<compile_context>
chip_gen: v6e
topology: v6e:2x2x1
jax: 0.10.0
libtpu: 0.0.40
codegen_flags: <defaults>
</compile_context>

<pallas_src>
import math

import jax
import jax.numpy as jnp
from jax import lax
from jax.experimental import pallas as pl
from jax.experimental.pallas import tpu as pltpu

# ---- model config (mirrors the PyTorch `args`) ----
D_PARTICIPANT = 8
D_TIME = 8
D_F0 = 16
D_TOTAL = D_PARTICIPANT + D_TIME + D_F0            # 32
NUM_PARTICIPANTS = 4
TIME_CUTOFF = 10.0
NUM_TIMES = int(round(round(TIME_CUTOFF, 1) * 10)) + 1   # dim_time(10.0) = 101
NUM_F0 = 64
NHEAD = 4
HEAD_DIM = D_TOTAL // NHEAD                         # 8
NLAYERS = 2
DIM_FF = 2048                                       # PyTorch TransformerEncoderLayer default
LONGEST_TIME = 36000.0
CONTEXT_LEN = 8
BATCH = 2
LN_EPS = 1e-5
TS = D_PARTICIPANT                                  # 8
TF = TS + D_TIME                                    # 16
LOGIT_DIM = NUM_PARTICIPANTS + NUM_TIMES + NUM_F0   # 169
LOGIT_PAD = 256                                     # lane-dense output width (2 x 128)
FF_CHUNK = 512                                      # FFN hidden-dim chunk (4 chunks/layer)

# version-tolerant handles (these names moved across JAX releases)
_MS = getattr(pltpu, "MemorySpace", None) or getattr(pltpu, "TPUMemorySpace", None)
_CP = getattr(pltpu, "CompilerParams", None) or getattr(pltpu, "TPUCompilerParams", None)


def _recip(x):
    if hasattr(pl, "reciprocal"):
        return pl.reciprocal(x, approx=True)
    return 1.0 / x


# -------------------- single fused Pallas kernel --------------------

def _fused_kernel(x_ref, wqkv_ref, bqkv_ref, wo_ref, bo_ref,
                  w1_ref, b1_ref, w2_ref, b2_ref,
                  g1_ref, be1_ref, g2_ref, be2_ref,
                  wlog_ref, o_ref):
    """Whole batch in one invocation: NLAYERS post-norm layers + tied-logit matmul."""
    B, S, D = x_ref.shape
    N = B * S
    x = x_ref[...].reshape(N, D)                     # f32 (B*S, D)

    # (S, S) causal additive mask, built once, broadcast over batch*heads.
    row = lax.broadcasted_iota(jnp.int32, (S, S), 0)
    col = lax.broadcasted_iota(jnp.int32, (S, S), 1)
    causal = jnp.where(col > row, jnp.float32(-1e9), jnp.float32(0.0))

    def layer_norm(y, g, b):
        mu = jnp.mean(y, axis=-1, keepdims=True)
        var = jnp.mean((y - mu) ** 2, axis=-1, keepdims=True)
        return (y - mu) * lax.rsqrt(var + LN_EPS) * g + b

    for l in range(NLAYERS):                          # static unroll (2 layers)
        # ---- multi-head self-attention (head-batched, bf16 MXU operands) ----
        # 1/sqrt(HEAD_DIM) is pre-folded into the Q columns of wqkv/bqkv host-side.
        qkv = jnp.dot(x.astype(jnp.bfloat16), wqkv_ref[l],
                      preferred_element_type=jnp.float32) + bqkv_ref[l]

        def to_heads(base):
            # merged-batch layout (NHEAD*B, S, HEAD_DIM); merged index = h*B + b
            parts = [qkv[:, base + h * HEAD_DIM: base + (h + 1) * HEAD_DIM]
                     for h in range(NHEAD)]
            stacked = jnp.concatenate(parts, axis=0)          # (NHEAD*N, HEAD_DIM)
            return stacked.reshape(NHEAD * B, S, HEAD_DIM).astype(jnp.bfloat16)

        q_bh = to_heads(0)
        k_bh = to_heads(D)
        v_bh = to_heads(2 * D)

        s = jnp.einsum('bqd,bkd->bqk', q_bh, k_bh,
                       preferred_element_type=jnp.float32) + causal[None]
        s = s - jnp.max(s, axis=-1, keepdims=True)
        p = jnp.exp(s)
        p = p * _recip(jnp.sum(p, axis=-1, keepdims=True))
        o_bh = jnp.einsum('bqk,bkd->bqd', p.astype(jnp.bfloat16), v_bh,
                          preferred_element_type=jnp.float32)

        # un-merge heads into one (N, D) slab (lane concat) -> single Wo matmul
        o_flat = o_bh.reshape(NHEAD * N, HEAD_DIM)
        attn = jnp.concatenate(
            [o_flat[h * N:(h + 1) * N, :] for h in range(NHEAD)], axis=-1)   # (N, D)
        attn_out = jnp.dot(attn.astype(jnp.bfloat16), wo_ref[l],
                           preferred_element_type=jnp.float32)

        x = layer_norm(x + attn_out + bo_ref[l], g1_ref[l], be1_ref[l])

        # ---- feed-forward (relu), chunked over DIM_FF to avoid vreg spills ----
        x_bf = x.astype(jnp.bfloat16)
        h2 = jnp.zeros((N, D), jnp.float32)
        for c in range(0, DIM_FF, FF_CHUNK):
            h1c = jnp.dot(x_bf, w1_ref[l, :, c:c + FF_CHUNK],
                          preferred_element_type=jnp.float32) + b1_ref[l, :, c:c + FF_CHUNK]
            h1c = jnp.maximum(h1c, 0.0).astype(jnp.bfloat16)
            h2 = h2 + jnp.dot(h1c, w2_ref[l, c:c + FF_CHUNK, :],
                              preferred_element_type=jnp.float32)

        x = layer_norm(x + h2 + b2_ref[l], g2_ref[l], be2_ref[l])

    # ---- fused weight-tied logits: one block-diagonal matmul, lane-dense store ----
    out = jnp.dot(x.astype(jnp.bfloat16), wlog_ref[...],
                  preferred_element_type=jnp.float32)           # (N, LOGIT_PAD)
    o_ref[...] = out.reshape(B, S, LOGIT_PAD)


def fused_transformer(x, prep):
    B, S, _ = x.shape
    kwargs = {}
    if _MS is not None:
        vspec = pl.BlockSpec(memory_space=_MS.VMEM)
        kwargs["in_specs"] = [vspec] * 14
        kwargs["out_specs"] = vspec
    if _CP is not None:
        kwargs["compiler_params"] = _CP()
    # TODO(synk): on v5e a grid=(NLAYERS,) layer pipeline (per-layer weight BlockSpecs,
    # x carried in VMEM scratch) would hide the ~0.6 MiB weight DMA; skipped here since
    # it is break-even on v6e and a loss on v7x.
    return pl.pallas_call(
        _fused_kernel,
        out_shape=jax.ShapeDtypeStruct((B, S, LOGIT_PAD), jnp.float32),
        **kwargs,
    )(x, prep["wqkv"], prep["bqkv"], prep["wo"], prep["bo"],
      prep["w1"], prep["b1"], prep["w2"], prep["b2"],
      prep["g1"], prep["be1"], prep["g2"], prep["be2"], prep["wlog"])


# -------------------- glue (embeddings / positional encoding) --------------------

def sin_encoding(time_back, d_emb, L, scale_base=10000.0):
    # matches sin_embedding/sin_encoding: interleaved sin/cos
    i = jnp.arange(d_emb // 2, dtype=jnp.float32)
    wk = (scale_base ** (-i / d_emb)) * d_emb / L              # (d_emb//2,)
    angle = time_back[..., None].astype(jnp.float32) * wk      # (B, S, d_emb//2)
    pe = jnp.stack([jnp.sin(angle), jnp.cos(angle)], axis=-1)
    return pe.reshape(time_back.shape + (d_emb,))


def forward(prep, participant, delta_time, f0, time_back):
    # eval-mode forward (dropout = identity; no last-token zeroing)
    emb_p = prep["emb_participant"][participant]    # (B, S, d_p)
    emb_t = prep["emb_time"][delta_time]            # (B, S, d_t)
    emb_f = prep["emb_f0"][f0]                      # (B, S, d_f)
    x = jnp.concatenate([emb_p, emb_t, emb_f], axis=-1)
    x = x + sin_encoding(time_back, D_TOTAL, LONGEST_TIME)

    logits = fused_transformer(x, prep)             # (B, S, LOGIT_PAD)
    pred_cat_logits = logits[..., :NUM_PARTICIPANTS]
    pred_time_logits = logits[..., NUM_PARTICIPANTS:NUM_PARTICIPANTS + NUM_TIMES]
    pred_f0_logits = logits[..., NUM_PARTICIPANTS + NUM_TIMES:LOGIT_DIM]
    return pred_cat_logits, pred_time_logits, pred_f0_logits


# -------------------- parameter init & host-side prep --------------------

def init_params(key):
    """PyTorch-layout parameters (weights as (out, in))."""
    ks = jax.random.split(key, 4)
    emb_p = jax.random.normal(ks[0], (NUM_PARTICIPANTS, D_PARTICIPANT), jnp.float32)
    emb_t = jax.random.normal(ks[1], (NUM_TIMES, D_TIME), jnp.float32)
    emb_f = jax.random.normal(ks[2], (NUM_F0, D_F0), jnp.float32)

    layers = []
    for lk in jax.random.split(ks[3], NLAYERS):
        w = jax.random.split(lk, 4)
        D = D_TOTAL
        wqkv = jax.random.normal(w[0], (3 * D, D), jnp.float32) / math.sqrt(D)
        bqkv = jnp.zeros((1, 3 * D), jnp.float32)
        wo = jax.random.normal(w[1], (D, D), jnp.float32) / math.sqrt(D)
        bo = jnp.zeros((1, D), jnp.float32)
        w1 = jax.random.normal(w[2], (DIM_FF, D), jnp.float32) / math.sqrt(D)
        b1 = jnp.zeros((1, DIM_FF), jnp.float32)
        w2 = jax.random.normal(w[3], (D, DIM_FF), jnp.float32) / math.sqrt(DIM_FF)
        b2 = jnp.zeros((1, D), jnp.float32)
        g1 = jnp.ones((1, D), jnp.float32); be1 = jnp.zeros((1, D), jnp.float32)
        g2 = jnp.ones((1, D), jnp.float32); be2 = jnp.zeros((1, D), jnp.float32)
        layers.append((wqkv, bqkv, wo, bo, w1, b1, w2, b2, g1, be1, g2, be2))

    # TODO(synk): pad_embedding from __init__ is never used in forward(); omitted.
    return dict(emb_participant=emb_p, emb_time=emb_t, emb_f0=emb_f, layers=tuple(layers))


def prepare_fused_params(params):
    """Pre-transpose, pre-scale, stack and bf16-cast weights; build block-diag logits W."""
    layers = params["layers"]
    stk = lambda xs: jnp.stack(xs, axis=0)
    scale = 1.0 / math.sqrt(HEAD_DIM)

    wqkv_l, bqkv_l = [], []
    for lp in layers:
        wt = lp[0].T                                   # (D, 3D)
        bt = lp[1].reshape(1, -1)                      # (1, 3D)
        # fold the 1/sqrt(head_dim) attention scale into the Q block
        wt = jnp.concatenate([wt[:, :D_TOTAL] * scale, wt[:, D_TOTAL:]], axis=-1)
        bt = jnp.concatenate([bt[:, :D_TOTAL] * scale, bt[:, D_TOTAL:]], axis=-1)
        wqkv_l.append(wt)
        bqkv_l.append(bt)

    wqkv = stk(wqkv_l).astype(jnp.bfloat16)                      # (L, D, 3D) bf16
    bqkv = stk(bqkv_l)                                           # (L, 1, 3D) f32
    wo = stk([lp[2].T for lp in layers]).astype(jnp.bfloat16)    # (L, D, D) bf16
    bo = stk([lp[3].reshape(1, -1) for lp in layers])            # (L, 1, D)
    w1 = stk([lp[4].T for lp in layers]).astype(jnp.bfloat16)    # (L, D, DIM_FF) bf16
    b1 = stk([lp[5].reshape(1, -1) for lp in layers])            # (L, 1, DIM_FF)
    w2 = stk([lp[6].T for lp in layers]).astype(jnp.bfloat16)    # (L, DIM_FF, D) bf16
    b2 = stk([lp[7].reshape(1, -1) for lp in layers])            # (L, 1, D)
    g1 = stk([lp[8].reshape(1, -1) for lp in layers])
    be1 = stk([lp[9].reshape(1, -1) for lp in layers])
    g2 = stk([lp[10].reshape(1, -1) for lp in layers])
    be2 = stk([lp[11].reshape(1, -1) for lp in layers])

    # block-diagonal, exact-zero padded tied-logits weight: (D, LOGIT_PAD)
    assert LOGIT_PAD % 128 == 0 and LOGIT_DIM <= LOGIT_PAD
    assert TS == D_PARTICIPANT and TF == TS + D_TIME and TF + D_F0 == D_TOTAL
    assert NUM_PARTICIPANTS + NUM_TIMES + NUM_F0 == LOGIT_DIM
    wlog = jnp.zeros((D_TOTAL, LOGIT_PAD), jnp.float32)
    wlog = wlog.at[:TS, :NUM_PARTICIPANTS].set(params["emb_participant"].T)
    wlog = wlog.at[TS:TF, NUM_PARTICIPANTS:NUM_PARTICIPANTS + NUM_TIMES].set(params["emb_time"].T)
    wlog = wlog.at[TF:, NUM_PARTICIPANTS + NUM_TIMES:LOGIT_DIM].set(params["emb_f0"].T)
    wlog = wlog.astype(jnp.bfloat16)

    return dict(emb_participant=params["emb_participant"],
                emb_time=params["emb_time"], emb_f0=params["emb_f0"],
                wqkv=wqkv, bqkv=bqkv, wo=wo, bo=bo,
                w1=w1, b1=b1, w2=w2, b2=b2,
                g1=g1, be1=be1, g2=g2, be2=be2, wlog=wlog)


if __name__ == "__main__":
    key = jax.random.PRNGKey(0)
    kp, kd, kf, kt, kw = jax.random.split(key, 5)

    params = init_params(kw)
    prep = prepare_fused_params(params)   # host/XLA one-time weight layout prep

    participant = jax.random.randint(kp, (BATCH, CONTEXT_LEN), 0, NUM_PARTICIPANTS, dtype=jnp.int32)
    delta_time = jax.random.randint(kd, (BATCH, CONTEXT_LEN), 0, NUM_TIMES, dtype=jnp.int32)
    f0 = jax.random.randint(kf, (BATCH, CONTEXT_LEN), 0, NUM_F0, dtype=jnp.int32)
    time_back = jax.random.uniform(kt, (BATCH, CONTEXT_LEN), jnp.float32, 0.0, 3600.0)

    fwd = jax.jit(forward)
    pred_cat_logits, pred_time_logits, pred_f0_logits = fwd(
        prep, participant, delta_time, f0, time_back)
    jax.block_until_ready((pred_cat_logits, pred_time_logits, pred_f0_logits))

    assert pred_cat_logits.shape == (BATCH, CONTEXT_LEN, NUM_PARTICIPANTS)
    assert pred_time_logits.shape == (BATCH, CONTEXT_LEN, NUM_TIMES)
    assert pred_f0_logits.shape == (BATCH, CONTEXT_LEN, NUM_F0)
    assert all(bool(jnp.all(jnp.isfinite(o))) for o in
               (pred_cat_logits, pred_time_logits, pred_f0_logits))

    print("KERNEL_OK")
</pallas_src>

<mosaic_0001>
module attributes {stable_mosaic.version = 11 : i64} {
  func.func @_fused_kernel(%arg0: memref<2x8x32xf32, #tpu.memory_space<vmem>>, %arg1: memref<2x32x96xbf16, #tpu.memory_space<vmem>>, %arg2: memref<2x1x96xf32, #tpu.memory_space<vmem>>, %arg3: memref<2x32x32xbf16, #tpu.memory_space<vmem>>, %arg4: memref<2x1x32xf32, #tpu.memory_space<vmem>>, %arg5: memref<2x32x2048xbf16, #tpu.memory_space<vmem>>, %arg6: memref<2x1x2048xf32, #tpu.memory_space<vmem>>, %arg7: memref<2x2048x32xbf16, #tpu.memory_space<vmem>>, %arg8: memref<2x1x32xf32, #tpu.memory_space<vmem>>, %arg9: memref<2x1x32xf32, #tpu.memory_space<vmem>>, %arg10: memref<2x1x32xf32, #tpu.memory_space<vmem>>, %arg11: memref<2x1x32xf32, #tpu.memory_space<vmem>>, %arg12: memref<2x1x32xf32, #tpu.memory_space<vmem>>, %arg13: memref<32x256xbf16, #tpu.memory_space<vmem>>, %arg14: memref<2x8x256xf32, #tpu.memory_space<vmem>>) attributes {dimension_semantics = [], scalar_prefetch = 0 : i64, scratch_operands = 0 : i64, tpu.core_type = #tpu.core_type<tc>} {
    %c0 = arith.constant 0 : index
    %c0_0 = arith.constant 0 : index
    %c0_1 = arith.constant 0 : index
    %0 = vector.load %arg0[%c0, %c0_0, %c0_1] : memref<2x8x32xf32, #tpu.memory_space<vmem>>, vector<2x8x32xf32>
    %1 = vector.shape_cast %0 : vector<2x8x32xf32> to vector<16x32xf32>
    %2 = tpu.iota {dimensions = array<i32: 0>} : vector<8x8xi32>
    %3 = tpu.iota {dimensions = array<i32: 1>} : vector<8x8xi32>
    %4 = arith.cmpi sgt, %3, %2 : vector<8x8xi32>
    %cst = arith.constant -1.000000e+09 : f32
    %cst_2 = arith.constant 0.000000e+00 : f32
    %5 = vector.broadcast %cst : f32 to vector<8x8xf32>
    %6 = vector.broadcast %cst_2 : f32 to vector<8x8xf32>
    %7 = arith.select %4, %5, %6 : vector<8x8xi1>, vector<8x8xf32>
    %8 = arith.truncf %1 : vector<16x32xf32> to vector<16x32xbf16>
    %c0_3 = arith.constant 0 : index
    %c0_4 = arith.constant 0 : index
    %c0_5 = arith.constant 0 : index
    %9 = vector.load %arg1[%c0_3, %c0_4, %c0_5] : memref<2x32x96xbf16, #tpu.memory_space<vmem>>, vector<1x32x96xbf16>
    %10 = vector.shape_cast %9 : vector<1x32x96xbf16> to vector<32x96xbf16>
    %cst_6 = arith.constant dense<0.000000e+00> : vector<16x96xf32>
    %11 = tpu.matmul %8, %10, %cst_6 {dimension_numbers = #tpu.dot_dimension_numbers<[1], [0], [0], [1], [0, 0, 1, 1], [], []>} : vector<16x32xbf16>, vector<32x96xbf16>, vector<16x96xf32> -> vector<16x96xf32>
    %c0_7 = arith.constant 0 : index
    %c0_8 = arith.constant 0 : index
    %c0_9 = arith.constant 0 : index
    %12 = vector.load %arg2[%c0_7, %c0_8, %c0_9] : memref<2x1x96xf32, #tpu.memory_space<vmem>>, vector<1x1x96xf32>
    %13 = vector.shape_cast %12 : vector<1x1x96xf32> to vector<1x96xf32>
    %14 = vector.broadcast %13 : vector<1x96xf32> to vector<16x96xf32>
    %15 = arith.addf %11, %14 : vector<16x96xf32>
    %16 = vector.extract_strided_slice %15 {offsets = [0, 0], sizes = [16, 8], strides = [1, 1]} : vector<16x96xf32> to vector<16x8xf32>
    %17 = vector.extract_strided_slice %15 {offsets = [0, 8], sizes = [16, 8], strides = [1, 1]} : vector<16x96xf32> to vector<16x8xf32>
    %18 = vector.extract_strided_slice %15 {offsets = [0, 16], sizes = [16, 8], strides = [1, 1]} : vector<16x96xf32> to vector<16x8xf32>
    %19 = vector.extract_strided_slice %15 {offsets = [0, 24], sizes = [16, 8], strides = [1, 1]} : vector<16x96xf32> to vector<16x8xf32>
    %20 = tpu.concatenate %16, %17, %18, %19 in 0 : vector<16x8xf32>, vector<16x8xf32>, vector<16x8xf32>, vector<16x8xf32> -> vector<64x8xf32>
    %21 = vector.shape_cast %20 : vector<64x8xf32> to vector<8x8x8xf32>
    %22 = arith.truncf %21 : vector<8x8x8xf32> to vector<8x8x8xbf16>
    %23 = vector.extract_strided_slice %15 {offsets = [0, 32], sizes = [16, 8], strides = [1, 1]} : vector<16x96xf32> to vector<16x8xf32>
    %24 = vector.extract_strided_slice %15 {offsets = [0, 40], sizes = [16, 8], strides = [1, 1]} : vector<16x96xf32> to vector<16x8xf32>
    %25 = vector.extract_strided_slice %15 {offsets = [0, 48], sizes = [16, 8], strides = [1, 1]} : vector<16x96xf32> to vector<16x8xf32>
    %26 = vector.extract_strided_slice %15 {offsets = [0, 56], sizes = [16, 8], strides = [1, 1]} : vector<16x96xf32> to vector<16x8xf32>
    %27 = tpu.concatenate %23, %24, %25, %26 in 0 : vector<16x8xf32>, vector<16x8xf32>, vector<16x8xf32>, vector<16x8xf32> -> vector<64x8xf32>
    %28 = vector.shape_cast %27 : vector<64x8xf32> to vector<8x8x8xf32>
    %29 = arith.truncf %28 : vector<8x8x8xf32> to vector<8x8x8xbf16>
    %30 = vector.extract_strided_slice %15 {offsets = [0, 64], sizes = [16, 8], strides = [1, 1]} : vector<16x96xf32> to vector<16x8xf32>
    %31 = vector.extract_strided_slice %15 {offsets = [0, 72], sizes = [16, 8], strides = [1, 1]} : vector<16x96xf32> to vector<16x8xf32>
    %32 = vector.extract_strided_slice %15 {offsets = [0, 80], sizes = [16, 8], strides = [1, 1]} : vector<16x96xf32> to vector<16x8xf32>
    %33 = vector.extract_strided_slice %15 {offsets = [0, 88], sizes = [16, 8], strides = [1, 1]} : vector<16x96xf32> to vector<16x8xf32>
    %34 = tpu.concatenate %30, %31, %32, %33 in 0 : vector<16x8xf32>, vector<16x8xf32>, vector<16x8xf32>, vector<16x8xf32> -> vector<64x8xf32>
    %35 = vector.shape_cast %34 : vector<64x8xf32> to vector<8x8x8xf32>
    %36 = arith.truncf %35 : vector<8x8x8xf32> to vector<8x8x8xbf16>
    "tpu.trace_start"() <{level = 10 : i32, message = "bqd,bkd->bqk"}> : () -> ()
    %cst_10 = arith.constant dense<0.000000e+00> : vector<8x8x8xf32>
    %37 = tpu.matmul %22, %29, %cst_10 {dimension_numbers = #tpu.dot_dimension_numbers<[2], [2], [1], [1], [0, 0, 0, 1, 1, 1], [0], [0]>} : vector<8x8x8xbf16>, vector<8x8x8xbf16>, vector<8x8x8xf32> -> vector<8x8x8xf32>
    "tpu.trace_stop"() : () -> ()
    %38 = vector.shape_cast %7 : vector<8x8xf32> to vector<1x8x8xf32>
    %39 = vector.broadcast %38 : vector<1x8x8xf32> to vector<8x8x8xf32>
    %40 = arith.addf %37, %39 : vector<8x8x8xf32>
    %cst_11 = arith.constant dense<0xFF800000> : vector<8x8xf32>
    %41 = vector.multi_reduction <maximumf>, %40, %cst_11 [2] : vector<8x8x8xf32> to vector<8x8xf32>
    %42 = vector.shape_cast %41 : vector<8x8xf32> to vector<8x8x1xf32>
    %43 = vector.broadcast %42 : vector<8x8x1xf32> to vector<8x8x8xf32>
    %44 = arith.subf %40, %43 : vector<8x8x8xf32>
    %45 = math.exp %44 : vector<8x8x8xf32>
    %cst_12 = arith.constant dense<0.000000e+00> : vector<8x8xf32>
    %46 = vector.multi_reduction <add>, %45, %cst_12 [2] : vector<8x8x8xf32> to vector<8x8xf32>
    %47 = vector.shape_cast %46 : vector<8x8xf32> to vector<8x8x1xf32>
    %48 = tpu.reciprocal %47 {approx = true} : vector<8x8x1xf32> -> vector<8x8x1xf32>
    %49 = vector.broadcast %48 : vector<8x8x1xf32> to vector<8x8x8xf32>
    %50 = arith.mulf %45, %49 : vector<8x8x8xf32>
    %51 = arith.truncf %50 : vector<8x8x8xf32> to vector<8x8x8xbf16>
    "tpu.trace_start"() <{level = 10 : i32, message = "bqk,bkd->bqd"}> : () -> ()
    %cst_13 = arith.constant dense<0.000000e+00> : vector<8x8x8xf32>
    %52 = tpu.matmul %51, %36, %cst_13 {dimension_numbers = #tpu.dot_dimension_numbers<[2], [1], [1], [2], [0, 0, 0, 1, 1, 2], [0], [0]>} : vector<8x8x8xbf16>, vector<8x8x8xbf16>, vector<8x8x8xf32> -> vector<8x8x8xf32>
    "tpu.trace_stop"() : () -> ()
    %53 = vector.shape_cast %52 : vector<8x8x8xf32> to vector<64x8xf32>
    %54 = vector.extract_strided_slice %53 {offsets = [0, 0], sizes = [16, 8], strides = [1, 1]} : vector<64x8xf32> to vector<16x8xf32>
    %55 = vector.extract_strided_slice %53 {offsets = [16, 0], sizes = [16, 8], strides = [1, 1]} : vector<64x8xf32> to vector<16x8xf32>
    %56 = vector.extract_strided_slice %53 {offsets = [32, 0], sizes = [16, 8], strides = [1, 1]} : vector<64x8xf32> to vector<16x8xf32>
    %57 = vector.extract_strided_slice %53 {offsets = [48, 0], sizes = [16, 8], strides = [1, 1]} : vector<64x8xf32> to vector<16x8xf32>
    %58 = tpu.concatenate %54, %55, %56, %57 in 1 : vector<16x8xf32>, vector<16x8xf32>, vector<16x8xf32>, vector<16x8xf32> -> vector<16x32xf32>
    %59 = arith.truncf %58 : vector<16x32xf32> to vector<16x32xbf16>
    %c0_14 = arith.constant 0 : index
    %c0_15 = arith.constant 0 : index
    %c0_16 = arith.constant 0 : index
    %60 = vector.load %arg3[%c0_14, %c0_15, %c0_16] : memref<2x32x32xbf16, #tpu.memory_space<vmem>>, vector<1x32x32xbf16>
    %61 = vector.shape_cast %60 : vector<1x32x32xbf16> to vector<32x32xbf16>
    %cst_17 = arith.constant dense<0.000000e+00> : vector<16x32xf32>
    %62 = tpu.matmul %59, %61, %cst_17 {dimension_numbers = #tpu.dot_dimension_numbers<[1], [0], [0], [1], [0, 0, 1, 1], [], []>} : vector<16x32xbf16>, vector<32x32xbf16>, vector<16x32xf32> -> vector<16x32xf32>
    %63 = arith.addf %1, %62 : vector<16x32xf32>
    %c0_18 = arith.constant 0 : index
    %c0_19 = arith.constant 0 : index
    %c0_20 = arith.constant 0 : index
    %64 = vector.load %arg4[%c0_18, %c0_19, %c0_20] : memref<2x1x32xf32, #tpu.memory_space<vmem>>, vector<1x1x32xf32>
    %65 = vector.shape_cast %64 : vector<1x1x32xf32> to vector<1x32xf32>
    %66 = vector.broadcast %65 : vector<1x32xf32> to vector<16x32xf32>
    %67 = arith.addf %63, %66 : vector<16x32xf32>
    %c0_21 = arith.constant 0 : index
    %c0_22 = arith.constant 0 : index
    %c0_23 = arith.constant 0 : index
    %68 = vector.load %arg9[%c0_21, %c0_22, %c0_23] : memref<2x1x32xf32, #tpu.memory_space<vmem>>, vector<1x1x32xf32>
    %69 = vector.shape_cast %68 : vector<1x1x32xf32> to vector<1x32xf32>
    %c0_24 = arith.constant 0 : index
    %c0_25 = arith.constant 0 : index
    %c0_26 = arith.constant 0 : index
    %70 = vector.load %arg10[%c0_24, %c0_25, %c0_26] : memref<2x1x32xf32, #tpu.memory_space<vmem>>, vector<1x1x32xf32>
    %71 = vector.shape_cast %70 : vector<1x1x32xf32> to vector<1x32xf32>
    %cst_27 = arith.constant dense<0.000000e+00> : vector<16xf32>
    %72 = vector.multi_reduction <add>, %67, %cst_27 [1] : vector<16x32xf32> to vector<16xf32>
    %73 = vector.shape_cast %72 : vector<16xf32> to vector<16x1xf32>
    %cst_28 = arith.constant 3.200000e+01 : f32
    %74 = vector.broadcast %cst_28 : f32 to vector<16x1xf32>
    %75 = arith.divf %73, %74 : vector<16x1xf32>
    %76 = vector.broadcast %75 : vector<16x1xf32> to vector<16x32xf32>
    %77 = arith.subf %67, %76 : vector<16x32xf32>
    %78 = arith.mulf %77, %77 : vector<16x32xf32>
    %cst_29 = arith.constant dense<0.000000e+00> : vector<16xf32>
    %79 = vector.multi_reduction <add>, %78, %cst_29 [1] : vector<16x32xf32> to vector<16xf32>
    %80 = vector.shape_cast %79 : vector<16xf32> to vector<16x1xf32>
    %cst_30 = arith.constant 3.200000e+01 : f32
    %81 = vector.broadcast %cst_30 : f32 to vector<16x1xf32>
    %82 = arith.divf %80, %81 : vector<16x1xf32>
    %83 = vector.broadcast %75 : vector<16x1xf32> to vector<16x32xf32>
    %84 = arith.subf %67, %83 : vector<16x32xf32>
    %cst_31 = arith.constant 9.99999974E-6 : f32
    %85 = vector.broadcast %cst_31 : f32 to vector<16x1xf32>
    %86 = arith.addf %82, %85 : vector<16x1xf32>
    %87 = math.rsqrt %86 : vector<16x1xf32>
    %88 = vector.broadcast %87 : vector<16x1xf32> to vector<16x32xf32>
    %89 = arith.mulf %84, %88 : vector<16x32xf32>
    %90 = vector.broadcast %69 : vector<1x32xf32> to vector<16x32xf32>
    %91 = arith.mulf %89, %90 : vector<16x32xf32>
    %92 = vector.broadcast %71 : vector<1x32xf32> to vector<16x32xf32>
    %93 = arith.addf %91, %92 : vector<16x32xf32>
    %94 = arith.truncf %93 : vector<16x32xf32> to vector<16x32xbf16>
    %cst_32 = arith.constant 0.000000e+00 : f32
    %95 = vector.broadcast %cst_32 : f32 to vector<16x32xf32>
    %c0_33 = arith.constant 0 : index
    %c0_34 = arith.constant 0 : index
    %c0_35 = arith.constant 0 : index
    %96 = vector.load %arg5[%c0_33, %c0_34, %c0_35] : memref<2x32x2048xbf16, #tpu.memory_space<vmem>>, vector<1x32x512xbf16>
    %97 = vector.shape_cast %96 : vector<1x32x512xbf16> to vector<32x512xbf16>
    %cst_36 = arith.constant dense<0.000000e+00> : vector<16x512xf32>
    %98 = tpu.matmul %94, %97, %cst_36 {dimension_numbers = #tpu.dot_dimension_numbers<[1], [0], [0], [1], [0, 0, 1, 1], [], []>} : vector<16x32xbf16>, vector<32x512xbf16>, vector<16x512xf32> -> vector<16x512xf32>
    %c0_37 = arith.constant 0 : index
    %c0_38 = arith.constant 0 : index
    %c0_39 = arith.constant 0 : index
    %99 = vector.load %arg6[%c0_37, %c0_38, %c0_39] : memref<2x1x2048xf32, #tpu.memory_space<vmem>>, vector<1x1x512xf32>
    %100 = vector.shape_cast %99 : vector<1x1x512xf32> to vector<1x512xf32>
    %101 = vector.broadcast %100 : vector<1x512xf32> to vector<16x512xf32>
    %102 = arith.addf %98, %101 : vector<16x512xf32>
    %cst_40 = arith.constant 0.000000e+00 : f32
    %103 = vector.broadcast %cst_40 : f32 to vector<16x512xf32>
    %104 = arith.maximumf %102, %103 : vector<16x512xf32>
    %105 = arith.truncf %104 : vector<16x512xf32> to vector<16x512xbf16>
    %c0_41 = arith.constant 0 : index
    %c0_42 = arith.constant 0 : index
    %c0_43 = arith.constant 0 : index
    %106 = vector.load %arg7[%c0_41, %c0_42, %c0_43] : memref<2x2048x32xbf16, #tpu.memory_space<vmem>>, vector<1x512x32xbf16>
    %107 = vector.shape_cast %106 : vector<1x512x32xbf16> to vector<512x32xbf16>
    %cst_44 = arith.constant dense<0.000000e+00> : vector<16x32xf32>
    %108 = tpu.matmul %105, %107, %cst_44 {dimension_numbers = #tpu.dot_dimension_numbers<[1], [0], [0], [1], [0, 0, 1, 1], [], []>} : vector<16x512xbf16>, vector<512x32xbf16>, vector<16x32xf32> -> vector<16x32xf32>
    %109 = arith.addf %95, %108 : vector<16x32xf32>
    %c0_45 = arith.constant 0 : index
    %c0_46 = arith.constant 0 : index
    %c512 = arith.constant 512 : index
    %110 = vector.load %arg5[%c0_45, %c0_46, %c512] : memref<2x32x2048xbf16, #tpu.memory_space<vmem>>, vector<1x32x512xbf16>
    %111 = vector.shape_cast %110 : vector<1x32x512xbf16> to vector<32x512xbf16>
    %cst_47 = arith.constant dense<0.000000e+00> : vector<16x512xf32>
    %112 = tpu.matmul %94, %111, %cst_47 {dimension_numbers = #tpu.dot_dimension_numbers<[1], [0], [0], [1], [0, 0, 1, 1], [], []>} : vector<16x32xbf16>, vector<32x512xbf16>, vector<16x512xf32> -> vector<16x512xf32>
    %c0_48 = arith.constant 0 : index
    %c0_49 = arith.constant 0 : index
    %c512_50 = arith.constant 512 : index
    %113 = vector.load %arg6[%c0_48, %c0_49, %c512_50] : memref<2x1x2048xf32, #tpu.memory_space<vmem>>, vector<1x1x512xf32>
    %114 = vector.shape_cast %113 : vector<1x1x512xf32> to vector<1x512xf32>
    %115 = vector.broadcast %114 : vector<1x512xf32> to vector<16x512xf32>
    %116 = arith.addf %112, %115 : vector<16x512xf32>
    %cst_51 = arith.constant 0.000000e+00 : f32
    %117 = vector.broadcast %cst_51 : f32 to vector<16x512xf32>
    %118 = arith.maximumf %116, %117 : vector<16x512xf32>
    %119 = arith.truncf %118 : vector<16x512xf32> to vector<16x512xbf16>
    %c0_52 = arith.constant 0 : index
    %c512_53 = arith.constant 512 : index
    %c0_54 = arith.constant 0 : index
    %120 = vector.load %arg7[%c0_52, %c512_53, %c0_54] : memref<2x2048x32xbf16, #tpu.memory_space<vmem>>, vector<1x512x32xbf16>
    %121 = vector.shape_cast %120 : vector<1x512x32xbf16> to vector<512x32xbf16>
    %cst_55 = arith.constant dense<0.000000e+00> : vector<16x32xf32>
    %122 = tpu.matmul %119, %121, %cst_55 {dimension_numbers = #tpu.dot_dimension_numbers<[1], [0], [0], [1], [0, 0, 1, 1], [], []>} : vector<16x512xbf16>, vector<512x32xbf16>, vector<16x32xf32> -> vector<16x32xf32>
    %123 = arith.addf %109, %122 : vector<16x32xf32>
    %c0_56 = arith.constant 0 : index
    %c0_57 = arith.constant 0 : index
    %c1024 = arith.constant 1024 : index
    %124 = vector.load %arg5[%c0_56, %c0_57, %c1024] : memref<2x32x2048xbf16, #tpu.memory_space<vmem>>, vector<1x32x512xbf16>
    %125 = vector.shape_cast %124 : vector<1x32x512xbf16> to vector<32x512xbf16>
    %cst_58 = arith.constant dense<0.000000e+00> : vector<16x512xf32>
    %126 = tpu.matmul %94, %125, %cst_58 {dimension_numbers = #tpu.dot_dimension_numbers<[1], [0], [0], [1], [0, 0, 1, 1], [], []>} : vector<16x32xbf16>, vector<32x512xbf16>, vector<16x512xf32> -> vector<16x512xf32>
    %c0_59 = arith.constant 0 : index
    %c0_60 = arith.constant 0 : index
    %c1024_61 = arith.constant 1024 : index
    %127 = vector.load %arg6[%c0_59, %c0_60, %c1024_61] : memref<2x1x2048xf32, #tpu.memory_space<vmem>>, vector<1x1x512xf32>
    %128 = vector.shape_cast %127 : vector<1x1x512xf32> to vector<1x512xf32>
    %129 = vector.broadcast %128 : vector<1x512xf32> to vector<16x512xf32>
    %130 = arith.addf %126, %129 : vector<16x512xf32>
    %cst_62 = arith.constant 0.000000e+00 : f32
    %131 = vector.broadcast %cst_62 : f32 to vector<16x512xf32>
    %132 = arith.maximumf %130, %131 : vector<16x512xf32>
    %133 = arith.truncf %132 : vector<16x512xf32> to vector<16x512xbf16>
    %c0_63 = arith.constant 0 : index
    %c1024_64 = arith.constant 1024 : index
    %c0_65 = arith.constant 0 : index
    %134 = vector.load %arg7[%c0_63, %c1024_64, %c0_65] : memref<2x2048x32xbf16, #tpu.memory_space<vmem>>, vector<1x512x32xbf16>
    %135 = vector.shape_cast %134 : vector<1x512x32xbf16> to vector<512x32xbf16>
    %cst_66 = arith.constant dense<0.000000e+00> : vector<16x32xf32>
    %136 = tpu.matmul %133, %135, %cst_66 {dimension_numbers = #tpu.dot_dimension_numbers<[1], [0], [0], [1], [0, 0, 1, 1], [], []>} : vector<16x512xbf16>, vector<512x32xbf16>, vector<16x32xf32> -> vector<16x32xf32>
    %137 = arith.addf %123, %136 : vector<16x32xf32>
    %c0_67 = arith.constant 0 : index
    %c0_68 = arith.constant 0 : index
    %c1536 = arith.constant 1536 : index
    %138 = vector.load %arg5[%c0_67, %c0_68, %c1536] : memref<2x32x2048xbf16, #tpu.memory_space<vmem>>, vector<1x32x512xbf16>
    %139 = vector.shape_cast %138 : vector<1x32x512xbf16> to vector<32x512xbf16>
    %cst_69 = arith.constant dense<0.000000e+00> : vector<16x512xf32>
    %140 = tpu.matmul %94, %139, %cst_69 {dimension_numbers = #tpu.dot_dimension_numbers<[1], [0], [0], [1], [0, 0, 1, 1], [], []>} : vector<16x32xbf16>, vector<32x512xbf16>, vector<16x512xf32> -> vector<16x512xf32>
    %c0_70 = arith.constant 0 : index
    %c0_71 = arith.constant 0 : index
    %c1536_72 = arith.constant 1536 : index
    %141 = vector.load %arg6[%c0_70, %c0_71, %c1536_72] : memref<2x1x2048xf32, #tpu.memory_space<vmem>>, vector<1x1x512xf32>
    %142 = vector.shape_cast %141 : vector<1x1x512xf32> to vector<1x512xf32>
    %143 = vector.broadcast %142 : vector<1x512xf32> to vector<16x512xf32>
    %144 = arith.addf %140, %143 : vector<16x512xf32>
    %cst_73 = arith.constant 0.000000e+00 : f32
    %145 = vector.broadcast %cst_73 : f32 to vector<16x512xf32>
    %146 = arith.maximumf %144, %145 : vector<16x512xf32>
    %147 = arith.truncf %146 : vector<16x512xf32> to vector<16x512xbf16>
    %c0_74 = arith.constant 0 : index
    %c1536_75 = arith.constant 1536 : index
    %c0_76 = arith.constant 0 : index
    %148 = vector.load %arg7[%c0_74, %c1536_75, %c0_76] : memref<2x2048x32xbf16, #tpu.memory_space<vmem>>, vector<1x512x32xbf16>
    %149 = vector.shape_cast %148 : vector<1x512x32xbf16> to vector<512x32xbf16>
    %cst_77 = arith.constant dense<0.000000e+00> : vector<16x32xf32>
    %150 = tpu.matmul %147, %149, %cst_77 {dimension_numbers = #tpu.dot_dimension_numbers<[1], [0], [0], [1], [0, 0, 1, 1], [], []>} : vector<16x512xbf16>, vector<512x32xbf16>, vector<16x32xf32> -> vector<16x32xf32>
    %151 = arith.addf %137, %150 : vector<16x32xf32>
    %152 = arith.addf %93, %151 : vector<16x32xf32>
    %c0_78 = arith.constant 0 : index
    %c0_79 = arith.constant 0 : index
    %c0_80 = arith.constant 0 : index
    %153 = vector.load %arg8[%c0_78, %c0_79, %c0_80] : memref<2x1x32xf32, #tpu.memory_space<vmem>>, vector<1x1x32xf32>
    %154 = vector.shape_cast %153 : vector<1x1x32xf32> to vector<1x32xf32>
    %155 = vector.broadcast %154 : vector<1x32xf32> to vector<16x32xf32>
    %156 = arith.addf %152, %155 : vector<16x32xf32>
    %c0_81 = arith.constant 0 : index
    %c0_82 = arith.constant 0 : index
    %c0_83 = arith.constant 0 : index
    %157 = vector.load %arg11[%c0_81, %c0_82, %c0_83] : memref<2x1x32xf32, #tpu.memory_space<vmem>>, vector<1x1x32xf32>
    %158 = vector.shape_cast %157 : vector<1x1x32xf32> to vector<1x32xf32>
    %c0_84 = arith.constant 0 : index
    %c0_85 = arith.constant 0 : index
    %c0_86 = arith.constant 0 : index
    %159 = vector.load %arg12[%c0_84, %c0_85, %c0_86] : memref<2x1x32xf32, #tpu.memory_space<vmem>>, vector<1x1x32xf32>
    %160 = vector.shape_cast %159 : vector<1x1x32xf32> to vector<1x32xf32>
    %cst_87 = arith.constant dense<0.000000e+00> : vector<16xf32>
    %161 = vector.multi_reduction <add>, %156, %cst_87 [1] : vector<16x32xf32> to vector<16xf32>
    %162 = vector.shape_cast %161 : vector<16xf32> to vector<16x1xf32>
    %cst_88 = arith.constant 3.200000e+01 : f32
    %163 = vector.broadcast %cst_88 : f32 to vector<16x1xf32>
    %164 = arith.divf %162, %163 : vector<16x1xf32>
    %165 = vector.broadcast %164 : vector<16x1xf32> to vector<16x32xf32>
    %166 = arith.subf %156, %165 : vector<16x32xf32>
    %167 = arith.mulf %166, %166 : vector<16x32xf32>
    %cst_89 = arith.constant dense<0.000000e+00> : vector<16xf32>
    %168 = vector.multi_reduction <add>, %167, %cst_89 [1] : vector<16x32xf32> to vector<16xf32>
    %169 = vector.shape_cast %168 : vector<16xf32> to vector<16x1xf32>
    %cst_90 = arith.constant 3.200000e+01 : f32
    %170 = vector.broadcast %cst_90 : f32 to vector<16x1xf32>
    %171 = arith.divf %169, %170 : vector<16x1xf32>
    %172 = vector.broadcast %164 : vector<16x1xf32> to vector<16x32xf32>
    %173 = arith.subf %156, %172 : vector<16x32xf32>
    %cst_91 = arith.constant 9.99999974E-6 : f32
    %174 = vector.broadcast %cst_91 : f32 to vector<16x1xf32>
    %175 = arith.addf %171, %174 : vector<16x1xf32>
    %176 = math.rsqrt %175 : vector<16x1xf32>
    %177 = vector.broadcast %176 : vector<16x1xf32> to vector<16x32xf32>
    %178 = arith.mulf %173, %177 : vector<16x32xf32>
    %179 = vector.broadcast %158 : vector<1x32xf32> to vector<16x32xf32>
    %180 = arith.mulf %178, %179 : vector<16x32xf32>
    %181 = vector.broadcast %160 : vector<1x32xf32> to vector<16x32xf32>
    %182 = arith.addf %180, %181 : vector<16x32xf32>
    %183 = arith.truncf %182 : vector<16x32xf32> to vector<16x32xbf16>
    %c1 = arith.constant 1 : index
    %c0_92 = arith.constant 0 : index
    %c0_93 = arith.constant 0 : index
    %184 = vector.load %arg1[%c1, %c0_92, %c0_93] : memref<2x32x96xbf16, #tpu.memory_space<vmem>>, vector<1x32x96xbf16>
    %185 = vector.shape_cast %184 : vector<1x32x96xbf16> to vector<32x96xbf16>
    %cst_94 = arith.constant dense<0.000000e+00> : vector<16x96xf32>
    %186 = tpu.matmul %183, %185, %cst_94 {dimension_numbers = #tpu.dot_dimension_numbers<[1], [0], [0], [1], [0, 0, 1, 1], [], []>} : vector<16x32xbf16>, vector<32x96xbf16>, vector<16x96xf32> -> vector<16x96xf32>
    %c1_95 = arith.constant 1 : index
    %c0_96 = arith.constant 0 : index
    %c0_97 = arith.constant 0 : index
    %187 = vector.load %arg2[%c1_95, %c0_96, %c0_97] : memref<2x1x96xf32, #tpu.memory_space<vmem>>, vector<1x1x96xf32>
    %188 = vector.shape_cast %187 : vector<1x1x96xf32> to vector<1x96xf32>
    %189 = vector.broadcast %188 : vector<1x96xf32> to vector<16x96xf32>
    %190 = arith.addf %186, %189 : vector<16x96xf32>
    %191 = vector.extract_strided_slice %190 {offsets = [0, 0], sizes = [16, 8], strides = [1, 1]} : vector<16x96xf32> to vector<16x8xf32>
    %192 = vector.extract_strided_slice %190 {offsets = [0, 8], sizes = [16, 8], strides = [1, 1]} : vector<16x96xf32> to vector<16x8xf32>
    %193 = vector.extract_strided_slice %190 {offsets = [0, 16], sizes = [16, 8], strides = [1, 1]} : vector<16x96xf32> to vector<16x8xf32>
    %194 = vector.extract_strided_slice %190 {offsets = [0, 24], sizes = [16, 8], strides = [1, 1]} : vector<16x96xf32> to vector<16x8xf32>
    %195 = tpu.concatenate %191, %192, %193, %194 in 0 : vector<16x8xf32>, vector<16x8xf32>, vector<16x8xf32>, vector<16x8xf32> -> vector<64x8xf32>
    %196 = vector.shape_cast %195 : vector<64x8xf32> to vector<8x8x8xf32>
    %197 = arith.truncf %196 : vector<8x8x8xf32> to vector<8x8x8xbf16>
    %198 = vector.extract_strided_slice %190 {offsets = [0, 32], sizes = [16, 8], strides = [1, 1]} : vector<16x96xf32> to vector<16x8xf32>
    %199 = vector.extract_strided_slice %190 {offsets = [0, 40], sizes = [16, 8], strides = [1, 1]} : vector<16x96xf32> to vector<16x8xf32>
    %200 = vector.extract_strided_slice %190 {offsets = [0, 48], sizes = [16, 8], strides = [1, 1]} : vector<16x96xf32> to vector<16x8xf32>
    %201 = vector.extract_strided_slice %190 {offsets = [0, 56], sizes = [16, 8], strides = [1, 1]} : vector<16x96xf32> to vector<16x8xf32>
    %202 = tpu.concatenate %198, %199, %200, %201 in 0 : vector<16x8xf32>, vector<16x8xf32>, vector<16x8xf32>, vector<16x8xf32> -> vector<64x8xf32>
    %203 = vector.shape_cast %202 : vector<64x8xf32> to vector<8x8x8xf32>
    %204 = arith.truncf %203 : vector<8x8x8xf32> to vector<8x8x8xbf16>
    %205 = vector.extract_strided_slice %190 {offsets = [0, 64], sizes = [16, 8], strides = [1, 1]} : vector<16x96xf32> to vector<16x8xf32>
    %206 = vector.extract_strided_slice %190 {offsets = [0, 72], sizes = [16, 8], strides = [1, 1]} : vector<16x96xf32> to vector<16x8xf32>
    %207 = vector.extract_strided_slice %190 {offsets = [0, 80], sizes = [16, 8], strides = [1, 1]} : vector<16x96xf32> to vector<16x8xf32>
    %208 = vector.extract_strided_slice %190 {offsets = [0, 88], sizes = [16, 8], strides = [1, 1]} : vector<16x96xf32> to vector<16x8xf32>
    %209 = tpu.concatenate %205, %206, %207, %208 in 0 : vector<16x8xf32>, vector<16x8xf32>, vector<16x8xf32>, vector<16x8xf32> -> vector<64x8xf32>
    %210 = vector.shape_cast %209 : vector<64x8xf32> to vector<8x8x8xf32>
    %211 = arith.truncf %210 : vector<8x8x8xf32> to vector<8x8x8xbf16>
    "tpu.trace_start"() <{level = 10 : i32, message = "bqd,bkd->bqk"}> : () -> ()
    %cst_98 = arith.constant dense<0.000000e+00> : vector<8x8x8xf32>
    %212 = tpu.matmul %197, %204, %cst_98 {dimension_numbers = #tpu.dot_dimension_numbers<[2], [2], [1], [1], [0, 0, 0, 1, 1, 1], [0], [0]>} : vector<8x8x8xbf16>, vector<8x8x8xbf16>, vector<8x8x8xf32> -> vector<8x8x8xf32>
    "tpu.trace_stop"() : () -> ()
    %213 = vector.shape_cast %7 : vector<8x8xf32> to vector<1x8x8xf32>
    %214 = vector.broadcast %213 : vector<1x8x8xf32> to vector<8x8x8xf32>
    %215 = arith.addf %212, %214 : vector<8x8x8xf32>
    %cst_99 = arith.constant dense<0xFF800000> : vector<8x8xf32>
    %216 = vector.multi_reduction <maximumf>, %215, %cst_99 [2] : vector<8x8x8xf32> to vector<8x8xf32>
    %217 = vector.shape_cast %216 : vector<8x8xf32> to vector<8x8x1xf32>
    %218 = vector.broadcast %217 : vector<8x8x1xf32> to vector<8x8x8xf32>
    %219 = arith.subf %215, %218 : vector<8x8x8xf32>
    %220 = math.exp %219 : vector<8x8x8xf32>
    %cst_100 = arith.constant dense<0.000000e+00> : vector<8x8xf32>
    %221 = vector.multi_reduction <add>, %220, %cst_100 [2] : vector<8x8x8xf32> to vector<8x8xf32>
    %222 = vector.shape_cast %221 : vector<8x8xf32> to vector<8x8x1xf32>
    %223 = tpu.reciprocal %222 {approx = true} : vector<8x8x1xf32> -> vector<8x8x1xf32>
    %224 = vector.broadcast %223 : vector<8x8x1xf32> to vector<8x8x8xf32>
    %225 = arith.mulf %220, %224 : vector<8x8x8xf32>
    %226 = arith.truncf %225 : vector<8x8x8xf32> to vector<8x8x8xbf16>
    "tpu.trace_start"() <{level = 10 : i32, message = "bqk,bkd->bqd"}> : () -> ()
    %cst_101 = arith.constant dense<0.000000e+00> : vector<8x8x8xf32>
    %227 = tpu.matmul %226, %211, %cst_101 {dimension_numbers = #tpu.dot_dimension_numbers<[2], [1], [1], [2], [0, 0, 0, 1, 1, 2], [0], [0]>} : vector<8x8x8xbf16>, vector<8x8x8xbf16>, vector<8x8x8xf32> -> vector<8x8x8xf32>
    "tpu.trace_stop"() : () -> ()
    %228 = vector.shape_cast %227 : vector<8x8x8xf32> to vector<64x8xf32>
    %229 = vector.extract_strided_slice %228 {offsets = [0, 0], sizes = [16, 8], strides = [1, 1]} : vector<64x8xf32> to vector<16x8xf32>
    %230 = vector.extract_strided_slice %228 {offsets = [16, 0], sizes = [16, 8], strides = [1, 1]} : vector<64x8xf32> to vector<16x8xf32>
    %231 = vector.extract_strided_slice %228 {offsets = [32, 0], sizes = [16, 8], strides = [1, 1]} : vector<64x8xf32> to vector<16x8xf32>
    %232 = vector.extract_strided_slice %228 {offsets = [48, 0], sizes = [16, 8], strides = [1, 1]} : vector<64x8xf32> to vector<16x8xf32>
    %233 = tpu.concatenate %229, %230, %231, %232 in 1 : vector<16x8xf32>, vector<16x8xf32>, vector<16x8xf32>, vector<16x8xf32> -> vector<16x32xf32>
    %234 = arith.truncf %233 : vector<16x32xf32> to vector<16x32xbf16>
    %c1_102 = arith.constant 1 : index
    %c0_103 = arith.constant 0 : index
    %c0_104 = arith.constant 0 : index
    %235 = vector.load %arg3[%c1_102, %c0_103, %c0_104] : memref<2x32x32xbf16, #tpu.memory_space<vmem>>, vector<1x32x32xbf16>
    %236 = vector.shape_cast %235 : vector<1x32x32xbf16> to vector<32x32xbf16>
    %cst_105 = arith.constant dense<0.000000e+00> : vector<16x32xf32>
    %237 = tpu.matmul %234, %236, %cst_105 {dimension_numbers = #tpu.dot_dimension_numbers<[1], [0], [0], [1], [0, 0, 1, 1], [], []>} : vector<16x32xbf16>, vector<32x32xbf16>, vector<16x32xf32> -> vector<16x32xf32>
    %238 = arith.addf %182, %237 : vector<16x32xf32>
    %c1_106 = arith.constant 1 : index
    %c0_107 = arith.constant 0 : index
    %c0_108 = arith.constant 0 : index
    %239 = vector.load %arg4[%c1_106, %c0_107, %c0_108] : memref<2x1x32xf32, #tpu.memory_space<vmem>>, vector<1x1x32xf32>
    %240 = vector.shape_cast %239 : vector<1x1x32xf32> to vector<1x32xf32>
    %241 = vector.broadcast %240 : vector<1x32xf32> to vector<16x32xf32>
    %242 = arith.addf %238, %241 : vector<16x32xf32>
    %c1_109 = arith.constant 1 : index
    %c0_110 = arith.constant 0 : index
    %c0_111 = arith.constant 0 : index
    %243 = vector.load %arg9[%c1_109, %c0_110, %c0_111] : memref<2x1x32xf32, #tpu.memory_space<vmem>>, vector<1x1x32xf32>
    %244 = vector.shape_cast %243 : vector<1x1x32xf32> to vector<1x32xf32>
    %c1_112 = arith.constant 1 : index
    %c0_113 = arith.constant 0 : index
    %c0_114 = arith.constant 0 : index
    %245 = vector.load %arg10[%c1_112, %c0_113, %c0_114] : memref<2x1x32xf32, #tpu.memory_space<vmem>>, vector<1x1x32xf32>
    %246 = vector.shape_cast %245 : vector<1x1x32xf32> to vector<1x32xf32>
    %cst_115 = arith.constant dense<0.000000e+00> : vector<16xf32>
    %247 = vector.multi_reduction <add>, %242, %cst_115 [1] : vector<16x32xf32> to vector<16xf32>
    %248 = vector.shape_cast %247 : vector<16xf32> to vector<16x1xf32>
    %cst_116 = arith.constant 3.200000e+01 : f32
    %249 = vector.broadcast %cst_116 : f32 to vector<16x1xf32>
    %250 = arith.divf %248, %249 : vector<16x1xf32>
    %251 = vector.broadcast %250 : vector<16x1xf32> to vector<16x32xf32>
    %252 = arith.subf %242, %251 : vector<16x32xf32>
    %253 = arith.mulf %252, %252 : vector<16x32xf32>
    %cst_117 = arith.constant dense<0.000000e+00> : vector<16xf32>
    %254 = vector.multi_reduction <add>, %253, %cst_117 [1] : vector<16x32xf32> to vector<16xf32>
    %255 = vector.shape_cast %254 : vector<16xf32> to vector<16x1xf32>
    %cst_118 = arith.constant 3.200000e+01 : f32
    %256 = vector.broadcast %cst_118 : f32 to vector<16x1xf32>
    %257 = arith.divf %255, %256 : vector<16x1xf32>
    %258 = vector.broadcast %250 : vector<16x1xf32> to vector<16x32xf32>
    %259 = arith.subf %242, %258 : vector<16x32xf32>
    %cst_119 = arith.constant 9.99999974E-6 : f32
    %260 = vector.broadcast %cst_119 : f32 to vector<16x1xf32>
    %261 = arith.addf %257, %260 : vector<16x1xf32>
    %262 = math.rsqrt %261 : vector<16x1xf32>
    %263 = vector.broadcast %262 : vector<16x1xf32> to vector<16x32xf32>
    %264 = arith.mulf %259, %263 : vector<16x32xf32>
    %265 = vector.broadcast %244 : vector<1x32xf32> to vector<16x32xf32>
    %266 = arith.mulf %264, %265 : vector<16x32xf32>
    %267 = vector.broadcast %246 : vector<1x32xf32> to vector<16x32xf32>
    %268 = arith.addf %266, %267 : vector<16x32xf32>
    %269 = arith.truncf %268 : vector<16x32xf32> to vector<16x32xbf16>
    %cst_120 = arith.constant 0.000000e+00 : f32
    %270 = vector.broadcast %cst_120 : f32 to vector<16x32xf32>
    %c1_121 = arith.constant 1 : index
    %c0_122 = arith.constant 0 : index
    %c0_123 = arith.constant 0 : index
    %271 = vector.load %arg5[%c1_121, %c0_122, %c0_123] : memref<2x32x2048xbf16, #tpu.memory_space<vmem>>, vector<1x32x512xbf16>
    %272 = vector.shape_cast %271 : vector<1x32x512xbf16> to vector<32x512xbf16>
    %cst_124 = arith.constant dense<0.000000e+00> : vector<16x512xf32>
    %273 = tpu.matmul %269, %272, %cst_124 {dimension_numbers = #tpu.dot_dimension_numbers<[1], [0], [0], [1], [0, 0, 1, 1], [], []>} : vector<16x32xbf16>, vector<32x512xbf16>, vector<16x512xf32> -> vector<16x512xf32>
    %c1_125 = arith.constant 1 : index
    %c0_126 = arith.constant 0 : index
    %c0_127 = arith.constant 0 : index
    %274 = vector.load %arg6[%c1_125, %c0_126, %c0_127] : memref<2x1x2048xf32, #tpu.memory_space<vmem>>, vector<1x1x512xf32>
    %275 = vector.shape_cast %274 : vector<1x1x512xf32> to vector<1x512xf32>
    %276 = vector.broadcast %275 : vector<1x512xf32> to vector<16x512xf32>
    %277 = arith.addf %273, %276 : vector<16x512xf32>
    %cst_128 = arith.constant 0.000000e+00 : f32
    %278 = vector.broadcast %cst_128 : f32 to vector<16x512xf32>
    %279 = arith.maximumf %277, %278 : vector<16x512xf32>
    %280 = arith.truncf %279 : vector<16x512xf32> to vector<16x512xbf16>
    %c1_129 = arith.constant 1 : index
    %c0_130 = arith.constant 0 : index
    %c0_131 = arith.constant 0 : index
    %281 = vector.load %arg7[%c1_129, %c0_130, %c0_131] : memref<2x2048x32xbf16, #tpu.memory_space<vmem>>, vector<1x512x32xbf16>
    %282 = vector.shape_cast %281 : vector<1x512x32xbf16> to vector<512x32xbf16>
    %cst_132 = arith.constant dense<0.000000e+00> : vector<16x32xf32>
    %283 = tpu.matmul %280, %282, %cst_132 {dimension_numbers = #tpu.dot_dimension_numbers<[1], [0], [0], [1], [0, 0, 1, 1], [], []>} : vector<16x512xbf16>, vector<512x32xbf16>, vector<16x32xf32> -> vector<16x32xf32>
    %284 = arith.addf %270, %283 : vector<16x32xf32>
    %c1_133 = arith.constant 1 : index
    %c0_134 = arith.constant 0 : index
    %c512_135 = arith.constant 512 : index
    %285 = vector.load %arg5[%c1_133, %c0_134, %c512_135] : memref<2x32x2048xbf16, #tpu.memory_space<vmem>>, vector<1x32x512xbf16>
    %286 = vector.shape_cast %285 : vector<1x32x512xbf16> to vector<32x512xbf16>
    %cst_136 = arith.constant dense<0.000000e+00> : vector<16x512xf32>
    %287 = tpu.matmul %269, %286, %cst_136 {dimension_numbers = #tpu.dot_dimension_numbers<[1], [0], [0], [1], [0, 0, 1, 1], [], []>} : vector<16x32xbf16>, vector<32x512xbf16>, vector<16x512xf32> -> vector<16x512xf32>
    %c1_137 = arith.constant 1 : index
    %c0_138 = arith.constant 0 : index
    %c512_139 = arith.constant 512 : index
    %288 = vector.load %arg6[%c1_137, %c0_138, %c512_139] : memref<2x1x2048xf32, #tpu.memory_space<vmem>>, vector<1x1x512xf32>
    %289 = vector.shape_cast %288 : vector<1x1x512xf32> to vector<1x512xf32>
    %290 = vector.broadcast %289 : vector<1x512xf32> to vector<16x512xf32>
    %291 = arith.addf %287, %290 : vector<16x512xf32>
    %cst_140 = arith.constant 0.000000e+00 : f32
    %292 = vector.broadcast %cst_140 : f32 to vector<16x512xf32>
    %293 = arith.maximumf %291, %292 : vector<16x512xf32>
    %294 = arith.truncf %293 : vector<16x512xf32> to vector<16x512xbf16>
    %c1_141 = arith.constant 1 : index
    %c512_142 = arith.constant 512 : index
    %c0_143 = arith.constant 0 : index
    %295 = vector.load %arg7[%c1_141, %c512_142, %c0_143] : memref<2x2048x32xbf16, #tpu.memory_space<vmem>>, vector<1x512x32xbf16>
    %296 = vector.shape_cast %295 : vector<1x512x32xbf16> to vector<512x32xbf16>
    %cst_144 = arith.constant dense<0.000000e+00> : vector<16x32xf32>
    %297 = tpu.matmul %294, %296, %cst_144 {dimension_numbers = #tpu.dot_dimension_numbers<[1], [0], [0], [1], [0, 0, 1, 1], [], []>} : vector<16x512xbf16>, vector<512x32xbf16>, vector<16x32xf32> -> vector<16x32xf32>
    %298 = arith.addf %284, %297 : vector<16x32xf32>
    %c1_145 = arith.constant 1 : index
    %c0_146 = arith.constant 0 : index
    %c1024_147 = arith.constant 1024 : index
    %299 = vector.load %arg5[%c1_145, %c0_146, %c1024_147] : memref<2x32x2048xbf16, #tpu.memory_space<vmem>>, vector<1x32x512xbf16>
    %300 = vector.shape_cast %299 : vector<1x32x512xbf16> to vector<32x512xbf16>
    %cst_148 = arith.constant dense<0.000000e+00> : vector<16x512xf32>
    %301 = tpu.matmul %269, %300, %cst_148 {dimension_numbers = #tpu.dot_dimension_numbers<[1], [0], [0], [1], [0, 0, 1, 1], [], []>} : vector<16x32xbf16>, vector<32x512xbf16>, vector<16x512xf32> -> vector<16x512xf32>
    %c1_149 = arith.constant 1 : index
    %c0_150 = arith.constant 0 : index
    %c1024_151 = arith.constant 1024 : index
    %302 = vector.load %arg6[%c1_149, %c0_150, %c1024_151] : memref<2x1x2048xf32, #tpu.memory_space<vmem>>, vector<1x1x512xf32>
    %303 = vector.shape_cast %302 : vector<1x1x512xf32> to vector<1x512xf32>
    %304 = vector.broadcast %303 : vector<1x512xf32> to vector<16x512xf32>
    %305 = arith.addf %301, %304 : vector<16x512xf32>
    %cst_152 = arith.constant 0.000000e+00 : f32
    %306 = vector.broadcast %cst_152 : f32 to vector<16x512xf32>
    %307 = arith.maximumf %305, %306 : vector<16x512xf32>
    %308 = arith.truncf %307 : vector<16x512xf32> to vector<16x512xbf16>
    %c1_153 = arith.constant 1 : index
    %c1024_154 = arith.constant 1024 : index
    %c0_155 = arith.constant 0 : index
    %309 = vector.load %arg7[%c1_153, %c1024_154, %c0_155] : memref<2x2048x32xbf16, #tpu.memory_space<vmem>>, vector<1x512x32xbf16>
    %310 = vector.shape_cast %309 : vector<1x512x32xbf16> to vector<512x32xbf16>
    %cst_156 = arith.constant dense<0.000000e+00> : vector<16x32xf32>
    %311 = tpu.matmul %308, %310, %cst_156 {dimension_numbers = #tpu.dot_dimension_numbers<[1], [0], [0], [1], [0, 0, 1, 1], [], []>} : vector<16x512xbf16>, vector<512x32xbf16>, vector<16x32xf32> -> vector<16x32xf32>
    %312 = arith.addf %298, %311 : vector<16x32xf32>
    %c1_157 = arith.constant 1 : index
    %c0_158 = arith.constant 0 : index
    %c1536_159 = arith.constant 1536 : index
    %313 = vector.load %arg5[%c1_157, %c0_158, %c1536_159] : memref<2x32x2048xbf16, #tpu.memory_space<vmem>>, vector<1x32x512xbf16>
    %314 = vector.shape_cast %313 : vector<1x32x512xbf16> to vector<32x512xbf16>
    %cst_160 = arith.constant dense<0.000000e+00> : vector<16x512xf32>
    %315 = tpu.matmul %269, %314, %cst_160 {dimension_numbers = #tpu.dot_dimension_numbers<[1], [0], [0], [1], [0, 0, 1, 1], [], []>} : vector<16x32xbf16>, vector<32x512xbf16>, vector<16x512xf32> -> vector<16x512xf32>
    %c1_161 = arith.constant 1 : index
    %c0_162 = arith.constant 0 : index
    %c1536_163 = arith.constant 1536 : index
    %316 = vector.load %arg6[%c1_161, %c0_162, %c1536_163] : memref<2x1x2048xf32, #tpu.memory_space<vmem>>, vector<1x1x512xf32>
    %317 = vector.shape_cast %316 : vector<1x1x512xf32> to vector<1x512xf32>
    %318 = vector.broadcast %317 : vector<1x512xf32> to vector<16x512xf32>
    %319 = arith.addf %315, %318 : vector<16x512xf32>
    %cst_164 = arith.constant 0.000000e+00 : f32
    %320 = vector.broadcast %cst_164 : f32 to vector<16x512xf32>
    %321 = arith.maximumf %319, %320 : vector<16x512xf32>
    %322 = arith.truncf %321 : vector<16x512xf32> to vector<16x512xbf16>
    %c1_165 = arith.constant 1 : index
    %c1536_166 = arith.constant 1536 : index
    %c0_167 = arith.constant 0 : index
    %323 = vector.load %arg7[%c1_165, %c1536_166, %c0_167] : memref<2x2048x32xbf16, #tpu.memory_space<vmem>>, vector<1x512x32xbf16>
    %324 = vector.shape_cast %323 : vector<1x512x32xbf16> to vector<512x32xbf16>
    %cst_168 = arith.constant dense<0.000000e+00> : vector<16x32xf32>
    %325 = tpu.matmul %322, %324, %cst_168 {dimension_numbers = #tpu.dot_dimension_numbers<[1], [0], [0], [1], [0, 0, 1, 1], [], []>} : vector<16x512xbf16>, vector<512x32xbf16>, vector<16x32xf32> -> vector<16x32xf32>
    %326 = arith.addf %312, %325 : vector<16x32xf32>
    %327 = arith.addf %268, %326 : vector<16x32xf32>
    %c1_169 = arith.constant 1 : index
    %c0_170 = arith.constant 0 : index
    %c0_171 = arith.constant 0 : index
    %328 = vector.load %arg8[%c1_169, %c0_170, %c0_171] : memref<2x1x32xf32, #tpu.memory_space<vmem>>, vector<1x1x32xf32>
    %329 = vector.shape_cast %328 : vector<1x1x32xf32> to vector<1x32xf32>
    %330 = vector.broadcast %329 : vector<1x32xf32> to vector<16x32xf32>
    %331 = arith.addf %327, %330 : vector<16x32xf32>
    %c1_172 = arith.constant 1 : index
    %c0_173 = arith.constant 0 : index
    %c0_174 = arith.constant 0 : index
    %332 = vector.load %arg11[%c1_172, %c0_173, %c0_174] : memref<2x1x32xf32, #tpu.memory_space<vmem>>, vector<1x1x32xf32>
    %333 = vector.shape_cast %332 : vector<1x1x32xf32> to vector<1x32xf32>
    %c1_175 = arith.constant 1 : index
    %c0_176 = arith.constant 0 : index
    %c0_177 = arith.constant 0 : index
    %334 = vector.load %arg12[%c1_175, %c0_176, %c0_177] : memref<2x1x32xf32, #tpu.memory_space<vmem>>, vector<1x1x32xf32>
    %335 = vector.shape_cast %334 : vector<1x1x32xf32> to vector<1x32xf32>
    %cst_178 = arith.constant dense<0.000000e+00> : vector<16xf32>
    %336 = vector.multi_reduction <add>, %331, %cst_178 [1] : vector<16x32xf32> to vector<16xf32>
    %337 = vector.shape_cast %336 : vector<16xf32> to vector<16x1xf32>
    %cst_179 = arith.constant 3.200000e+01 : f32
    %338 = vector.broadcast %cst_179 : f32 to vector<16x1xf32>
    %339 = arith.divf %337, %338 : vector<16x1xf32>
    %340 = vector.broadcast %339 : vector<16x1xf32> to vector<16x32xf32>
    %341 = arith.subf %331, %340 : vector<16x32xf32>
    %342 = arith.mulf %341, %341 : vector<16x32xf32>
    %cst_180 = arith.constant dense<0.000000e+00> : vector<16xf32>
    %343 = vector.multi_reduction <add>, %342, %cst_180 [1] : vector<16x32xf32> to vector<16xf32>
    %344 = vector.shape_cast %343 : vector<16xf32> to vector<16x1xf32>
    %cst_181 = arith.constant 3.200000e+01 : f32
    %345 = vector.broadcast %cst_181 : f32 to vector<16x1xf32>
    %346 = arith.divf %344, %345 : vector<16x1xf32>
    %347 = vector.broadcast %339 : vector<16x1xf32> to vector<16x32xf32>
    %348 = arith.subf %331, %347 : vector<16x32xf32>
    %cst_182 = arith.constant 9.99999974E-6 : f32
    %349 = vector.broadcast %cst_182 : f32 to vector<16x1xf32>
    %350 = arith.addf %346, %349 : vector<16x1xf32>
    %351 = math.rsqrt %350 : vector<16x1xf32>
    %352 = vector.broadcast %351 : vector<16x1xf32> to vector<16x32xf32>
    %353 = arith.mulf %348, %352 : vector<16x32xf32>
    %354 = vector.broadcast %333 : vector<1x32xf32> to vector<16x32xf32>
    %355 = arith.mulf %353, %354 : vector<16x32xf32>
    %356 = vector.broadcast %335 : vector<1x32xf32> to vector<16x32xf32>
    %357 = arith.addf %355, %356 : vector<16x32xf32>
    %358 = arith.truncf %357 : vector<16x32xf32> to vector<16x32xbf16>
    %c0_183 = arith.constant 0 : index
    %c0_184 = arith.constant 0 : index
    %359 = vector.load %arg13[%c0_183, %c0_184] : memref<32x256xbf16, #tpu.memory_space<vmem>>, vector<32x256xbf16>
    %cst_185 = arith.constant dense<0.000000e+00> : vector<16x256xf32>
    %360 = tpu.matmul %358, %359, %cst_185 {dimension_numbers = #tpu.dot_dimension_numbers<[1], [0], [0], [1], [0, 0, 1, 1], [], []>} : vector<16x32xbf16>, vector<32x256xbf16>, vector<16x256xf32> -> vector<16x256xf32>
    %361 = vector.shape_cast %360 : vector<16x256xf32> to vector<2x8x256xf32>
    %c0_186 = arith.constant 0 : index
    %c0_187 = arith.constant 0 : index
    %c0_188 = arith.constant 0 : index
    %362 = vector.load %arg14[%c0_186, %c0_187, %c0_188] : memref<2x8x256xf32, #tpu.memory_space<vmem>>, vector<2x8x256xf32>
    tpu.vector_store %arg14[%c0_186, %c0_187, %c0_188], %361 {strides = array<i32>} : memref<2x8x256xf32, #tpu.memory_space<vmem>>, vector<2x8x256xf32>,
    return
  }
}

</mosaic_0001>

<llo_original>
// kernel: forward.1
$region0: #{forward.1}
  #allocation0 [shape = 'u32[]', space=smem, size = 0x4, offset = 0x4, fixed_abs, tag = 'smem constant byte address 0x4 - core index']
  #allocation1 [shape = 'u32[144,128]{1,0:T(1,128)}', space=vmem, size = 0x12000, scoped, tag = 'internal scratch']
  %s0 = inlined_call_operand.vmem [shape: f32[2,8,32], index: 0, kind: input, shape index: {}]
  %s1 = inlined_call_operand.vmem [shape: bf16[2,32,96], index: 1, kind: input, shape index: {}]
  %s2 = inlined_call_operand.vmem [shape: f32[2,1,96], index: 2, kind: input, shape index: {}]
  %s3 = inlined_call_operand.vmem [shape: bf16[2,32,32], index: 3, kind: input, shape index: {}]
  %s4 = inlined_call_operand.vmem [shape: f32[2,1,32], index: 4, kind: input, shape index: {}]
  %s5 = inlined_call_operand.vmem [shape: bf16[2,32,2048], index: 5, kind: input, shape index: {}]
  %s6 = inlined_call_operand.vmem [shape: f32[2,1,2048], index: 6, kind: input, shape index: {}]
  %s7 = inlined_call_operand.vmem [shape: bf16[2,2048,32], index: 7, kind: input, shape index: {}]
  %s8 = inlined_call_operand.vmem [shape: f32[2,1,32], index: 8, kind: input, shape index: {}]
  %s9 = inlined_call_operand.vmem [shape: f32[2,1,32], index: 9, kind: input, shape index: {}]
  %s10 = inlined_call_operand.vmem [shape: f32[2,1,32], index: 10, kind: input, shape index: {}]
  %s11 = inlined_call_operand.vmem [shape: f32[2,1,32], index: 11, kind: input, shape index: {}]
  %s12 = inlined_call_operand.vmem [shape: f32[2,1,32], index: 12, kind: input, shape index: {}]
  %s13 = inlined_call_operand.vmem [shape: bf16[32,256], index: 13, kind: input, shape index: {}]
  %s14 = inlined_call_operand.vmem [shape: f32[2,8,256], index: 14, kind: output, shape index: {}]
  %s15 = sld [smem:[#allocation0]]
  $region66: #{forward.1} parent=0
    _
  %s17 = ssub.s32 1, %s15
  %s18 = scalar_select 0, %s17, %s15
  // Predicated region
  $region2: #{forward.1} parent=0 // pred_check
    _
  $region3: #{forward.1} parent=0 // pred_check_branch
    %20 = sbr.rel (0) target = $region5
  $region4: #{forward.1} parent=0 // pred_region
    _
  $region5: #{forward.1} parent=0 // pred_fallthru
    _
  // Predicated region
  $region6: #{forward.1} parent=0 // pred_check
    _
  $region7: #{forward.1} parent=0 // pred_check_branch
    %22 = sbr.rel (0) target = $region9
  $region8: #{forward.1} parent=0 // pred_region
    _
  $region9: #{forward.1} parent=0 // pred_fallthru
    _
  // Predicated region
  $region10: #{forward.1} parent=0 // pred_check
    _
  $region11: #{forward.1} parent=0 // pred_check_branch
    %24 = sbr.rel (0) target = $region13
  $region12: #{forward.1} parent=0 // pred_region
    _
  $region13: #{forward.1} parent=0 // pred_fallthru
    _
  // Predicated region
  $region14: #{forward.1} parent=0 // pred_check
    _
  $region15: #{forward.1} parent=0 // pred_check_branch
    %26 = sbr.rel (0) target = $region17
  $region16: #{forward.1} parent=0 // pred_region
    _
  $region17: #{forward.1} parent=0 // pred_fallthru
    _
  // Predicated region
  $region18: #{forward.1} parent=0 // pred_check
    _
  $region19: #{forward.1} parent=0 // pred_check_branch
    %28 = sbr.rel (0) target = $region21
  $region20: #{forward.1} parent=0 // pred_region
    _
  $region21: #{forward.1} parent=0 // pred_fallthru
    _
  // Predicated region
  $region22: #{forward.1} parent=0 // pred_check
    _
  $region23: #{forward.1} parent=0 // pred_check_branch
    %30 = sbr.rel (0) target = $region25
  $region24: #{forward.1} parent=0 // pred_region
    _
  $region25: #{forward.1} parent=0 // pred_fallthru
    _
  // Predicated region
  $region26: #{forward.1} parent=0 // pred_check
    _
  $region27: #{forward.1} parent=0 // pred_check_branch
    %32 = sbr.rel (0) target = $region29
  $region28: #{forward.1} parent=0 // pred_region
    _
  $region29: #{forward.1} parent=0 // pred_fallthru
    _
  // Predicated region
  $region30: #{forward.1} parent=0 // pred_check
    _
  $region31: #{forward.1} parent=0 // pred_check_branch
    %34 = sbr.rel (0) target = $region33
  $region32: #{forward.1} parent=0 // pred_region
    _
  $region33: #{forward.1} parent=0 // pred_fallthru
    _
  // Predicated region
  $region34: #{forward.1} parent=0 // pred_check
    _
  $region35: #{forward.1} parent=0 // pred_check_branch
    %36 = sbr.rel (0) target = $region37
  $region36: #{forward.1} parent=0 // pred_region
    _
  $region37: #{forward.1} parent=0 // pred_fallthru
    _
  // Predicated region
  $region38: #{forward.1} parent=0 // pred_check
    _
  $region39: #{forward.1} parent=0 // pred_check_branch
    %38 = sbr.rel (0) target = $region41
  $region40: #{forward.1} parent=0 // pred_region
    _
  $region41: #{forward.1} parent=0 // pred_fallthru
    _
  // Predicated region
  $region42: #{forward.1} parent=0 // pred_check
    _
  $region43: #{forward.1} parent=0 // pred_check_branch
    %40 = sbr.rel (0) target = $region45
  $region44: #{forward.1} parent=0 // pred_region
    _
  $region45: #{forward.1} parent=0 // pred_fallthru
    _
  // Predicated region
  $region46: #{forward.1} parent=0 // pred_check
    _
  $region47: #{forward.1} parent=0 // pred_check_branch
    %42 = sbr.rel (0) target = $region49
  $region48: #{forward.1} parent=0 // pred_region
    _
  $region49: #{forward.1} parent=0 // pred_fallthru
    _
  // Predicated region
  $region50: #{forward.1} parent=0 // pred_check
    _
  $region51: #{forward.1} parent=0 // pred_check_branch
    %44 = sbr.rel (0) target = $region53
  $region52: #{forward.1} parent=0 // pred_region
    _
  $region53: #{forward.1} parent=0 // pred_fallthru
    _
  // Predicated region
  $region54: #{forward.1} parent=0 // pred_check
    _
  $region55: #{forward.1} parent=0 // pred_check_branch
    %46 = sbr.rel (0) target = $region57
  $region56: #{forward.1} parent=0 // pred_region
    _
  $region57: #{forward.1} parent=0 // pred_fallthru
    _
  %v48 = vld [vmem:[%s0] sm:$0xff]
  %v49 = vld [vmem:[%s0 + $0x8] sm:$0xff]
  %v50 = vlaneseq
  %v51 = vshrl.u32 %v50, 7
  %v52 = vlaneseq
  %v53 = vand.u32 %v52, 127
  %vm54 = vcmp.gt.s32.totalorder %v53, %v51
  %v55 = vsel %vm54, -1e+09, 0.0
  %v56 = vpack.c.bf16 %v49, %v48
  %v57 = vld [vmem:[%s1] sm:$0xf]
  %v58 = vld [vmem:[%s1 + $0x4] sm:$0xf]
  %v59 = vld [vmem:[%s1 + $0x8] sm:$0xf]
  %v60 = vld [vmem:[%s1 + $0xc] sm:$0xf]
  %v61 = vld [vmem:[%s2] sm:$0x1]
  %v63 = vlaneseq
  %v64 = vshrl.u32 %v63, 7
  %v65 = vsub.s32 0, %v64
  %v66 = vrot.slane %v61, %v65
  %v72 = vunpack.c.l.b16 %v57
  %v73 = vunpack.c.l.b16 %v58
  %v74 = vunpack.c.l.b16 %v59
  %v75 = vunpack.c.l.b16 %v60
  %v76 = vpack.c.b16 %v73, %v72
  %v77 = vpack.c.b16 %v75, %v74
  %vm80 = vcmask 261120
  %v82 = vsel %vm80, %v56, 0
  %84 = vmatprep.subr.bf16.mxu0 0
  %85 = vmatpush1.bf16.msra.mxu0 0
  %86 = vmatprep.subr.bf16.mxu0 0
  %87 = vmatpush1.bf16.msra.mxu0 0
  %88 = vmatprep.subr.bf16.mxu0 0
  %89 = vmatpush1.bf16.msra.mxu0 0
  %90 = vmatprep.subr.bf16.mxu0 0
  %91 = vmatpush1.bf16.msra.mxu0 0
  %92 = vmatprep.subr.bf16.mxu0 0
  %93 = vmatpush1.bf16.msra.mxu0 0
  %94 = vmatprep.subr.bf16.mxu0 0
  %95 = vmatpush1.bf16.msra.mxu0 0
  %96 = vmatprep.subr.bf16.mxu0 0
  %97 = vmatpush1.bf16.msra.mxu0 %v77
  %98 = vmatprep.subr.bf16.mxu0 0
  %99 = vmatpush1.bf16.msra.mxu0 %v76
  %100 = vmatprep.subr.bf16.mxu0 0
  %101 = vmatpush2.bf16.msra.mxu0 0
  %102 = vmatprep.subr.bf16.mxu0 0
  %103 = vmatpush2.bf16.msra.mxu0 0
  %104 = vmatprep.subr.bf16.mxu0 0
  %105 = vmatpush2.bf16.msra.mxu0 0
  %106 = vmatprep.subr.bf16.mxu0 0
  %107 = vmatpush2.bf16.msra.mxu0 0
  %108 = vmatprep.subr.bf16.mxu0 0
  %109 = vmatpush2.bf16.msra.mxu0 0
  %110 = vmatprep.subr.bf16.mxu0 0
  %111 = vmatpush2.bf16.msra.mxu0 0
  %112 = vmatprep.subr.bf16.mxu0 0
  %113 = vmatpush2.bf16.msra.mxu0 0
  %114 = vmatprep.subr.bf16.mxu0 0
  %115 = vmatpush2.bf16.msra.mxu0 0
  %116 = vmatprep.mubr.bf16.mxu0 0
  %117 = vmatmul.mubr.bf16.gmra.mxu0 %v82
  %v118 = vpop.f32.mrf.mxu0
  %v119 = vadd.f32 %v66, %v118
  %v120 = vpop.f32.mrf.mxu0
  %v121 = vpop.f32.mrf.mxu0
  %v122 = vadd.f32 %v66, %v121
  %v123 = vpop.f32.mrf.mxu0
  %124 = vdwg.mxu0
  %127 = vrot.lane.b32.xlu0 %v119, 120
  %v128 = vpop.permute.xlu0 %127
  %129 = vrot.lane.b32.xlu0 %v122, 120
  %v130 = vpop.permute.xlu0 %129
  %133 = vrot.lane.b32.xlu0 %v119, 112
  %v134 = vpop.permute.xlu0 %133
  %135 = vrot.lane.b32.xlu0 %v122, 112
  %v136 = vpop.permute.xlu0 %135
  %139 = vrot.lane.b32.xlu0 %v119, 104
  %v140 = vpop.permute.xlu0 %139
  %141 = vrot.lane.b32.xlu0 %v122, 104
  %v142 = vpop.permute.xlu0 %141
  %v145 = vpack.c.bf16 %v119, %v119
  %v146 = vpack.c.bf16 %v122, %v122
  %v147 = vpack.c.bf16 %v128, %v128
  %v148 = vpack.c.bf16 %v130, %v130
  %v149 = vpack.c.bf16 %v134, %v134
  %v150 = vpack.c.bf16 %v136, %v136
  %v151 = vpack.c.bf16 %v140, %v140
  %v152 = vpack.c.bf16 %v142, %v142
  %154 = vrot.lane.b32.xlu0 %v145, 96
  %v155 = vpop.permute.xlu0 %154
  %vm156 = vcmask 64512
  %v158 = vsel %vm156, %v145, 0
  %v161 = vsel %vm156, %v155, 0
  %163 = vmatprep.subr.bf16.mxu0 0
  %164 = vmatpush1.bf16.xpose.msra.mxu0 0
  %165 = vmatprep.subr.bf16.mxu0 0
  %166 = vmatpush1.bf16.xpose.msra.mxu0 0
  %167 = vmatprep.subr.bf16.mxu0 0
  %168 = vmatpush1.bf16.xpose.msra.mxu0 0
  %169 = vmatprep.subr.bf16.mxu0 0
  %170 = vmatpush1.bf16.xpose.msra.mxu0 0
  %171 = vmatprep.subr.bf16.mxu0 0
  %172 = vmatpush1.bf16.xpose.msra.mxu0 0
  %173 = vmatprep.subr.bf16.mxu0 0
  %174 = vmatpush1.bf16.xpose.msra.mxu0 0
  %175 = vmatprep.subr.bf16.mxu0 0
  %176 = vmatpush1.bf16.xpose.msra.mxu0 0
  %177 = vmatprep.subr.bf16.mxu0 0
  %178 = vmatpush1.bf16.xpose.msra.mxu0 %v161
  %179 = vmatprep.subr.bf16.mxu0 0
  %180 = vmatpush2.bf16.xpose.msra.mxu0 0
  %181 = vmatprep.subr.bf16.mxu0 0
  %182 = vmatpush2.bf16.xpose.msra.mxu0 0
  %183 = vmatprep.subr.bf16.mxu0 0
  %184 = vmatpush2.bf16.xpose.msra.mxu0 0
  %185 = vmatprep.subr.bf16.mxu0 0
  %186 = vmatpush2.bf16.xpose.msra.mxu0 0
  %187 = vmatprep.subr.bf16.mxu0 0
  %188 = vmatpush2.bf16.xpose.msra.mxu0 0
  %189 = vmatprep.subr.bf16.mxu0 0
  %190 = vmatpush2.bf16.xpose.msra.mxu0 0
  %191 = vmatprep.subr.bf16.mxu0 0
  %192 = vmatpush2.bf16.xpose.msra.mxu0 0
  %193 = vmatprep.subr.bf16.mxu0 0
  %194 = vmatpush2.bf16.xpose.msra.mxu0 0
  %195 = vmatprep.mubr.bf16.mxu0 0
  %196 = vmatmul.mubr.bf16.gmra.mxu0 %v158
  %v197 = vpop.f32.mrf.mxu0
  %v198 = vadd.f32 %v55, %v197
  %v199 = vpop.f32.mrf.mxu0
  %v200 = vpop.f32.mrf.mxu0
  %v201 = vpop.f32.mrf.mxu0
  %202 = vdwg.mxu0
  %204 = vrot.lane.b32.xlu0 %v146, 96
  %v205 = vpop.permute.xlu0 %204
  %v207 = vsel %vm156, %v146, 0
  %v210 = vsel %vm156, %v205, 0
  %212 = vmatprep.subr.bf16.mxu0 0
  %213 = vmatpush1.bf16.xpose.msra.mxu0 0
  %214 = vmatprep.subr.bf16.mxu0 0
  %215 = vmatpush1.bf16.xpose.msra.mxu0 0
  %216 = vmatprep.subr.bf16.mxu0 0
  %217 = vmatpush1.bf16.xpose.msra.mxu0 0
  %218 = vmatprep.subr.bf16.mxu0 0
  %219 = vmatpush1.bf16.xpose.msra.mxu0 0
  %220 = vmatprep.subr.bf16.mxu0 0
  %221 = vmatpush1.bf16.xpose.msra.mxu0 0
  %222 = vmatprep.subr.bf16.mxu0 0
  %223 = vmatpush1.bf16.xpose.msra.mxu0 0
  %224 = vmatprep.subr.bf16.mxu0 0
  %225 = vmatpush1.bf16.xpose.msra.mxu0 0
  %226 = vmatprep.subr.bf16.mxu0 0
  %227 = vmatpush1.bf16.xpose.msra.mxu0 %v210
  %228 = vmatprep.subr.bf16.mxu0 0
  %229 = vmatpush2.bf16.xpose.msra.mxu0 0
  %230 = vmatprep.subr.bf16.mxu0 0
  %231 = vmatpush2.bf16.xpose.msra.mxu0 0
  %232 = vmatprep.subr.bf16.mxu0 0
  %233 = vmatpush2.bf16.xpose.msra.mxu0 0
  %234 = vmatprep.subr.bf16.mxu0 0
  %235 = vmatpush2.bf16.xpose.msra.mxu0 0
  %236 = vmatprep.subr.bf16.mxu0 0
  %237 = vmatpush2.bf16.xpose.msra.mxu0 0
  %238 = vmatprep.subr.bf16.mxu0 0
  %239 = vmatpush2.bf16.xpose.msra.mxu0 0
  %240 = vmatprep.subr.bf16.mxu0 0
  %241 = vmatpush2.bf16.xpose.msra.mxu0 0
  %242 = vmatprep.subr.bf16.mxu0 0
  %243 = vmatpush2.bf16.xpose.msra.mxu0 0
  %244 = vmatprep.mubr.bf16.mxu0 0
  %245 = vmatmul.mubr.bf16.gmra.mxu0 %v207
  %v246 = vpop.f32.mrf.mxu0
  %v247 = vadd.f32 %v55, %v246
  %v248 = vpop.f32.mrf.mxu0
  %v249 = vpop.f32.mrf.mxu0
  %v250 = vpop.f32.mrf.mxu0
  %251 = vdwg.mxu0
  %253 = vrot.lane.b32.xlu0 %v147, 96
  %v254 = vpop.permute.xlu0 %253
  %v256 = vsel %vm156, %v147, 0
  %v259 = vsel %vm156, %v254, 0
  %261 = vmatprep.subr.bf16.mxu0 0
  %262 = vmatpush1.bf16.xpose.msra.mxu0 0
  %263 = vmatprep.subr.bf16.mxu0 0
  %264 = vmatpush1.bf16.xpose.msra.mxu0 0
  %265 = vmatprep.subr.bf16.mxu0 0
  %266 = vmatpush1.bf16.xpose.msra.mxu0 0
  %267 = vmatprep.subr.bf16.mxu0 0
  %268 = vmatpush1.bf16.xpose.msra.mxu0 0
  %269 = vmatprep.subr.bf16.mxu0 0
  %270 = vmatpush1.bf16.xpose.msra.mxu0 0
  %271 = vmatprep.subr.bf16.mxu0 0
  %272 = vmatpush1.bf16.xpose.msra.mxu0 0
  %273 = vmatprep.subr.bf16.mxu0 0
  %274 = vmatpush1.bf16.xpose.msra.mxu0 0
  %275 = vmatprep.subr.bf16.mxu0 0
  %276 = vmatpush1.bf16.xpose.msra.mxu0 %v259
  %277 = vmatprep.subr.bf16.mxu0 0
  %278 = vmatpush2.bf16.xpose.msra.mxu0 0
  %279 = vmatprep.subr.bf16.mxu0 0
  %280 = vmatpush2.bf16.xpose.msra.mxu0 0
  %281 = vmatprep.subr.bf16.mxu0 0
  %282 = vmatpush2.bf16.xpose.msra.mxu0 0
  %283 = vmatprep.subr.bf16.mxu0 0
  %284 = vmatpush2.bf16.xpose.msra.mxu0 0
  %285 = vmatprep.subr.bf16.mxu0 0
  %286 = vmatpush2.bf16.xpose.msra.mxu0 0
  %287 = vmatprep.subr.bf16.mxu0 0
  %288 = vmatpush2.bf16.xpose.msra.mxu0 0
  %289 = vmatprep.subr.bf16.mxu0 0
  %290 = vmatpush2.bf16.xpose.msra.mxu0 0
  %291 = vmatprep.subr.bf16.mxu0 0
  %292 = vmatpush2.bf16.xpose.msra.mxu0 0
  %293 = vmatprep.mubr.bf16.mxu0 0
  %294 = vmatmul.mubr.bf16.gmra.mxu0 %v256
  %v295 = vpop.f32.mrf.mxu0
  %v296 = vadd.f32 %v55, %v295
  %v297 = vpop.f32.mrf.mxu0
  %v298 = vpop.f32.mrf.mxu0
  %v299 = vpop.f32.mrf.mxu0
  %300 = vdwg.mxu0
  %302 = vrot.lane.b32.xlu0 %v148, 96
  %v303 = vpop.permute.xlu0 %302
  %v305 = vsel %vm156, %v148, 0
  %v308 = vsel %vm156, %v303, 0
  %310 = vmatprep.subr.bf16.mxu0 0
  %311 = vmatpush1.bf16.xpose.msra.mxu0 0
  %312 = vmatprep.subr.bf16.mxu0 0
  %313 = vmatpush1.bf16.xpose.msra.mxu0 0
  %314 = vmatprep.subr.bf16.mxu0 0
  %315 = vmatpush1.bf16.xpose.msra.mxu0 0
  %316 = vmatprep.subr.bf16.mxu0 0
  %317 = vmatpush1.bf16.xpose.msra.mxu0 0
  %318 = vmatprep.subr.bf16.mxu0 0
  %319 = vmatpush1.bf16.xpose.msra.mxu0 0
  %320 = vmatprep.subr.bf16.mxu0 0
  %321 = vmatpush1.bf16.xpose.msra.mxu0 0
  %322 = vmatprep.subr.bf16.mxu0 0
  %323 = vmatpush1.bf16.xpose.msra.mxu0 0
  %324 = vmatprep.subr.bf16.mxu0 0
  %325 = vmatpush1.bf16.xpose.msra.mxu0 %v308
  %326 = vmatprep.subr.bf16.mxu0 0
  %327 = vmatpush2.bf16.xpose.msra.mxu0 0
  %328 = vmatprep.subr.bf16.mxu0 0
  %329 = vmatpush2.bf16.xpose.msra.mxu0 0
  %330 = vmatprep.subr.bf16.mxu0 0
  %331 = vmatpush2.bf16.xpose.msra.mxu0 0
  %332 = vmatprep.subr.bf16.mxu0 0
  %333 = vmatpush2.bf16.xpose.msra.mxu0 0
  %334 = vmatprep.subr.bf16.mxu0 0
  %335 = vmatpush2.bf16.xpose.msra.mxu0 0
  %336 = vmatprep.subr.bf16.mxu0 0
  %337 = vmatpush2.bf16.xpose.msra.mxu0 0
  %338 = vmatprep.subr.bf16.mxu0 0
  %339 = vmatpush2.bf16.xpose.msra.mxu0 0
  %340 = vmatprep.subr.bf16.mxu0 0
  %341 = vmatpush2.bf16.xpose.msra.mxu0 0
  %342 = vmatprep.mubr.bf16.mxu0 0
  %343 = vmatmul.mubr.bf16.gmra.mxu0 %v305
  %v344 = vpop.f32.mrf.mxu0
  %v345 = vadd.f32 %v55, %v344
  %v346 = vpop.f32.mrf.mxu0
  %v347 = vpop.f32.mrf.mxu0
  %v348 = vpop.f32.mrf.mxu0
  %349 = vdwg.mxu0
  %351 = vrot.lane.b32.xlu0 %v149, 96
  %v352 = vpop.permute.xlu0 %351
  %v354 = vsel %vm156, %v149, 0
  %v357 = vsel %vm156, %v352, 0
  %359 = vmatprep.subr.bf16.mxu0 0
  %360 = vmatpush1.bf16.xpose.msra.mxu0 0
  %361 = vmatprep.subr.bf16.mxu0 0
  %362 = vmatpush1.bf16.xpose.msra.mxu0 0
  %363 = vmatprep.subr.bf16.mxu0 0
  %364 = vmatpush1.bf16.xpose.msra.mxu0 0
  %365 = vmatprep.subr.bf16.mxu0 0
  %366 = vmatpush1.bf16.xpose.msra.mxu0 0
  %367 = vmatprep.subr.bf16.mxu0 0
  %368 = vmatpush1.bf16.xpose.msra.mxu0 0
  %369 = vmatprep.subr.bf16.mxu0 0
  %370 = vmatpush1.bf16.xpose.msra.mxu0 0
  %371 = vmatprep.subr.bf16.mxu0 0
  %372 = vmatpush1.bf16.xpose.msra.mxu0 0
  %373 = vmatprep.subr.bf16.mxu0 0
  %374 = vmatpush1.bf16.xpose.msra.mxu0 %v357
  %375 = vmatprep.subr.bf16.mxu0 0
  %376 = vmatpush2.bf16.xpose.msra.mxu0 0
  %377 = vmatprep.subr.bf16.mxu0 0
  %378 = vmatpush2.bf16.xpose.msra.mxu0 0
  %379 = vmatprep.subr.bf16.mxu0 0
  %380 = vmatpush2.bf16.xpose.msra.mxu0 0
  %381 = vmatprep.subr.bf16.mxu0 0
  %382 = vmatpush2.bf16.xpose.msra.mxu0 0
  %383 = vmatprep.subr.bf16.mxu0 0
  %384 = vmatpush2.bf16.xpose.msra.mxu0 0
  %385 = vmatprep.subr.bf16.mxu0 0
  %386 = vmatpush2.bf16.xpose.msra.mxu0 0
  %387 = vmatprep.subr.bf16.mxu0 0
  %388 = vmatpush2.bf16.xpose.msra.mxu0 0
  %389 = vmatprep.subr.bf16.mxu0 0
  %390 = vmatpush2.bf16.xpose.msra.mxu0 0
  %391 = vmatprep.mubr.bf16.mxu0 0
  %392 = vmatmul.mubr.bf16.gmra.mxu0 %v354
  %v393 = vpop.f32.mrf.mxu0
  %v394 = vadd.f32 %v55, %v393
  %v395 = vpop.f32.mrf.mxu0
  %v396 = vpop.f32.mrf.mxu0
  %v397 = vpop.f32.mrf.mxu0
  %398 = vdwg.mxu0
  %400 = vrot.lane.b32.xlu0 %v150, 96
  %v401 = vpop.permute.xlu0 %400
  %v403 = vsel %vm156, %v150, 0
  %v406 = vsel %vm156, %v401, 0
  %408 = vmatprep.subr.bf16.mxu0 0
  %409 = vmatpush1.bf16.xpose.msra.mxu0 0
  %410 = vmatprep.subr.bf16.mxu0 0
  %411 = vmatpush1.bf16.xpose.msra.mxu0 0
  %412 = vmatprep.subr.bf16.mxu0 0
  %413 = vmatpush1.bf16.xpose.msra.mxu0 0
  %414 = vmatprep.subr.bf16.mxu0 0
  %415 = vmatpush1.bf16.xpose.msra.mxu0 0
  %416 = vmatprep.subr.bf16.mxu0 0
  %417 = vmatpush1.bf16.xpose.msra.mxu0 0
  %418 = vmatprep.subr.bf16.mxu0 0
  %419 = vmatpush1.bf16.xpose.msra.mxu0 0
  %420 = vmatprep.subr.bf16.mxu0 0
  %421 = vmatpush1.bf16.xpose.msra.mxu0 0
  %422 = vmatprep.subr.bf16.mxu0 0
  %423 = vmatpush1.bf16.xpose.msra.mxu0 %v406
  %424 = vmatprep.subr.bf16.mxu0 0
  %425 = vmatpush2.bf16.xpose.msra.mxu0 0
  %426 = vmatprep.subr.bf16.mxu0 0
  %427 = vmatpush2.bf16.xpose.msra.mxu0 0
  %428 = vmatprep.subr.bf16.mxu0 0
  %429 = vmatpush2.bf16.xpose.msra.mxu0 0
  %430 = vmatprep.subr.bf16.mxu0 0
  %431 = vmatpush2.bf16.xpose.msra.mxu0 0
  %432 = vmatprep.subr.bf16.mxu0 0
  %433 = vmatpush2.bf16.xpose.msra.mxu0 0
  %434 = vmatprep.subr.bf16.mxu0 0
  %435 = vmatpush2.bf16.xpose.msra.mxu0 0
  %436 = vmatprep.subr.bf16.mxu0 0
  %437 = vmatpush2.bf16.xpose.msra.mxu0 0
  %438 = vmatprep.subr.bf16.mxu0 0
  %439 = vmatpush2.bf16.xpose.msra.mxu0 0
  %440 = vmatprep.mubr.bf16.mxu0 0
  %441 = vmatmul.mubr.bf16.gmra.mxu0 %v403
  %v442 = vpop.f32.mrf.mxu0
  %v443 = vadd.f32 %v55, %v442
  %v444 = vpop.f32.mrf.mxu0
  %v445 = vpop.f32.mrf.mxu0
  %v446 = vpop.f32.mrf.mxu0
  %447 = vdwg.mxu0
  %449 = vrot.lane.b32.xlu0 %v151, 96
  %v450 = vpop.permute.xlu0 %449
  %v452 = vsel %vm156, %v151, 0
  %v455 = vsel %vm156, %v450, 0
  %457 = vmatprep.subr.bf16.mxu0 0
  %458 = vmatpush1.bf16.xpose.msra.mxu0 0
  %459 = vmatprep.subr.bf16.mxu0 0
  %460 = vmatpush1.bf16.xpose.msra.mxu0 0
  %461 = vmatprep.subr.bf16.mxu0 0
  %462 = vmatpush1.bf16.xpose.msra.mxu0 0
  %463 = vmatprep.subr.bf16.mxu0 0
  %464 = vmatpush1.bf16.xpose.msra.mxu0 0
  %465 = vmatprep.subr.bf16.mxu0 0
  %466 = vmatpush1.bf16.xpose.msra.mxu0 0
  %467 = vmatprep.subr.bf16.mxu0 0
  %468 = vmatpush1.bf16.xpose.msra.mxu0 0
  %469 = vmatprep.subr.bf16.mxu0 0
  %470 = vmatpush1.bf16.xpose.msra.mxu0 0
  %471 = vmatprep.subr.bf16.mxu0 0
  %472 = vmatpush1.bf16.xpose.msra.mxu0 %v455
  %473 = vmatprep.subr.bf16.mxu0 0
  %474 = vmatpush2.bf16.xpose.msra.mxu0 0
  %475 = vmatprep.subr.bf16.mxu0 0
  %476 = vmatpush2.bf16.xpose.msra.mxu0 0
  %477 = vmatprep.subr.bf16.mxu0 0
  %478 = vmatpush2.bf16.xpose.msra.mxu0 0
  %479 = vmatprep.subr.bf16.mxu0 0
  %480 = vmatpush2.bf16.xpose.msra.mxu0 0
  %481 = vmatprep.subr.bf16.mxu0 0
  %482 = vmatpush2.bf16.xpose.msra.mxu0 0
  %483 = vmatprep.subr.bf16.mxu0 0
  %484 = vmatpush2.bf16.xpose.msra.mxu0 0
  %485 = vmatprep.subr.bf16.mxu0 0
  %486 = vmatpush2.bf16.xpose.msra.mxu0 0
  %487 = vmatprep.subr.bf16.mxu0 0
  %488 = vmatpush2.bf16.xpose.msra.mxu0 0
  %489 = vmatprep.mubr.bf16.mxu0 0
  %490 = vmatmul.mubr.bf16.gmra.mxu0 %v452
  %v491 = vpop.f32.mrf.mxu0
  %v492 = vadd.f32 %v55, %v491
  %v493 = vpop.f32.mrf.mxu0
  %v494 = vpop.f32.mrf.mxu0
  %v495 = vpop.f32.mrf.mxu0
  %496 = vdwg.mxu0
  %498 = vrot.lane.b32.xlu0 %v152, 96
  %v499 = vpop.permute.xlu0 %498
  %v501 = vsel %vm156, %v152, 0
  %v504 = vsel %vm156, %v499, 0
  %506 = vmatprep.subr.bf16.mxu0 0
  %507 = vmatpush1.bf16.xpose.msra.mxu0 0
  %508 = vmatprep.subr.bf16.mxu0 0
  %509 = vmatpush1.bf16.xpose.msra.mxu0 0
  %510 = vmatprep.subr.bf16.mxu0 0
  %511 = vmatpush1.bf16.xpose.msra.mxu0 0
  %512 = vmatprep.subr.bf16.mxu0 0
  %513 = vmatpush1.bf16.xpose.msra.mxu0 0
  %514 = vmatprep.subr.bf16.mxu0 0
  %515 = vmatpush1.bf16.xpose.msra.mxu0 0
  %516 = vmatprep.subr.bf16.mxu0 0
  %517 = vmatpush1.bf16.xpose.msra.mxu0 0
  %518 = vmatprep.subr.bf16.mxu0 0
  %519 = vmatpush1.bf16.xpose.msra.mxu0 0
  %520 = vmatprep.subr.bf16.mxu0 0
  %521 = vmatpush1.bf16.xpose.msra.mxu0 %v504
  %522 = vmatprep.subr.bf16.mxu0 0
  %523 = vmatpush2.bf16.xpose.msra.mxu0 0
  %524 = vmatprep.subr.bf16.mxu0 0
  %525 = vmatpush2.bf16.xpose.msra.mxu0 0
  %526 = vmatprep.subr.bf16.mxu0 0
  %527 = vmatpush2.bf16.xpose.msra.mxu0 0
  %528 = vmatprep.subr.bf16.mxu0 0
  %529 = vmatpush2.bf16.xpose.msra.mxu0 0
  %530 = vmatprep.subr.bf16.mxu0 0
  %531 = vmatpush2.bf16.xpose.msra.mxu0 0
  %532 = vmatprep.subr.bf16.mxu0 0
  %533 = vmatpush2.bf16.xpose.msra.mxu0 0
  %534 = vmatprep.subr.bf16.mxu0 0
  %535 = vmatpush2.bf16.xpose.msra.mxu0 0
  %536 = vmatprep.subr.bf16.mxu0 0
  %537 = vmatpush2.bf16.xpose.msra.mxu0 0
  %538 = vmatprep.mubr.bf16.mxu0 0
  %539 = vmatmul.mubr.bf16.gmra.mxu0 %v501
  %v540 = vpop.f32.mrf.mxu0
  %v541 = vadd.f32 %v55, %v540
  %v542 = vpop.f32.mrf.mxu0
  %v543 = vpop.f32.mrf.mxu0
  %v544 = vpop.f32.mrf.mxu0
  %545 = vdwg.mxu0
  %v546 = vsel %vm156, %v198, -inf
  %547 = vmax.xlane.f32.xlu0 %v546
  %v548 = vpop.xlane.xlu0 %547
  %v549 = vsel %vm156, %v247, -inf
  %550 = vmax.xlane.f32.xlu0 %v549
  %v551 = vpop.xlane.xlu0 %550
  %v552 = vsel %vm156, %v296, -inf
  %553 = vmax.xlane.f32.xlu0 %v552
  %v554 = vpop.xlane.xlu0 %553
  %v555 = vsel %vm156, %v345, -inf
  %556 = vmax.xlane.f32.xlu0 %v555
  %v557 = vpop.xlane.xlu0 %556
  %v558 = vsel %vm156, %v394, -inf
  %559 = vmax.xlane.f32.xlu0 %v558
  %v560 = vpop.xlane.xlu0 %559
  %v561 = vsel %vm156, %v443, -inf
  %562 = vmax.xlane.f32.xlu0 %v561
  %v563 = vpop.xlane.xlu0 %562
  %v564 = vsel %vm156, %v492, -inf
  %565 = vmax.xlane.f32.xlu0 %v564
  %v566 = vpop.xlane.xlu0 %565
  %v567 = vsel %vm156, %v541, -inf
  %568 = vmax.xlane.f32.xlu0 %v567
  %v569 = vpop.xlane.xlu0 %568
  %v570 = vsub.f32 %v198, %v548
  %v571 = vsub.f32 %v247, %v551
  %v572 = vsub.f32 %v296, %v554
  %v573 = vsub.f32 %v345, %v557
  %v574 = vsub.f32 %v394, %v560
  %v575 = vsub.f32 %v443, %v563
  %v576 = vsub.f32 %v492, %v566
  %v577 = vsub.f32 %v541, %v569
  %v578 = vmul.f32 %v570, 1.442695
  %v579 = vpow.pop %v578
  %v580 = vmul.f32 %v571, 1.442695
  %v581 = vpow.pop %v580
  %v582 = vmul.f32 %v572, 1.442695
  %v583 = vpow.pop %v582
  %v584 = vmul.f32 %v573, 1.442695
  %v585 = vpow.pop %v584
  %v586 = vmul.f32 %v574, 1.442695
  %v587 = vpow.pop %v586
  %v588 = vmul.f32 %v575, 1.442695
  %v589 = vpow.pop %v588
  %v590 = vmul.f32 %v576, 1.442695
  %v591 = vpow.pop %v590
  %v592 = vmul.f32 %v577, 1.442695
  %v593 = vpow.pop %v592
  %v594 = vsel %vm156, %v579, 0.0
  %595 = vadd.xlane.f32.xlu0 %v594
  %v596 = vpop.xlane.xlu0 %595
  %v597 = vsel %vm156, %v581, 0.0
  %598 = vadd.xlane.f32.xlu0 %v597
  %v599 = vpop.xlane.xlu0 %598
  %v600 = vsel %vm156, %v583, 0.0
  %601 = vadd.xlane.f32.xlu0 %v600
  %v602 = vpop.xlane.xlu0 %601
  %v603 = vsel %vm156, %v585, 0.0
  %604 = vadd.xlane.f32.xlu0 %v603
  %v605 = vpop.xlane.xlu0 %604
  %v606 = vsel %vm156, %v587, 0.0
  %607 = vadd.xlane.f32.xlu0 %v606
  %v608 = vpop.xlane.xlu0 %607
  %v609 = vsel %vm156, %v589, 0.0
  %610 = vadd.xlane.f32.xlu0 %v609
  %v611 = vpop.xlane.xlu0 %610
  %v612 = vsel %vm156, %v591, 0.0
  %613 = vadd.xlane.f32.xlu0 %v612
  %v614 = vpop.xlane.xlu0 %613
  %v615 = vsel %vm156, %v593, 0.0
  %616 = vadd.xlane.f32.xlu0 %v615
  %v617 = vpop.xlane.xlu0 %616
  %v618 = vrcp.pop %v596
  %v619 = vrcp.pop %v599
  %v620 = vrcp.pop %v602
  %v621 = vrcp.pop %v605
  %v622 = vrcp.pop %v608
  %v623 = vrcp.pop %v611
  %v624 = vrcp.pop %v614
  %v625 = vrcp.pop %v617
  %v626 = vmul.f32 %v579, %v618
  %v627 = vmul.f32 %v581, %v619
  %v628 = vmul.f32 %v583, %v620
  %v629 = vmul.f32 %v585, %v621
  %v630 = vmul.f32 %v587, %v622
  %v631 = vmul.f32 %v589, %v623
  %v632 = vmul.f32 %v591, %v624
  %v633 = vmul.f32 %v593, %v625
  %v634 = vpack.c.bf16 %v626, %v626
  %v635 = vpack.c.bf16 %v627, %v627
  %v636 = vpack.c.bf16 %v628, %v628
  %v637 = vpack.c.bf16 %v629, %v629
  %v638 = vpack.c.bf16 %v630, %v630
  %v639 = vpack.c.bf16 %v631, %v631
  %v640 = vpack.c.bf16 %v632, %v632
  %v641 = vpack.c.bf16 %v633, %v633
  %642 = vrot.lane.b32.xlu0 %v145, 64
  %v643 = vpop.permute.xlu0 %642
  %v645 = vsel %vm156, %v634, 0
  %vm647 = vcmask 1043456
  %v649 = vsel %vm647, %v643, 0
  %651 = vmatprep.subr.bf16.mxu0 0
  %652 = vmatpush1.bf16.msra.mxu0 0
  %653 = vmatprep.subr.bf16.mxu0 0
  %654 = vmatpush1.bf16.msra.mxu0 0
  %655 = vmatprep.subr.bf16.mxu0 0
  %656 = vmatpush1.bf16.msra.mxu0 0
  %657 = vmatprep.subr.bf16.mxu0 0
  %658 = vmatpush1.bf16.msra.mxu0 0
  %659 = vmatprep.subr.bf16.mxu0 0
  %660 = vmatpush1.bf16.msra.mxu0 0
  %661 = vmatprep.subr.bf16.mxu0 0
  %662 = vmatpush1.bf16.msra.mxu0 0
  %663 = vmatprep.subr.bf16.mxu0 0
  %664 = vmatpush1.bf16.msra.mxu0 0
  %665 = vmatprep.subr.bf16.mxu0 0
  %666 = vmatpush1.bf16.msra.mxu0 %v649
  %667 = vmatprep.subr.bf16.mxu0 0
  %668 = vmatpush2.bf16.msra.mxu0 0
  %669 = vmatprep.subr.bf16.mxu0 0
  %670 = vmatpush2.bf16.msra.mxu0 0
  %671 = vmatprep.subr.bf16.mxu0 0
  %672 = vmatpush2.bf16.msra.mxu0 0
  %673 = vmatprep.subr.bf16.mxu0 0
  %674 = vmatpush2.bf16.msra.mxu0 0
  %675 = vmatprep.subr.bf16.mxu0 0
  %676 = vmatpush2.bf16.msra.mxu0 0
  %677 = vmatprep.subr.bf16.mxu0 0
  %678 = vmatpush2.bf16.msra.mxu0 0
  %679 = vmatprep.subr.bf16.mxu0 0
  %680 = vmatpush2.bf16.msra.mxu0 0
  %681 = vmatprep.subr.bf16.mxu0 0
  %682 = vmatpush2.bf16.msra.mxu0 0
  %683 = vmatprep.mubr.bf16.mxu0 0
  %684 = vmatmul.mubr.bf16.gmra.mxu0 %v645
  %v685 = vpop.f32.mrf.mxu0
  %v686 = vadd.f32 0.0, %v685
  %v687 = vpop.f32.mrf.mxu0
  %v688 = vpop.f32.mrf.mxu0
  %v689 = vpop.f32.mrf.mxu0
  %690 = vdwg.mxu0
  %691 = vrot.lane.b32.xlu0 %v146, 64
  %v692 = vpop.permute.xlu0 %691
  %v694 = vsel %vm156, %v635, 0
  %v697 = vsel %vm647, %v692, 0
  %699 = vmatprep.subr.bf16.mxu0 0
  %700 = vmatpush1.bf16.msra.mxu0 0
  %701 = vmatprep.subr.bf16.mxu0 0
  %702 = vmatpush1.bf16.msra.mxu0 0
  %703 = vmatprep.subr.bf16.mxu0 0
  %704 = vmatpush1.bf16.msra.mxu0 0
  %705 = vmatprep.subr.bf16.mxu0 0
  %706 = vmatpush1.bf16.msra.mxu0 0
  %707 = vmatprep.subr.bf16.mxu0 0
  %708 = vmatpush1.bf16.msra.mxu0 0
  %709 = vmatprep.subr.bf16.mxu0 0
  %710 = vmatpush1.bf16.msra.mxu0 0
  %711 = vmatprep.subr.bf16.mxu0 0
  %712 = vmatpush1.bf16.msra.mxu0 0
  %713 = vmatprep.subr.bf16.mxu0 0
  %714 = vmatpush1.bf16.msra.mxu0 %v697
  %715 = vmatprep.subr.bf16.mxu0 0
  %716 = vmatpush2.bf16.msra.mxu0 0
  %717 = vmatprep.subr.bf16.mxu0 0
  %718 = vmatpush2.bf16.msra.mxu0 0
  %719 = vmatprep.subr.bf16.mxu0 0
  %720 = vmatpush2.bf16.msra.mxu0 0
  %721 = vmatprep.subr.bf16.mxu0 0
  %722 = vmatpush2.bf16.msra.mxu0 0
  %723 = vmatprep.subr.bf16.mxu0 0
  %724 = vmatpush2.bf16.msra.mxu0 0
  %725 = vmatprep.subr.bf16.mxu0 0
  %726 = vmatpush2.bf16.msra.mxu0 0
  %727 = vmatprep.subr.bf16.mxu0 0
  %728 = vmatpush2.bf16.msra.mxu0 0
  %729 = vmatprep.subr.bf16.mxu0 0
  %730 = vmatpush2.bf16.msra.mxu0 0
  %731 = vmatprep.mubr.bf16.mxu0 0
  %732 = vmatmul.mubr.bf16.gmra.mxu0 %v694
  %v733 = vpop.f32.mrf.mxu0
  %v734 = vadd.f32 0.0, %v733
  %v735 = vpop.f32.mrf.mxu0
  %v736 = vpop.f32.mrf.mxu0
  %v737 = vpop.f32.mrf.mxu0
  %738 = vdwg.mxu0
  %739 = vrot.lane.b32.xlu0 %v147, 64
  %v740 = vpop.permute.xlu0 %739
  %v742 = vsel %vm156, %v636, 0
  %v745 = vsel %vm647, %v740, 0
  %747 = vmatprep.subr.bf16.mxu0 0
  %748 = vmatpush1.bf16.msra.mxu0 0
  %749 = vmatprep.subr.bf16.mxu0 0
  %750 = vmatpush1.bf16.msra.mxu0 0
  %751 = vmatprep.subr.bf16.mxu0 0
  %752 = vmatpush1.bf16.msra.mxu0 0
  %753 = vmatprep.subr.bf16.mxu0 0
  %754 = vmatpush1.bf16.msra.mxu0 0
  %755 = vmatprep.subr.bf16.mxu0 0
  %756 = vmatpush1.bf16.msra.mxu0 0
  %757 = vmatprep.subr.bf16.mxu0 0
  %758 = vmatpush1.bf16.msra.mxu0 0
  %759 = vmatprep.subr.bf16.mxu0 0
  %760 = vmatpush1.bf16.msra.mxu0 0
  %761 = vmatprep.subr.bf16.mxu0 0
  %762 = vmatpush1.bf16.msra.mxu0 %v745
  %763 = vmatprep.subr.bf16.mxu0 0
  %764 = vmatpush2.bf16.msra.mxu0 0
  %765 = vmatprep.subr.bf16.mxu0 0
  %766 = vmatpush2.bf16.msra.mxu0 0
  %767 = vmatprep.subr.bf16.mxu0 0
  %768 = vmatpush2.bf16.msra.mxu0 0
  %769 = vmatprep.subr.bf16.mxu0 0
  %770 = vmatpush2.bf16.msra.mxu0 0
  %771 = vmatprep.subr.bf16.mxu0 0
  %772 = vmatpush2.bf16.msra.mxu0 0
  %773 = vmatprep.subr.bf16.mxu0 0
  %774 = vmatpush2.bf16.msra.mxu0 0
  %775 = vmatprep.subr.bf16.mxu0 0
  %776 = vmatpush2.bf16.msra.mxu0 0
  %777 = vmatprep.subr.bf16.mxu0 0
  %778 = vmatpush2.bf16.msra.mxu0 0
  %779 = vmatprep.mubr.bf16.mxu0 0
  %780 = vmatmul.mubr.bf16.gmra.mxu0 %v742
  %v781 = vpop.f32.mrf.mxu0
  %v782 = vadd.f32 0.0, %v781
  %v783 = vpop.f32.mrf.mxu0
  %v784 = vpop.f32.mrf.mxu0
  %v785 = vpop.f32.mrf.mxu0
  %786 = vdwg.mxu0
  %787 = vrot.lane.b32.xlu0 %v148, 64
  %v788 = vpop.permute.xlu0 %787
  %v790 = vsel %vm156, %v637, 0
  %v793 = vsel %vm647, %v788, 0
  %795 = vmatprep.subr.bf16.mxu0 0
  %796 = vmatpush1.bf16.msra.mxu0 0
  %797 = vmatprep.subr.bf16.mxu0 0
  %798 = vmatpush1.bf16.msra.mxu0 0
  %799 = vmatprep.subr.bf16.mxu0 0
  %800 = vmatpush1.bf16.msra.mxu0 0
  %801 = vmatprep.subr.bf16.mxu0 0
  %802 = vmatpush1.bf16.msra.mxu0 0
  %803 = vmatprep.subr.bf16.mxu0 0
  %804 = vmatpush1.bf16.msra.mxu0 0
  %805 = vmatprep.subr.bf16.mxu0 0
  %806 = vmatpush1.bf16.msra.mxu0 0
  %807 = vmatprep.subr.bf16.mxu0 0
  %808 = vmatpush1.bf16.msra.mxu0 0
  %809 = vmatprep.subr.bf16.mxu0 0
  %810 = vmatpush1.bf16.msra.mxu0 %v793
  %811 = vmatprep.subr.bf16.mxu0 0
  %812 = vmatpush2.bf16.msra.mxu0 0
  %813 = vmatprep.subr.bf16.mxu0 0
  %814 = vmatpush2.bf16.msra.mxu0 0
  %815 = vmatprep.subr.bf16.mxu0 0
  %816 = vmatpush2.bf16.msra.mxu0 0
  %817 = vmatprep.subr.bf16.mxu0 0
  %818 = vmatpush2.bf16.msra.mxu0 0
  %819 = vmatprep.subr.bf16.mxu0 0
  %820 = vmatpush2.bf16.msra.mxu0 0
  %821 = vmatprep.subr.bf16.mxu0 0
  %822 = vmatpush2.bf16.msra.mxu0 0
  %823 = vmatprep.subr.bf16.mxu0 0
  %824 = vmatpush2.bf16.msra.mxu0 0
  %825 = vmatprep.subr.bf16.mxu0 0
  %826 = vmatpush2.bf16.msra.mxu0 0
  %827 = vmatprep.mubr.bf16.mxu0 0
  %828 = vmatmul.mubr.bf16.gmra.mxu0 %v790
  %v829 = vpop.f32.mrf.mxu0
  %v830 = vadd.f32 0.0, %v829
  %v831 = vpop.f32.mrf.mxu0
  %v832 = vpop.f32.mrf.mxu0
  %v833 = vpop.f32.mrf.mxu0
  %834 = vdwg.mxu0
  %835 = vrot.lane.b32.xlu0 %v149, 64
  %v836 = vpop.permute.xlu0 %835
  %v838 = vsel %vm156, %v638, 0
  %v841 = vsel %vm647, %v836, 0
  %843 = vmatprep.subr.bf16.mxu0 0
  %844 = vmatpush1.bf16.msra.mxu0 0
  %845 = vmatprep.subr.bf16.mxu0 0
  %846 = vmatpush1.bf16.msra.mxu0 0
  %847 = vmatprep.subr.bf16.mxu0 0
  %848 = vmatpush1.bf16.msra.mxu0 0
  %849 = vmatprep.subr.bf16.mxu0 0
  %850 = vmatpush1.bf16.msra.mxu0 0
  %851 = vmatprep.subr.bf16.mxu0 0
  %852 = vmatpush1.bf16.msra.mxu0 0
  %853 = vmatprep.subr.bf16.mxu0 0
  %854 = vmatpush1.bf16.msra.mxu0 0
  %855 = vmatprep.subr.bf16.mxu0 0
  %856 = vmatpush1.bf16.msra.mxu0 0
  %857 = vmatprep.subr.bf16.mxu0 0
  %858 = vmatpush1.bf16.msra.mxu0 %v841
  %859 = vmatprep.subr.bf16.mxu0 0
  %860 = vmatpush2.bf16.msra.mxu0 0
  %861 = vmatprep.subr.bf16.mxu0 0
  %862 = vmatpush2.bf16.msra.mxu0 0
  %863 = vmatprep.subr.bf16.mxu0 0
  %864 = vmatpush2.bf16.msra.mxu0 0
  %865 = vmatprep.subr.bf16.mxu0 0
  %866 = vmatpush2.bf16.msra.mxu0 0
  %867 = vmatprep.subr.bf16.mxu0 0
  %868 = vmatpush2.bf16.msra.mxu0 0
  %869 = vmatprep.subr.bf16.mxu0 0
  %870 = vmatpush2.bf16.msra.mxu0 0
  %871 = vmatprep.subr.bf16.mxu0 0
  %872 = vmatpush2.bf16.msra.mxu0 0
  %873 = vmatprep.subr.bf16.mxu0 0
  %874 = vmatpush2.bf16.msra.mxu0 0
  %875 = vmatprep.mubr.bf16.mxu0 0
  %876 = vmatmul.mubr.bf16.gmra.mxu0 %v838
  %v877 = vpop.f32.mrf.mxu0
  %v878 = vadd.f32 0.0, %v877
  %v879 = vpop.f32.mrf.mxu0
  %v880 = vpop.f32.mrf.mxu0
  %v881 = vpop.f32.mrf.mxu0
  %882 = vdwg.mxu0
  %883 = vrot.lane.b32.xlu0 %v150, 64
  %v884 = vpop.permute.xlu0 %883
  %v886 = vsel %vm156, %v639, 0
  %v889 = vsel %vm647, %v884, 0
  %891 = vmatprep.subr.bf16.mxu0 0
  %892 = vmatpush1.bf16.msra.mxu0 0
  %893 = vmatprep.subr.bf16.mxu0 0
  %894 = vmatpush1.bf16.msra.mxu0 0
  %895 = vmatprep.subr.bf16.mxu0 0
  %896 = vmatpush1.bf16.msra.mxu0 0
  %897 = vmatprep.subr.bf16.mxu0 0
  %898 = vmatpush1.bf16.msra.mxu0 0
  %899 = vmatprep.subr.bf16.mxu0 0
  %900 = vmatpush1.bf16.msra.mxu0 0
  %901 = vmatprep.subr.bf16.mxu0 0
  %902 = vmatpush1.bf16.msra.mxu0 0
  %903 = vmatprep.subr.bf16.mxu0 0
  %904 = vmatpush1.bf16.msra.mxu0 0
  %905 = vmatprep.subr.bf16.mxu0 0
  %906 = vmatpush1.bf16.msra.mxu0 %v889
  %907 = vmatprep.subr.bf16.mxu0 0
  %908 = vmatpush2.bf16.msra.mxu0 0
  %909 = vmatprep.subr.bf16.mxu0 0
  %910 = vmatpush2.bf16.msra.mxu0 0
  %911 = vmatprep.subr.bf16.mxu0 0
  %912 = vmatpush2.bf16.msra.mxu0 0
  %913 = vmatprep.subr.bf16.mxu0 0
  %914 = vmatpush2.bf16.msra.mxu0 0
  %915 = vmatprep.subr.bf16.mxu0 0
  %916 = vmatpush2.bf16.msra.mxu0 0
  %917 = vmatprep.subr.bf16.mxu0 0
  %918 = vmatpush2.bf16.msra.mxu0 0
  %919 = vmatprep.subr.bf16.mxu0 0
  %920 = vmatpush2.bf16.msra.mxu0 0
  %921 = vmatprep.subr.bf16.mxu0 0
  %922 = vmatpush2.bf16.msra.mxu0 0
  %923 = vmatprep.mubr.bf16.mxu0 0
  %924 = vmatmul.mubr.bf16.gmra.mxu0 %v886
  %v925 = vpop.f32.mrf.mxu0
  %v926 = vadd.f32 0.0, %v925
  %v927 = vpop.f32.mrf.mxu0
  %v928 = vpop.f32.mrf.mxu0
  %v929 = vpop.f32.mrf.mxu0
  %930 = vdwg.mxu0
  %931 = vrot.lane.b32.xlu0 %v151, 64
  %v932 = vpop.permute.xlu0 %931
  %v934 = vsel %vm156, %v640, 0
  %v937 = vsel %vm647, %v932, 0
  %939 = vmatprep.subr.bf16.mxu0 0
  %940 = vmatpush1.bf16.msra.mxu0 0
  %941 = vmatprep.subr.bf16.mxu0 0
  %942 = vmatpush1.bf16.msra.mxu0 0
  %943 = vmatprep.subr.bf16.mxu0 0
  %944 = vmatpush1.bf16.msra.mxu0 0
  %945 = vmatprep.subr.bf16.mxu0 0
  %946 = vmatpush1.bf16.msra.mxu0 0
  %947 = vmatprep.subr.bf16.mxu0 0
  %948 = vmatpush1.bf16.msra.mxu0 0
  %949 = vmatprep.subr.bf16.mxu0 0
  %950 = vmatpush1.bf16.msra.mxu0 0
  %951 = vmatprep.subr.bf16.mxu0 0
  %952 = vmatpush1.bf16.msra.mxu0 0
  %953 = vmatprep.subr.bf16.mxu0 0
  %954 = vmatpush1.bf16.msra.mxu0 %v937
  %955 = vmatprep.subr.bf16.mxu0 0
  %956 = vmatpush2.bf16.msra.mxu0 0
  %957 = vmatprep.subr.bf16.mxu0 0
  %958 = vmatpush2.bf16.msra.mxu0 0
  %959 = vmatprep.subr.bf16.mxu0 0
  %960 = vmatpush2.bf16.msra.mxu0 0
  %961 = vmatprep.subr.bf16.mxu0 0
  %962 = vmatpush2.bf16.msra.mxu0 0
  %963 = vmatprep.subr.bf16.mxu0 0
  %964 = vmatpush2.bf16.msra.mxu0 0
  %965 = vmatprep.subr.bf16.mxu0 0
  %966 = vmatpush2.bf16.msra.mxu0 0
  %967 = vmatprep.subr.bf16.mxu0 0
  %968 = vmatpush2.bf16.msra.mxu0 0
  %969 = vmatprep.subr.bf16.mxu0 0
  %970 = vmatpush2.bf16.msra.mxu0 0
  %971 = vmatprep.mubr.bf16.mxu0 0
  %972 = vmatmul.mubr.bf16.gmra.mxu0 %v934
  %v973 = vpop.f32.mrf.mxu0
  %v974 = vadd.f32 0.0, %v973
  %v975 = vpop.f32.mrf.mxu0
  %v976 = vpop.f32.mrf.mxu0
  %v977 = vpop.f32.mrf.mxu0
  %978 = vdwg.mxu0
  %979 = vrot.lane.b32.xlu0 %v152, 64
  %v980 = vpop.permute.xlu0 %979
  %v982 = vsel %vm156, %v641, 0
  %v985 = vsel %vm647, %v980, 0
  %987 = vmatprep.subr.bf16.mxu0 0
  %988 = vmatpush1.bf16.msra.mxu0 0
  %989 = vmatprep.subr.bf16.mxu0 0
  %990 = vmatpush1.bf16.msra.mxu0 0
  %991 = vmatprep.subr.bf16.mxu0 0
  %992 = vmatpush1.bf16.msra.mxu0 0
  %993 = vmatprep.subr.bf16.mxu0 0
  %994 = vmatpush1.bf16.msra.mxu0 0
  %995 = vmatprep.subr.bf16.mxu0 0
  %996 = vmatpush1.bf16.msra.mxu0 0
  %997 = vmatprep.subr.bf16.mxu0 0
  %998 = vmatpush1.bf16.msra.mxu0 0
  %999 = vmatprep.subr.bf16.mxu0 0
  %1000 = vmatpush1.bf16.msra.mxu0 0
  %1001 = vmatprep.subr.bf16.mxu0 0
  %1002 = vmatpush1.bf16.msra.mxu0 %v985
  %1003 = vmatprep.subr.bf16.mxu0 0
  %1004 = vmatpush2.bf16.msra.mxu0 0
  %1005 = vmatprep.subr.bf16.mxu0 0
  %1006 = vmatpush2.bf16.msra.mxu0 0
  %1007 = vmatprep.subr.bf16.mxu0 0
  %1008 = vmatpush2.bf16.msra.mxu0 0
  %1009 = vmatprep.subr.bf16.mxu0 0
  %1010 = vmatpush2.bf16.msra.mxu0 0
  %1011 = vmatprep.subr.bf16.mxu0 0
  %1012 = vmatpush2.bf16.msra.mxu0 0
  %1013 = vmatprep.subr.bf16.mxu0 0
  %1014 = vmatpush2.bf16.msra.mxu0 0
  %1015 = vmatprep.subr.bf16.mxu0 0
  %1016 = vmatpush2.bf16.msra.mxu0 0
  %1017 = vmatprep.subr.bf16.mxu0 0
  %1018 = vmatpush2.bf16.msra.mxu0 0
  %1019 = vmatprep.mubr.bf16.mxu0 0
  %1020 = vmatmul.mubr.bf16.gmra.mxu0 %v982
  %v1021 = vpop.f32.mrf.mxu0
  %v1022 = vadd.f32 0.0, %v1021
  %v1023 = vpop.f32.mrf.mxu0
  %v1024 = vpop.f32.mrf.mxu0
  %v1025 = vpop.f32.mrf.mxu0
  %1026 = vdwg.mxu0
  %1029 = vrot.lane.b32.xlu0 %v782, 8
  %v1030 = vpop.permute.xlu0 %1029
  %1031 = vrot.lane.b32.xlu0 %v830, 8
  %v1032 = vpop.permute.xlu0 %1031
  %1037 = vrot.lane.b32.xlu0 %v878, 16
  %v1038 = vpop.permute.xlu0 %1037
  %1039 = vrot.lane.b32.xlu0 %v926, 16
  %v1040 = vpop.permute.xlu0 %1039
  %1045 = vrot.lane.b32.xlu0 %v974, 24
  %v1046 = vpop.permute.xlu0 %1045
  %1047 = vrot.lane.b32.xlu0 %v1022, 24
  %v1048 = vpop.permute.xlu0 %1047
  %v1051 = vsel %vm156, %v686, %v1030
  %v1052 = vsel %vm156, %v734, %v1032
  %vm1053 = vcmask 130048
  %v1054 = vsel %vm1053, %v1051, %v1038
  %v1055 = vsel %vm1053, %v1052, %v1040
  %vm1056 = vcmask 195584
  %v1057 = vsel %vm1056, %v1054, %v1046
  %v1058 = vsel %vm1056, %v1055, %v1048
  %v1059 = vpack.c.bf16 %v1058, %v1057
  %v1060 = vld [vmem:[%s3] sm:$0xf]
  %v1061 = vld [vmem:[%s3 + $0x4] sm:$0xf]
  %v1062 = vld [vmem:[%s3 + $0x8] sm:$0xf]
  %v1063 = vld [vmem:[%s3 + $0xc] sm:$0xf]
  %v1068 = vunpack.c.l.b16 %v1060
  %v1069 = vunpack.c.l.b16 %v1061
  %v1070 = vunpack.c.l.b16 %v1062
  %v1071 = vunpack.c.l.b16 %v1063
  %v1072 = vpack.c.b16 %v1069, %v1068
  %v1073 = vpack.c.b16 %v1071, %v1070
  %v1077 = vsel %vm80, %v1059, 0
  %1079 = vmatprep.subr.bf16.mxu0 0
  %1080 = vmatpush1.bf16.msra.mxu0 0
  %1081 = vmatprep.subr.bf16.mxu0 0
  %1082 = vmatpush1.bf16.msra.mxu0 0
  %1083 = vmatprep.subr.bf16.mxu0 0
  %1084 = vmatpush1.bf16.msra.mxu0 0
  %1085 = vmatprep.subr.bf16.mxu0 0
  %1086 = vmatpush1.bf16.msra.mxu0 0
  %1087 = vmatprep.subr.bf16.mxu0 0
  %1088 = vmatpush1.bf16.msra.mxu0 0
  %1089 = vmatprep.subr.bf16.mxu0 0
  %1090 = vmatpush1.bf16.msra.mxu0 0
  %1091 = vmatprep.subr.bf16.mxu0 0
  %1092 = vmatpush1.bf16.msra.mxu0 %v1073
  %1093 = vmatprep.subr.bf16.mxu0 0
  %1094 = vmatpush1.bf16.msra.mxu0 %v1072
  %1095 = vmatprep.subr.bf16.mxu0 0
  %1096 = vmatpush2.bf16.msra.mxu0 0
  %1097 = vmatprep.subr.bf16.mxu0 0
  %1098 = vmatpush2.bf16.msra.mxu0 0
  %1099 = vmatprep.subr.bf16.mxu0 0
  %1100 = vmatpush2.bf16.msra.mxu0 0
  %1101 = vmatprep.subr.bf16.mxu0 0
  %1102 = vmatpush2.bf16.msra.mxu0 0
  %1103 = vmatprep.subr.bf16.mxu0 0
  %1104 = vmatpush2.bf16.msra.mxu0 0
  %1105 = vmatprep.subr.bf16.mxu0 0
  %1106 = vmatpush2.bf16.msra.mxu0 0
  %1107 = vmatprep.subr.bf16.mxu0 0
  %1108 = vmatpush2.bf16.msra.mxu0 0
  %1109 = vmatprep.subr.bf16.mxu0 0
  %1110 = vmatpush2.bf16.msra.mxu0 0
  %1111 = vmatprep.mubr.bf16.mxu0 0
  %1112 = vmatmul.mubr.bf16.gmra.mxu0 %v1077
  %v1113 = vpop.f32.mrf.mxu0
  %v1114 = vadd.f32 0.0, %v1113
  %v1115 = vpop.f32.mrf.mxu0
  %v1116 = vpop.f32.mrf.mxu0
  %v1117 = vadd.f32 0.0, %v1116
  %v1118 = vpop.f32.mrf.mxu0
  %1119 = vdwg.mxu0
  %v1120 = vadd.f32 %v48, %v1114
  %v1121 = vadd.f32 %v49, %v1117
  %v1122 = vld [vmem:[%s4] sm:$0x1]
  %v1124 = vlaneseq
  %v1125 = vshrl.u32 %v1124, 7
  %v1126 = vsub.s32 0, %v1125
  %v1127 = vrot.slane %v1122, %v1126
  %v1129 = vadd.f32 %v1120, %v1127
  %v1130 = vadd.f32 %v1121, %v1127
  %v1131 = vld [vmem:[%s9] sm:$0x1]
  %v1132 = vld [vmem:[%s10] sm:$0x1]
  %v1133 = vsel %vm80, %v1129, 0.0
  %1134 = vadd.xlane.f32.xlu0 %v1133
  %v1135 = vpop.xlane.xlu0 %1134
  %v1136 = vsel %vm80, %v1130, 0.0
  %1137 = vadd.xlane.f32.xlu0 %v1136
  %v1138 = vpop.xlane.xlu0 %1137
  %v1139 = vrcp.pop 32.0
  %v1140 = vmul.f32 %v1135, %v1139
  %v1141 = vmul.f32 %v1138, %v1139
  %v1142 = vsub.f32 %v1129, %v1140
  %v1143 = vsub.f32 %v1130, %v1141
  %v1144 = vmul.f32 %v1142, %v1142
  %v1145 = vmul.f32 %v1143, %v1143
  %v1146 = vsel %vm80, %v1144, 0.0
  %1147 = vadd.xlane.f32.xlu0 %v1146
  %v1148 = vpop.xlane.xlu0 %1147
  %v1149 = vsel %vm80, %v1145, 0.0
  %1150 = vadd.xlane.f32.xlu0 %v1149
  %v1151 = vpop.xlane.xlu0 %1150
  %v1152 = vmul.f32 %v1148, %v1139
  %v1153 = vmul.f32 %v1151, %v1139
  %v1154 = vadd.f32 %v1152, 1e-05
  %v1155 = vadd.f32 %v1153, 1e-05
  %v1156 = vrsqrt.pop %v1154
  %v1157 = vrsqrt.pop %v1155
  %v1158 = vmul.f32 %v1142, %v1156
  %v1159 = vmul.f32 %v1143, %v1157
  %v1161 = vlaneseq
  %v1162 = vshrl.u32 %v1161, 7
  %v1163 = vsub.s32 0, %v1162
  %v1164 = vrot.slane %v1131, %v1163
  %v1166 = vmul.f32 %v1158, %v1164
  %v1167 = vmul.f32 %v1159, %v1164
  %v1169 = vlaneseq
  %v1170 = vshrl.u32 %v1169, 7
  %v1171 = vsub.s32 0, %v1170
  %v1172 = vrot.slane %v1132, %v1171
  %v1174 = vadd.f32 %v1166, %v1172
  %v1175 = vadd.f32 %v1167, %v1172
  %v1176 = vpack.c.bf16 %v1175, %v1174
  %v1177 = vld [vmem:[%s5] sm:$0xff]
  %v1178 = vld [vmem:[%s5 + $0x8] sm:$0xff]
  %v1179 = vld [vmem:[%s5 + $0x40] sm:$0xff]
  %v1180 = vld [vmem:[%s5 + $0x48] sm:$0xff]
  %v1181 = vld [vmem:[%s5 + $0x80] sm:$0xff]
  %v1182 = vld [vmem:[%s5 + $0x88] sm:$0xff]
  %v1183 = vld [vmem:[%s5 + $0xc0] sm:$0xff]
  %v1184 = vld [vmem:[%s5 + $0xc8] sm:$0xff]
  %v1185 = vld [vmem:[%s6] sm:$0xf]
  %v1187 = vlaneseq
  %v1188 = vshrl.u32 %v1187, 7
  %v1189 = vsub.s32 0, %v1188
  %v1190 = vrot.slane %v1185, %v1189
  %v1191 = vlaneseq
  %v1192 = vshrl.u32 %v1191, 7
  %v1193 = vsub.s32 1, %v1192
  %v1194 = vrot.slane %v1185, %v1193
  %v1195 = vlaneseq
  %v1196 = vshrl.u32 %v1195, 7
  %v1197 = vsub.s32 2, %v1196
  %v1198 = vrot.slane %v1185, %v1197
  %v1199 = vlaneseq
  %v1200 = vshrl.u32 %v1199, 7
  %v1201 = vsub.s32 3, %v1200
  %v1202 = vrot.slane %v1185, %v1201
  %v1215 = vunpack.c.l.b16 %v1177
  %v1216 = vunpack.c.h.b16 %v1177
  %v1217 = vunpack.c.l.b16 %v1178
  %v1218 = vunpack.c.h.b16 %v1178
  %v1219 = vunpack.c.l.b16 %v1179
  %v1220 = vunpack.c.h.b16 %v1179
  %v1221 = vunpack.c.l.b16 %v1180
  %v1222 = vunpack.c.h.b16 %v1180
  %v1223 = vunpack.c.l.b16 %v1181
  %v1224 = vunpack.c.h.b16 %v1181
  %v1225 = vunpack.c.l.b16 %v1182
  %v1226 = vunpack.c.h.b16 %v1182
  %v1227 = vunpack.c.l.b16 %v1183
  %v1228 = vunpack.c.h.b16 %v1183
  %v1229 = vunpack.c.l.b16 %v1184
  %v1230 = vunpack.c.h.b16 %v1184
  %v1231 = vpack.c.b16 %v1219, %v1215
  %v1232 = vpack.c.b16 %v1220, %v1216
  %v1233 = vpack.c.b16 %v1221, %v1217
  %v1234 = vpack.c.b16 %v1222, %v1218
  %v1235 = vpack.c.b16 %v1227, %v1223
  %v1236 = vpack.c.b16 %v1228, %v1224
  %v1237 = vpack.c.b16 %v1229, %v1225
  %v1238 = vpack.c.b16 %v1230, %v1226
  %v1248 = vsel %vm80, %v1176, 0
  %1250 = vmatprep.subr.bf16.mxu0 0
  %1251 = vmatpush1.bf16.msra.mxu0 0
  %1252 = vmatprep.subr.bf16.mxu0 0
  %1253 = vmatpush1.bf16.msra.mxu0 0
  %1254 = vmatprep.subr.bf16.mxu0 0
  %1255 = vmatpush1.bf16.msra.mxu0 0
  %1256 = vmatprep.subr.bf16.mxu0 0
  %1257 = vmatpush1.bf16.msra.mxu0 0
  %1258 = vmatprep.subr.bf16.mxu0 0
  %1259 = vmatpush1.bf16.msra.mxu0 0
  %1260 = vmatprep.subr.bf16.mxu0 0
  %1261 = vmatpush1.bf16.msra.mxu0 0
  %1262 = vmatprep.subr.bf16.mxu0 %v1236
  %1263 = vmatpush1.bf16.msra.mxu0 %v1235
  %1264 = vmatprep.subr.bf16.mxu0 %v1232
  %1265 = vmatpush1.bf16.msra.mxu0 %v1231
  %1266 = vmatprep.subr.bf16.mxu0 0
  %1267 = vmatpush2.bf16.msra.mxu0 0
  %1268 = vmatprep.subr.bf16.mxu0 0
  %1269 = vmatpush2.bf16.msra.mxu0 0
  %1270 = vmatprep.subr.bf16.mxu0 0
  %1271 = vmatpush2.bf16.msra.mxu0 0
  %1272 = vmatprep.subr.bf16.mxu0 0
  %1273 = vmatpush2.bf16.msra.mxu0 0
  %1274 = vmatprep.subr.bf16.mxu0 0
  %1275 = vmatpush2.bf16.msra.mxu0 0
  %1276 = vmatprep.subr.bf16.mxu0 0
  %1277 = vmatpush2.bf16.msra.mxu0 0
  %1278 = vmatprep.subr.bf16.mxu0 0
  %1279 = vmatpush2.bf16.msra.mxu0 0
  %1280 = vmatprep.subr.bf16.mxu0 0
  %1281 = vmatpush2.bf16.msra.mxu0 0
  %1282 = vmatprep.mubr.bf16.mxu0 0
  %1283 = vmatmul.mubr.bf16.gmra.mxu0 %v1248
  %v1284 = vpop.f32.mrf.mxu0
  %v1285 = vadd.f32 %v1190, %v1284
  %v1286 = vpop.f32.mrf.mxu0
  %v1287 = vadd.f32 %v1194, %v1286
  %v1288 = vpop.f32.mrf.mxu0
  %v1289 = vadd.f32 %v1190, %v1288
  %v1290 = vpop.f32.mrf.mxu0
  %v1291 = vadd.f32 %v1194, %v1290
  %1292 = vdwg.mxu0
  %1293 = vmatprep.subr.bf16.mxu0 0
  %1294 = vmatpush1.bf16.msra.mxu0 0
  %1295 = vmatprep.subr.bf16.mxu0 0
  %1296 = vmatpush1.bf16.msra.mxu0 0
  %1297 = vmatprep.subr.bf16.mxu0 0
  %1298 = vmatpush1.bf16.msra.mxu0 0
  %1299 = vmatprep.subr.bf16.mxu0 0
  %1300 = vmatpush1.bf16.msra.mxu0 0
  %1301 = vmatprep.subr.bf16.mxu0 0
  %1302 = vmatpush1.bf16.msra.mxu0 0
  %1303 = vmatprep.subr.bf16.mxu0 0
  %1304 = vmatpush1.bf16.msra.mxu0 0
  %1305 = vmatprep.subr.bf16.mxu0 %v1238
  %1306 = vmatpush1.bf16.msra.mxu0 %v1237
  %1307 = vmatprep.subr.bf16.mxu0 %v1234
  %1308 = vmatpush1.bf16.msra.mxu0 %v1233
  %1309 = vmatprep.subr.bf16.mxu0 0
  %1310 = vmatpush2.bf16.msra.mxu0 0
  %1311 = vmatprep.subr.bf16.mxu0 0
  %1312 = vmatpush2.bf16.msra.mxu0 0
  %1313 = vmatprep.subr.bf16.mxu0 0
  %1314 = vmatpush2.bf16.msra.mxu0 0
  %1315 = vmatprep.subr.bf16.mxu0 0
  %1316 = vmatpush2.bf16.msra.mxu0 0
  %1317 = vmatprep.subr.bf16.mxu0 0
  %1318 = vmatpush2.bf16.msra.mxu0 0
  %1319 = vmatprep.subr.bf16.mxu0 0
  %1320 = vmatpush2.bf16.msra.mxu0 0
  %1321 = vmatprep.subr.bf16.mxu0 0
  %1322 = vmatpush2.bf16.msra.mxu0 0
  %1323 = vmatprep.subr.bf16.mxu0 0
  %1324 = vmatpush2.bf16.msra.mxu0 0
  %1325 = vmatprep.mubr.bf16.mxu0 0
  %1326 = vmatmul.mubr.bf16.gmra.mxu0 %v1248
  %v1327 = vpop.f32.mrf.mxu0
  %v1328 = vadd.f32 %v1198, %v1327
  %v1329 = vpop.f32.mrf.mxu0
  %v1330 = vadd.f32 %v1202, %v1329
  %v1331 = vpop.f32.mrf.mxu0
  %v1332 = vadd.f32 %v1198, %v1331
  %v1333 = vpop.f32.mrf.mxu0
  %v1334 = vadd.f32 %v1202, %v1333
  %1335 = vdwg.mxu0
  %v1336 = vmax.f32 %v1285, 0.0
  %v1337 = vmax.f32 %v1287, 0.0
  %v1338 = vmax.f32 %v1328, 0.0
  %v1339 = vmax.f32 %v1330, 0.0
  %v1340 = vmax.f32 %v1289, 0.0
  %v1341 = vmax.f32 %v1291, 0.0
  %v1342 = vmax.f32 %v1332, 0.0
  %v1343 = vmax.f32 %v1334, 0.0
  %v1344 = vpack.c.bf16 %v1340, %v1336
  %v1345 = vpack.c.bf16 %v1341, %v1337
  %v1346 = vpack.c.bf16 %v1342, %v1338
  %v1347 = vpack.c.bf16 %v1343, %v1339
  %v1348 = vld [vmem:[%s7] sm:$0xf]
  %v1349 = vld [vmem:[%s7 + $0x4] sm:$0xf]
  %v1350 = vld [vmem:[%s7 + $0x8] sm:$0xf]
  %v1351 = vld [vmem:[%s7 + $0xc] sm:$0xf]
  %v1352 = vld [vmem:[%s7 + $0x10] sm:$0xf]
  %v1353 = vld [vmem:[%s7 + $0x14] sm:$0xf]
  %v1354 = vld [vmem:[%s7 + $0x18] sm:$0xf]
  %v1355 = vld [vmem:[%s7 + $0x1c] sm:$0xf]
  %v1356 = vld [vmem:[%s7 + $0x20] sm:$0xf]
  %v1357 = vld [vmem:[%s7 + $0x24] sm:$0xf]
  %v1358 = vld [vmem:[%s7 + $0x28] sm:$0xf]
  %v1359 = vld [vmem:[%s7 + $0x2c] sm:$0xf]
  %v1360 = vld [vmem:[%s7 + $0x30] sm:$0xf]
  %v1361 = vld [vmem:[%s7 + $0x34] sm:$0xf]
  %v1362 = vld [vmem:[%s7 + $0x38] sm:$0xf]
  %v1363 = vld [vmem:[%s7 + $0x3c] sm:$0xf]
  %v1364 = vld [vmem:[%s7 + $0x40] sm:$0xf]
  %v1365 = vld [vmem:[%s7 + $0x44] sm:$0xf]
  %v1366 = vld [vmem:[%s7 + $0x48] sm:$0xf]
  %v1367 = vld [vmem:[%s7 + $0x4c] sm:$0xf]
  %v1368 = vld [vmem:[%s7 + $0x50] sm:$0xf]
  %v1369 = vld [vmem:[%s7 + $0x54] sm:$0xf]
  %v1370 = vld [vmem:[%s7 + $0x58] sm:$0xf]
  %v1371 = vld [vmem:[%s7 + $0x5c] sm:$0xf]
  %v1372 = vld [vmem:[%s7 + $0x60] sm:$0xf]
  %v1373 = vld [vmem:[%s7 + $0x64] sm:$0xf]
  %v1374 = vld [vmem:[%s7 + $0x68] sm:$0xf]
  %v1375 = vld [vmem:[%s7 + $0x6c] sm:$0xf]
  %v1376 = vld [vmem:[%s7 + $0x70] sm:$0xf]
  %v1377 = vld [vmem:[%s7 + $0x74] sm:$0xf]
  %v1378 = vld [vmem:[%s7 + $0x78] sm:$0xf]
  %v1379 = vld [vmem:[%s7 + $0x7c] sm:$0xf]
  %v1380 = vld [vmem:[%s7 + $0x80] sm:$0xf]
  %v1381 = vld [vmem:[%s7 + $0x84] sm:$0xf]
  %v1382 = vld [vmem:[%s7 + $0x88] sm:$0xf]
  %v1383 = vld [vmem:[%s7 + $0x8c] sm:$0xf]
  %v1384 = vld [vmem:[%s7 + $0x90] sm:$0xf]
  %v1385 = vld [vmem:[%s7 + $0x94] sm:$0xf]
  %v1386 = vld [vmem:[%s7 + $0x98] sm:$0xf]
  %v1387 = vld [vmem:[%s7 + $0x9c] sm:$0xf]
  %v1388 = vld [vmem:[%s7 + $0xa0] sm:$0xf]
  %v1389 = vld [vmem:[%s7 + $0xa4] sm:$0xf]
  %v1390 = vld [vmem:[%s7 + $0xa8] sm:$0xf]
  %v1391 = vld [vmem:[%s7 + $0xac] sm:$0xf]
  %v1392 = vld [vmem:[%s7 + $0xb0] sm:$0xf]
  %v1393 = vld [vmem:[%s7 + $0xb4] sm:$0xf]
  %v1394 = vld [vmem:[%s7 + $0xb8] sm:$0xf]
  %v1395 = vld [vmem:[%s7 + $0xbc] sm:$0xf]
  %v1396 = vld [vmem:[%s7 + $0xc0] sm:$0xf]
  %v1397 = vld [vmem:[%s7 + $0xc4] sm:$0xf]
  %v1398 = vld [vmem:[%s7 + $0xc8] sm:$0xf]
  %v1399 = vld [vmem:[%s7 + $0xcc] sm:$0xf]
  %v1400 = vld [vmem:[%s7 + $0xd0] sm:$0xf]
  %v1401 = vld [vmem:[%s7 + $0xd4] sm:$0xf]
  %v1402 = vld [vmem:[%s7 + $0xd8] sm:$0xf]
  %v1403 = vld [vmem:[%s7 + $0xdc] sm:$0xf]
  %v1404 = vld [vmem:[%s7 + $0xe0] sm:$0xf]
  %v1405 = vld [vmem:[%s7 + $0xe4] sm:$0xf]
  %v1406 = vld [vmem:[%s7 + $0xe8] sm:$0xf]
  %v1407 = vld [vmem:[%s7 + $0xec] sm:$0xf]
  %v1408 = vld [vmem:[%s7 + $0xf0] sm:$0xf]
  %v1409 = vld [vmem:[%s7 + $0xf4] sm:$0xf]
  %v1410 = vld [vmem:[%s7 + $0xf8] sm:$0xf]
  %v1411 = vld [vmem:[%s7 + $0xfc] sm:$0xf]
  %v1412 = vld [vmem:[%s5 + $0x10] sm:$0xff]
  %v1413 = vld [vmem:[%s5 + $0x18] sm:$0xff]
  %v1414 = vld [vmem:[%s5 + $0x50] sm:$0xff]
  %v1415 = vld [vmem:[%s5 + $0x58] sm:$0xff]
  %v1416 = vld [vmem:[%s5 + $0x90] sm:$0xff]
  %v1417 = vld [vmem:[%s5 + $0x98] sm:$0xff]
  %v1418 = vld [vmem:[%s5 + $0xd0] sm:$0xff]
  %v1419 = vld [vmem:[%s5 + $0xd8] sm:$0xff]
  %v1420 = vld [vmem:[%s6 + $0x4] sm:$0xf]
  %v1422 = vlaneseq
  %v1423 = vshrl.u32 %v1422, 7
  %v1424 = vsub.s32 0, %v1423
  %v1425 = vrot.slane %v1420, %v1424
  %v1426 = vlaneseq
  %v1427 = vshrl.u32 %v1426, 7
  %v1428 = vsub.s32 1, %v1427
  %v1429 = vrot.slane %v1420, %v1428
  %v1430 = vlaneseq
  %v1431 = vshrl.u32 %v1430, 7
  %v1432 = vsub.s32 2, %v1431
  %v1433 = vrot.slane %v1420, %v1432
  %v1434 = vlaneseq
  %v1435 = vshrl.u32 %v1434, 7
  %v1436 = vsub.s32 3, %v1435
  %v1437 = vrot.slane %v1420, %v1436
  %v1450 = vunpack.c.l.b16 %v1412
  %v1451 = vunpack.c.h.b16 %v1412
  %v1452 = vunpack.c.l.b16 %v1413
  %v1453 = vunpack.c.h.b16 %v1413
  %v1454 = vunpack.c.l.b16 %v1414
  %v1455 = vunpack.c.h.b16 %v1414
  %v1456 = vunpack.c.l.b16 %v1415
  %v1457 = vunpack.c.h.b16 %v1415
  %v1458 = vunpack.c.l.b16 %v1416
  %v1459 = vunpack.c.h.b16 %v1416
  %v1460 = vunpack.c.l.b16 %v1417
  %v1461 = vunpack.c.h.b16 %v1417
  %v1462 = vunpack.c.l.b16 %v1418
  %v1463 = vunpack.c.h.b16 %v1418
  %v1464 = vunpack.c.l.b16 %v1419
  %v1465 = vunpack.c.h.b16 %v1419
  %v1466 = vpack.c.b16 %v1454, %v1450
  %v1467 = vpack.c.b16 %v1455, %v1451
  %v1468 = vpack.c.b16 %v1456, %v1452
  %v1469 = vpack.c.b16 %v1457, %v1453
  %v1470 = vpack.c.b16 %v1462, %v1458
  %v1471 = vpack.c.b16 %v1463, %v1459
  %v1472 = vpack.c.b16 %v1464, %v1460
  %v1473 = vpack.c.b16 %v1465, %v1461
  %1482 = vmatprep.subr.bf16.mxu0 0
  %1483 = vmatpush1.bf16.msra.mxu0 0
  %1484 = vmatprep.subr.bf16.mxu0 0
  %1485 = vmatpush1.bf16.msra.mxu0 0
  %1486 = vmatprep.subr.bf16.mxu0 0
  %1487 = vmatpush1.bf16.msra.mxu0 0
  %1488 = vmatprep.subr.bf16.mxu0 0
  %1489 = vmatpush1.bf16.msra.mxu0 0
  %1490 = vmatprep.subr.bf16.mxu0 0
  %1491 = vmatpush1.bf16.msra.mxu0 0
  %1492 = vmatprep.subr.bf16.mxu0 0
  %1493 = vmatpush1.bf16.msra.mxu0 0
  %1494 = vmatprep.subr.bf16.mxu0 %v1471
  %1495 = vmatpush1.bf16.msra.mxu0 %v1470
  %1496 = vmatprep.subr.bf16.mxu0 %v1467
  %1497 = vmatpush1.bf16.msra.mxu0 %v1466
  %1498 = vmatprep.subr.bf16.mxu0 0
  %1499 = vmatpush2.bf16.msra.mxu0 0
  %1500 = vmatprep.subr.bf16.mxu0 0
  %1501 = vmatpush2.bf16.msra.mxu0 0
  %1502 = vmatprep.subr.bf16.mxu0 0
  %1503 = vmatpush2.bf16.msra.mxu0 0
  %1504 = vmatprep.subr.bf16.mxu0 0
  %1505 = vmatpush2.bf16.msra.mxu0 0
  %1506 = vmatprep.subr.bf16.mxu0 0
  %1507 = vmatpush2.bf16.msra.mxu0 0
  %1508 = vmatprep.subr.bf16.mxu0 0
  %1509 = vmatpush2.bf16.msra.mxu0 0
  %1510 = vmatprep.subr.bf16.mxu0 0
  %1511 = vmatpush2.bf16.msra.mxu0 0
  %1512 = vmatprep.subr.bf16.mxu0 0
  %1513 = vmatpush2.bf16.msra.mxu0 0
  %1514 = vmatprep.mubr.bf16.mxu0 0
  %1515 = vmatmul.mubr.bf16.gmra.mxu0 %v1248
  %v1516 = vpop.f32.mrf.mxu0
  %v1517 = vadd.f32 %v1425, %v1516
  %v1518 = vpop.f32.mrf.mxu0
  %v1519 = vadd.f32 %v1429, %v1518
  %v1520 = vpop.f32.mrf.mxu0
  %v1521 = vadd.f32 %v1425, %v1520
  %v1522 = vpop.f32.mrf.mxu0
  %v1523 = vadd.f32 %v1429, %v1522
  %1524 = vdwg.mxu0
  %1525 = vmatprep.subr.bf16.mxu0 0
  %1526 = vmatpush1.bf16.msra.mxu0 0
  %1527 = vmatprep.subr.bf16.mxu0 0
  %1528 = vmatpush1.bf16.msra.mxu0 0
  %1529 = vmatprep.subr.bf16.mxu0 0
  %1530 = vmatpush1.bf16.msra.mxu0 0
  %1531 = vmatprep.subr.bf16.mxu0 0
  %1532 = vmatpush1.bf16.msra.mxu0 0
  %1533 = vmatprep.subr.bf16.mxu0 0
  %1534 = vmatpush1.bf16.msra.mxu0 0
  %1535 = vmatprep.subr.bf16.mxu0 0
  %1536 = vmatpush1.bf16.msra.mxu0 0
  %1537 = vmatprep.subr.bf16.mxu0 %v1473
  %1538 = vmatpush1.bf16.msra.mxu0 %v1472
  %1539 = vmatprep.subr.bf16.mxu0 %v1469
  %1540 = vmatpush1.bf16.msra.mxu0 %v1468
  %1541 = vmatprep.subr.bf16.mxu0 0
  %1542 = vmatpush2.bf16.msra.mxu0 0
  %1543 = vmatprep.subr.bf16.mxu0 0
  %1544 = vmatpush2.bf16.msra.mxu0 0
  %1545 = vmatprep.subr.bf16.mxu0 0
  %1546 = vmatpush2.bf16.msra.mxu0 0
  %1547 = vmatprep.subr.bf16.mxu0 0
  %1548 = vmatpush2.bf16.msra.mxu0 0
  %1549 = vmatprep.subr.bf16.mxu0 0
  %1550 = vmatpush2.bf16.msra.mxu0 0
  %1551 = vmatprep.subr.bf16.mxu0 0
  %1552 = vmatpush2.bf16.msra.mxu0 0
  %1553 = vmatprep.subr.bf16.mxu0 0
  %1554 = vmatpush2.bf16.msra.mxu0 0
  %1555 = vmatprep.subr.bf16.mxu0 0
  %1556 = vmatpush2.bf16.msra.mxu0 0
  %1557 = vmatprep.mubr.bf16.mxu0 0
  %1558 = vmatmul.mubr.bf16.gmra.mxu0 %v1248
  %v1559 = vpop.f32.mrf.mxu0
  %v1560 = vadd.f32 %v1433, %v1559
  %v1561 = vpop.f32.mrf.mxu0
  %v1562 = vadd.f32 %v1437, %v1561
  %v1563 = vpop.f32.mrf.mxu0
  %v1564 = vadd.f32 %v1433, %v1563
  %v1565 = vpop.f32.mrf.mxu0
  %v1566 = vadd.f32 %v1437, %v1565
  %1567 = vdwg.mxu0
  %v1568 = vmax.f32 %v1517, 0.0
  %v1569 = vmax.f32 %v1519, 0.0
  %v1570 = vmax.f32 %v1560, 0.0
  %v1571 = vmax.f32 %v1562, 0.0
  %v1572 = vmax.f32 %v1521, 0.0
  %v1573 = vmax.f32 %v1523, 0.0
  %v1574 = vmax.f32 %v1564, 0.0
  %v1575 = vmax.f32 %v1566, 0.0
  %v1576 = vpack.c.bf16 %v1572, %v1568
  %v1577 = vpack.c.bf16 %v1573, %v1569
  %v1578 = vpack.c.bf16 %v1574, %v1570
  %v1579 = vpack.c.bf16 %v1575, %v1571
  %v1580 = vld [vmem:[%s7 + $0x100] sm:$0xf]
  %v1581 = vld [vmem:[%s7 + $0x104] sm:$0xf]
  %v1582 = vld [vmem:[%s7 + $0x108] sm:$0xf]
  %v1583 = vld [vmem:[%s7 + $0x10c] sm:$0xf]
  %v1584 = vld [vmem:[%s7 + $0x110] sm:$0xf]
  %v1585 = vld [vmem:[%s7 + $0x114] sm:$0xf]
  %v1586 = vld [vmem:[%s7 + $0x118] sm:$0xf]
  %v1587 = vld [vmem:[%s7 + $0x11c] sm:$0xf]
  %v1588 = vld [vmem:[%s7 + $0x120] sm:$0xf]
  %v1589 = vld [vmem:[%s7 + $0x124] sm:$0xf]
  %v1590 = vld [vmem:[%s7 + $0x128] sm:$0xf]
  %v1591 = vld [vmem:[%s7 + $0x12c] sm:$0xf]
  %v1592 = vld [vmem:[%s7 + $0x130] sm:$0xf]
  %v1593 = vld [vmem:[%s7 + $0x134] sm:$0xf]
  %v1594 = vld [vmem:[%s7 + $0x138] sm:$0xf]
  %v1595 = vld [vmem:[%s7 + $0x13c] sm:$0xf]
  %v1596 = vld [vmem:[%s7 + $0x140] sm:$0xf]
  %v1597 = vld [vmem:[%s7 + $0x144] sm:$0xf]
  %v1598 = vld [vmem:[%s7 + $0x148] sm:$0xf]
  %v1599 = vld [vmem:[%s7 + $0x14c] sm:$0xf]
  %v1600 = vld [vmem:[%s7 + $0x150] sm:$0xf]
  %v1601 = vld [vmem:[%s7 + $0x154] sm:$0xf]
  %v1602 = vld [vmem:[%s7 + $0x158] sm:$0xf]
  %v1603 = vld [vmem:[%s7 + $0x15c] sm:$0xf]
  %v1604 = vld [vmem:[%s7 + $0x160] sm:$0xf]
  %v1605 = vld [vmem:[%s7 + $0x164] sm:$0xf]
  %v1606 = vld [vmem:[%s7 + $0x168] sm:$0xf]
  %v1607 = vld [vmem:[%s7 + $0x16c] sm:$0xf]
  %v1608 = vld [vmem:[%s7 + $0x170] sm:$0xf]
  %v1609 = vld [vmem:[%s7 + $0x174] sm:$0xf]
  %v1610 = vld [vmem:[%s7 + $0x178] sm:$0xf]
  %v1611 = vld [vmem:[%s7 + $0x17c] sm:$0xf]
  %v1612 = vld [vmem:[%s7 + $0x180] sm:$0xf]
  %v1613 = vld [vmem:[%s7 + $0x184] sm:$0xf]
  %v1614 = vld [vmem:[%s7 + $0x188] sm:$0xf]
  %v1615 = vld [vmem:[%s7 + $0x18c] sm:$0xf]
  %v1616 = vld [vmem:[%s7 + $0x190] sm:$0xf]
  %v1617 = vld [vmem:[%s7 + $0x194] sm:$0xf]
  %v1618 = vld [vmem:[%s7 + $0x198] sm:$0xf]
  %v1619 = vld [vmem:[%s7 + $0x19c] sm:$0xf]
  %v1620 = vld [vmem:[%s7 + $0x1a0] sm:$0xf]
  %v1621 = vld [vmem:[%s7 + $0x1a4] sm:$0xf]
  %v1622 = vld [vmem:[%s7 + $0x1a8] sm:$0xf]
  %v1623 = vld [vmem:[%s7 + $0x1ac] sm:$0xf]
  %v1624 = vld [vmem:[%s7 + $0x1b0] sm:$0xf]
  %v1625 = vld [vmem:[%s7 + $0x1b4] sm:$0xf]
  %v1626 = vld [vmem:[%s7 + $0x1b8] sm:$0xf]
  %v1627 = vld [vmem:[%s7 + $0x1bc] sm:$0xf]
  %v1628 = vld [vmem:[%s7 + $0x1c0] sm:$0xf]
  %v1629 = vld [vmem:[%s7 + $0x1c4] sm:$0xf]
  %v1630 = vld [vmem:[%s7 + $0x1c8] sm:$0xf]
  %v1631 = vld [vmem:[%s7 + $0x1cc] sm:$0xf]
  %v1632 = vld [vmem:[%s7 + $0x1d0] sm:$0xf]
  %v1633 = vld [vmem:[%s7 + $0x1d4] sm:$0xf]
  %v1634 = vld [vmem:[%s7 + $0x1d8] sm:$0xf]
  %v1635 = vld [vmem:[%s7 + $0x1dc] sm:$0xf]
  %v1636 = vld [vmem:[%s7 + $0x1e0] sm:$0xf]
  %v1637 = vld [vmem:[%s7 + $0x1e4] sm:$0xf]
  %v1638 = vld [vmem:[%s7 + $0x1e8] sm:$0xf]
  %v1639 = vld [vmem:[%s7 + $0x1ec] sm:$0xf]
  %v1640 = vld [vmem:[%s7 + $0x1f0] sm:$0xf]
  %v1641 = vld [vmem:[%s7 + $0x1f4] sm:$0xf]
  %v1642 = vld [vmem:[%s7 + $0x1f8] sm:$0xf]
  %v1643 = vld [vmem:[%s7 + $0x1fc] sm:$0xf]
  %v1708 = vunpack.c.l.b16 %v1580
  %v1709 = vunpack.c.l.b16 %v1581
  %v1710 = vunpack.c.l.b16 %v1582
  %v1711 = vunpack.c.l.b16 %v1583
  %v1712 = vunpack.c.l.b16 %v1584
  %v1713 = vunpack.c.l.b16 %v1585
  %v1714 = vunpack.c.l.b16 %v1586
  %v1715 = vunpack.c.l.b16 %v1587
  %v1716 = vunpack.c.l.b16 %v1588
  %v1717 = vunpack.c.l.b16 %v1589
  %v1718 = vunpack.c.l.b16 %v1590
  %v1719 = vunpack.c.l.b16 %v1591
  %v1720 = vunpack.c.l.b16 %v1592
  %v1721 = vunpack.c.l.b16 %v1593
  %v1722 = vunpack.c.l.b16 %v1594
  %v1723 = vunpack.c.l.b16 %v1595
  %v1724 = vunpack.c.l.b16 %v1596
  %v1725 = vunpack.c.l.b16 %v1597
  %v1726 = vunpack.c.l.b16 %v1598
  %v1727 = vunpack.c.l.b16 %v1599
  %v1728 = vunpack.c.l.b16 %v1600
  %v1729 = vunpack.c.l.b16 %v1601
  %v1730 = vunpack.c.l.b16 %v1602
  %v1731 = vunpack.c.l.b16 %v1603
  %v1732 = vunpack.c.l.b16 %v1604
  %v1733 = vunpack.c.l.b16 %v1605
  %v1734 = vunpack.c.l.b16 %v1606
  %v1735 = vunpack.c.l.b16 %v1607
  %v1736 = vunpack.c.l.b16 %v1608
  %v1737 = vunpack.c.l.b16 %v1609
  %v1738 = vunpack.c.l.b16 %v1610
  %v1739 = vunpack.c.l.b16 %v1611
  %v1740 = vunpack.c.l.b16 %v1612
  %v1741 = vunpack.c.l.b16 %v1613
  %v1742 = vunpack.c.l.b16 %v1614
  %v1743 = vunpack.c.l.b16 %v1615
  %v1744 = vunpack.c.l.b16 %v1616
  %v1745 = vunpack.c.l.b16 %v1617
  %v1746 = vunpack.c.l.b16 %v1618
  %v1747 = vunpack.c.l.b16 %v1619
  %v1748 = vunpack.c.l.b16 %v1620
  %v1749 = vunpack.c.l.b16 %v1621
  %v1750 = vunpack.c.l.b16 %v1622
  %v1751 = vunpack.c.l.b16 %v1623
  %v1752 = vunpack.c.l.b16 %v1624
  %v1753 = vunpack.c.l.b16 %v1625
  %v1754 = vunpack.c.l.b16 %v1626
  %v1755 = vunpack.c.l.b16 %v1627
  %v1756 = vunpack.c.l.b16 %v1628
  %v1757 = vunpack.c.l.b16 %v1629
  %v1758 = vunpack.c.l.b16 %v1630
  %v1759 = vunpack.c.l.b16 %v1631
  %v1760 = vunpack.c.l.b16 %v1632
  %v1761 = vunpack.c.l.b16 %v1633
  %v1762 = vunpack.c.l.b16 %v1634
  %v1763 = vunpack.c.l.b16 %v1635
  %v1764 = vunpack.c.l.b16 %v1636
  %v1765 = vunpack.c.l.b16 %v1637
  %v1766 = vunpack.c.l.b16 %v1638
  %v1767 = vunpack.c.l.b16 %v1639
  %v1768 = vunpack.c.l.b16 %v1640
  %v1769 = vunpack.c.l.b16 %v1641
  %v1770 = vunpack.c.l.b16 %v1642
  %v1771 = vunpack.c.l.b16 %v1643
  %v1772 = vpack.c.b16 %v1709, %v1708
  %v1773 = vpack.c.b16 %v1711, %v1710
  %v1774 = vpack.c.b16 %v1713, %v1712
  %v1775 = vpack.c.b16 %v1715, %v1714
  %v1776 = vpack.c.b16 %v1717, %v1716
  %v1777 = vpack.c.b16 %v1719, %v1718
  %v1778 = vpack.c.b16 %v1721, %v1720
  %v1779 = vpack.c.b16 %v1723, %v1722
  %v1780 = vpack.c.b16 %v1725, %v1724
  %v1781 = vpack.c.b16 %v1727, %v1726
  %v1782 = vpack.c.b16 %v1729, %v1728
  %v1783 = vpack.c.b16 %v1731, %v1730
  %v1784 = vpack.c.b16 %v1733, %v1732
  %v1785 = vpack.c.b16 %v1735, %v1734
  %v1786 = vpack.c.b16 %v1737, %v1736
  %v1787 = vpack.c.b16 %v1739, %v1738
  %v1788 = vpack.c.b16 %v1741, %v1740
  %v1789 = vpack.c.b16 %v1743, %v1742
  %v1790 = vpack.c.b16 %v1745, %v1744
  %v1791 = vpack.c.b16 %v1747, %v1746
  %v1792 = vpack.c.b16 %v1749, %v1748
  %v1793 = vpack.c.b16 %v1751, %v1750
  %v1794 = vpack.c.b16 %v1753, %v1752
  %v1795 = vpack.c.b16 %v1755, %v1754
  %v1796 = vpack.c.b16 %v1757, %v1756
  %v1797 = vpack.c.b16 %v1759, %v1758
  %v1798 = vpack.c.b16 %v1761, %v1760
  %v1799 = vpack.c.b16 %v1763, %v1762
  %v1800 = vpack.c.b16 %v1765, %v1764
  %v1801 = vpack.c.b16 %v1767, %v1766
  %v1802 = vpack.c.b16 %v1769, %v1768
  %v1803 = vpack.c.b16 %v1771, %v1770
  %1836 = vmatprep.subr.bf16.mxu0 0
  %1837 = vmatpush1.bf16.msra.mxu0 %v1779
  %1838 = vmatprep.subr.bf16.mxu0 0
  %1839 = vmatpush1.bf16.msra.mxu0 %v1778
  %1840 = vmatprep.subr.bf16.mxu0 0
  %1841 = vmatpush1.bf16.msra.mxu0 %v1777
  %1842 = vmatprep.subr.bf16.mxu0 0
  %1843 = vmatpush1.bf16.msra.mxu0 %v1776
  %1844 = vmatprep.subr.bf16.mxu0 0
  %1845 = vmatpush1.bf16.msra.mxu0 %v1775
  %1846 = vmatprep.subr.bf16.mxu0 0
  %1847 = vmatpush1.bf16.msra.mxu0 %v1774
  %1848 = vmatprep.subr.bf16.mxu0 0
  %1849 = vmatpush1.bf16.msra.mxu0 %v1773
  %1850 = vmatprep.subr.bf16.mxu0 0
  %1851 = vmatpush1.bf16.msra.mxu0 %v1772
  %1852 = vmatprep.subr.bf16.mxu0 0
  %1853 = vmatpush2.bf16.msra.mxu0 %v1787
  %1854 = vmatprep.subr.bf16.mxu0 0
  %1855 = vmatpush2.bf16.msra.mxu0 %v1786
  %1856 = vmatprep.subr.bf16.mxu0 0
  %1857 = vmatpush2.bf16.msra.mxu0 %v1785
  %1858 = vmatprep.subr.bf16.mxu0 0
  %1859 = vmatpush2.bf16.msra.mxu0 %v1784
  %1860 = vmatprep.subr.bf16.mxu0 0
  %1861 = vmatpush2.bf16.msra.mxu0 %v1783
  %1862 = vmatprep.subr.bf16.mxu0 0
  %1863 = vmatpush2.bf16.msra.mxu0 %v1782
  %1864 = vmatprep.subr.bf16.mxu0 0
  %1865 = vmatpush2.bf16.msra.mxu0 %v1781
  %1866 = vmatprep.subr.bf16.mxu0 0
  %1867 = vmatpush2.bf16.msra.mxu0 %v1780
  %1868 = vmatprep.mubr.bf16.mxu0 %v1577
  %1869 = vmatmul.mubr.bf16.gmra.mxu0 %v1576
  %v1870 = vpop.f32.mrf.mxu0
  %v1871 = vadd.f32 0.0, %v1870
  %v1872 = vpop.f32.mrf.mxu0
  %v1873 = vpop.f32.mrf.mxu0
  %v1874 = vadd.f32 0.0, %v1873
  %v1875 = vpop.f32.mrf.mxu0
  %1876 = vdwg.mxu0
  %1877 = vmatprep.subr.bf16.mxu0 0
  %1878 = vmatpush1.bf16.msra.mxu0 %v1795
  %1879 = vmatprep.subr.bf16.mxu0 0
  %1880 = vmatpush1.bf16.msra.mxu0 %v1794
  %1881 = vmatprep.subr.bf16.mxu0 0
  %1882 = vmatpush1.bf16.msra.mxu0 %v1793
  %1883 = vmatprep.subr.bf16.mxu0 0
  %1884 = vmatpush1.bf16.msra.mxu0 %v1792
  %1885 = vmatprep.subr.bf16.mxu0 0
  %1886 = vmatpush1.bf16.msra.mxu0 %v1791
  %1887 = vmatprep.subr.bf16.mxu0 0
  %1888 = vmatpush1.bf16.msra.mxu0 %v1790
  %1889 = vmatprep.subr.bf16.mxu0 0
  %1890 = vmatpush1.bf16.msra.mxu0 %v1789
  %1891 = vmatprep.subr.bf16.mxu0 0
  %1892 = vmatpush1.bf16.msra.mxu0 %v1788
  %1893 = vmatprep.subr.bf16.mxu0 0
  %1894 = vmatpush2.bf16.msra.mxu0 %v1803
  %1895 = vmatprep.subr.bf16.mxu0 0
  %1896 = vmatpush2.bf16.msra.mxu0 %v1802
  %1897 = vmatprep.subr.bf16.mxu0 0
  %1898 = vmatpush2.bf16.msra.mxu0 %v1801
  %1899 = vmatprep.subr.bf16.mxu0 0
  %1900 = vmatpush2.bf16.msra.mxu0 %v1800
  %1901 = vmatprep.subr.bf16.mxu0 0
  %1902 = vmatpush2.bf16.msra.mxu0 %v1799
  %1903 = vmatprep.subr.bf16.mxu0 0
  %1904 = vmatpush2.bf16.msra.mxu0 %v1798
  %1905 = vmatprep.subr.bf16.mxu0 0
  %1906 = vmatpush2.bf16.msra.mxu0 %v1797
  %1907 = vmatprep.subr.bf16.mxu0 0
  %1908 = vmatpush2.bf16.msra.mxu0 %v1796
  %1909 = vmatprep.mubr.bf16.mxu0 %v1579
  %1910 = vmatmul.mubr.bf16.gmra.mxu0 %v1578
  %v1911 = vpop.f32.mrf.mxu0
  %v1912 = vadd.f32 %v1871, %v1911
  %v1913 = vpop.f32.mrf.mxu0
  %v1914 = vpop.f32.mrf.mxu0
  %v1915 = vadd.f32 %v1874, %v1914
  %v1916 = vpop.f32.mrf.mxu0
  %1917 = vdwg.mxu0
  %v1982 = vunpack.c.l.b16 %v1348
  %v1983 = vunpack.c.l.b16 %v1349
  %v1984 = vunpack.c.l.b16 %v1350
  %v1985 = vunpack.c.l.b16 %v1351
  %v1986 = vunpack.c.l.b16 %v1352
  %v1987 = vunpack.c.l.b16 %v1353
  %v1988 = vunpack.c.l.b16 %v1354
  %v1989 = vunpack.c.l.b16 %v1355
  %v1990 = vunpack.c.l.b16 %v1356
  %v1991 = vunpack.c.l.b16 %v1357
  %v1992 = vunpack.c.l.b16 %v1358
  %v1993 = vunpack.c.l.b16 %v1359
  %v1994 = vunpack.c.l.b16 %v1360
  %v1995 = vunpack.c.l.b16 %v1361
  %v1996 = vunpack.c.l.b16 %v1362
  %v1997 = vunpack.c.l.b16 %v1363
  %v1998 = vunpack.c.l.b16 %v1364
  %v1999 = vunpack.c.l.b16 %v1365
  %v2000 = vunpack.c.l.b16 %v1366
  %v2001 = vunpack.c.l.b16 %v1367
  %v2002 = vunpack.c.l.b16 %v1368
  %v2003 = vunpack.c.l.b16 %v1369
  %v2004 = vunpack.c.l.b16 %v1370
  %v2005 = vunpack.c.l.b16 %v1371
  %v2006 = vunpack.c.l.b16 %v1372
  %v2007 = vunpack.c.l.b16 %v1373
  %v2008 = vunpack.c.l.b16 %v1374
  %v2009 = vunpack.c.l.b16 %v1375
  %v2010 = vunpack.c.l.b16 %v1376
  %v2011 = vunpack.c.l.b16 %v1377
  %v2012 = vunpack.c.l.b16 %v1378
  %v2013 = vunpack.c.l.b16 %v1379
  %v2014 = vunpack.c.l.b16 %v1380
  %v2015 = vunpack.c.l.b16 %v1381
  %v2016 = vunpack.c.l.b16 %v1382
  %v2017 = vunpack.c.l.b16 %v1383
  %v2018 = vunpack.c.l.b16 %v1384
  %v2019 = vunpack.c.l.b16 %v1385
  %v2020 = vunpack.c.l.b16 %v1386
  %v2021 = vunpack.c.l.b16 %v1387
  %v2022 = vunpack.c.l.b16 %v1388
  %v2023 = vunpack.c.l.b16 %v1389
  %v2024 = vunpack.c.l.b16 %v1390
  %v2025 = vunpack.c.l.b16 %v1391
  %v2026 = vunpack.c.l.b16 %v1392
  %v2027 = vunpack.c.l.b16 %v1393
  %v2028 = vunpack.c.l.b16 %v1394
  %v2029 = vunpack.c.l.b16 %v1395
  %v2030 = vunpack.c.l.b16 %v1396
  %v2031 = vunpack.c.l.b16 %v1397
  %v2032 = vunpack.c.l.b16 %v1398
  %v2033 = vunpack.c.l.b16 %v1399
  %v2034 = vunpack.c.l.b16 %v1400
  %v2035 = vunpack.c.l.b16 %v1401
  %v2036 = vunpack.c.l.b16 %v1402
  %v2037 = vunpack.c.l.b16 %v1403
  %v2038 = vunpack.c.l.b16 %v1404
  %v2039 = vunpack.c.l.b16 %v1405
  %v2040 = vunpack.c.l.b16 %v1406
  %v2041 = vunpack.c.l.b16 %v1407
  %v2042 = vunpack.c.l.b16 %v1408
  %v2043 = vunpack.c.l.b16 %v1409
  %v2044 = vunpack.c.l.b16 %v1410
  %v2045 = vunpack.c.l.b16 %v1411
  %v2046 = vpack.c.b16 %v1983, %v1982
  %v2047 = vpack.c.b16 %v1985, %v1984
  %v2048 = vpack.c.b16 %v1987, %v1986
  %v2049 = vpack.c.b16 %v1989, %v1988
  %v2050 = vpack.c.b16 %v1991, %v1990
  %v2051 = vpack.c.b16 %v1993, %v1992
  %v2052 = vpack.c.b16 %v1995, %v1994
  %v2053 = vpack.c.b16 %v1997, %v1996
  %v2054 = vpack.c.b16 %v1999, %v1998
  %v2055 = vpack.c.b16 %v2001, %v2000
  %v2056 = vpack.c.b16 %v2003, %v2002
  %v2057 = vpack.c.b16 %v2005, %v2004
  %v2058 = vpack.c.b16 %v2007, %v2006
  %v2059 = vpack.c.b16 %v2009, %v2008
  %v2060 = vpack.c.b16 %v2011, %v2010
  %v2061 = vpack.c.b16 %v2013, %v2012
  %v2062 = vpack.c.b16 %v2015, %v2014
  %v2063 = vpack.c.b16 %v2017, %v2016
  %v2064 = vpack.c.b16 %v2019, %v2018
  %v2065 = vpack.c.b16 %v2021, %v2020
  %v2066 = vpack.c.b16 %v2023, %v2022
  %v2067 = vpack.c.b16 %v2025, %v2024
  %v2068 = vpack.c.b16 %v2027, %v2026
  %v2069 = vpack.c.b16 %v2029, %v2028
  %v2070 = vpack.c.b16 %v2031, %v2030
  %v2071 = vpack.c.b16 %v2033, %v2032
  %v2072 = vpack.c.b16 %v2035, %v2034
  %v2073 = vpack.c.b16 %v2037, %v2036
  %v2074 = vpack.c.b16 %v2039, %v2038
  %v2075 = vpack.c.b16 %v2041, %v2040
  %v2076 = vpack.c.b16 %v2043, %v2042
  %v2077 = vpack.c.b16 %v2045, %v2044
  %2110 = vmatprep.subr.bf16.mxu0 0
  %2111 = vmatpush1.bf16.msra.mxu0 %v2053
  %2112 = vmatprep.subr.bf16.mxu0 0
  %2113 = vmatpush1.bf16.msra.mxu0 %v2052
  %2114 = vmatprep.subr.bf16.mxu0 0
  %2115 = vmatpush1.bf16.msra.mxu0 %v2051
  %2116 = vmatprep.subr.bf16.mxu0 0
  %2117 = vmatpush1.bf16.msra.mxu0 %v2050
  %2118 = vmatprep.subr.bf16.mxu0 0
  %2119 = vmatpush1.bf16.msra.mxu0 %v2049
  %2120 = vmatprep.subr.bf16.mxu0 0
  %2121 = vmatpush1.bf16.msra.mxu0 %v2048
  %2122 = vmatprep.subr.bf16.mxu0 0
  %2123 = vmatpush1.bf16.msra.mxu0 %v2047
  %2124 = vmatprep.subr.bf16.mxu0 0
  %2125 = vmatpush1.bf16.msra.mxu0 %v2046
  %2126 = vmatprep.subr.bf16.mxu0 0
  %2127 = vmatpush2.bf16.msra.mxu0 %v2061
  %2128 = vmatprep.subr.bf16.mxu0 0
  %2129 = vmatpush2.bf16.msra.mxu0 %v2060
  %2130 = vmatprep.subr.bf16.mxu0 0
  %2131 = vmatpush2.bf16.msra.mxu0 %v2059
  %2132 = vmatprep.subr.bf16.mxu0 0
  %2133 = vmatpush2.bf16.msra.mxu0 %v2058
  %2134 = vmatprep.subr.bf16.mxu0 0
  %2135 = vmatpush2.bf16.msra.mxu0 %v2057
  %2136 = vmatprep.subr.bf16.mxu0 0
  %2137 = vmatpush2.bf16.msra.mxu0 %v2056
  %2138 = vmatprep.subr.bf16.mxu0 0
  %2139 = vmatpush2.bf16.msra.mxu0 %v2055
  %2140 = vmatprep.subr.bf16.mxu0 0
  %2141 = vmatpush2.bf16.msra.mxu0 %v2054
  %2142 = vmatprep.mubr.bf16.mxu0 %v1345
  %2143 = vmatmul.mubr.bf16.gmra.mxu0 %v1344
  %v2144 = vpop.f32.mrf.mxu0
  %v2145 = vadd.f32 %v1912, %v2144
  %v2146 = vpop.f32.mrf.mxu0
  %v2147 = vpop.f32.mrf.mxu0
  %v2148 = vadd.f32 %v1915, %v2147
  %v2149 = vpop.f32.mrf.mxu0
  %2150 = vdwg.mxu0
  %2151 = vmatprep.subr.bf16.mxu0 0
  %2152 = vmatpush1.bf16.msra.mxu0 %v2069
  %2153 = vmatprep.subr.bf16.mxu0 0
  %2154 = vmatpush1.bf16.msra.mxu0 %v2068
  %2155 = vmatprep.subr.bf16.mxu0 0
  %2156 = vmatpush1.bf16.msra.mxu0 %v2067
  %2157 = vmatprep.subr.bf16.mxu0 0
  %2158 = vmatpush1.bf16.msra.mxu0 %v2066
  %2159 = vmatprep.subr.bf16.mxu0 0
  %2160 = vmatpush1.bf16.msra.mxu0 %v2065
  %2161 = vmatprep.subr.bf16.mxu0 0
  %2162 = vmatpush1.bf16.msra.mxu0 %v2064
  %2163 = vmatprep.subr.bf16.mxu0 0
  %2164 = vmatpush1.bf16.msra.mxu0 %v2063
  %2165 = vmatprep.subr.bf16.mxu0 0
  %2166 = vmatpush1.bf16.msra.mxu0 %v2062
  %2167 = vmatprep.subr.bf16.mxu0 0
  %2168 = vmatpush2.bf16.msra.mxu0 %v2077
  %2169 = vmatprep.subr.bf16.mxu0 0
  %2170 = vmatpush2.bf16.msra.mxu0 %v2076
  %2171 = vmatprep.subr.bf16.mxu0 0
  %2172 = vmatpush2.bf16.msra.mxu0 %v2075
  %2173 = vmatprep.subr.bf16.mxu0 0
  %2174 = vmatpush2.bf16.msra.mxu0 %v2074
  %2175 = vmatprep.subr.bf16.mxu0 0
  %2176 = vmatpush2.bf16.msra.mxu0 %v2073
  %2177 = vmatprep.subr.bf16.mxu0 0
  %2178 = vmatpush2.bf16.msra.mxu0 %v2072
  %2179 = vmatprep.subr.bf16.mxu0 0
  %2180 = vmatpush2.bf16.msra.mxu0 %v2071
  %2181 = vmatprep.subr.bf16.mxu0 0
  %2182 = vmatpush2.bf16.msra.mxu0 %v2070
  %2183 = vmatprep.mubr.bf16.mxu0 %v1347
  %2184 = vmatmul.mubr.bf16.gmra.mxu0 %v1346
  %v2185 = vpop.f32.mrf.mxu0
  %v2186 = vadd.f32 %v2145, %v2185
  %v2187 = vpop.f32.mrf.mxu0
  %v2188 = vpop.f32.mrf.mxu0
  %v2189 = vadd.f32 %v2148, %v2188
  %v2190 = vpop.f32.mrf.mxu0
  %2191 = vdwg.mxu0
  %v2192 = vld [vmem:[%s5 + $0x20] sm:$0xff]
  %v2193 = vld [vmem:[%s5 + $0x28] sm:$0xff]
  %v2194 = vld [vmem:[%s5 + $0x60] sm:$0xff]
  %v2195 = vld [vmem:[%s5 + $0x68] sm:$0xff]
  %v2196 = vld [vmem:[%s5 + $0xa0] sm:$0xff]
  %v2197 = vld [vmem:[%s5 + $0xa8] sm:$0xff]
  %v2198 = vld [vmem:[%s5 + $0xe0] sm:$0xff]
  %v2199 = vld [vmem:[%s5 + $0xe8] sm:$0xff]
  %v2200 = vld [vmem:[%s6 + $0x8] sm:$0xf]
  %v2202 = vlaneseq
  %v2203 = vshrl.u32 %v2202, 7
  %v2204 = vsub.s32 0, %v2203
  %v2205 = vrot.slane %v2200, %v2204
  %v2206 = vlaneseq
  %v2207 = vshrl.u32 %v2206, 7
  %v2208 = vsub.s32 1, %v2207
  %v2209 = vrot.slane %v2200, %v2208
  %v2210 = vlaneseq
  %v2211 = vshrl.u32 %v2210, 7
  %v2212 = vsub.s32 2, %v2211
  %v2213 = vrot.slane %v2200, %v2212
  %v2214 = vlaneseq
  %v2215 = vshrl.u32 %v2214, 7
  %v2216 = vsub.s32 3, %v2215
  %v2217 = vrot.slane %v2200, %v2216
  %v2230 = vunpack.c.l.b16 %v2192
  %v2231 = vunpack.c.h.b16 %v2192
  %v2232 = vunpack.c.l.b16 %v2193
  %v2233 = vunpack.c.h.b16 %v2193
  %v2234 = vunpack.c.l.b16 %v2194
  %v2235 = vunpack.c.h.b16 %v2194
  %v2236 = vunpack.c.l.b16 %v2195
  %v2237 = vunpack.c.h.b16 %v2195
  %v2238 = vunpack.c.l.b16 %v2196
  %v2239 = vunpack.c.h.b16 %v2196
  %v2240 = vunpack.c.l.b16 %v2197
  %v2241 = vunpack.c.h.b16 %v2197
  %v2242 = vunpack.c.l.b16 %v2198
  %v2243 = vunpack.c.h.b16 %v2198
  %v2244 = vunpack.c.l.b16 %v2199
  %v2245 = vunpack.c.h.b16 %v2199
  %v2246 = vpack.c.b16 %v2234, %v2230
  %v2247 = vpack.c.b16 %v2235, %v2231
  %v2248 = vpack.c.b16 %v2236, %v2232
  %v2249 = vpack.c.b16 %v2237, %v2233
  %v2250 = vpack.c.b16 %v2242, %v2238
  %v2251 = vpack.c.b16 %v2243, %v2239
  %v2252 = vpack.c.b16 %v2244, %v2240
  %v2253 = vpack.c.b16 %v2245, %v2241
  %2262 = vmatprep.subr.bf16.mxu0 0
  %2263 = vmatpush1.bf16.msra.mxu0 0
  %2264 = vmatprep.subr.bf16.mxu0 0
  %2265 = vmatpush1.bf16.msra.mxu0 0
  %2266 = vmatprep.subr.bf16.mxu0 0
  %2267 = vmatpush1.bf16.msra.mxu0 0
  %2268 = vmatprep.subr.bf16.mxu0 0
  %2269 = vmatpush1.bf16.msra.mxu0 0
  %2270 = vmatprep.subr.bf16.mxu0 0
  %2271 = vmatpush1.bf16.msra.mxu0 0
  %2272 = vmatprep.subr.bf16.mxu0 0
  %2273 = vmatpush1.bf16.msra.mxu0 0
  %2274 = vmatprep.subr.bf16.mxu0 %v2251
  %2275 = vmatpush1.bf16.msra.mxu0 %v2250
  %2276 = vmatprep.subr.bf16.mxu0 %v2247
  %2277 = vmatpush1.bf16.msra.mxu0 %v2246
  %2278 = vmatprep.subr.bf16.mxu0 0
  %2279 = vmatpush2.bf16.msra.mxu0 0
  %2280 = vmatprep.subr.bf16.mxu0 0
  %2281 = vmatpush2.bf16.msra.mxu0 0
  %2282 = vmatprep.subr.bf16.mxu0 0
  %2283 = vmatpush2.bf16.msra.mxu0 0
  %2284 = vmatprep.subr.bf16.mxu0 0
  %2285 = vmatpush2.bf16.msra.mxu0 0
  %2286 = vmatprep.subr.bf16.mxu0 0
  %2287 = vmatpush2.bf16.msra.mxu0 0
  %2288 = vmatprep.subr.bf16.mxu0 0
  %2289 = vmatpush2.bf16.msra.mxu0 0
  %2290 = vmatprep.subr.bf16.mxu0 0
  %2291 = vmatpush2.bf16.msra.mxu0 0
  %2292 = vmatprep.subr.bf16.mxu0 0
  %2293 = vmatpush2.bf16.msra.mxu0 0
  %2294 = vmatprep.mubr.bf16.mxu0 0
  %2295 = vmatmul.mubr.bf16.gmra.mxu0 %v1248
  %v2296 = vpop.f32.mrf.mxu0
  %v2297 = vadd.f32 %v2205, %v2296
  %v2298 = vpop.f32.mrf.mxu0
  %v2299 = vadd.f32 %v2209, %v2298
  %v2300 = vpop.f32.mrf.mxu0
  %v2301 = vadd.f32 %v2205, %v2300
  %v2302 = vpop.f32.mrf.mxu0
  %v2303 = vadd.f32 %v2209, %v2302
  %2304 = vdwg.mxu0
  %2305 = vmatprep.subr.bf16.mxu0 0
  %2306 = vmatpush1.bf16.msra.mxu0 0
  %2307 = vmatprep.subr.bf16.mxu0 0
  %2308 = vmatpush1.bf16.msra.mxu0 0
  %2309 = vmatprep.subr.bf16.mxu0 0
  %2310 = vmatpush1.bf16.msra.mxu0 0
  %2311 = vmatprep.subr.bf16.mxu0 0
  %2312 = vmatpush1.bf16.msra.mxu0 0
  %2313 = vmatprep.subr.bf16.mxu0 0
  %2314 = vmatpush1.bf16.msra.mxu0 0
  %2315 = vmatprep.subr.bf16.mxu0 0
  %2316 = vmatpush1.bf16.msra.mxu0 0
  %2317 = vmatprep.subr.bf16.mxu0 %v2253
  %2318 = vmatpush1.bf16.msra.mxu0 %v2252
  %2319 = vmatprep.subr.bf16.mxu0 %v2249
  %2320 = vmatpush1.bf16.msra.mxu0 %v2248
  %2321 = vmatprep.subr.bf16.mxu0 0
  %2322 = vmatpush2.bf16.msra.mxu0 0
  %2323 = vmatprep.subr.bf16.mxu0 0
  %2324 = vmatpush2.bf16.msra.mxu0 0
  %2325 = vmatprep.subr.bf16.mxu0 0
  %2326 = vmatpush2.bf16.msra.mxu0 0
  %2327 = vmatprep.subr.bf16.mxu0 0
  %2328 = vmatpush2.bf16.msra.mxu0 0
  %2329 = vmatprep.subr.bf16.mxu0 0
  %2330 = vmatpush2.bf16.msra.mxu0 0
  %2331 = vmatprep.subr.bf16.mxu0 0
  %2332 = vmatpush2.bf16.msra.mxu0 0
  %2333 = vmatprep.subr.bf16.mxu0 0
  %2334 = vmatpush2.bf16.msra.mxu0 0
  %2335 = vmatprep.subr.bf16.mxu0 0
  %2336 = vmatpush2.bf16.msra.mxu0 0
  %2337 = vmatprep.mubr.bf16.mxu0 0
  %2338 = vmatmul.mubr.bf16.gmra.mxu0 %v1248
  %v2339 = vpop.f32.mrf.mxu0
  %v2340 = vadd.f32 %v2213, %v2339
  %v2341 = vpop.f32.mrf.mxu0
  %v2342 = vadd.f32 %v2217, %v2341
  %v2343 = vpop.f32.mrf.mxu0
  %v2344 = vadd.f32 %v2213, %v2343
  %v2345 = vpop.f32.mrf.mxu0
  %v2346 = vadd.f32 %v2217, %v2345
  %2347 = vdwg.mxu0
  %v2348 = vmax.f32 %v2297, 0.0
  %v2349 = vmax.f32 %v2299, 0.0
  %v2350 = vmax.f32 %v2340, 0.0
  %v2351 = vmax.f32 %v2342, 0.0
  %v2352 = vmax.f32 %v2301, 0.0
  %v2353 = vmax.f32 %v2303, 0.0
  %v2354 = vmax.f32 %v2344, 0.0
  %v2355 = vmax.f32 %v2346, 0.0
  %v2356 = vpack.c.bf16 %v2352, %v2348
  %v2357 = vpack.c.bf16 %v2353, %v2349
  %v2358 = vpack.c.bf16 %v2354, %v2350
  %v2359 = vpack.c.bf16 %v2355, %v2351
  %v2360 = vld [vmem:[%s7 + $0x200] sm:$0xf]
  %v2361 = vld [vmem:[%s7 + $0x204] sm:$0xf]
  %v2362 = vld [vmem:[%s7 + $0x208] sm:$0xf]
  %v2363 = vld [vmem:[%s7 + $0x20c] sm:$0xf]
  %v2364 = vld [vmem:[%s7 + $0x210] sm:$0xf]
  %v2365 = vld [vmem:[%s7 + $0x214] sm:$0xf]
  %v2366 = vld [vmem:[%s7 + $0x218] sm:$0xf]
  %v2367 = vld [vmem:[%s7 + $0x21c] sm:$0xf]
  %v2368 = vld [vmem:[%s7 + $0x220] sm:$0xf]
  %v2369 = vld [vmem:[%s7 + $0x224] sm:$0xf]
  %v2370 = vld [vmem:[%s7 + $0x228] sm:$0xf]
  %v2371 = vld [vmem:[%s7 + $0x22c] sm:$0xf]
  %v2372 = vld [vmem:[%s7 + $0x230] sm:$0xf]
  %v2373 = vld [vmem:[%s7 + $0x234] sm:$0xf]
  %v2374 = vld [vmem:[%s7 + $0x238] sm:$0xf]
  %v2375 = vld [vmem:[%s7 + $0x23c] sm:$0xf]
  %v2376 = vld [vmem:[%s7 + $0x240] sm:$0xf]
  %v2377 = vld [vmem:[%s7 + $0x244] sm:$0xf]
  %v2378 = vld [vmem:[%s7 + $0x248] sm:$0xf]
  %v2379 = vld [vmem:[%s7 + $0x24c] sm:$0xf]
  %v2380 = vld [vmem:[%s7 + $0x250] sm:$0xf]
  %v2381 = vld [vmem:[%s7 + $0x254] sm:$0xf]
  %v2382 = vld [vmem:[%s7 + $0x258] sm:$0xf]
  %v2383 = vld [vmem:[%s7 + $0x25c] sm:$0xf]
  %v2384 = vld [vmem:[%s7 + $0x260] sm:$0xf]
  %v2385 = vld [vmem:[%s7 + $0x264] sm:$0xf]
  %v2386 = vld [vmem:[%s7 + $0x268] sm:$0xf]
  %v2387 = vld [vmem:[%s7 + $0x26c] sm:$0xf]
  %v2388 = vld [vmem:[%s7 + $0x270] sm:$0xf]
  %v2389 = vld [vmem:[%s7 + $0x274] sm:$0xf]
  %v2390 = vld [vmem:[%s7 + $0x278] sm:$0xf]
  %v2391 = vld [vmem:[%s7 + $0x27c] sm:$0xf]
  %v2392 = vld [vmem:[%s7 + $0x280] sm:$0xf]
  %v2393 = vld [vmem:[%s7 + $0x284] sm:$0xf]
  %v2394 = vld [vmem:[%s7 + $0x288] sm:$0xf]
  %v2395 = vld [vmem:[%s7 + $0x28c] sm:$0xf]
  %v2396 = vld [vmem:[%s7 + $0x290] sm:$0xf]
  %v2397 = vld [vmem:[%s7 + $0x294] sm:$0xf]
  %v2398 = vld [vmem:[%s7 + $0x298] sm:$0xf]
  %v2399 = vld [vmem:[%s7 + $0x29c] sm:$0xf]
  %v2400 = vld [vmem:[%s7 + $0x2a0] sm:$0xf]
  %v2401 = vld [vmem:[%s7 + $0x2a4] sm:$0xf]
  %v2402 = vld [vmem:[%s7 + $0x2a8] sm:$0xf]
  %v2403 = vld [vmem:[%s7 + $0x2ac] sm:$0xf]
  %v2404 = vld [vmem:[%s7 + $0x2b0] sm:$0xf]
  %v2405 = vld [vmem:[%s7 + $0x2b4] sm:$0xf]
  %v2406 = vld [vmem:[%s7 + $0x2b8] sm:$0xf]
  %v2407 = vld [vmem:[%s7 + $0x2bc] sm:$0xf]
  %v2408 = vld [vmem:[%s7 + $0x2c0] sm:$0xf]
  %v2409 = vld [vmem:[%s7 + $0x2c4] sm:$0xf]
  %v2410 = vld [vmem:[%s7 + $0x2c8] sm:$0xf]
  %v2411 = vld [vmem:[%s7 + $0x2cc] sm:$0xf]
  %v2412 = vld [vmem:[%s7 + $0x2d0] sm:$0xf]
  %v2413 = vld [vmem:[%s7 + $0x2d4] sm:$0xf]
  %v2414 = vld [vmem:[%s7 + $0x2d8] sm:$0xf]
  %v2415 = vld [vmem:[%s7 + $0x2dc] sm:$0xf]
  %v2416 = vld [vmem:[%s7 + $0x2e0] sm:$0xf]
  %v2417 = vld [vmem:[%s7 + $0x2e4] sm:$0xf]
  %v2418 = vld [vmem:[%s7 + $0x2e8] sm:$0xf]
  %v2419 = vld [vmem:[%s7 + $0x2ec] sm:$0xf]
  %v2420 = vld [vmem:[%s7 + $0x2f0] sm:$0xf]
  %v2421 = vld [vmem:[%s7 + $0x2f4] sm:$0xf]
  %v2422 = vld [vmem:[%s7 + $0x2f8] sm:$0xf]
  %v2423 = vld [vmem:[%s7 + $0x2fc] sm:$0xf]
  %v2488 = vunpack.c.l.b16 %v2360
  %v2489 = vunpack.c.l.b16 %v2361
  %v2490 = vunpack.c.l.b16 %v2362
  %v2491 = vunpack.c.l.b16 %v2363
  %v2492 = vunpack.c.l.b16 %v2364
  %v2493 = vunpack.c.l.b16 %v2365
  %v2494 = vunpack.c.l.b16 %v2366
  %v2495 = vunpack.c.l.b16 %v2367
  %v2496 = vunpack.c.l.b16 %v2368
  %v2497 = vunpack.c.l.b16 %v2369
  %v2498 = vunpack.c.l.b16 %v2370
  %v2499 = vunpack.c.l.b16 %v2371
  %v2500 = vunpack.c.l.b16 %v2372
  %v2501 = vunpack.c.l.b16 %v2373
  %v2502 = vunpack.c.l.b16 %v2374
  %v2503 = vunpack.c.l.b16 %v2375
  %v2504 = vunpack.c.l.b16 %v2376
  %v2505 = vunpack.c.l.b16 %v2377
  %v2506 = vunpack.c.l.b16 %v2378
  %v2507 = vunpack.c.l.b16 %v2379
  %v2508 = vunpack.c.l.b16 %v2380
  %v2509 = vunpack.c.l.b16 %v2381
  %v2510 = vunpack.c.l.b16 %v2382
  %v2511 = vunpack.c.l.b16 %v2383
  %v2512 = vunpack.c.l.b16 %v2384
  %v2513 = vunpack.c.l.b16 %v2385
  %v2514 = vunpack.c.l.b16 %v2386
  %v2515 = vunpack.c.l.b16 %v2387
  %v2516 = vunpack.c.l.b16 %v2388
  %v2517 = vunpack.c.l.b16 %v2389
  %v2518 = vunpack.c.l.b16 %v2390
  %v2519 = vunpack.c.l.b16 %v2391
  %v2520 = vunpack.c.l.b16 %v2392
  %v2521 = vunpack.c.l.b16 %v2393
  %v2522 = vunpack.c.l.b16 %v2394
  %v2523 = vunpack.c.l.b16 %v2395
  %v2524 = vunpack.c.l.b16 %v2396
  %v2525 = vunpack.c.l.b16 %v2397
  %v2526 = vunpack.c.l.b16 %v2398
  %v2527 = vunpack.c.l.b16 %v2399
  %v2528 = vunpack.c.l.b16 %v2400
  %v2529 = vunpack.c.l.b16 %v2401
  %v2530 = vunpack.c.l.b16 %v2402
  %v2531 = vunpack.c.l.b16 %v2403
  %v2532 = vunpack.c.l.b16 %v2404
  %v2533 = vunpack.c.l.b16 %v2405
  %v2534 = vunpack.c.l.b16 %v2406
  %v2535 = vunpack.c.l.b16 %v2407
  %v2536 = vunpack.c.l.b16 %v2408
  %v2537 = vunpack.c.l.b16 %v2409
  %v2538 = vunpack.c.l.b16 %v2410
  %v2539 = vunpack.c.l.b16 %v2411
  %v2540 = vunpack.c.l.b16 %v2412
  %v2541 = vunpack.c.l.b16 %v2413
  %v2542 = vunpack.c.l.b16 %v2414
  %v2543 = vunpack.c.l.b16 %v2415
  %v2544 = vunpack.c.l.b16 %v2416
  %v2545 = vunpack.c.l.b16 %v2417
  %v2546 = vunpack.c.l.b16 %v2418
  %v2547 = vunpack.c.l.b16 %v2419
  %v2548 = vunpack.c.l.b16 %v2420
  %v2549 = vunpack.c.l.b16 %v2421
  %v2550 = vunpack.c.l.b16 %v2422
  %v2551 = vunpack.c.l.b16 %v2423
  %v2552 = vpack.c.b16 %v2489, %v2488
  %v2553 = vpack.c.b16 %v2491, %v2490
  %v2554 = vpack.c.b16 %v2493, %v2492
  %v2555 = vpack.c.b16 %v2495, %v2494
  %v2556 = vpack.c.b16 %v2497, %v2496
  %v2557 = vpack.c.b16 %v2499, %v2498
  %v2558 = vpack.c.b16 %v2501, %v2500
  %v2559 = vpack.c.b16 %v2503, %v2502
  %v2560 = vpack.c.b16 %v2505, %v2504
  %v2561 = vpack.c.b16 %v2507, %v2506
  %v2562 = vpack.c.b16 %v2509, %v2508
  %v2563 = vpack.c.b16 %v2511, %v2510
  %v2564 = vpack.c.b16 %v2513, %v2512
  %v2565 = vpack.c.b16 %v2515, %v2514
  %v2566 = vpack.c.b16 %v2517, %v2516
  %v2567 = vpack.c.b16 %v2519, %v2518
  %v2568 = vpack.c.b16 %v2521, %v2520
  %v2569 = vpack.c.b16 %v2523, %v2522
  %v2570 = vpack.c.b16 %v2525, %v2524
  %v2571 = vpack.c.b16 %v2527, %v2526
  %v2572 = vpack.c.b16 %v2529, %v2528
  %v2573 = vpack.c.b16 %v2531, %v2530
  %v2574 = vpack.c.b16 %v2533, %v2532
  %v2575 = vpack.c.b16 %v2535, %v2534
  %v2576 = vpack.c.b16 %v2537, %v2536
  %v2577 = vpack.c.b16 %v2539, %v2538
  %v2578 = vpack.c.b16 %v2541, %v2540
  %v2579 = vpack.c.b16 %v2543, %v2542
  %v2580 = vpack.c.b16 %v2545, %v2544
  %v2581 = vpack.c.b16 %v2547, %v2546
  %v2582 = vpack.c.b16 %v2549, %v2548
  %v2583 = vpack.c.b16 %v2551, %v2550
  %2616 = vmatprep.subr.bf16.mxu0 0
  %2617 = vmatpush1.bf16.msra.mxu0 %v2559
  %2618 = vmatprep.subr.bf16.mxu0 0
  %2619 = vmatpush1.bf16.msra.mxu0 %v2558
  %2620 = vmatprep.subr.bf16.mxu0 0
  %2621 = vmatpush1.bf16.msra.mxu0 %v2557
  %2622 = vmatprep.subr.bf16.mxu0 0
  %2623 = vmatpush1.bf16.msra.mxu0 %v2556
  %2624 = vmatprep.subr.bf16.mxu0 0
  %2625 = vmatpush1.bf16.msra.mxu0 %v2555
  %2626 = vmatprep.subr.bf16.mxu0 0
  %2627 = vmatpush1.bf16.msra.mxu0 %v2554
  %2628 = vmatprep.subr.bf16.mxu0 0
  %2629 = vmatpush1.bf16.msra.mxu0 %v2553
  %2630 = vmatprep.subr.bf16.mxu0 0
  %2631 = vmatpush1.bf16.msra.mxu0 %v2552
  %2632 = vmatprep.subr.bf16.mxu0 0
  %2633 = vmatpush2.bf16.msra.mxu0 %v2567
  %2634 = vmatprep.subr.bf16.mxu0 0
  %2635 = vmatpush2.bf16.msra.mxu0 %v2566
  %2636 = vmatprep.subr.bf16.mxu0 0
  %2637 = vmatpush2.bf16.msra.mxu0 %v2565
  %2638 = vmatprep.subr.bf16.mxu0 0
  %2639 = vmatpush2.bf16.msra.mxu0 %v2564
  %2640 = vmatprep.subr.bf16.mxu0 0
  %2641 = vmatpush2.bf16.msra.mxu0 %v2563
  %2642 = vmatprep.subr.bf16.mxu0 0
  %2643 = vmatpush2.bf16.msra.mxu0 %v2562
  %2644 = vmatprep.subr.bf16.mxu0 0
  %2645 = vmatpush2.bf16.msra.mxu0 %v2561
  %2646 = vmatprep.subr.bf16.mxu0 0
  %2647 = vmatpush2.bf16.msra.mxu0 %v2560
  %2648 = vmatprep.mubr.bf16.mxu0 %v2357
  %2649 = vmatmul.mubr.bf16.gmra.mxu0 %v2356
  %v2650 = vpop.f32.mrf.mxu0
  %v2651 = vadd.f32 0.0, %v2650
  %v2652 = vpop.f32.mrf.mxu0
  %v2653 = vpop.f32.mrf.mxu0
  %v2654 = vadd.f32 0.0, %v2653
  %v2655 = vpop.f32.mrf.mxu0
  %2656 = vdwg.mxu0
  %2657 = vmatprep.subr.bf16.mxu0 0
  %2658 = vmatpush1.bf16.msra.mxu0 %v2575
  %2659 = vmatprep.subr.bf16.mxu0 0
  %2660 = vmatpush1.bf16.msra.mxu0 %v2574
  %2661 = vmatprep.subr.bf16.mxu0 0
  %2662 = vmatpush1.bf16.msra.mxu0 %v2573
  %2663 = vmatprep.subr.bf16.mxu0 0
  %2664 = vmatpush1.bf16.msra.mxu0 %v2572
  %2665 = vmatprep.subr.bf16.mxu0 0
  %2666 = vmatpush1.bf16.msra.mxu0 %v2571
  %2667 = vmatprep.subr.bf16.mxu0 0
  %2668 = vmatpush1.bf16.msra.mxu0 %v2570
  %2669 = vmatprep.subr.bf16.mxu0 0
  %2670 = vmatpush1.bf16.msra.mxu0 %v2569
  %2671 = vmatprep.subr.bf16.mxu0 0
  %2672 = vmatpush1.bf16.msra.mxu0 %v2568
  %2673 = vmatprep.subr.bf16.mxu0 0
  %2674 = vmatpush2.bf16.msra.mxu0 %v2583
  %2675 = vmatprep.subr.bf16.mxu0 0
  %2676 = vmatpush2.bf16.msra.mxu0 %v2582
  %2677 = vmatprep.subr.bf16.mxu0 0
  %2678 = vmatpush2.bf16.msra.mxu0 %v2581
  %2679 = vmatprep.subr.bf16.mxu0 0
  %2680 = vmatpush2.bf16.msra.mxu0 %v2580
  %2681 = vmatprep.subr.bf16.mxu0 0
  %2682 = vmatpush2.bf16.msra.mxu0 %v2579
  %2683 = vmatprep.subr.bf16.mxu0 0
  %2684 = vmatpush2.bf16.msra.mxu0 %v2578
  %2685 = vmatprep.subr.bf16.mxu0 0
  %2686 = vmatpush2.bf16.msra.mxu0 %v2577
  %2687 = vmatprep.subr.bf16.mxu0 0
  %2688 = vmatpush2.bf16.msra.mxu0 %v2576
  %2689 = vmatprep.mubr.bf16.mxu0 %v2359
  %2690 = vmatmul.mubr.bf16.gmra.mxu0 %v2358
  %v2691 = vpop.f32.mrf.mxu0
  %v2692 = vadd.f32 %v2651, %v2691
  %v2693 = vpop.f32.mrf.mxu0
  %v2694 = vpop.f32.mrf.mxu0
  %v2695 = vadd.f32 %v2654, %v2694
  %v2696 = vpop.f32.mrf.mxu0
  %2697 = vdwg.mxu0
  %v2698 = vadd.f32 %v2186, %v2692
  %v2699 = vadd.f32 %v2189, %v2695
  %v2700 = vld [vmem:[%s5 + $0x30] sm:$0xff]
  %v2701 = vld [vmem:[%s5 + $0x38] sm:$0xff]
  %v2702 = vld [vmem:[%s5 + $0x70] sm:$0xff]
  %v2703 = vld [vmem:[%s5 + $0x78] sm:$0xff]
  %v2704 = vld [vmem:[%s5 + $0xb0] sm:$0xff]
  %v2705 = vld [vmem:[%s5 + $0xb8] sm:$0xff]
  %v2706 = vld [vmem:[%s5 + $0xf0] sm:$0xff]
  %v2707 = vld [vmem:[%s5 + $0xf8] sm:$0xff]
  %v2708 = vld [vmem:[%s6 + $0xc] sm:$0xf]
  %v2710 = vlaneseq
  %v2711 = vshrl.u32 %v2710, 7
  %v2712 = vsub.s32 0, %v2711
  %v2713 = vrot.slane %v2708, %v2712
  %v2714 = vlaneseq
  %v2715 = vshrl.u32 %v2714, 7
  %v2716 = vsub.s32 1, %v2715
  %v2717 = vrot.slane %v2708, %v2716
  %v2718 = vlaneseq
  %v2719 = vshrl.u32 %v2718, 7
  %v2720 = vsub.s32 2, %v2719
  %v2721 = vrot.slane %v2708, %v2720
  %v2722 = vlaneseq
  %v2723 = vshrl.u32 %v2722, 7
  %v2724 = vsub.s32 3, %v2723
  %v2725 = vrot.slane %v2708, %v2724
  %v2738 = vunpack.c.l.b16 %v2700
  %v2739 = vunpack.c.h.b16 %v2700
  %v2740 = vunpack.c.l.b16 %v2701
  %v2741 = vunpack.c.h.b16 %v2701
  %v2742 = vunpack.c.l.b16 %v2702
  %v2743 = vunpack.c.h.b16 %v2702
  %v2744 = vunpack.c.l.b16 %v2703
  %v2745 = vunpack.c.h.b16 %v2703
  %v2746 = vunpack.c.l.b16 %v2704
  %v2747 = vunpack.c.h.b16 %v2704
  %v2748 = vunpack.c.l.b16 %v2705
  %v2749 = vunpack.c.h.b16 %v2705
  %v2750 = vunpack.c.l.b16 %v2706
  %v2751 = vunpack.c.h.b16 %v2706
  %v2752 = vunpack.c.l.b16 %v2707
  %v2753 = vunpack.c.h.b16 %v2707
  %v2754 = vpack.c.b16 %v2742, %v2738
  %v2755 = vpack.c.b16 %v2743, %v2739
  %v2756 = vpack.c.b16 %v2744, %v2740
  %v2757 = vpack.c.b16 %v2745, %v2741
  %v2758 = vpack.c.b16 %v2750, %v2746
  %v2759 = vpack.c.b16 %v2751, %v2747
  %v2760 = vpack.c.b16 %v2752, %v2748
  %v2761 = vpack.c.b16 %v2753, %v2749
  %2770 = vmatprep.subr.bf16.mxu0 0
  %2771 = vmatpush1.bf16.msra.mxu0 0
  %2772 = vmatprep.subr.bf16.mxu0 0
  %2773 = vmatpush1.bf16.msra.mxu0 0
  %2774 = vmatprep.subr.bf16.mxu0 0
  %2775 = vmatpush1.bf16.msra.mxu0 0
  %2776 = vmatprep.subr.bf16.mxu0 0
  %2777 = vmatpush1.bf16.msra.mxu0 0
  %2778 = vmatprep.subr.bf16.mxu0 0
  %2779 = vmatpush1.bf16.msra.mxu0 0
  %2780 = vmatprep.subr.bf16.mxu0 0
  %2781 = vmatpush1.bf16.msra.mxu0 0
  %2782 = vmatprep.subr.bf16.mxu0 %v2759
  %2783 = vmatpush1.bf16.msra.mxu0 %v2758
  %2784 = vmatprep.subr.bf16.mxu0 %v2755
  %2785 = vmatpush1.bf16.msra.mxu0 %v2754
  %2786 = vmatprep.subr.bf16.mxu0 0
  %2787 = vmatpush2.bf16.msra.mxu0 0
  %2788 = vmatprep.subr.bf16.mxu0 0
  %2789 = vmatpush2.bf16.msra.mxu0 0
  %2790 = vmatprep.subr.bf16.mxu0 0
  %2791 = vmatpush2.bf16.msra.mxu0 0
  %2792 = vmatprep.subr.bf16.mxu0 0
  %2793 = vmatpush2.bf16.msra.mxu0 0
  %2794 = vmatprep.subr.bf16.mxu0 0
  %2795 = vmatpush2.bf16.msra.mxu0 0
  %2796 = vmatprep.subr.bf16.mxu0 0
  %2797 = vmatpush2.bf16.msra.mxu0 0
  %2798 = vmatprep.subr.bf16.mxu0 0
  %2799 = vmatpush2.bf16.msra.mxu0 0
  %2800 = vmatprep.subr.bf16.mxu0 0
  %2801 = vmatpush2.bf16.msra.mxu0 0
  %2802 = vmatprep.mubr.bf16.mxu0 0
  %2803 = vmatmul.mubr.bf16.gmra.mxu0 %v1248
  %v2804 = vpop.f32.mrf.mxu0
  %v2805 = vadd.f32 %v2713, %v2804
  %v2806 = vpop.f32.mrf.mxu0
  %v2807 = vadd.f32 %v2717, %v2806
  %v2808 = vpop.f32.mrf.mxu0
  %v2809 = vadd.f32 %v2713, %v2808
  %v2810 = vpop.f32.mrf.mxu0
  %v2811 = vadd.f32 %v2717, %v2810
  %2812 = vdwg.mxu0
  %2813 = vmatprep.subr.bf16.mxu0 0
  %2814 = vmatpush1.bf16.msra.mxu0 0
  %2815 = vmatprep.subr.bf16.mxu0 0
  %2816 = vmatpush1.bf16.msra.mxu0 0
  %2817 = vmatprep.subr.bf16.mxu0 0
  %2818 = vmatpush1.bf16.msra.mxu0 0
  %2819 = vmatprep.subr.bf16.mxu0 0
  %2820 = vmatpush1.bf16.msra.mxu0 0
  %2821 = vmatprep.subr.bf16.mxu0 0
  %2822 = vmatpush1.bf16.msra.mxu0 0
  %2823 = vmatprep.subr.bf16.mxu0 0
  %2824 = vmatpush1.bf16.msra.mxu0 0
  %2825 = vmatprep.subr.bf16.mxu0 %v2761
  %2826 = vmatpush1.bf16.msra.mxu0 %v2760
  %2827 = vmatprep.subr.bf16.mxu0 %v2757
  %2828 = vmatpush1.bf16.msra.mxu0 %v2756
  %2829 = vmatprep.subr.bf16.mxu0 0
  %2830 = vmatpush2.bf16.msra.mxu0 0
  %2831 = vmatprep.subr.bf16.mxu0 0
  %2832 = vmatpush2.bf16.msra.mxu0 0
  %2833 = vmatprep.subr.bf16.mxu0 0
  %2834 = vmatpush2.bf16.msra.mxu0 0
  %2835 = vmatprep.subr.bf16.mxu0 0
  %2836 = vmatpush2.bf16.msra.mxu0 0
  %2837 = vmatprep.subr.bf16.mxu0 0
  %2838 = vmatpush2.bf16.msra.mxu0 0
  %2839 = vmatprep.subr.bf16.mxu0 0
  %2840 = vmatpush2.bf16.msra.mxu0 0
  %2841 = vmatprep.subr.bf16.mxu0 0
  %2842 = vmatpush2.bf16.msra.mxu0 0
  %2843 = vmatprep.subr.bf16.mxu0 0
  %2844 = vmatpush2.bf16.msra.mxu0 0
  %2845 = vmatprep.mubr.bf16.mxu0 0
  %2846 = vmatmul.mubr.bf16.gmra.mxu0 %v1248
  %v2847 = vpop.f32.mrf.mxu0
  %v2848 = vadd.f32 %v2721, %v2847
  %v2849 = vpop.f32.mrf.mxu0
  %v2850 = vadd.f32 %v2725, %v2849
  %v2851 = vpop.f32.mrf.mxu0
  %v2852 = vadd.f32 %v2721, %v2851
  %v2853 = vpop.f32.mrf.mxu0
  %v2854 = vadd.f32 %v2725, %v2853
  %2855 = vdwg.mxu0
  %v2856 = vmax.f32 %v2805, 0.0
  %v2857 = vmax.f32 %v2807, 0.0
  %v2858 = vmax.f32 %v2848, 0.0
  %v2859 = vmax.f32 %v2850, 0.0
  %v2860 = vmax.f32 %v2809, 0.0
  %v2861 = vmax.f32 %v2811, 0.0
  %v2862 = vmax.f32 %v2852, 0.0
  %v2863 = vmax.f32 %v2854, 0.0
  %v2864 = vpack.c.bf16 %v2860, %v2856
  %v2865 = vpack.c.bf16 %v2861, %v2857
  %v2866 = vpack.c.bf16 %v2862, %v2858
  %v2867 = vpack.c.bf16 %v2863, %v2859
  %v2868 = vld [vmem:[%s7 + $0x300] sm:$0xf]
  %v2869 = vld [vmem:[%s7 + $0x304] sm:$0xf]
  %v2870 = vld [vmem:[%s7 + $0x308] sm:$0xf]
  %v2871 = vld [vmem:[%s7 + $0x30c] sm:$0xf]
  %v2872 = vld [vmem:[%s7 + $0x310] sm:$0xf]
  %v2873 = vld [vmem:[%s7 + $0x314] sm:$0xf]
  %v2874 = vld [vmem:[%s7 + $0x318] sm:$0xf]
  %v2875 = vld [vmem:[%s7 + $0x31c] sm:$0xf]
  %v2876 = vld [vmem:[%s7 + $0x320] sm:$0xf]
  %v2877 = vld [vmem:[%s7 + $0x324] sm:$0xf]
  %v2878 = vld [vmem:[%s7 + $0x328] sm:$0xf]
  %v2879 = vld [vmem:[%s7 + $0x32c] sm:$0xf]
  %v2880 = vld [vmem:[%s7 + $0x330] sm:$0xf]
  %v2881 = vld [vmem:[%s7 + $0x334] sm:$0xf]
  %v2882 = vld [vmem:[%s7 + $0x338] sm:$0xf]
  %v2883 = vld [vmem:[%s7 + $0x33c] sm:$0xf]
  %v2884 = vld [vmem:[%s7 + $0x340] sm:$0xf]
  %v2885 = vld [vmem:[%s7 + $0x344] sm:$0xf]
  %v2886 = vld [vmem:[%s7 + $0x348] sm:$0xf]
  %v2887 = vld [vmem:[%s7 + $0x34c] sm:$0xf]
  %v2888 = vld [vmem:[%s7 + $0x350] sm:$0xf]
  %v2889 = vld [vmem:[%s7 + $0x354] sm:$0xf]
  %v2890 = vld [vmem:[%s7 + $0x358] sm:$0xf]
  %v2891 = vld [vmem:[%s7 + $0x35c] sm:$0xf]
  %v2892 = vld [vmem:[%s7 + $0x360] sm:$0xf]
  %v2893 = vld [vmem:[%s7 + $0x364] sm:$0xf]
  %v2894 = vld [vmem:[%s7 + $0x368] sm:$0xf]
  %v2895 = vld [vmem:[%s7 + $0x36c] sm:$0xf]
  %v2896 = vld [vmem:[%s7 + $0x370] sm:$0xf]
  %v2897 = vld [vmem:[%s7 + $0x374] sm:$0xf]
  %v2898 = vld [vmem:[%s7 + $0x378] sm:$0xf]
  %v2899 = vld [vmem:[%s7 + $0x37c] sm:$0xf]
  %v2900 = vld [vmem:[%s7 + $0x380] sm:$0xf]
  %v2901 = vld [vmem:[%s7 + $0x384] sm:$0xf]
  %v2902 = vld [vmem:[%s7 + $0x388] sm:$0xf]
  %v2903 = vld [vmem:[%s7 + $0x38c] sm:$0xf]
  %v2904 = vld [vmem:[%s7 + $0x390] sm:$0xf]
  %v2905 = vld [vmem:[%s7 + $0x394] sm:$0xf]
  %v2906 = vld [vmem:[%s7 + $0x398] sm:$0xf]
  %v2907 = vld [vmem:[%s7 + $0x39c] sm:$0xf]
  %v2908 = vld [vmem:[%s7 + $0x3a0] sm:$0xf]
  %v2909 = vld [vmem:[%s7 + $0x3a4] sm:$0xf]
  %v2910 = vld [vmem:[%s7 + $0x3a8] sm:$0xf]
  %v2911 = vld [vmem:[%s7 + $0x3ac] sm:$0xf]
  %v2912 = vld [vmem:[%s7 + $0x3b0] sm:$0xf]
  %v2913 = vld [vmem:[%s7 + $0x3b4] sm:$0xf]
  %v2914 = vld [vmem:[%s7 + $0x3b8] sm:$0xf]
  %v2915 = vld [vmem:[%s7 + $0x3bc] sm:$0xf]
  %v2916 = vld [vmem:[%s7 + $0x3c0] sm:$0xf]
  %v2917 = vld [vmem:[%s7 + $0x3c4] sm:$0xf]
  %v2918 = vld [vmem:[%s7 + $0x3c8] sm:$0xf]
  %v2919 = vld [vmem:[%s7 + $0x3cc] sm:$0xf]
  %v2920 = vld [vmem:[%s7 + $0x3d0] sm:$0xf]
  %v2921 = vld [vmem:[%s7 + $0x3d4] sm:$0xf]
  %v2922 = vld [vmem:[%s7 + $0x3d8] sm:$0xf]
  %v2923 = vld [vmem:[%s7 + $0x3dc] sm:$0xf]
  %v2924 = vld [vmem:[%s7 + $0x3e0] sm:$0xf]
  %v2925 = vld [vmem:[%s7 + $0x3e4] sm:$0xf]
  %v2926 = vld [vmem:[%s7 + $0x3e8] sm:$0xf]
  %v2927 = vld [vmem:[%s7 + $0x3ec] sm:$0xf]
  %v2928 = vld [vmem:[%s7 + $0x3f0] sm:$0xf]
  %v2929 = vld [vmem:[%s7 + $0x3f4] sm:$0xf]
  %v2930 = vld [vmem:[%s7 + $0x3f8] sm:$0xf]
  %v2931 = vld [vmem:[%s7 + $0x3fc] sm:$0xf]
  %v2996 = vunpack.c.l.b16 %v2868
  %v2997 = vunpack.c.l.b16 %v2869
  %v2998 = vunpack.c.l.b16 %v2870
  %v2999 = vunpack.c.l.b16 %v2871
  %v3000 = vunpack.c.l.b16 %v2872
  %v3001 = vunpack.c.l.b16 %v2873
  %v3002 = vunpack.c.l.b16 %v2874
  %v3003 = vunpack.c.l.b16 %v2875
  %v3004 = vunpack.c.l.b16 %v2876
  %v3005 = vunpack.c.l.b16 %v2877
  %v3006 = vunpack.c.l.b16 %v2878
  %v3007 = vunpack.c.l.b16 %v2879
  %v3008 = vunpack.c.l.b16 %v2880
  %v3009 = vunpack.c.l.b16 %v2881
  %v3010 = vunpack.c.l.b16 %v2882
  %v3011 = vunpack.c.l.b16 %v2883
  %v3012 = vunpack.c.l.b16 %v2884
  %v3013 = vunpack.c.l.b16 %v2885
  %v3014 = vunpack.c.l.b16 %v2886
  %v3015 = vunpack.c.l.b16 %v2887
  %v3016 = vunpack.c.l.b16 %v2888
  %v3017 = vunpack.c.l.b16 %v2889
  %v3018 = vunpack.c.l.b16 %v2890
  %v3019 = vunpack.c.l.b16 %v2891
  %v3020 = vunpack.c.l.b16 %v2892
  %v3021 = vunpack.c.l.b16 %v2893
  %v3022 = vunpack.c.l.b16 %v2894
  %v3023 = vunpack.c.l.b16 %v2895
  %v3024 = vunpack.c.l.b16 %v2896
  %v3025 = vunpack.c.l.b16 %v2897
  %v3026 = vunpack.c.l.b16 %v2898
  %v3027 = vunpack.c.l.b16 %v2899
  %v3028 = vunpack.c.l.b16 %v2900
  %v3029 = vunpack.c.l.b16 %v2901
  %v3030 = vunpack.c.l.b16 %v2902
  %v3031 = vunpack.c.l.b16 %v2903
  %v3032 = vunpack.c.l.b16 %v2904
  %v3033 = vunpack.c.l.b16 %v2905
  %v3034 = vunpack.c.l.b16 %v2906
  %v3035 = vunpack.c.l.b16 %v2907
  %v3036 = vunpack.c.l.b16 %v2908
  %v3037 = vunpack.c.l.b16 %v2909
  %v3038 = vunpack.c.l.b16 %v2910
  %v3039 = vunpack.c.l.b16 %v2911
  %v3040 = vunpack.c.l.b16 %v2912
  %v3041 = vunpack.c.l.b16 %v2913
  %v3042 = vunpack.c.l.b16 %v2914
  %v3043 = vunpack.c.l.b16 %v2915
  %v3044 = vunpack.c.l.b16 %v2916
  %v3045 = vunpack.c.l.b16 %v2917
  %v3046 = vunpack.c.l.b16 %v2918
  %v3047 = vunpack.c.l.b16 %v2919
  %v3048 = vunpack.c.l.b16 %v2920
  %v3049 = vunpack.c.l.b16 %v2921
  %v3050 = vunpack.c.l.b16 %v2922
  %v3051 = vunpack.c.l.b16 %v2923
  %v3052 = vunpack.c.l.b16 %v2924
  %v3053 = vunpack.c.l.b16 %v2925
  %v3054 = vunpack.c.l.b16 %v2926
  %v3055 = vunpack.c.l.b16 %v2927
  %v3056 = vunpack.c.l.b16 %v2928
  %v3057 = vunpack.c.l.b16 %v2929
  %v3058 = vunpack.c.l.b16 %v2930
  %v3059 = vunpack.c.l.b16 %v2931
  %v3060 = vpack.c.b16 %v2997, %v2996
  %v3061 = vpack.c.b16 %v2999, %v2998
  %v3062 = vpack.c.b16 %v3001, %v3000
  %v3063 = vpack.c.b16 %v3003, %v3002
  %v3064 = vpack.c.b16 %v3005, %v3004
  %v3065 = vpack.c.b16 %v3007, %v3006
  %v3066 = vpack.c.b16 %v3009, %v3008
  %v3067 = vpack.c.b16 %v3011, %v3010
  %v3068 = vpack.c.b16 %v3013, %v3012
  %v3069 = vpack.c.b16 %v3015, %v3014
  %v3070 = vpack.c.b16 %v3017, %v3016
  %v3071 = vpack.c.b16 %v3019, %v3018
  %v3072 = vpack.c.b16 %v3021, %v3020
  %v3073 = vpack.c.b16 %v3023, %v3022
  %v3074 = vpack.c.b16 %v3025, %v3024
  %v3075 = vpack.c.b16 %v3027, %v3026
  %v3076 = vpack.c.b16 %v3029, %v3028
  %v3077 = vpack.c.b16 %v3031, %v3030
  %v3078 = vpack.c.b16 %v3033, %v3032
  %v3079 = vpack.c.b16 %v3035, %v3034
  %v3080 = vpack.c.b16 %v3037, %v3036
  %v3081 = vpack.c.b16 %v3039, %v3038
  %v3082 = vpack.c.b16 %v3041, %v3040
  %v3083 = vpack.c.b16 %v3043, %v3042
  %v3084 = vpack.c.b16 %v3045, %v3044
  %v3085 = vpack.c.b16 %v3047, %v3046
  %v3086 = vpack.c.b16 %v3049, %v3048
  %v3087 = vpack.c.b16 %v3051, %v3050
  %v3088 = vpack.c.b16 %v3053, %v3052
  %v3089 = vpack.c.b16 %v3055, %v3054
  %v3090 = vpack.c.b16 %v3057, %v3056
  %v3091 = vpack.c.b16 %v3059, %v3058
  %3124 = vmatprep.subr.bf16.mxu0 0
  %3125 = vmatpush1.bf16.msra.mxu0 %v3067
  %3126 = vmatprep.subr.bf16.mxu0 0
  %3127 = vmatpush1.bf16.msra.mxu0 %v3066
  %3128 = vmatprep.subr.bf16.mxu0 0
  %3129 = vmatpush1.bf16.msra.mxu0 %v3065
  %3130 = vmatprep.subr.bf16.mxu0 0
  %3131 = vmatpush1.bf16.msra.mxu0 %v3064
  %3132 = vmatprep.subr.bf16.mxu0 0
  %3133 = vmatpush1.bf16.msra.mxu0 %v3063
  %3134 = vmatprep.subr.bf16.mxu0 0
  %3135 = vmatpush1.bf16.msra.mxu0 %v3062
  %3136 = vmatprep.subr.bf16.mxu0 0
  %3137 = vmatpush1.bf16.msra.mxu0 %v3061
  %3138 = vmatprep.subr.bf16.mxu0 0
  %3139 = vmatpush1.bf16.msra.mxu0 %v3060
  %3140 = vmatprep.subr.bf16.mxu0 0
  %3141 = vmatpush2.bf16.msra.mxu0 %v3075
  %3142 = vmatprep.subr.bf16.mxu0 0
  %3143 = vmatpush2.bf16.msra.mxu0 %v3074
  %3144 = vmatprep.subr.bf16.mxu0 0
  %3145 = vmatpush2.bf16.msra.mxu0 %v3073
  %3146 = vmatprep.subr.bf16.mxu0 0
  %3147 = vmatpush2.bf16.msra.mxu0 %v3072
  %3148 = vmatprep.subr.bf16.mxu0 0
  %3149 = vmatpush2.bf16.msra.mxu0 %v3071
  %3150 = vmatprep.subr.bf16.mxu0 0
  %3151 = vmatpush2.bf16.msra.mxu0 %v3070
  %3152 = vmatprep.subr.bf16.mxu0 0
  %3153 = vmatpush2.bf16.msra.mxu0 %v3069
  %3154 = vmatprep.subr.bf16.mxu0 0
  %3155 = vmatpush2.bf16.msra.mxu0 %v3068
  %3156 = vmatprep.mubr.bf16.mxu0 %v2865
  %3157 = vmatmul.mubr.bf16.gmra.mxu0 %v2864
  %v3158 = vpop.f32.mrf.mxu0
  %v3159 = vadd.f32 0.0, %v3158
  %v3160 = vpop.f32.mrf.mxu0
  %v3161 = vpop.f32.mrf.mxu0
  %v3162 = vadd.f32 0.0, %v3161
  %v3163 = vpop.f32.mrf.mxu0
  %3164 = vdwg.mxu0
  %3165 = vmatprep.subr.bf16.mxu0 0
  %3166 = vmatpush1.bf16.msra.mxu0 %v3083
  %3167 = vmatprep.subr.bf16.mxu0 0
  %3168 = vmatpush1.bf16.msra.mxu0 %v3082
  %3169 = vmatprep.subr.bf16.mxu0 0
  %3170 = vmatpush1.bf16.msra.mxu0 %v3081
  %3171 = vmatprep.subr.bf16.mxu0 0
  %3172 = vmatpush1.bf16.msra.mxu0 %v3080
  %3173 = vmatprep.subr.bf16.mxu0 0
  %3174 = vmatpush1.bf16.msra.mxu0 %v3079
  %3175 = vmatprep.subr.bf16.mxu0 0
  %3176 = vmatpush1.bf16.msra.mxu0 %v3078
  %3177 = vmatprep.subr.bf16.mxu0 0
  %3178 = vmatpush1.bf16.msra.mxu0 %v3077
  %3179 = vmatprep.subr.bf16.mxu0 0
  %3180 = vmatpush1.bf16.msra.mxu0 %v3076
  %3181 = vmatprep.subr.bf16.mxu0 0
  %3182 = vmatpush2.bf16.msra.mxu0 %v3091
  %3183 = vmatprep.subr.bf16.mxu0 0
  %3184 = vmatpush2.bf16.msra.mxu0 %v3090
  %3185 = vmatprep.subr.bf16.mxu0 0
  %3186 = vmatpush2.bf16.msra.mxu0 %v3089
  %3187 = vmatprep.subr.bf16.mxu0 0
  %3188 = vmatpush2.bf16.msra.mxu0 %v3088
  %3189 = vmatprep.subr.bf16.mxu0 0
  %3190 = vmatpush2.bf16.msra.mxu0 %v3087
  %3191 = vmatprep.subr.bf16.mxu0 0
  %3192 = vmatpush2.bf16.msra.mxu0 %v3086
  %3193 = vmatprep.subr.bf16.mxu0 0
  %3194 = vmatpush2.bf16.msra.mxu0 %v3085
  %3195 = vmatprep.subr.bf16.mxu0 0
  %3196 = vmatpush2.bf16.msra.mxu0 %v3084
  %3197 = vmatprep.mubr.bf16.mxu0 %v2867
  %3198 = vmatmul.mubr.bf16.gmra.mxu0 %v2866
  %v3199 = vpop.f32.mrf.mxu0
  %v3200 = vadd.f32 %v3159, %v3199
  %v3201 = vpop.f32.mrf.mxu0
  %v3202 = vpop.f32.mrf.mxu0
  %v3203 = vadd.f32 %v3162, %v3202
  %v3204 = vpop.f32.mrf.mxu0
  %3205 = vdwg.mxu0
  %v3206 = vadd.f32 %v2698, %v3200
  %v3207 = vadd.f32 %v2699, %v3203
  %v3208 = vadd.f32 %v1174, %v3206
  %v3209 = vadd.f32 %v1175, %v3207
  %v3210 = vld [vmem:[%s8] sm:$0x1]
  %v3212 = vlaneseq
  %v3213 = vshrl.u32 %v3212, 7
  %v3214 = vsub.s32 0, %v3213
  %v3215 = vrot.slane %v3210, %v3214
  %v3217 = vadd.f32 %v3208, %v3215
  %v3218 = vadd.f32 %v3209, %v3215
  %v3219 = vld [vmem:[%s11] sm:$0x1]
  %v3220 = vld [vmem:[%s12] sm:$0x1]
  %v3221 = vsel %vm80, %v3217, 0.0
  %3222 = vadd.xlane.f32.xlu0 %v3221
  %v3223 = vpop.xlane.xlu0 %3222
  %v3224 = vsel %vm80, %v3218, 0.0
  %3225 = vadd.xlane.f32.xlu0 %v3224
  %v3226 = vpop.xlane.xlu0 %3225
  %v3227 = vmul.f32 %v3223, %v1139
  %v3228 = vmul.f32 %v3226, %v1139
  %v3229 = vsub.f32 %v3217, %v3227
  %v3230 = vsub.f32 %v3218, %v3228
  %v3231 = vmul.f32 %v3229, %v3229
  %v3232 = vmul.f32 %v3230, %v3230
  %v3233 = vsel %vm80, %v3231, 0.0
  %3234 = vadd.xlane.f32.xlu0 %v3233
  %v3235 = vpop.xlane.xlu0 %3234
  %v3236 = vsel %vm80, %v3232, 0.0
  %3237 = vadd.xlane.f32.xlu0 %v3236
  %v3238 = vpop.xlane.xlu0 %3237
  %v3239 = vmul.f32 %v3235, %v1139
  %v3240 = vmul.f32 %v3238, %v1139
  %v3241 = vadd.f32 %v3239, 1e-05
  %v3242 = vadd.f32 %v3240, 1e-05
  %v3243 = vrsqrt.pop %v3241
  %v3244 = vrsqrt.pop %v3242
  %v3245 = vmul.f32 %v3229, %v3243
  %v3246 = vmul.f32 %v3230, %v3244
  %v3248 = vlaneseq
  %v3249 = vshrl.u32 %v3248, 7
  %v3250 = vsub.s32 0, %v3249
  %v3251 = vrot.slane %v3219, %v3250
  %v3253 = vmul.f32 %v3245, %v3251
  %v3254 = vmul.f32 %v3246, %v3251
  %v3256 = vlaneseq
  %v3257 = vshrl.u32 %v3256, 7
  %v3258 = vsub.s32 0, %v3257
  %v3259 = vrot.slane %v3220, %v3258
  %v3261 = vadd.f32 %v3253, %v3259
  %v3262 = vadd.f32 %v3254, %v3259
  %v3263 = vpack.c.bf16 %v3262, %v3261
  %s3264 = scalar_lea.vmem %s1, 16
  %v3265 = vld [vmem:[%s3264] sm:$0xf]
  %v3266 = vld [vmem:[%s3264 + $0x4] sm:$0xf]
  %v3267 = vld [vmem:[%s3264 + $0x8] sm:$0xf]
  %v3268 = vld [vmem:[%s3264 + $0xc] sm:$0xf]
  %s3269 = scalar_lea.vmem %s2, 1
  %v3270 = vld [vmem:[%s3269] sm:$0x1]
  %v3272 = vlaneseq
  %v3273 = vshrl.u32 %v3272, 7
  %v3274 = vsub.s32 0, %v3273
  %v3275 = vrot.slane %v3270, %v3274
  %v3281 = vunpack.c.l.b16 %v3265
  %v3282 = vunpack.c.l.b16 %v3266
  %v3283 = vunpack.c.l.b16 %v3267
  %v3284 = vunpack.c.l.b16 %v3268
  %v3285 = vpack.c.b16 %v3282, %v3281
  %v3286 = vpack.c.b16 %v3284, %v3283
  %v3290 = vsel %vm80, %v3263, 0
  %3292 = vmatprep.subr.bf16.mxu0 0
  %3293 = vmatpush1.bf16.msra.mxu0 0
  %3294 = vmatprep.subr.bf16.mxu0 0
  %3295 = vmatpush1.bf16.msra.mxu0 0
  %3296 = vmatprep.subr.bf16.mxu0 0
  %3297 = vmatpush1.bf16.msra.mxu0 0
  %3298 = vmatprep.subr.bf16.mxu0 0
  %3299 = vmatpush1.bf16.msra.mxu0 0
  %3300 = vmatprep.subr.bf16.mxu0 0
  %3301 = vmatpush1.bf16.msra.mxu0 0
  %3302 = vmatprep.subr.bf16.mxu0 0
  %3303 = vmatpush1.bf16.msra.mxu0 0
  %3304 = vmatprep.subr.bf16.mxu0 0
  %3305 = vmatpush1.bf16.msra.mxu0 %v3286
  %3306 = vmatprep.subr.bf16.mxu0 0
  %3307 = vmatpush1.bf16.msra.mxu0 %v3285
  %3308 = vmatprep.subr.bf16.mxu0 0
  %3309 = vmatpush2.bf16.msra.mxu0 0
  %3310 = vmatprep.subr.bf16.mxu0 0
  %3311 = vmatpush2.bf16.msra.mxu0 0
  %3312 = vmatprep.subr.bf16.mxu0 0
  %3313 = vmatpush2.bf16.msra.mxu0 0
  %3314 = vmatprep.subr.bf16.mxu0 0
  %3315 = vmatpush2.bf16.msra.mxu0 0
  %3316 = vmatprep.subr.bf16.mxu0 0
  %3317 = vmatpush2.bf16.msra.mxu0 0
  %3318 = vmatprep.subr.bf16.mxu0 0
  %3319 = vmatpush2.bf16.msra.mxu0 0
  %3320 = vmatprep.subr.bf16.mxu0 0
  %3321 = vmatpush2.bf16.msra.mxu0 0
  %3322 = vmatprep.subr.bf16.mxu0 0
  %3323 = vmatpush2.bf16.msra.mxu0 0
  %3324 = vmatprep.mubr.bf16.mxu0 0
  %3325 = vmatmul.mubr.bf16.gmra.mxu0 %v3290
  %v3326 = vpop.f32.mrf.mxu0
  %v3327 = vadd.f32 %v3275, %v3326
  %v3328 = vpop.f32.mrf.mxu0
  %v3329 = vpop.f32.mrf.mxu0
  %v3330 = vadd.f32 %v3275, %v3329
  %v3331 = vpop.f32.mrf.mxu0
  %3332 = vdwg.mxu0
  %3335 = vrot.lane.b32.xlu0 %v3327, 120
  %v3336 = vpop.permute.xlu0 %3335
  %3337 = vrot.lane.b32.xlu0 %v3330, 120
  %v3338 = vpop.permute.xlu0 %3337
  %3341 = vrot.lane.b32.xlu0 %v3327, 112
  %v3342 = vpop.permute.xlu0 %3341
  %3343 = vrot.lane.b32.xlu0 %v3330, 112
  %v3344 = vpop.permute.xlu0 %3343
  %3347 = vrot.lane.b32.xlu0 %v3327, 104
  %v3348 = vpop.permute.xlu0 %3347
  %3349 = vrot.lane.b32.xlu0 %v3330, 104
  %v3350 = vpop.permute.xlu0 %3349
  %v3353 = vpack.c.bf16 %v3327, %v3327
  %v3354 = vpack.c.bf16 %v3330, %v3330
  %v3355 = vpack.c.bf16 %v3336, %v3336
  %v3356 = vpack.c.bf16 %v3338, %v3338
  %v3357 = vpack.c.bf16 %v3342, %v3342
  %v3358 = vpack.c.bf16 %v3344, %v3344
  %v3359 = vpack.c.bf16 %v3348, %v3348
  %v3360 = vpack.c.bf16 %v3350, %v3350
  %3362 = vrot.lane.b32.xlu0 %v3353, 96
  %v3363 = vpop.permute.xlu0 %3362
  %v3365 = vsel %vm156, %v3353, 0
  %v3368 = vsel %vm156, %v3363, 0
  %3370 = vmatprep.subr.bf16.mxu0 0
  %3371 = vmatpush1.bf16.xpose.msra.mxu0 0
  %3372 = vmatprep.subr.bf16.mxu0 0
  %3373 = vmatpush1.bf16.xpose.msra.mxu0 0
  %3374 = vmatprep.subr.bf16.mxu0 0
  %3375 = vmatpush1.bf16.xpose.msra.mxu0 0
  %3376 = vmatprep.subr.bf16.mxu0 0
  %3377 = vmatpush1.bf16.xpose.msra.mxu0 0
  %3378 = vmatprep.subr.bf16.mxu0 0
  %3379 = vmatpush1.bf16.xpose.msra.mxu0 0
  %3380 = vmatprep.subr.bf16.mxu0 0
  %3381 = vmatpush1.bf16.xpose.msra.mxu0 0
  %3382 = vmatprep.subr.bf16.mxu0 0
  %3383 = vmatpush1.bf16.xpose.msra.mxu0 0
  %3384 = vmatprep.subr.bf16.mxu0 0
  %3385 = vmatpush1.bf16.xpose.msra.mxu0 %v3368
  %3386 = vmatprep.subr.bf16.mxu0 0
  %3387 = vmatpush2.bf16.xpose.msra.mxu0 0
  %3388 = vmatprep.subr.bf16.mxu0 0
  %3389 = vmatpush2.bf16.xpose.msra.mxu0 0
  %3390 = vmatprep.subr.bf16.mxu0 0
  %3391 = vmatpush2.bf16.xpose.msra.mxu0 0
  %3392 = vmatprep.subr.bf16.mxu0 0
  %3393 = vmatpush2.bf16.xpose.msra.mxu0 0
  %3394 = vmatprep.subr.bf16.mxu0 0
  %3395 = vmatpush2.bf16.xpose.msra.mxu0 0
  %3396 = vmatprep.subr.bf16.mxu0 0
  %3397 = vmatpush2.bf16.xpose.msra.mxu0 0
  %3398 = vmatprep.subr.bf16.mxu0 0
  %3399 = vmatpush2.bf16.xpose.msra.mxu0 0
  %3400 = vmatprep.subr.bf16.mxu0 0
  %3401 = vmatpush2.bf16.xpose.msra.mxu0 0
  %3402 = vmatprep.mubr.bf16.mxu0 0
  %3403 = vmatmul.mubr.bf16.gmra.mxu0 %v3365
  %v3404 = vpop.f32.mrf.mxu0
  %v3405 = vadd.f32 %v55, %v3404
  %v3406 = vpop.f32.mrf.mxu0
  %v3407 = vpop.f32.mrf.mxu0
  %v3408 = vpop.f32.mrf.mxu0
  %3409 = vdwg.mxu0
  %3411 = vrot.lane.b32.xlu0 %v3354, 96
  %v3412 = vpop.permute.xlu0 %3411
  %v3414 = vsel %vm156, %v3354, 0
  %v3417 = vsel %vm156, %v3412, 0
  %3419 = vmatprep.subr.bf16.mxu0 0
  %3420 = vmatpush1.bf16.xpose.msra.mxu0 0
  %3421 = vmatprep.subr.bf16.mxu0 0
  %3422 = vmatpush1.bf16.xpose.msra.mxu0 0
  %3423 = vmatprep.subr.bf16.mxu0 0
  %3424 = vmatpush1.bf16.xpose.msra.mxu0 0
  %3425 = vmatprep.subr.bf16.mxu0 0
  %3426 = vmatpush1.bf16.xpose.msra.mxu0 0
  %3427 = vmatprep.subr.bf16.mxu0 0
  %3428 = vmatpush1.bf16.xpose.msra.mxu0 0
  %3429 = vmatprep.subr.bf16.mxu0 0
  %3430 = vmatpush1.bf16.xpose.msra.mxu0 0
  %3431 = vmatprep.subr.bf16.mxu0 0
  %3432 = vmatpush1.bf16.xpose.msra.mxu0 0
  %3433 = vmatprep.subr.bf16.mxu0 0
  %3434 = vmatpush1.bf16.xpose.msra.mxu0 %v3417
  %3435 = vmatprep.subr.bf16.mxu0 0
  %3436 = vmatpush2.bf16.xpose.msra.mxu0 0
  %3437 = vmatprep.subr.bf16.mxu0 0
  %3438 = vmatpush2.bf16.xpose.msra.mxu0 0
  %3439 = vmatprep.subr.bf16.mxu0 0
  %3440 = vmatpush2.bf16.xpose.msra.mxu0 0
  %3441 = vmatprep.subr.bf16.mxu0 0
  %3442 = vmatpush2.bf16.xpose.msra.mxu0 0
  %3443 = vmatprep.subr.bf16.mxu0 0
  %3444 = vmatpush2.bf16.xpose.msra.mxu0 0
  %3445 = vmatprep.subr.bf16.mxu0 0
  %3446 = vmatpush2.bf16.xpose.msra.mxu0 0
  %3447 = vmatprep.subr.bf16.mxu0 0
  %3448 = vmatpush2.bf16.xpose.msra.mxu0 0
  %3449 = vmatprep.subr.bf16.mxu0 0
  %3450 = vmatpush2.bf16.xpose.msra.mxu0 0
  %3451 = vmatprep.mubr.bf16.mxu0 0
  %3452 = vmatmul.mubr.bf16.gmra.mxu0 %v3414
  %v3453 = vpop.f32.mrf.mxu0
  %v3454 = vadd.f32 %v55, %v3453
  %v3455 = vpop.f32.mrf.mxu0
  %v3456 = vpop.f32.mrf.mxu0
  %v3457 = vpop.f32.mrf.mxu0
  %3458 = vdwg.mxu0
  %3460 = vrot.lane.b32.xlu0 %v3355, 96
  %v3461 = vpop.permute.xlu0 %3460
  %v3463 = vsel %vm156, %v3355, 0
  %v3466 = vsel %vm156, %v3461, 0
  %3468 = vmatprep.subr.bf16.mxu0 0
  %3469 = vmatpush1.bf16.xpose.msra.mxu0 0
  %3470 = vmatprep.subr.bf16.mxu0 0
  %3471 = vmatpush1.bf16.xpose.msra.mxu0 0
  %3472 = vmatprep.subr.bf16.mxu0 0
  %3473 = vmatpush1.bf16.xpose.msra.mxu0 0
  %3474 = vmatprep.subr.bf16.mxu0 0
  %3475 = vmatpush1.bf16.xpose.msra.mxu0 0
  %3476 = vmatprep.subr.bf16.mxu0 0
  %3477 = vmatpush1.bf16.xpose.msra.mxu0 0
  %3478 = vmatprep.subr.bf16.mxu0 0
  %3479 = vmatpush1.bf16.xpose.msra.mxu0 0
  %3480 = vmatprep.subr.bf16.mxu0 0
  %3481 = vmatpush1.bf16.xpose.msra.mxu0 0
  %3482 = vmatprep.subr.bf16.mxu0 0
  %3483 = vmatpush1.bf16.xpose.msra.mxu0 %v3466
  %3484 = vmatprep.subr.bf16.mxu0 0
  %3485 = vmatpush2.bf16.xpose.msra.mxu0 0
  %3486 = vmatprep.subr.bf16.mxu0 0
  %3487 = vmatpush2.bf16.xpose.msra.mxu0 0
  %3488 = vmatprep.subr.bf16.mxu0 0
  %3489 = vmatpush2.bf16.xpose.msra.mxu0 0
  %3490 = vmatprep.subr.bf16.mxu0 0
  %3491 = vmatpush2.bf16.xpose.msra.mxu0 0
  %3492 = vmatprep.subr.bf16.mxu0 0
  %3493 = vmatpush2.bf16.xpose.msra.mxu0 0
  %3494 = vmatprep.subr.bf16.mxu0 0
  %3495 = vmatpush2.bf16.xpose.msra.mxu0 0
  %3496 = vmatprep.subr.bf16.mxu0 0
  %3497 = vmatpush2.bf16.xpose.msra.mxu0 0
  %3498 = vmatprep.subr.bf16.mxu0 0
  %3499 = vmatpush2.bf16.xpose.msra.mxu0 0
  %3500 = vmatprep.mubr.bf16.mxu0 0
  %3501 = vmatmul.mubr.bf16.gmra.mxu0 %v3463
  %v3502 = vpop.f32.mrf.mxu0
  %v3503 = vadd.f32 %v55, %v3502
  %v3504 = vpop.f32.mrf.mxu0
  %v3505 = vpop.f32.mrf.mxu0
  %v3506 = vpop.f32.mrf.mxu0
  %3507 = vdwg.mxu0
  %3509 = vrot.lane.b32.xlu0 %v3356, 96
  %v3510 = vpop.permute.xlu0 %3509
  %v3512 = vsel %vm156, %v3356, 0
  %v3515 = vsel %vm156, %v3510, 0
  %3517 = vmatprep.subr.bf16.mxu0 0
  %3518 = vmatpush1.bf16.xpose.msra.mxu0 0
  %3519 = vmatprep.subr.bf16.mxu0 0
  %3520 = vmatpush1.bf16.xpose.msra.mxu0 0
  %3521 = vmatprep.subr.bf16.mxu0 0
  %3522 = vmatpush1.bf16.xpose.msra.mxu0 0
  %3523 = vmatprep.subr.bf16.mxu0 0
  %3524 = vmatpush1.bf16.xpose.msra.mxu0 0
  %3525 = vmatprep.subr.bf16.mxu0 0
  %3526 = vmatpush1.bf16.xpose.msra.mxu0 0
  %3527 = vmatprep.subr.bf16.mxu0 0
  %3528 = vmatpush1.bf16.xpose.msra.mxu0 0
  %3529 = vmatprep.subr.bf16.mxu0 0
  %3530 = vmatpush1.bf16.xpose.msra.mxu0 0
  %3531 = vmatprep.subr.bf16.mxu0 0
  %3532 = vmatpush1.bf16.xpose.msra.mxu0 %v3515
  %3533 = vmatprep.subr.bf16.mxu0 0
  %3534 = vmatpush2.bf16.xpose.msra.mxu0 0
  %3535 = vmatprep.subr.bf16.mxu0 0
  %3536 = vmatpush2.bf16.xpose.msra.mxu0 0
  %3537 = vmatprep.subr.bf16.mxu0 0
  %3538 = vmatpush2.bf16.xpose.msra.mxu0 0
  %3539 = vmatprep.subr.bf16.mxu0 0
  %3540 = vmatpush2.bf16.xpose.msra.mxu0 0
  %3541 = vmatprep.subr.bf16.mxu0 0
  %3542 = vmatpush2.bf16.xpose.msra.mxu0 0
  %3543 = vmatprep.subr.bf16.mxu0 0
  %3544 = vmatpush2.bf16.xpose.msra.mxu0 0
  %3545 = vmatprep.subr.bf16.mxu0 0
  %3546 = vmatpush2.bf16.xpose.msra.mxu0 0
  %3547 = vmatprep.subr.bf16.mxu0 0
  %3548 = vmatpush2.bf16.xpose.msra.mxu0 0
  %3549 = vmatprep.mubr.bf16.mxu0 0
  %3550 = vmatmul.mubr.bf16.gmra.mxu0 %v3512
  %v3551 = vpop.f32.mrf.mxu0
  %v3552 = vadd.f32 %v55, %v3551
  %v3553 = vpop.f32.mrf.mxu0
  %v3554 = vpop.f32.mrf.mxu0
  %v3555 = vpop.f32.mrf.mxu0
  %3556 = vdwg.mxu0
  %3558 = vrot.lane.b32.xlu0 %v3357, 96
  %v3559 = vpop.permute.xlu0 %3558
  %v3561 = vsel %vm156, %v3357, 0
  %v3564 = vsel %vm156, %v3559, 0
  %3566 = vmatprep.subr.bf16.mxu0 0
  %3567 = vmatpush1.bf16.xpose.msra.mxu0 0
  %3568 = vmatprep.subr.bf16.mxu0 0
  %3569 = vmatpush1.bf16.xpose.msra.mxu0 0
  %3570 = vmatprep.subr.bf16.mxu0 0
  %3571 = vmatpush1.bf16.xpose.msra.mxu0 0
  %3572 = vmatprep.subr.bf16.mxu0 0
  %3573 = vmatpush1.bf16.xpose.msra.mxu0 0
  %3574 = vmatprep.subr.bf16.mxu0 0
  %3575 = vmatpush1.bf16.xpose.msra.mxu0 0
  %3576 = vmatprep.subr.bf16.mxu0 0
  %3577 = vmatpush1.bf16.xpose.msra.mxu0 0
  %3578 = vmatprep.subr.bf16.mxu0 0
  %3579 = vmatpush1.bf16.xpose.msra.mxu0 0
  %3580 = vmatprep.subr.bf16.mxu0 0
  %3581 = vmatpush1.bf16.xpose.msra.mxu0 %v3564
  %3582 = vmatprep.subr.bf16.mxu0 0
  %3583 = vmatpush2.bf16.xpose.msra.mxu0 0
  %3584 = vmatprep.subr.bf16.mxu0 0
  %3585 = vmatpush2.bf16.xpose.msra.mxu0 0
  %3586 = vmatprep.subr.bf16.mxu0 0
  %3587 = vmatpush2.bf16.xpose.msra.mxu0 0
  %3588 = vmatprep.subr.bf16.mxu0 0
  %3589 = vmatpush2.bf16.xpose.msra.mxu0 0
  %3590 = vmatprep.subr.bf16.mxu0 0
  %3591 = vmatpush2.bf16.xpose.msra.mxu0 0
  %3592 = vmatprep.subr.bf16.mxu0 0
  %3593 = vmatpush2.bf16.xpose.msra.mxu0 0
  %3594 = vmatprep.subr.bf16.mxu0 0
  %3595 = vmatpush2.bf16.xpose.msra.mxu0 0
  %3596 = vmatprep.subr.bf16.mxu0 0
  %3597 = vmatpush2.bf16.xpose.msra.mxu0 0
  %3598 = vmatprep.mubr.bf16.mxu0 0
  %3599 = vmatmul.mubr.bf16.gmra.mxu0 %v3561
  %v3600 = vpop.f32.mrf.mxu0
  %v3601 = vadd.f32 %v55, %v3600
  %v3602 = vpop.f32.mrf.mxu0
  %v3603 = vpop.f32.mrf.mxu0
  %v3604 = vpop.f32.mrf.mxu0
  %3605 = vdwg.mxu0
  %3607 = vrot.lane.b32.xlu0 %v3358, 96
  %v3608 = vpop.permute.xlu0 %3607
  %v3610 = vsel %vm156, %v3358, 0
  %v3613 = vsel %vm156, %v3608, 0
  %3615 = vmatprep.subr.bf16.mxu0 0
  %3616 = vmatpush1.bf16.xpose.msra.mxu0 0
  %3617 = vmatprep.subr.bf16.mxu0 0
  %3618 = vmatpush1.bf16.xpose.msra.mxu0 0
  %3619 = vmatprep.subr.bf16.mxu0 0
  %3620 = vmatpush1.bf16.xpose.msra.mxu0 0
  %3621 = vmatprep.subr.bf16.mxu0 0
  %3622 = vmatpush1.bf16.xpose.msra.mxu0 0
  %3623 = vmatprep.subr.bf16.mxu0 0
  %3624 = vmatpush1.bf16.xpose.msra.mxu0 0
  %3625 = vmatprep.subr.bf16.mxu0 0
  %3626 = vmatpush1.bf16.xpose.msra.mxu0 0
  %3627 = vmatprep.subr.bf16.mxu0 0
  %3628 = vmatpush1.bf16.xpose.msra.mxu0 0
  %3629 = vmatprep.subr.bf16.mxu0 0
  %3630 = vmatpush1.bf16.xpose.msra.mxu0 %v3613
  %3631 = vmatprep.subr.bf16.mxu0 0
  %3632 = vmatpush2.bf16.xpose.msra.mxu0 0
  %3633 = vmatprep.subr.bf16.mxu0 0
  %3634 = vmatpush2.bf16.xpose.msra.mxu0 0
  %3635 = vmatprep.subr.bf16.mxu0 0
  %3636 = vmatpush2.bf16.xpose.msra.mxu0 0
  %3637 = vmatprep.subr.bf16.mxu0 0
  %3638 = vmatpush2.bf16.xpose.msra.mxu0 0
  %3639 = vmatprep.subr.bf16.mxu0 0
  %3640 = vmatpush2.bf16.xpose.msra.mxu0 0
  %3641 = vmatprep.subr.bf16.mxu0 0
  %3642 = vmatpush2.bf16.xpose.msra.mxu0 0
  %3643 = vmatprep.subr.bf16.mxu0 0
  %3644 = vmatpush2.bf16.xpose.msra.mxu0 0
  %3645 = vmatprep.subr.bf16.mxu0 0
  %3646 = vmatpush2.bf16.xpose.msra.mxu0 0
  %3647 = vmatprep.mubr.bf16.mxu0 0
  %3648 = vmatmul.mubr.bf16.gmra.mxu0 %v3610
  %v3649 = vpop.f32.mrf.mxu0
  %v3650 = vadd.f32 %v55, %v3649
  %v3651 = vpop.f32.mrf.mxu0
  %v3652 = vpop.f32.mrf.mxu0
  %v3653 = vpop.f32.mrf.mxu0
  %3654 = vdwg.mxu0
  %3656 = vrot.lane.b32.xlu0 %v3359, 96
  %v3657 = vpop.permute.xlu0 %3656
  %v3659 = vsel %vm156, %v3359, 0
  %v3662 = vsel %vm156, %v3657, 0
  %3664 = vmatprep.subr.bf16.mxu0 0
  %3665 = vmatpush1.bf16.xpose.msra.mxu0 0
  %3666 = vmatprep.subr.bf16.mxu0 0
  %3667 = vmatpush1.bf16.xpose.msra.mxu0 0
  %3668 = vmatprep.subr.bf16.mxu0 0
  %3669 = vmatpush1.bf16.xpose.msra.mxu0 0
  %3670 = vmatprep.subr.bf16.mxu0 0
  %3671 = vmatpush1.bf16.xpose.msra.mxu0 0
  %3672 = vmatprep.subr.bf16.mxu0 0
  %3673 = vmatpush1.bf16.xpose.msra.mxu0 0
  %3674 = vmatprep.subr.bf16.mxu0 0
  %3675 = vmatpush1.bf16.xpose.msra.mxu0 0
  %3676 = vmatprep.subr.bf16.mxu0 0
  %3677 = vmatpush1.bf16.xpose.msra.mxu0 0
  %3678 = vmatprep.subr.bf16.mxu0 0
  %3679 = vmatpush1.bf16.xpose.msra.mxu0 %v3662
  %3680 = vmatprep.subr.bf16.mxu0 0
  %3681 = vmatpush2.bf16.xpose.msra.mxu0 0
  %3682 = vmatprep.subr.bf16.mxu0 0
  %3683 = vmatpush2.bf16.xpose.msra.mxu0 0
  %3684 = vmatprep.subr.bf16.mxu0 0
  %3685 = vmatpush2.bf16.xpose.msra.mxu0 0
  %3686 = vmatprep.subr.bf16.mxu0 0
  %3687 = vmatpush2.bf16.xpose.msra.mxu0 0
  %3688 = vmatprep.subr.bf16.mxu0 0
  %3689 = vmatpush2.bf16.xpose.msra.mxu0 0
  %3690 = vmatprep.subr.bf16.mxu0 0
  %3691 = vmatpush2.bf16.xpose.msra.mxu0 0
  %3692 = vmatprep.subr.bf16.mxu0 0
  %3693 = vmatpush2.bf16.xpose.msra.mxu0 0
  %3694 = vmatprep.subr.bf16.mxu0 0
  %3695 = vmatpush2.bf16.xpose.msra.mxu0 0
  %3696 = vmatprep.mubr.bf16.mxu0 0
  %3697 = vmatmul.mubr.bf16.gmra.mxu0 %v3659
  %v3698 = vpop.f32.mrf.mxu0
  %v3699 = vadd.f32 %v55, %v3698
  %v3700 = vpop.f32.mrf.mxu0
  %v3701 = vpop.f32.mrf.mxu0
  %v3702 = vpop.f32.mrf.mxu0
  %3703 = vdwg.mxu0
  %3705 = vrot.lane.b32.xlu0 %v3360, 96
  %v3706 = vpop.permute.xlu0 %3705
  %v3708 = vsel %vm156, %v3360, 0
  %v3711 = vsel %vm156, %v3706, 0
  %3713 = vmatprep.subr.bf16.mxu0 0
  %3714 = vmatpush1.bf16.xpose.msra.mxu0 0
  %3715 = vmatprep.subr.bf16.mxu0 0
  %3716 = vmatpush1.bf16.xpose.msra.mxu0 0
  %3717 = vmatprep.subr.bf16.mxu0 0
  %3718 = vmatpush1.bf16.xpose.msra.mxu0 0
  %3719 = vmatprep.subr.bf16.mxu0 0
  %3720 = vmatpush1.bf16.xpose.msra.mxu0 0
  %3721 = vmatprep.subr.bf16.mxu0 0
  %3722 = vmatpush1.bf16.xpose.msra.mxu0 0
  %3723 = vmatprep.subr.bf16.mxu0 0
  %3724 = vmatpush1.bf16.xpose.msra.mxu0 0
  %3725 = vmatprep.subr.bf16.mxu0 0
  %3726 = vmatpush1.bf16.xpose.msra.mxu0 0
  %3727 = vmatprep.subr.bf16.mxu0 0
  %3728 = vmatpush1.bf16.xpose.msra.mxu0 %v3711
  %3729 = vmatprep.subr.bf16.mxu0 0
  %3730 = vmatpush2.bf16.xpose.msra.mxu0 0
  %3731 = vmatprep.subr.bf16.mxu0 0
  %3732 = vmatpush2.bf16.xpose.msra.mxu0 0
  %3733 = vmatprep.subr.bf16.mxu0 0
  %3734 = vmatpush2.bf16.xpose.msra.mxu0 0
  %3735 = vmatprep.subr.bf16.mxu0 0
  %3736 = vmatpush2.bf16.xpose.msra.mxu0 0
  %3737 = vmatprep.subr.bf16.mxu0 0
  %3738 = vmatpush2.bf16.xpose.msra.mxu0 0
  %3739 = vmatprep.subr.bf16.mxu0 0
  %3740 = vmatpush2.bf16.xpose.msra.mxu0 0
  %3741 = vmatprep.subr.bf16.mxu0 0
  %3742 = vmatpush2.bf16.xpose.msra.mxu0 0
  %3743 = vmatprep.subr.bf16.mxu0 0
  %3744 = vmatpush2.bf16.xpose.msra.mxu0 0
  %3745 = vmatprep.mubr.bf16.mxu0 0
  %3746 = vmatmul.mubr.bf16.gmra.mxu0 %v3708
  %v3747 = vpop.f32.mrf.mxu0
  %v3748 = vadd.f32 %v55, %v3747
  %v3749 = vpop.f32.mrf.mxu0
  %v3750 = vpop.f32.mrf.mxu0
  %v3751 = vpop.f32.mrf.mxu0
  %3752 = vdwg.mxu0
  %v3753 = vsel %vm156, %v3405, -inf
  %3754 = vmax.xlane.f32.xlu0 %v3753
  %v3755 = vpop.xlane.xlu0 %3754
  %v3756 = vsel %vm156, %v3454, -inf
  %3757 = vmax.xlane.f32.xlu0 %v3756
  %v3758 = vpop.xlane.xlu0 %3757
  %v3759 = vsel %vm156, %v3503, -inf
  %3760 = vmax.xlane.f32.xlu0 %v3759
  %v3761 = vpop.xlane.xlu0 %3760
  %v3762 = vsel %vm156, %v3552, -inf
  %3763 = vmax.xlane.f32.xlu0 %v3762
  %v3764 = vpop.xlane.xlu0 %3763
  %v3765 = vsel %vm156, %v3601, -inf
  %3766 = vmax.xlane.f32.xlu0 %v3765
  %v3767 = vpop.xlane.xlu0 %3766
  %v3768 = vsel %vm156, %v3650, -inf
  %3769 = vmax.xlane.f32.xlu0 %v3768
  %v3770 = vpop.xlane.xlu0 %3769
  %v3771 = vsel %vm156, %v3699, -inf
  %3772 = vmax.xlane.f32.xlu0 %v3771
  %v3773 = vpop.xlane.xlu0 %3772
  %v3774 = vsel %vm156, %v3748, -inf
  %3775 = vmax.xlane.f32.xlu0 %v3774
  %v3776 = vpop.xlane.xlu0 %3775
  %v3777 = vsub.f32 %v3405, %v3755
  %v3778 = vsub.f32 %v3454, %v3758
  %v3779 = vsub.f32 %v3503, %v3761
  %v3780 = vsub.f32 %v3552, %v3764
  %v3781 = vsub.f32 %v3601, %v3767
  %v3782 = vsub.f32 %v3650, %v3770
  %v3783 = vsub.f32 %v3699, %v3773
  %v3784 = vsub.f32 %v3748, %v3776
  %v3785 = vmul.f32 %v3777, 1.442695
  %v3786 = vpow.pop %v3785
  %v3787 = vmul.f32 %v3778, 1.442695
  %v3788 = vpow.pop %v3787
  %v3789 = vmul.f32 %v3779, 1.442695
  %v3790 = vpow.pop %v3789
  %v3791 = vmul.f32 %v3780, 1.442695
  %v3792 = vpow.pop %v3791
  %v3793 = vmul.f32 %v3781, 1.442695
  %v3794 = vpow.pop %v3793
  %v3795 = vmul.f32 %v3782, 1.442695
  %v3796 = vpow.pop %v3795
  %v3797 = vmul.f32 %v3783, 1.442695
  %v3798 = vpow.pop %v3797
  %v3799 = vmul.f32 %v3784, 1.442695
  %v3800 = vpow.pop %v3799
  %v3801 = vsel %vm156, %v3786, 0.0
  %3802 = vadd.xlane.f32.xlu0 %v3801
  %v3803 = vpop.xlane.xlu0 %3802
  %v3804 = vsel %vm156, %v3788, 0.0
  %3805 = vadd.xlane.f32.xlu0 %v3804
  %v3806 = vpop.xlane.xlu0 %3805
  %v3807 = vsel %vm156, %v3790, 0.0
  %3808 = vadd.xlane.f32.xlu0 %v3807
  %v3809 = vpop.xlane.xlu0 %3808
  %v3810 = vsel %vm156, %v3792, 0.0
  %3811 = vadd.xlane.f32.xlu0 %v3810
  %v3812 = vpop.xlane.xlu0 %3811
  %v3813 = vsel %vm156, %v3794, 0.0
  %3814 = vadd.xlane.f32.xlu0 %v3813
  %v3815 = vpop.xlane.xlu0 %3814
  %v3816 = vsel %vm156, %v3796, 0.0
  %3817 = vadd.xlane.f32.xlu0 %v3816
  %v3818 = vpop.xlane.xlu0 %3817
  %v3819 = vsel %vm156, %v3798, 0.0
  %3820 = vadd.xlane.f32.xlu0 %v3819
  %v3821 = vpop.xlane.xlu0 %3820
  %v3822 = vsel %vm156, %v3800, 0.0
  %3823 = vadd.xlane.f32.xlu0 %v3822
  %v3824 = vpop.xlane.xlu0 %3823
  %v3825 = vrcp.pop %v3803
  %v3826 = vrcp.pop %v3806
  %v3827 = vrcp.pop %v3809
  %v3828 = vrcp.pop %v3812
  %v3829 = vrcp.pop %v3815
  %v3830 = vrcp.pop %v3818
  %v3831 = vrcp.pop %v3821
  %v3832 = vrcp.pop %v3824
  %v3833 = vmul.f32 %v3786, %v3825
  %v3834 = vmul.f32 %v3788, %v3826
  %v3835 = vmul.f32 %v3790, %v3827
  %v3836 = vmul.f32 %v3792, %v3828
  %v3837 = vmul.f32 %v3794, %v3829
  %v3838 = vmul.f32 %v3796, %v3830
  %v3839 = vmul.f32 %v3798, %v3831
  %v3840 = vmul.f32 %v3800, %v3832
  %v3841 = vpack.c.bf16 %v3833, %v3833
  %v3842 = vpack.c.bf16 %v3834, %v3834
  %v3843 = vpack.c.bf16 %v3835, %v3835
  %v3844 = vpack.c.bf16 %v3836, %v3836
  %v3845 = vpack.c.bf16 %v3837, %v3837
  %v3846 = vpack.c.bf16 %v3838, %v3838
  %v3847 = vpack.c.bf16 %v3839, %v3839
  %v3848 = vpack.c.bf16 %v3840, %v3840
  %3849 = vrot.lane.b32.xlu0 %v3353, 64
  %v3850 = vpop.permute.xlu0 %3849
  %v3852 = vsel %vm156, %v3841, 0
  %v3855 = vsel %vm647, %v3850, 0
  %3857 = vmatprep.subr.bf16.mxu0 0
  %3858 = vmatpush1.bf16.msra.mxu0 0
  %3859 = vmatprep.subr.bf16.mxu0 0
  %3860 = vmatpush1.bf16.msra.mxu0 0
  %3861 = vmatprep.subr.bf16.mxu0 0
  %3862 = vmatpush1.bf16.msra.mxu0 0
  %3863 = vmatprep.subr.bf16.mxu0 0
  %3864 = vmatpush1.bf16.msra.mxu0 0
  %3865 = vmatprep.subr.bf16.mxu0 0
  %3866 = vmatpush1.bf16.msra.mxu0 0
  %3867 = vmatprep.subr.bf16.mxu0 0
  %3868 = vmatpush1.bf16.msra.mxu0 0
  %3869 = vmatprep.subr.bf16.mxu0 0
  %3870 = vmatpush1.bf16.msra.mxu0 0
  %3871 = vmatprep.subr.bf16.mxu0 0
  %3872 = vmatpush1.bf16.msra.mxu0 %v3855
  %3873 = vmatprep.subr.bf16.mxu0 0
  %3874 = vmatpush2.bf16.msra.mxu0 0
  %3875 = vmatprep.subr.bf16.mxu0 0
  %3876 = vmatpush2.bf16.msra.mxu0 0
  %3877 = vmatprep.subr.bf16.mxu0 0
  %3878 = vmatpush2.bf16.msra.mxu0 0
  %3879 = vmatprep.subr.bf16.mxu0 0
  %3880 = vmatpush2.bf16.msra.mxu0 0
  %3881 = vmatprep.subr.bf16.mxu0 0
  %3882 = vmatpush2.bf16.msra.mxu0 0
  %3883 = vmatprep.subr.bf16.mxu0 0
  %3884 = vmatpush2.bf16.msra.mxu0 0
  %3885 = vmatprep.subr.bf16.mxu0 0
  %3886 = vmatpush2.bf16.msra.mxu0 0
  %3887 = vmatprep.subr.bf16.mxu0 0
  %3888 = vmatpush2.bf16.msra.mxu0 0
  %3889 = vmatprep.mubr.bf16.mxu0 0
  %3890 = vmatmul.mubr.bf16.gmra.mxu0 %v3852
  %v3891 = vpop.f32.mrf.mxu0
  %v3892 = vadd.f32 0.0, %v3891
  %v3893 = vpop.f32.mrf.mxu0
  %v3894 = vpop.f32.mrf.mxu0
  %v3895 = vpop.f32.mrf.mxu0
  %3896 = vdwg.mxu0
  %3897 = vrot.lane.b32.xlu0 %v3354, 64
  %v3898 = vpop.permute.xlu0 %3897
  %v3900 = vsel %vm156, %v3842, 0
  %v3903 = vsel %vm647, %v3898, 0
  %3905 = vmatprep.subr.bf16.mxu0 0
  %3906 = vmatpush1.bf16.msra.mxu0 0
  %3907 = vmatprep.subr.bf16.mxu0 0
  %3908 = vmatpush1.bf16.msra.mxu0 0
  %3909 = vmatprep.subr.bf16.mxu0 0
  %3910 = vmatpush1.bf16.msra.mxu0 0
  %3911 = vmatprep.subr.bf16.mxu0 0
  %3912 = vmatpush1.bf16.msra.mxu0 0
  %3913 = vmatprep.subr.bf16.mxu0 0
  %3914 = vmatpush1.bf16.msra.mxu0 0
  %3915 = vmatprep.subr.bf16.mxu0 0
  %3916 = vmatpush1.bf16.msra.mxu0 0
  %3917 = vmatprep.subr.bf16.mxu0 0
  %3918 = vmatpush1.bf16.msra.mxu0 0
  %3919 = vmatprep.subr.bf16.mxu0 0
  %3920 = vmatpush1.bf16.msra.mxu0 %v3903
  %3921 = vmatprep.subr.bf16.mxu0 0
  %3922 = vmatpush2.bf16.msra.mxu0 0
  %3923 = vmatprep.subr.bf16.mxu0 0
  %3924 = vmatpush2.bf16.msra.mxu0 0
  %3925 = vmatprep.subr.bf16.mxu0 0
  %3926 = vmatpush2.bf16.msra.mxu0 0
  %3927 = vmatprep.subr.bf16.mxu0 0
  %3928 = vmatpush2.bf16.msra.mxu0 0
  %3929 = vmatprep.subr.bf16.mxu0 0
  %3930 = vmatpush2.bf16.msra.mxu0 0
  %3931 = vmatprep.subr.bf16.mxu0 0
  %3932 = vmatpush2.bf16.msra.mxu0 0
  %3933 = vmatprep.subr.bf16.mxu0 0
  %3934 = vmatpush2.bf16.msra.mxu0 0
  %3935 = vmatprep.subr.bf16.mxu0 0
  %3936 = vmatpush2.bf16.msra.mxu0 0
  %3937 = vmatprep.mubr.bf16.mxu0 0
  %3938 = vmatmul.mubr.bf16.gmra.mxu0 %v3900
  %v3939 = vpop.f32.mrf.mxu0
  %v3940 = vadd.f32 0.0, %v3939
  %v3941 = vpop.f32.mrf.mxu0
  %v3942 = vpop.f32.mrf.mxu0
  %v3943 = vpop.f32.mrf.mxu0
  %3944 = vdwg.mxu0
  %3945 = vrot.lane.b32.xlu0 %v3355, 64
  %v3946 = vpop.permute.xlu0 %3945
  %v3948 = vsel %vm156, %v3843, 0
  %v3951 = vsel %vm647, %v3946, 0
  %3953 = vmatprep.subr.bf16.mxu0 0
  %3954 = vmatpush1.bf16.msra.mxu0 0
  %3955 = vmatprep.subr.bf16.mxu0 0
  %3956 = vmatpush1.bf16.msra.mxu0 0
  %3957 = vmatprep.subr.bf16.mxu0 0
  %3958 = vmatpush1.bf16.msra.mxu0 0
  %3959 = vmatprep.subr.bf16.mxu0 0
  %3960 = vmatpush1.bf16.msra.mxu0 0
  %3961 = vmatprep.subr.bf16.mxu0 0
  %3962 = vmatpush1.bf16.msra.mxu0 0
  %3963 = vmatprep.subr.bf16.mxu0 0
  %3964 = vmatpush1.bf16.msra.mxu0 0
  %3965 = vmatprep.subr.bf16.mxu0 0
  %3966 = vmatpush1.bf16.msra.mxu0 0
  %3967 = vmatprep.subr.bf16.mxu0 0
  %3968 = vmatpush1.bf16.msra.mxu0 %v3951
  %3969 = vmatprep.subr.bf16.mxu0 0
  %3970 = vmatpush2.bf16.msra.mxu0 0
  %3971 = vmatprep.subr.bf16.mxu0 0
  %3972 = vmatpush2.bf16.msra.mxu0 0
  %3973 = vmatprep.subr.bf16.mxu0 0
  %3974 = vmatpush2.bf16.msra.mxu0 0
  %3975 = vmatprep.subr.bf16.mxu0 0
  %3976 = vmatpush2.bf16.msra.mxu0 0
  %3977 = vmatprep.subr.bf16.mxu0 0
  %3978 = vmatpush2.bf16.msra.mxu0 0
  %3979 = vmatprep.subr.bf16.mxu0 0
  %3980 = vmatpush2.bf16.msra.mxu0 0
  %3981 = vmatprep.subr.bf16.mxu0 0
  %3982 = vmatpush2.bf16.msra.mxu0 0
  %3983 = vmatprep.subr.bf16.mxu0 0
  %3984 = vmatpush2.bf16.msra.mxu0 0
  %3985 = vmatprep.mubr.bf16.mxu0 0
  %3986 = vmatmul.mubr.bf16.gmra.mxu0 %v3948
  %v3987 = vpop.f32.mrf.mxu0
  %v3988 = vadd.f32 0.0, %v3987
  %v3989 = vpop.f32.mrf.mxu0
  %v3990 = vpop.f32.mrf.mxu0
  %v3991 = vpop.f32.mrf.mxu0
  %3992 = vdwg.mxu0
  %3993 = vrot.lane.b32.xlu0 %v3356, 64
  %v3994 = vpop.permute.xlu0 %3993
  %v3996 = vsel %vm156, %v3844, 0
  %v3999 = vsel %vm647, %v3994, 0
  %4001 = vmatprep.subr.bf16.mxu0 0
  %4002 = vmatpush1.bf16.msra.mxu0 0
  %4003 = vmatprep.subr.bf16.mxu0 0
  %4004 = vmatpush1.bf16.msra.mxu0 0
  %4005 = vmatprep.subr.bf16.mxu0 0
  %4006 = vmatpush1.bf16.msra.mxu0 0
  %4007 = vmatprep.subr.bf16.mxu0 0
  %4008 = vmatpush1.bf16.msra.mxu0 0
  %4009 = vmatprep.subr.bf16.mxu0 0
  %4010 = vmatpush1.bf16.msra.mxu0 0
  %4011 = vmatprep.subr.bf16.mxu0 0
  %4012 = vmatpush1.bf16.msra.mxu0 0
  %4013 = vmatprep.subr.bf16.mxu0 0
  %4014 = vmatpush1.bf16.msra.mxu0 0
  %4015 = vmatprep.subr.bf16.mxu0 0
  %4016 = vmatpush1.bf16.msra.mxu0 %v3999
  %4017 = vmatprep.subr.bf16.mxu0 0
  %4018 = vmatpush2.bf16.msra.mxu0 0
  %4019 = vmatprep.subr.bf16.mxu0 0
  %4020 = vmatpush2.bf16.msra.mxu0 0
  %4021 = vmatprep.subr.bf16.mxu0 0
  %4022 = vmatpush2.bf16.msra.mxu0 0
  %4023 = vmatprep.subr.bf16.mxu0 0
  %4024 = vmatpush2.bf16.msra.mxu0 0
  %4025 = vmatprep.subr.bf16.mxu0 0
  %4026 = vmatpush2.bf16.msra.mxu0 0
  %4027 = vmatprep.subr.bf16.mxu0 0
  %4028 = vmatpush2.bf16.msra.mxu0 0
  %4029 = vmatprep.subr.bf16.mxu0 0
  %4030 = vmatpush2.bf16.msra.mxu0 0
  %4031 = vmatprep.subr.bf16.mxu0 0
  %4032 = vmatpush2.bf16.msra.mxu0 0
  %4033 = vmatprep.mubr.bf16.mxu0 0
  %4034 = vmatmul.mubr.bf16.gmra.mxu0 %v3996
  %v4035 = vpop.f32.mrf.mxu0
  %v4036 = vadd.f32 0.0, %v4035
  %v4037 = vpop.f32.mrf.mxu0
  %v4038 = vpop.f32.mrf.mxu0
  %v4039 = vpop.f32.mrf.mxu0
  %4040 = vdwg.mxu0
  %4041 = vrot.lane.b32.xlu0 %v3357, 64
  %v4042 = vpop.permute.xlu0 %4041
  %v4044 = vsel %vm156, %v3845, 0
  %v4047 = vsel %vm647, %v4042, 0
  %4049 = vmatprep.subr.bf16.mxu0 0
  %4050 = vmatpush1.bf16.msra.mxu0 0
  %4051 = vmatprep.subr.bf16.mxu0 0
  %4052 = vmatpush1.bf16.msra.mxu0 0
  %4053 = vmatprep.subr.bf16.mxu0 0
  %4054 = vmatpush1.bf16.msra.mxu0 0
  %4055 = vmatprep.subr.bf16.mxu0 0
  %4056 = vmatpush1.bf16.msra.mxu0 0
  %4057 = vmatprep.subr.bf16.mxu0 0
  %4058 = vmatpush1.bf16.msra.mxu0 0
  %4059 = vmatprep.subr.bf16.mxu0 0
  %4060 = vmatpush1.bf16.msra.mxu0 0
  %4061 = vmatprep.subr.bf16.mxu0 0
  %4062 = vmatpush1.bf16.msra.mxu0 0
  %4063 = vmatprep.subr.bf16.mxu0 0
  %4064 = vmatpush1.bf16.msra.mxu0 %v4047
  %4065 = vmatprep.subr.bf16.mxu0 0
  %4066 = vmatpush2.bf16.msra.mxu0 0
  %4067 = vmatprep.subr.bf16.mxu0 0
  %4068 = vmatpush2.bf16.msra.mxu0 0
  %4069 = vmatprep.subr.bf16.mxu0 0
  %4070 = vmatpush2.bf16.msra.mxu0 0
  %4071 = vmatprep.subr.bf16.mxu0 0
  %4072 = vmatpush2.bf16.msra.mxu0 0
  %4073 = vmatprep.subr.bf16.mxu0 0
  %4074 = vmatpush2.bf16.msra.mxu0 0
  %4075 = vmatprep.subr.bf16.mxu0 0
  %4076 = vmatpush2.bf16.msra.mxu0 0
  %4077 = vmatprep.subr.bf16.mxu0 0
  %4078 = vmatpush2.bf16.msra.mxu0 0
  %4079 = vmatprep.subr.bf16.mxu0 0
  %4080 = vmatpush2.bf16.msra.mxu0 0
  %4081 = vmatprep.mubr.bf16.mxu0 0
  %4082 = vmatmul.mubr.bf16.gmra.mxu0 %v4044
  %v4083 = vpop.f32.mrf.mxu0
  %v4084 = vadd.f32 0.0, %v4083
  %v4085 = vpop.f32.mrf.mxu0
  %v4086 = vpop.f32.mrf.mxu0
  %v4087 = vpop.f32.mrf.mxu0
  %4088 = vdwg.mxu0
  %4089 = vrot.lane.b32.xlu0 %v3358, 64
  %v4090 = vpop.permute.xlu0 %4089
  %v4092 = vsel %vm156, %v3846, 0
  %v4095 = vsel %vm647, %v4090, 0
  %4097 = vmatprep.subr.bf16.mxu0 0
  %4098 = vmatpush1.bf16.msra.mxu0 0
  %4099 = vmatprep.subr.bf16.mxu0 0
  %4100 = vmatpush1.bf16.msra.mxu0 0
  %4101 = vmatprep.subr.bf16.mxu0 0
  %4102 = vmatpush1.bf16.msra.mxu0 0
  %4103 = vmatprep.subr.bf16.mxu0 0
  %4104 = vmatpush1.bf16.msra.mxu0 0
  %4105 = vmatprep.subr.bf16.mxu0 0
  %4106 = vmatpush1.bf16.msra.mxu0 0
  %4107 = vmatprep.subr.bf16.mxu0 0
  %4108 = vmatpush1.bf16.msra.mxu0 0
  %4109 = vmatprep.subr.bf16.mxu0 0
  %4110 = vmatpush1.bf16.msra.mxu0 0
  %4111 = vmatprep.subr.bf16.mxu0 0
  %4112 = vmatpush1.bf16.msra.mxu0 %v4095
  %4113 = vmatprep.subr.bf16.mxu0 0
  %4114 = vmatpush2.bf16.msra.mxu0 0
  %4115 = vmatprep.subr.bf16.mxu0 0
  %4116 = vmatpush2.bf16.msra.mxu0 0
  %4117 = vmatprep.subr.bf16.mxu0 0
  %4118 = vmatpush2.bf16.msra.mxu0 0
  %4119 = vmatprep.subr.bf16.mxu0 0
  %4120 = vmatpush2.bf16.msra.mxu0 0
  %4121 = vmatprep.subr.bf16.mxu0 0
  %4122 = vmatpush2.bf16.msra.mxu0 0
  %4123 = vmatprep.subr.bf16.mxu0 0
  %4124 = vmatpush2.bf16.msra.mxu0 0
  %4125 = vmatprep.subr.bf16.mxu0 0
  %4126 = vmatpush2.bf16.msra.mxu0 0
  %4127 = vmatprep.subr.bf16.mxu0 0
  %4128 = vmatpush2.bf16.msra.mxu0 0
  %4129 = vmatprep.mubr.bf16.mxu0 0
  %4130 = vmatmul.mubr.bf16.gmra.mxu0 %v4092
  %v4131 = vpop.f32.mrf.mxu0
  %v4132 = vadd.f32 0.0, %v4131
  %v4133 = vpop.f32.mrf.mxu0
  %v4134 = vpop.f32.mrf.mxu0
  %v4135 = vpop.f32.mrf.mxu0
  %4136 = vdwg.mxu0
  %4137 = vrot.lane.b32.xlu0 %v3359, 64
  %v4138 = vpop.permute.xlu0 %4137
  %v4140 = vsel %vm156, %v3847, 0
  %v4143 = vsel %vm647, %v4138, 0
  %4145 = vmatprep.subr.bf16.mxu0 0
  %4146 = vmatpush1.bf16.msra.mxu0 0
  %4147 = vmatprep.subr.bf16.mxu0 0
  %4148 = vmatpush1.bf16.msra.mxu0 0
  %4149 = vmatprep.subr.bf16.mxu0 0
  %4150 = vmatpush1.bf16.msra.mxu0 0
  %4151 = vmatprep.subr.bf16.mxu0 0
  %4152 = vmatpush1.bf16.msra.mxu0 0
  %4153 = vmatprep.subr.bf16.mxu0 0
  %4154 = vmatpush1.bf16.msra.mxu0 0
  %4155 = vmatprep.subr.bf16.mxu0 0
  %4156 = vmatpush1.bf16.msra.mxu0 0
  %4157 = vmatprep.subr.bf16.mxu0 0
  %4158 = vmatpush1.bf16.msra.mxu0 0
  %4159 = vmatprep.subr.bf16.mxu0 0
  %4160 = vmatpush1.bf16.msra.mxu0 %v4143
  %4161 = vmatprep.subr.bf16.mxu0 0
  %4162 = vmatpush2.bf16.msra.mxu0 0
  %4163 = vmatprep.subr.bf16.mxu0 0
  %4164 = vmatpush2.bf16.msra.mxu0 0
  %4165 = vmatprep.subr.bf16.mxu0 0
  %4166 = vmatpush2.bf16.msra.mxu0 0
  %4167 = vmatprep.subr.bf16.mxu0 0
  %4168 = vmatpush2.bf16.msra.mxu0 0
  %4169 = vmatprep.subr.bf16.mxu0 0
  %4170 = vmatpush2.bf16.msra.mxu0 0
  %4171 = vmatprep.subr.bf16.mxu0 0
  %4172 = vmatpush2.bf16.msra.mxu0 0
  %4173 = vmatprep.subr.bf16.mxu0 0
  %4174 = vmatpush2.bf16.msra.mxu0 0
  %4175 = vmatprep.subr.bf16.mxu0 0
  %4176 = vmatpush2.bf16.msra.mxu0 0
  %4177 = vmatprep.mubr.bf16.mxu0 0
  %4178 = vmatmul.mubr.bf16.gmra.mxu0 %v4140
  %v4179 = vpop.f32.mrf.mxu0
  %v4180 = vadd.f32 0.0, %v4179
  %v4181 = vpop.f32.mrf.mxu0
  %v4182 = vpop.f32.mrf.mxu0
  %v4183 = vpop.f32.mrf.mxu0
  %4184 = vdwg.mxu0
  %4185 = vrot.lane.b32.xlu0 %v3360, 64
  %v4186 = vpop.permute.xlu0 %4185
  %v4188 = vsel %vm156, %v3848, 0
  %v4191 = vsel %vm647, %v4186, 0
  %4193 = vmatprep.subr.bf16.mxu0 0
  %4194 = vmatpush1.bf16.msra.mxu0 0
  %4195 = vmatprep.subr.bf16.mxu0 0
  %4196 = vmatpush1.bf16.msra.mxu0 0
  %4197 = vmatprep.subr.bf16.mxu0 0
  %4198 = vmatpush1.bf16.msra.mxu0 0
  %4199 = vmatprep.subr.bf16.mxu0 0
  %4200 = vmatpush1.bf16.msra.mxu0 0
  %4201 = vmatprep.subr.bf16.mxu0 0
  %4202 = vmatpush1.bf16.msra.mxu0 0
  %4203 = vmatprep.subr.bf16.mxu0 0
  %4204 = vmatpush1.bf16.msra.mxu0 0
  %4205 = vmatprep.subr.bf16.mxu0 0
  %4206 = vmatpush1.bf16.msra.mxu0 0
  %4207 = vmatprep.subr.bf16.mxu0 0
  %4208 = vmatpush1.bf16.msra.mxu0 %v4191
  %4209 = vmatprep.subr.bf16.mxu0 0
  %4210 = vmatpush2.bf16.msra.mxu0 0
  %4211 = vmatprep.subr.bf16.mxu0 0
  %4212 = vmatpush2.bf16.msra.mxu0 0
  %4213 = vmatprep.subr.bf16.mxu0 0
  %4214 = vmatpush2.bf16.msra.mxu0 0
  %4215 = vmatprep.subr.bf16.mxu0 0
  %4216 = vmatpush2.bf16.msra.mxu0 0
  %4217 = vmatprep.subr.bf16.mxu0 0
  %4218 = vmatpush2.bf16.msra.mxu0 0
  %4219 = vmatprep.subr.bf16.mxu0 0
  %4220 = vmatpush2.bf16.msra.mxu0 0
  %4221 = vmatprep.subr.bf16.mxu0 0
  %4222 = vmatpush2.bf16.msra.mxu0 0
  %4223 = vmatprep.subr.bf16.mxu0 0
  %4224 = vmatpush2.bf16.msra.mxu0 0
  %4225 = vmatprep.mubr.bf16.mxu0 0
  %4226 = vmatmul.mubr.bf16.gmra.mxu0 %v4188
  %v4227 = vpop.f32.mrf.mxu0
  %v4228 = vadd.f32 0.0, %v4227
  %v4229 = vpop.f32.mrf.mxu0
  %v4230 = vpop.f32.mrf.mxu0
  %v4231 = vpop.f32.mrf.mxu0
  %4232 = vdwg.mxu0
  %4235 = vrot.lane.b32.xlu0 %v3988, 8
  %v4236 = vpop.permute.xlu0 %4235
  %4237 = vrot.lane.b32.xlu0 %v4036, 8
  %v4238 = vpop.permute.xlu0 %4237
  %4243 = vrot.lane.b32.xlu0 %v4084, 16
  %v4244 = vpop.permute.xlu0 %4243
  %4245 = vrot.lane.b32.xlu0 %v4132, 16
  %v4246 = vpop.permute.xlu0 %4245
  %4251 = vrot.lane.b32.xlu0 %v4180, 24
  %v4252 = vpop.permute.xlu0 %4251
  %4253 = vrot.lane.b32.xlu0 %v4228, 24
  %v4254 = vpop.permute.xlu0 %4253
  %v4257 = vsel %vm156, %v3892, %v4236
  %v4258 = vsel %vm156, %v3940, %v4238
  %v4259 = vsel %vm1053, %v4257, %v4244
  %v4260 = vsel %vm1053, %v4258, %v4246
  %v4261 = vsel %vm1056, %v4259, %v4252
  %v4262 = vsel %vm1056, %v4260, %v4254
  %v4263 = vpack.c.bf16 %v4262, %v4261
  %s4264 = scalar_lea.vmem %s3, 16
  %v4265 = vld [vmem:[%s4264] sm:$0xf]
  %v4266 = vld [vmem:[%s4264 + $0x4] sm:$0xf]
  %v4267 = vld [vmem:[%s4264 + $0x8] sm:$0xf]
  %v4268 = vld [vmem:[%s4264 + $0xc] sm:$0xf]
  %v4273 = vunpack.c.l.b16 %v4265
  %v4274 = vunpack.c.l.b16 %v4266
  %v4275 = vunpack.c.l.b16 %v4267
  %v4276 = vunpack.c.l.b16 %v4268
  %v4277 = vpack.c.b16 %v4274, %v4273
  %v4278 = vpack.c.b16 %v4276, %v4275
  %v4282 = vsel %vm80, %v4263, 0
  %4284 = vmatprep.subr.bf16.mxu0 0
  %4285 = vmatpush1.bf16.msra.mxu0 0
  %4286 = vmatprep.subr.bf16.mxu0 0
  %4287 = vmatpush1.bf16.msra.mxu0 0
  %4288 = vmatprep.subr.bf16.mxu0 0
  %4289 = vmatpush1.bf16.msra.mxu0 0
  %4290 = vmatprep.subr.bf16.mxu0 0
  %4291 = vmatpush1.bf16.msra.mxu0 0
  %4292 = vmatprep.subr.bf16.mxu0 0
  %4293 = vmatpush1.bf16.msra.mxu0 0
  %4294 = vmatprep.subr.bf16.mxu0 0
  %4295 = vmatpush1.bf16.msra.mxu0 0
  %4296 = vmatprep.subr.bf16.mxu0 0
  %4297 = vmatpush1.bf16.msra.mxu0 %v4278
  %4298 = vmatprep.subr.bf16.mxu0 0
  %4299 = vmatpush1.bf16.msra.mxu0 %v4277
  %4300 = vmatprep.subr.bf16.mxu0 0
  %4301 = vmatpush2.bf16.msra.mxu0 0
  %4302 = vmatprep.subr.bf16.mxu0 0
  %4303 = vmatpush2.bf16.msra.mxu0 0
  %4304 = vmatprep.subr.bf16.mxu0 0
  %4305 = vmatpush2.bf16.msra.mxu0 0
  %4306 = vmatprep.subr.bf16.mxu0 0
  %4307 = vmatpush2.bf16.msra.mxu0 0
  %4308 = vmatprep.subr.bf16.mxu0 0
  %4309 = vmatpush2.bf16.msra.mxu0 0
  %4310 = vmatprep.subr.bf16.mxu0 0
  %4311 = vmatpush2.bf16.msra.mxu0 0
  %4312 = vmatprep.subr.bf16.mxu0 0
  %4313 = vmatpush2.bf16.msra.mxu0 0
  %4314 = vmatprep.subr.bf16.mxu0 0
  %4315 = vmatpush2.bf16.msra.mxu0 0
  %4316 = vmatprep.mubr.bf16.mxu0 0
  %4317 = vmatmul.mubr.bf16.gmra.mxu0 %v4282
  %v4318 = vpop.f32.mrf.mxu0
  %v4319 = vadd.f32 0.0, %v4318
  %v4320 = vpop.f32.mrf.mxu0
  %v4321 = vpop.f32.mrf.mxu0
  %v4322 = vadd.f32 0.0, %v4321
  %v4323 = vpop.f32.mrf.mxu0
  %4324 = vdwg.mxu0
  %v4325 = vadd.f32 %v3261, %v4319
  %v4326 = vadd.f32 %v3262, %v4322
  %s4327 = scalar_lea.vmem %s4, 1
  %v4328 = vld [vmem:[%s4327] sm:$0x1]
  %v4330 = vlaneseq
  %v4331 = vshrl.u32 %v4330, 7
  %v4332 = vsub.s32 0, %v4331
  %v4333 = vrot.slane %v4328, %v4332
  %v4335 = vadd.f32 %v4325, %v4333
  %v4336 = vadd.f32 %v4326, %v4333
  %s4337 = scalar_lea.vmem %s9, 1
  %v4338 = vld [vmem:[%s4337] sm:$0x1]
  %s4339 = scalar_lea.vmem %s10, 1
  %v4340 = vld [vmem:[%s4339] sm:$0x1]
  %v4341 = vsel %vm80, %v4335, 0.0
  %4342 = vadd.xlane.f32.xlu0 %v4341
  %v4343 = vpop.xlane.xlu0 %4342
  %v4344 = vsel %vm80, %v4336, 0.0
  %4345 = vadd.xlane.f32.xlu0 %v4344
  %v4346 = vpop.xlane.xlu0 %4345
  %v4347 = vmul.f32 %v4343, %v1139
  %v4348 = vmul.f32 %v4346, %v1139
  %v4349 = vsub.f32 %v4335, %v4347
  %v4350 = vsub.f32 %v4336, %v4348
  %v4351 = vmul.f32 %v4349, %v4349
  %v4352 = vmul.f32 %v4350, %v4350
  %v4353 = vsel %vm80, %v4351, 0.0
  %4354 = vadd.xlane.f32.xlu0 %v4353
  %v4355 = vpop.xlane.xlu0 %4354
  %v4356 = vsel %vm80, %v4352, 0.0
  %4357 = vadd.xlane.f32.xlu0 %v4356
  %v4358 = vpop.xlane.xlu0 %4357
  %v4359 = vmul.f32 %v4355, %v1139
  %v4360 = vmul.f32 %v4358, %v1139
  %v4361 = vadd.f32 %v4359, 1e-05
  %v4362 = vadd.f32 %v4360, 1e-05
  %v4363 = vrsqrt.pop %v4361
  %v4364 = vrsqrt.pop %v4362
  %v4365 = vmul.f32 %v4349, %v4363
  %v4366 = vmul.f32 %v4350, %v4364
  %v4368 = vlaneseq
  %v4369 = vshrl.u32 %v4368, 7
  %v4370 = vsub.s32 0, %v4369
  %v4371 = vrot.slane %v4338, %v4370
  %v4373 = vmul.f32 %v4365, %v4371
  %v4374 = vmul.f32 %v4366, %v4371
  %v4376 = vlaneseq
  %v4377 = vshrl.u32 %v4376, 7
  %v4378 = vsub.s32 0, %v4377
  %v4379 = vrot.slane %v4340, %v4378
  %v4381 = vadd.f32 %v4373, %v4379
  %v4382 = vadd.f32 %v4374, %v4379
  %v4383 = vpack.c.bf16 %v4382, %v4381
  %s4384 = scalar_lea.vmem %s5, 256
  %v4385 = vld [vmem:[%s4384] sm:$0xff]
  %v4386 = vld [vmem:[%s4384 + $0x8] sm:$0xff]
  %v4387 = vld [vmem:[%s4384 + $0x40] sm:$0xff]
  %v4388 = vld [vmem:[%s4384 + $0x48] sm:$0xff]
  %v4389 = vld [vmem:[%s4384 + $0x80] sm:$0xff]
  %v4390 = vld [vmem:[%s4384 + $0x88] sm:$0xff]
  %v4391 = vld [vmem:[%s4384 + $0xc0] sm:$0xff]
  %v4392 = vld [vmem:[%s4384 + $0xc8] sm:$0xff]
  %s4393 = scalar_lea.vmem %s6, 16
  %v4394 = vld [vmem:[%s4393] sm:$0xf]
  %v4396 = vlaneseq
  %v4397 = vshrl.u32 %v4396, 7
  %v4398 = vsub.s32 0, %v4397
  %v4399 = vrot.slane %v4394, %v4398
  %v4400 = vlaneseq
  %v4401 = vshrl.u32 %v4400, 7
  %v4402 = vsub.s32 1, %v4401
  %v4403 = vrot.slane %v4394, %v4402
  %v4404 = vlaneseq
  %v4405 = vshrl.u32 %v4404, 7
  %v4406 = vsub.s32 2, %v4405
  %v4407 = vrot.slane %v4394, %v4406
  %v4408 = vlaneseq
  %v4409 = vshrl.u32 %v4408, 7
  %v4410 = vsub.s32 3, %v4409
  %v4411 = vrot.slane %v4394, %v4410
  %v4424 = vunpack.c.l.b16 %v4385
  %v4425 = vunpack.c.h.b16 %v4385
  %v4426 = vunpack.c.l.b16 %v4386
  %v4427 = vunpack.c.h.b16 %v4386
  %v4428 = vunpack.c.l.b16 %v4387
  %v4429 = vunpack.c.h.b16 %v4387
  %v4430 = vunpack.c.l.b16 %v4388
  %v4431 = vunpack.c.h.b16 %v4388
  %v4432 = vunpack.c.l.b16 %v4389
  %v4433 = vunpack.c.h.b16 %v4389
  %v4434 = vunpack.c.l.b16 %v4390
  %v4435 = vunpack.c.h.b16 %v4390
  %v4436 = vunpack.c.l.b16 %v4391
  %v4437 = vunpack.c.h.b16 %v4391
  %v4438 = vunpack.c.l.b16 %v4392
  %v4439 = vunpack.c.h.b16 %v4392
  %v4440 = vpack.c.b16 %v4428, %v4424
  %v4441 = vpack.c.b16 %v4429, %v4425
  %v4442 = vpack.c.b16 %v4430, %v4426
  %v4443 = vpack.c.b16 %v4431, %v4427
  %v4444 = vpack.c.b16 %v4436, %v4432
  %v4445 = vpack.c.b16 %v4437, %v4433
  %v4446 = vpack.c.b16 %v4438, %v4434
  %v4447 = vpack.c.b16 %v4439, %v4435
  %v4457 = vsel %vm80, %v4383, 0
  %4459 = vmatprep.subr.bf16.mxu0 0
  %4460 = vmatpush1.bf16.msra.mxu0 0
  %4461 = vmatprep.subr.bf16.mxu0 0
  %4462 = vmatpush1.bf16.msra.mxu0 0
  %4463 = vmatprep.subr.bf16.mxu0 0
  %4464 = vmatpush1.bf16.msra.mxu0 0
  %4465 = vmatprep.subr.bf16.mxu0 0
  %4466 = vmatpush1.bf16.msra.mxu0 0
  %4467 = vmatprep.subr.bf16.mxu0 0
  %4468 = vmatpush1.bf16.msra.mxu0 0
  %4469 = vmatprep.subr.bf16.mxu0 0
  %4470 = vmatpush1.bf16.msra.mxu0 0
  %4471 = vmatprep.subr.bf16.mxu0 %v4445
  %4472 = vmatpush1.bf16.msra.mxu0 %v4444
  %4473 = vmatprep.subr.bf16.mxu0 %v4441
  %4474 = vmatpush1.bf16.msra.mxu0 %v4440
  %4475 = vmatprep.subr.bf16.mxu0 0
  %4476 = vmatpush2.bf16.msra.mxu0 0
  %4477 = vmatprep.subr.bf16.mxu0 0
  %4478 = vmatpush2.bf16.msra.mxu0 0
  %4479 = vmatprep.subr.bf16.mxu0 0
  %4480 = vmatpush2.bf16.msra.mxu0 0
  %4481 = vmatprep.subr.bf16.mxu0 0
  %4482 = vmatpush2.bf16.msra.mxu0 0
  %4483 = vmatprep.subr.bf16.mxu0 0
  %4484 = vmatpush2.bf16.msra.mxu0 0
  %4485 = vmatprep.subr.bf16.mxu0 0
  %4486 = vmatpush2.bf16.msra.mxu0 0
  %4487 = vmatprep.subr.bf16.mxu0 0
  %4488 = vmatpush2.bf16.msra.mxu0 0
  %4489 = vmatprep.subr.bf16.mxu0 0
  %4490 = vmatpush2.bf16.msra.mxu0 0
  %4491 = vmatprep.mubr.bf16.mxu0 0
  %4492 = vmatmul.mubr.bf16.gmra.mxu0 %v4457
  %v4493 = vpop.f32.mrf.mxu0
  %v4494 = vadd.f32 %v4399, %v4493
  %v4495 = vpop.f32.mrf.mxu0
  %v4496 = vadd.f32 %v4403, %v4495
  %v4497 = vpop.f32.mrf.mxu0
  %v4498 = vadd.f32 %v4399, %v4497
  %v4499 = vpop.f32.mrf.mxu0
  %v4500 = vadd.f32 %v4403, %v4499
  %4501 = vdwg.mxu0
  %4502 = vmatprep.subr.bf16.mxu0 0
  %4503 = vmatpush1.bf16.msra.mxu0 0
  %4504 = vmatprep.subr.bf16.mxu0 0
  %4505 = vmatpush1.bf16.msra.mxu0 0
  %4506 = vmatprep.subr.bf16.mxu0 0
  %4507 = vmatpush1.bf16.msra.mxu0 0
  %4508 = vmatprep.subr.bf16.mxu0 0
  %4509 = vmatpush1.bf16.msra.mxu0 0
  %4510 = vmatprep.subr.bf16.mxu0 0
  %4511 = vmatpush1.bf16.msra.mxu0 0
  %4512 = vmatprep.subr.bf16.mxu0 0
  %4513 = vmatpush1.bf16.msra.mxu0 0
  %4514 = vmatprep.subr.bf16.mxu0 %v4447
  %4515 = vmatpush1.bf16.msra.mxu0 %v4446
  %4516 = vmatprep.subr.bf16.mxu0 %v4443
  %4517 = vmatpush1.bf16.msra.mxu0 %v4442
  %4518 = vmatprep.subr.bf16.mxu0 0
  %4519 = vmatpush2.bf16.msra.mxu0 0
  %4520 = vmatprep.subr.bf16.mxu0 0
  %4521 = vmatpush2.bf16.msra.mxu0 0
  %4522 = vmatprep.subr.bf16.mxu0 0
  %4523 = vmatpush2.bf16.msra.mxu0 0
  %4524 = vmatprep.subr.bf16.mxu0 0
  %4525 = vmatpush2.bf16.msra.mxu0 0
  %4526 = vmatprep.subr.bf16.mxu0 0
  %4527 = vmatpush2.bf16.msra.mxu0 0
  %4528 = vmatprep.subr.bf16.mxu0 0
  %4529 = vmatpush2.bf16.msra.mxu0 0
  %4530 = vmatprep.subr.bf16.mxu0 0
  %4531 = vmatpush2.bf16.msra.mxu0 0
  %4532 = vmatprep.subr.bf16.mxu0 0
  %4533 = vmatpush2.bf16.msra.mxu0 0
  %4534 = vmatprep.mubr.bf16.mxu0 0
  %4535 = vmatmul.mubr.bf16.gmra.mxu0 %v4457
  %v4536 = vpop.f32.mrf.mxu0
  %v4537 = vadd.f32 %v4407, %v4536
  %v4538 = vpop.f32.mrf.mxu0
  %v4539 = vadd.f32 %v4411, %v4538
  %v4540 = vpop.f32.mrf.mxu0
  %v4541 = vadd.f32 %v4407, %v4540
  %v4542 = vpop.f32.mrf.mxu0
  %v4543 = vadd.f32 %v4411, %v4542
  %4544 = vdwg.mxu0
  %v4545 = vmax.f32 %v4494, 0.0
  %v4546 = vmax.f32 %v4496, 0.0
  %v4547 = vmax.f32 %v4537, 0.0
  %v4548 = vmax.f32 %v4539, 0.0
  %v4549 = vmax.f32 %v4498, 0.0
  %v4550 = vmax.f32 %v4500, 0.0
  %v4551 = vmax.f32 %v4541, 0.0
  %v4552 = vmax.f32 %v4543, 0.0
  %v4553 = vpack.c.bf16 %v4549, %v4545
  %v4554 = vpack.c.bf16 %v4550, %v4546
  %v4555 = vpack.c.bf16 %v4551, %v4547
  %v4556 = vpack.c.bf16 %v4552, %v4548
  %s4557 = scalar_lea.vmem %s7, 1024
  %v4558 = vld [vmem:[%s4557] sm:$0xf]
  %v4559 = vld [vmem:[%s4557 + $0x4] sm:$0xf]
  %v4560 = vld [vmem:[%s4557 + $0x8] sm:$0xf]
  %v4561 = vld [vmem:[%s4557 + $0xc] sm:$0xf]
  %v4562 = vld [vmem:[%s4557 + $0x10] sm:$0xf]
  %v4563 = vld [vmem:[%s4557 + $0x14] sm:$0xf]
  %v4564 = vld [vmem:[%s4557 + $0x18] sm:$0xf]
  %v4565 = vld [vmem:[%s4557 + $0x1c] sm:$0xf]
  %v4566 = vld [vmem:[%s4557 + $0x20] sm:$0xf]
  %v4567 = vld [vmem:[%s4557 + $0x24] sm:$0xf]
  %v4568 = vld [vmem:[%s4557 + $0x28] sm:$0xf]
  %v4569 = vld [vmem:[%s4557 + $0x2c] sm:$0xf]
  %v4570 = vld [vmem:[%s4557 + $0x30] sm:$0xf]
  %v4571 = vld [vmem:[%s4557 + $0x34] sm:$0xf]
  %v4572 = vld [vmem:[%s4557 + $0x38] sm:$0xf]
  %v4573 = vld [vmem:[%s4557 + $0x3c] sm:$0xf]
  %v4574 = vld [vmem:[%s4557 + $0x40] sm:$0xf]
  %v4575 = vld [vmem:[%s4557 + $0x44] sm:$0xf]
  %v4576 = vld [vmem:[%s4557 + $0x48] sm:$0xf]
  %v4577 = vld [vmem:[%s4557 + $0x4c] sm:$0xf]
  %v4578 = vld [vmem:[%s4557 + $0x50] sm:$0xf]
  %v4579 = vld [vmem:[%s4557 + $0x54] sm:$0xf]
  %v4580 = vld [vmem:[%s4557 + $0x58] sm:$0xf]
  %v4581 = vld [vmem:[%s4557 + $0x5c] sm:$0xf]
  %v4582 = vld [vmem:[%s4557 + $0x60] sm:$0xf]
  %v4583 = vld [vmem:[%s4557 + $0x64] sm:$0xf]
  %v4584 = vld [vmem:[%s4557 + $0x68] sm:$0xf]
  %v4585 = vld [vmem:[%s4557 + $0x6c] sm:$0xf]
  %v4586 = vld [vmem:[%s4557 + $0x70] sm:$0xf]
  %v4587 = vld [vmem:[%s4557 + $0x74] sm:$0xf]
  %v4588 = vld [vmem:[%s4557 + $0x78] sm:$0xf]
  %v4589 = vld [vmem:[%s4557 + $0x7c] sm:$0xf]
  %v4590 = vld [vmem:[%s4557 + $0x80] sm:$0xf]
  %v4591 = vld [vmem:[%s4557 + $0x84] sm:$0xf]
  %v4592 = vld [vmem:[%s4557 + $0x88] sm:$0xf]
  %v4593 = vld [vmem:[%s4557 + $0x8c] sm:$0xf]
  %v4594 = vld [vmem:[%s4557 + $0x90] sm:$0xf]
  %v4595 = vld [vmem:[%s4557 + $0x94] sm:$0xf]
  %v4596 = vld [vmem:[%s4557 + $0x98] sm:$0xf]
  %v4597 = vld [vmem:[%s4557 + $0x9c] sm:$0xf]
  %v4598 = vld [vmem:[%s4557 + $0xa0] sm:$0xf]
  %v4599 = vld [vmem:[%s4557 + $0xa4] sm:$0xf]
  %v4600 = vld [vmem:[%s4557 + $0xa8] sm:$0xf]
  %v4601 = vld [vmem:[%s4557 + $0xac] sm:$0xf]
  %v4602 = vld [vmem:[%s4557 + $0xb0] sm:$0xf]
  %v4603 = vld [vmem:[%s4557 + $0xb4] sm:$0xf]
  %v4604 = vld [vmem:[%s4557 + $0xb8] sm:$0xf]
  %v4605 = vld [vmem:[%s4557 + $0xbc] sm:$0xf]
  %v4606 = vld [vmem:[%s4557 + $0xc0] sm:$0xf]
  %v4607 = vld [vmem:[%s4557 + $0xc4] sm:$0xf]
  %v4608 = vld [vmem:[%s4557 + $0xc8] sm:$0xf]
  %v4609 = vld [vmem:[%s4557 + $0xcc] sm:$0xf]
  %v4610 = vld [vmem:[%s4557 + $0xd0] sm:$0xf]
  %v4611 = vld [vmem:[%s4557 + $0xd4] sm:$0xf]
  %v4612 = vld [vmem:[%s4557 + $0xd8] sm:$0xf]
  %v4613 = vld [vmem:[%s4557 + $0xdc] sm:$0xf]
  %v4614 = vld [vmem:[%s4557 + $0xe0] sm:$0xf]
  %v4615 = vld [vmem:[%s4557 + $0xe4] sm:$0xf]
  %v4616 = vld [vmem:[%s4557 + $0xe8] sm:$0xf]
  %v4617 = vld [vmem:[%s4557 + $0xec] sm:$0xf]
  %v4618 = vld [vmem:[%s4557 + $0xf0] sm:$0xf]
  %v4619 = vld [vmem:[%s4557 + $0xf4] sm:$0xf]
  %v4620 = vld [vmem:[%s4557 + $0xf8] sm:$0xf]
  %v4621 = vld [vmem:[%s4557 + $0xfc] sm:$0xf]
  %v4622 = vld [vmem:[%s4384 + $0x10] sm:$0xff]
  %v4623 = vld [vmem:[%s4384 + $0x18] sm:$0xff]
  %v4624 = vld [vmem:[%s4384 + $0x50] sm:$0xff]
  %v4625 = vld [vmem:[%s4384 + $0x58] sm:$0xff]
  %v4626 = vld [vmem:[%s4384 + $0x90] sm:$0xff]
  %v4627 = vld [vmem:[%s4384 + $0x98] sm:$0xff]
  %v4628 = vld [vmem:[%s4384 + $0xd0] sm:$0xff]
  %v4629 = vld [vmem:[%s4384 + $0xd8] sm:$0xff]
  %v4630 = vld [vmem:[%s4393 + $0x4] sm:$0xf]
  %v4632 = vlaneseq
  %v4633 = vshrl.u32 %v4632, 7
  %v4634 = vsub.s32 0, %v4633
  %v4635 = vrot.slane %v4630, %v4634
  %v4636 = vlaneseq
  %v4637 = vshrl.u32 %v4636, 7
  %v4638 = vsub.s32 1, %v4637
  %v4639 = vrot.slane %v4630, %v4638
  %v4640 = vlaneseq
  %v4641 = vshrl.u32 %v4640, 7
  %v4642 = vsub.s32 2, %v4641
  %v4643 = vrot.slane %v4630, %v4642
  %v4644 = vlaneseq
  %v4645 = vshrl.u32 %v4644, 7
  %v4646 = vsub.s32 3, %v4645
  %v4647 = vrot.slane %v4630, %v4646
  %v4660 = vunpack.c.l.b16 %v4622
  %v4661 = vunpack.c.h.b16 %v4622
  %v4662 = vunpack.c.l.b16 %v4623
  %v4663 = vunpack.c.h.b16 %v4623
  %v4664 = vunpack.c.l.b16 %v4624
  %v4665 = vunpack.c.h.b16 %v4624
  %v4666 = vunpack.c.l.b16 %v4625
  %v4667 = vunpack.c.h.b16 %v4625
  %v4668 = vunpack.c.l.b16 %v4626
  %v4669 = vunpack.c.h.b16 %v4626
  %v4670 = vunpack.c.l.b16 %v4627
  %v4671 = vunpack.c.h.b16 %v4627
  %v4672 = vunpack.c.l.b16 %v4628
  %v4673 = vunpack.c.h.b16 %v4628
  %v4674 = vunpack.c.l.b16 %v4629
  %v4675 = vunpack.c.h.b16 %v4629
  %v4676 = vpack.c.b16 %v4664, %v4660
  %v4677 = vpack.c.b16 %v4665, %v4661
  %v4678 = vpack.c.b16 %v4666, %v4662
  %v4679 = vpack.c.b16 %v4667, %v4663
  %v4680 = vpack.c.b16 %v4672, %v4668
  %v4681 = vpack.c.b16 %v4673, %v4669
  %v4682 = vpack.c.b16 %v4674, %v4670
  %v4683 = vpack.c.b16 %v4675, %v4671
  %4692 = vmatprep.subr.bf16.mxu0 0
  %4693 = vmatpush1.bf16.msra.mxu0 0
  %4694 = vmatprep.subr.bf16.mxu0 0
  %4695 = vmatpush1.bf16.msra.mxu0 0
  %4696 = vmatprep.subr.bf16.mxu0 0
  %4697 = vmatpush1.bf16.msra.mxu0 0
  %4698 = vmatprep.subr.bf16.mxu0 0
  %4699 = vmatpush1.bf16.msra.mxu0 0
  %4700 = vmatprep.subr.bf16.mxu0 0
  %4701 = vmatpush1.bf16.msra.mxu0 0
  %4702 = vmatprep.subr.bf16.mxu0 0
  %4703 = vmatpush1.bf16.msra.mxu0 0
  %4704 = vmatprep.subr.bf16.mxu0 %v4681
  %4705 = vmatpush1.bf16.msra.mxu0 %v4680
  %4706 = vmatprep.subr.bf16.mxu0 %v4677
  %4707 = vmatpush1.bf16.msra.mxu0 %v4676
  %4708 = vmatprep.subr.bf16.mxu0 0
  %4709 = vmatpush2.bf16.msra.mxu0 0
  %4710 = vmatprep.subr.bf16.mxu0 0
  %4711 = vmatpush2.bf16.msra.mxu0 0
  %4712 = vmatprep.subr.bf16.mxu0 0
  %4713 = vmatpush2.bf16.msra.mxu0 0
  %4714 = vmatprep.subr.bf16.mxu0 0
  %4715 = vmatpush2.bf16.msra.mxu0 0
  %4716 = vmatprep.subr.bf16.mxu0 0
  %4717 = vmatpush2.bf16.msra.mxu0 0
  %4718 = vmatprep.subr.bf16.mxu0 0
  %4719 = vmatpush2.bf16.msra.mxu0 0
  %4720 = vmatprep.subr.bf16.mxu0 0
  %4721 = vmatpush2.bf16.msra.mxu0 0
  %4722 = vmatprep.subr.bf16.mxu0 0
  %4723 = vmatpush2.bf16.msra.mxu0 0
  %4724 = vmatprep.mubr.bf16.mxu0 0
  %4725 = vmatmul.mubr.bf16.gmra.mxu0 %v4457
  %v4726 = vpop.f32.mrf.mxu0
  %v4727 = vadd.f32 %v4635, %v4726
  %v4728 = vpop.f32.mrf.mxu0
  %v4729 = vadd.f32 %v4639, %v4728
  %v4730 = vpop.f32.mrf.mxu0
  %v4731 = vadd.f32 %v4635, %v4730
  %v4732 = vpop.f32.mrf.mxu0
  %v4733 = vadd.f32 %v4639, %v4732
  %4734 = vdwg.mxu0
  %4735 = vmatprep.subr.bf16.mxu0 0
  %4736 = vmatpush1.bf16.msra.mxu0 0
  %4737 = vmatprep.subr.bf16.mxu0 0
  %4738 = vmatpush1.bf16.msra.mxu0 0
  %4739 = vmatprep.subr.bf16.mxu0 0
  %4740 = vmatpush1.bf16.msra.mxu0 0
  %4741 = vmatprep.subr.bf16.mxu0 0
  %4742 = vmatpush1.bf16.msra.mxu0 0
  %4743 = vmatprep.subr.bf16.mxu0 0
  %4744 = vmatpush1.bf16.msra.mxu0 0
  %4745 = vmatprep.subr.bf16.mxu0 0
  %4746 = vmatpush1.bf16.msra.mxu0 0
  %4747 = vmatprep.subr.bf16.mxu0 %v4683
  %4748 = vmatpush1.bf16.msra.mxu0 %v4682
  %4749 = vmatprep.subr.bf16.mxu0 %v4679
  %4750 = vmatpush1.bf16.msra.mxu0 %v4678
  %4751 = vmatprep.subr.bf16.mxu0 0
  %4752 = vmatpush2.bf16.msra.mxu0 0
  %4753 = vmatprep.subr.bf16.mxu0 0
  %4754 = vmatpush2.bf16.msra.mxu0 0
  %4755 = vmatprep.subr.bf16.mxu0 0
  %4756 = vmatpush2.bf16.msra.mxu0 0
  %4757 = vmatprep.subr.bf16.mxu0 0
  %4758 = vmatpush2.bf16.msra.mxu0 0
  %4759 = vmatprep.subr.bf16.mxu0 0
  %4760 = vmatpush2.bf16.msra.mxu0 0
  %4761 = vmatprep.subr.bf16.mxu0 0
  %4762 = vmatpush2.bf16.msra.mxu0 0
  %4763 = vmatprep.subr.bf16.mxu0 0
  %4764 = vmatpush2.bf16.msra.mxu0 0
  %4765 = vmatprep.subr.bf16.mxu0 0
  %4766 = vmatpush2.bf16.msra.mxu0 0
  %4767 = vmatprep.mubr.bf16.mxu0 0
  %4768 = vmatmul.mubr.bf16.gmra.mxu0 %v4457
  %v4769 = vpop.f32.mrf.mxu0
  %v4770 = vadd.f32 %v4643, %v4769
  %v4771 = vpop.f32.mrf.mxu0
  %v4772 = vadd.f32 %v4647, %v4771
  %v4773 = vpop.f32.mrf.mxu0
  %v4774 = vadd.f32 %v4643, %v4773
  %v4775 = vpop.f32.mrf.mxu0
  %v4776 = vadd.f32 %v4647, %v4775
  %4777 = vdwg.mxu0
  %v4778 = vmax.f32 %v4727, 0.0
  %v4779 = vmax.f32 %v4729, 0.0
  %v4780 = vmax.f32 %v4770, 0.0
  %v4781 = vmax.f32 %v4772, 0.0
  %v4782 = vmax.f32 %v4731, 0.0
  %v4783 = vmax.f32 %v4733, 0.0
  %v4784 = vmax.f32 %v4774, 0.0
  %v4785 = vmax.f32 %v4776, 0.0
  %v4786 = vpack.c.bf16 %v4782, %v4778
  %v4787 = vpack.c.bf16 %v4783, %v4779
  %v4788 = vpack.c.bf16 %v4784, %v4780
  %v4789 = vpack.c.bf16 %v4785, %v4781
  %v4790 = vld [vmem:[%s4557 + $0x100] sm:$0xf]
  %v4791 = vld [vmem:[%s4557 + $0x104] sm:$0xf]
  %v4792 = vld [vmem:[%s4557 + $0x108] sm:$0xf]
  %v4793 = vld [vmem:[%s4557 + $0x10c] sm:$0xf]
  %v4794 = vld [vmem:[%s4557 + $0x110] sm:$0xf]
  %v4795 = vld [vmem:[%s4557 + $0x114] sm:$0xf]
  %v4796 = vld [vmem:[%s4557 + $0x118] sm:$0xf]
  %v4797 = vld [vmem:[%s4557 + $0x11c] sm:$0xf]
  %v4798 = vld [vmem:[%s4557 + $0x120] sm:$0xf]
  %v4799 = vld [vmem:[%s4557 + $0x124] sm:$0xf]
  %v4800 = vld [vmem:[%s4557 + $0x128] sm:$0xf]
  %v4801 = vld [vmem:[%s4557 + $0x12c] sm:$0xf]
  %v4802 = vld [vmem:[%s4557 + $0x130] sm:$0xf]
  %v4803 = vld [vmem:[%s4557 + $0x134] sm:$0xf]
  %v4804 = vld [vmem:[%s4557 + $0x138] sm:$0xf]
  %v4805 = vld [vmem:[%s4557 + $0x13c] sm:$0xf]
  %v4806 = vld [vmem:[%s4557 + $0x140] sm:$0xf]
  %v4807 = vld [vmem:[%s4557 + $0x144] sm:$0xf]
  %v4808 = vld [vmem:[%s4557 + $0x148] sm:$0xf]
  %v4809 = vld [vmem:[%s4557 + $0x14c] sm:$0xf]
  %v4810 = vld [vmem:[%s4557 + $0x150] sm:$0xf]
  %v4811 = vld [vmem:[%s4557 + $0x154] sm:$0xf]
  %v4812 = vld [vmem:[%s4557 + $0x158] sm:$0xf]
  %v4813 = vld [vmem:[%s4557 + $0x15c] sm:$0xf]
  %v4814 = vld [vmem:[%s4557 + $0x160] sm:$0xf]
  %v4815 = vld [vmem:[%s4557 + $0x164] sm:$0xf]
  %v4816 = vld [vmem:[%s4557 + $0x168] sm:$0xf]
  %v4817 = vld [vmem:[%s4557 + $0x16c] sm:$0xf]
  %v4818 = vld [vmem:[%s4557 + $0x170] sm:$0xf]
  %v4819 = vld [vmem:[%s4557 + $0x174] sm:$0xf]
  %v4820 = vld [vmem:[%s4557 + $0x178] sm:$0xf]
  %v4821 = vld [vmem:[%s4557 + $0x17c] sm:$0xf]
  %v4822 = vld [vmem:[%s4557 + $0x180] sm:$0xf]
  %v4823 = vld [vmem:[%s4557 + $0x184] sm:$0xf]
  %v4824 = vld [vmem:[%s4557 + $0x188] sm:$0xf]
  %v4825 = vld [vmem:[%s4557 + $0x18c] sm:$0xf]
  %v4826 = vld [vmem:[%s4557 + $0x190] sm:$0xf]
  %v4827 = vld [vmem:[%s4557 + $0x194] sm:$0xf]
  %v4828 = vld [vmem:[%s4557 + $0x198] sm:$0xf]
  %v4829 = vld [vmem:[%s4557 + $0x19c] sm:$0xf]
  %v4830 = vld [vmem:[%s4557 + $0x1a0] sm:$0xf]
  %v4831 = vld [vmem:[%s4557 + $0x1a4] sm:$0xf]
  %v4832 = vld [vmem:[%s4557 + $0x1a8] sm:$0xf]
  %v4833 = vld [vmem:[%s4557 + $0x1ac] sm:$0xf]
  %v4834 = vld [vmem:[%s4557 + $0x1b0] sm:$0xf]
  %v4835 = vld [vmem:[%s4557 + $0x1b4] sm:$0xf]
  %v4836 = vld [vmem:[%s4557 + $0x1b8] sm:$0xf]
  %v4837 = vld [vmem:[%s4557 + $0x1bc] sm:$0xf]
  %v4838 = vld [vmem:[%s4557 + $0x1c0] sm:$0xf]
  %v4839 = vld [vmem:[%s4557 + $0x1c4] sm:$0xf]
  %v4840 = vld [vmem:[%s4557 + $0x1c8] sm:$0xf]
  %v4841 = vld [vmem:[%s4557 + $0x1cc] sm:$0xf]
  %v4842 = vld [vmem:[%s4557 + $0x1d0] sm:$0xf]
  %v4843 = vld [vmem:[%s4557 + $0x1d4] sm:$0xf]
  %v4844 = vld [vmem:[%s4557 + $0x1d8] sm:$0xf]
  %v4845 = vld [vmem:[%s4557 + $0x1dc] sm:$0xf]
  %v4846 = vld [vmem:[%s4557 + $0x1e0] sm:$0xf]
  %v4847 = vld [vmem:[%s4557 + $0x1e4] sm:$0xf]
  %v4848 = vld [vmem:[%s4557 + $0x1e8] sm:$0xf]
  %v4849 = vld [vmem:[%s4557 + $0x1ec] sm:$0xf]
  %v4850 = vld [vmem:[%s4557 + $0x1f0] sm:$0xf]
  %v4851 = vld [vmem:[%s4557 + $0x1f4] sm:$0xf]
  %v4852 = vld [vmem:[%s4557 + $0x1f8] sm:$0xf]
  %v4853 = vld [vmem:[%s4557 + $0x1fc] sm:$0xf]
  %v4918 = vunpack.c.l.b16 %v4790
  %v4919 = vunpack.c.l.b16 %v4791
  %v4920 = vunpack.c.l.b16 %v4792
  %v4921 = vunpack.c.l.b16 %v4793
  %v4922 = vunpack.c.l.b16 %v4794
  %v4923 = vunpack.c.l.b16 %v4795
  %v4924 = vunpack.c.l.b16 %v4796
  %v4925 = vunpack.c.l.b16 %v4797
  %v4926 = vunpack.c.l.b16 %v4798
  %v4927 = vunpack.c.l.b16 %v4799
  %v4928 = vunpack.c.l.b16 %v4800
  %v4929 = vunpack.c.l.b16 %v4801
  %v4930 = vunpack.c.l.b16 %v4802
  %v4931 = vunpack.c.l.b16 %v4803
  %v4932 = vunpack.c.l.b16 %v4804
  %v4933 = vunpack.c.l.b16 %v4805
  %v4934 = vunpack.c.l.b16 %v4806
  %v4935 = vunpack.c.l.b16 %v4807
  %v4936 = vunpack.c.l.b16 %v4808
  %v4937 = vunpack.c.l.b16 %v4809
  %v4938 = vunpack.c.l.b16 %v4810
  %v4939 = vunpack.c.l.b16 %v4811
  %v4940 = vunpack.c.l.b16 %v4812
  %v4941 = vunpack.c.l.b16 %v4813
  %v4942 = vunpack.c.l.b16 %v4814
  %v4943 = vunpack.c.l.b16 %v4815
  %v4944 = vunpack.c.l.b16 %v4816
  %v4945 = vunpack.c.l.b16 %v4817
  %v4946 = vunpack.c.l.b16 %v4818
  %v4947 = vunpack.c.l.b16 %v4819
  %v4948 = vunpack.c.l.b16 %v4820
  %v4949 = vunpack.c.l.b16 %v4821
  %v4950 = vunpack.c.l.b16 %v4822
  %v4951 = vunpack.c.l.b16 %v4823
  %v4952 = vunpack.c.l.b16 %v4824
  %v4953 = vunpack.c.l.b16 %v4825
  %v4954 = vunpack.c.l.b16 %v4826
  %v4955 = vunpack.c.l.b16 %v4827
  %v4956 = vunpack.c.l.b16 %v4828
  %v4957 = vunpack.c.l.b16 %v4829
  %v4958 = vunpack.c.l.b16 %v4830
  %v4959 = vunpack.c.l.b16 %v4831
  %v4960 = vunpack.c.l.b16 %v4832
  %v4961 = vunpack.c.l.b16 %v4833
  %v4962 = vunpack.c.l.b16 %v4834
  %v4963 = vunpack.c.l.b16 %v4835
  %v4964 = vunpack.c.l.b16 %v4836
  %v4965 = vunpack.c.l.b16 %v4837
  %v4966 = vunpack.c.l.b16 %v4838
  %v4967 = vunpack.c.l.b16 %v4839
  %v4968 = vunpack.c.l.b16 %v4840
  %v4969 = vunpack.c.l.b16 %v4841
  %v4970 = vunpack.c.l.b16 %v4842
  %v4971 = vunpack.c.l.b16 %v4843
  %v4972 = vunpack.c.l.b16 %v4844
  %v4973 = vunpack.c.l.b16 %v4845
  %v4974 = vunpack.c.l.b16 %v4846
  %v4975 = vunpack.c.l.b16 %v4847
  %v4976 = vunpack.c.l.b16 %v4848
  %v4977 = vunpack.c.l.b16 %v4849
  %v4978 = vunpack.c.l.b16 %v4850
  %v4979 = vunpack.c.l.b16 %v4851
  %v4980 = vunpack.c.l.b16 %v4852
  %v4981 = vunpack.c.l.b16 %v4853
  %v4982 = vpack.c.b16 %v4919, %v4918
  %v4983 = vpack.c.b16 %v4921, %v4920
  %v4984 = vpack.c.b16 %v4923, %v4922
  %v4985 = vpack.c.b16 %v4925, %v4924
  %v4986 = vpack.c.b16 %v4927, %v4926
  %v4987 = vpack.c.b16 %v4929, %v4928
  %v4988 = vpack.c.b16 %v4931, %v4930
  %v4989 = vpack.c.b16 %v4933, %v4932
  %v4990 = vpack.c.b16 %v4935, %v4934
  %v4991 = vpack.c.b16 %v4937, %v4936
  %v4992 = vpack.c.b16 %v4939, %v4938
  %v4993 = vpack.c.b16 %v4941, %v4940
  %v4994 = vpack.c.b16 %v4943, %v4942
  %v4995 = vpack.c.b16 %v4945, %v4944
  %v4996 = vpack.c.b16 %v4947, %v4946
  %v4997 = vpack.c.b16 %v4949, %v4948
  %v4998 = vpack.c.b16 %v4951, %v4950
  %v4999 = vpack.c.b16 %v4953, %v4952
  %v5000 = vpack.c.b16 %v4955, %v4954
  %v5001 = vpack.c.b16 %v4957, %v4956
  %v5002 = vpack.c.b16 %v4959, %v4958
  %v5003 = vpack.c.b16 %v4961, %v4960
  %v5004 = vpack.c.b16 %v4963, %v4962
  %v5005 = vpack.c.b16 %v4965, %v4964
  %v5006 = vpack.c.b16 %v4967, %v4966
  %v5007 = vpack.c.b16 %v4969, %v4968
  %v5008 = vpack.c.b16 %v4971, %v4970
  %v5009 = vpack.c.b16 %v4973, %v4972
  %v5010 = vpack.c.b16 %v4975, %v4974
  %v5011 = vpack.c.b16 %v4977, %v4976
  %v5012 = vpack.c.b16 %v4979, %v4978
  %v5013 = vpack.c.b16 %v4981, %v4980
  %5046 = vmatprep.subr.bf16.mxu0 0
  %5047 = vmatpush1.bf16.msra.mxu0 %v4989
  %5048 = vmatprep.subr.bf16.mxu0 0
  %5049 = vmatpush1.bf16.msra.mxu0 %v4988
  %5050 = vmatprep.subr.bf16.mxu0 0
  %5051 = vmatpush1.bf16.msra.mxu0 %v4987
  %5052 = vmatprep.subr.bf16.mxu0 0
  %5053 = vmatpush1.bf16.msra.mxu0 %v4986
  %5054 = vmatprep.subr.bf16.mxu0 0
  %5055 = vmatpush1.bf16.msra.mxu0 %v4985
  %5056 = vmatprep.subr.bf16.mxu0 0
  %5057 = vmatpush1.bf16.msra.mxu0 %v4984
  %5058 = vmatprep.subr.bf16.mxu0 0
  %5059 = vmatpush1.bf16.msra.mxu0 %v4983
  %5060 = vmatprep.subr.bf16.mxu0 0
  %5061 = vmatpush1.bf16.msra.mxu0 %v4982
  %5062 = vmatprep.subr.bf16.mxu0 0
  %5063 = vmatpush2.bf16.msra.mxu0 %v4997
  %5064 = vmatprep.subr.bf16.mxu0 0
  %5065 = vmatpush2.bf16.msra.mxu0 %v4996
  %5066 = vmatprep.subr.bf16.mxu0 0
  %5067 = vmatpush2.bf16.msra.mxu0 %v4995
  %5068 = vmatprep.subr.bf16.mxu0 0
  %5069 = vmatpush2.bf16.msra.mxu0 %v4994
  %5070 = vmatprep.subr.bf16.mxu0 0
  %5071 = vmatpush2.bf16.msra.mxu0 %v4993
  %5072 = vmatprep.subr.bf16.mxu0 0
  %5073 = vmatpush2.bf16.msra.mxu0 %v4992
  %5074 = vmatprep.subr.bf16.mxu0 0
  %5075 = vmatpush2.bf16.msra.mxu0 %v4991
  %5076 = vmatprep.subr.bf16.mxu0 0
  %5077 = vmatpush2.bf16.msra.mxu0 %v4990
  %5078 = vmatprep.mubr.bf16.mxu0 %v4787
  %5079 = vmatmul.mubr.bf16.gmra.mxu0 %v4786
  %v5080 = vpop.f32.mrf.mxu0
  %v5081 = vadd.f32 0.0, %v5080
  %v5082 = vpop.f32.mrf.mxu0
  %v5083 = vpop.f32.mrf.mxu0
  %v5084 = vadd.f32 0.0, %v5083
  %v5085 = vpop.f32.mrf.mxu0
  %5086 = vdwg.mxu0
  %5087 = vmatprep.subr.bf16.mxu0 0
  %5088 = vmatpush1.bf16.msra.mxu0 %v5005
  %5089 = vmatprep.subr.bf16.mxu0 0
  %5090 = vmatpush1.bf16.msra.mxu0 %v5004
  %5091 = vmatprep.subr.bf16.mxu0 0
  %5092 = vmatpush1.bf16.msra.mxu0 %v5003
  %5093 = vmatprep.subr.bf16.mxu0 0
  %5094 = vmatpush1.bf16.msra.mxu0 %v5002
  %5095 = vmatprep.subr.bf16.mxu0 0
  %5096 = vmatpush1.bf16.msra.mxu0 %v5001
  %5097 = vmatprep.subr.bf16.mxu0 0
  %5098 = vmatpush1.bf16.msra.mxu0 %v5000
  %5099 = vmatprep.subr.bf16.mxu0 0
  %5100 = vmatpush1.bf16.msra.mxu0 %v4999
  %5101 = vmatprep.subr.bf16.mxu0 0
  %5102 = vmatpush1.bf16.msra.mxu0 %v4998
  %5103 = vmatprep.subr.bf16.mxu0 0
  %5104 = vmatpush2.bf16.msra.mxu0 %v5013
  %5105 = vmatprep.subr.bf16.mxu0 0
  %5106 = vmatpush2.bf16.msra.mxu0 %v5012
  %5107 = vmatprep.subr.bf16.mxu0 0
  %5108 = vmatpush2.bf16.msra.mxu0 %v5011
  %5109 = vmatprep.subr.bf16.mxu0 0
  %5110 = vmatpush2.bf16.msra.mxu0 %v5010
  %5111 = vmatprep.subr.bf16.mxu0 0
  %5112 = vmatpush2.bf16.msra.mxu0 %v5009
  %5113 = vmatprep.subr.bf16.mxu0 0
  %5114 = vmatpush2.bf16.msra.mxu0 %v5008
  %5115 = vmatprep.subr.bf16.mxu0 0
  %5116 = vmatpush2.bf16.msra.mxu0 %v5007
  %5117 = vmatprep.subr.bf16.mxu0 0
  %5118 = vmatpush2.bf16.msra.mxu0 %v5006
  %5119 = vmatprep.mubr.bf16.mxu0 %v4789
  %5120 = vmatmul.mubr.bf16.gmra.mxu0 %v4788
  %v5121 = vpop.f32.mrf.mxu0
  %v5122 = vadd.f32 %v5081, %v5121
  %v5123 = vpop.f32.mrf.mxu0
  %v5124 = vpop.f32.mrf.mxu0
  %v5125 = vadd.f32 %v5084, %v5124
  %v5126 = vpop.f32.mrf.mxu0
  %5127 = vdwg.mxu0
  %v5192 = vunpack.c.l.b16 %v4558
  %v5193 = vunpack.c.l.b16 %v4559
  %v5194 = vunpack.c.l.b16 %v4560
  %v5195 = vunpack.c.l.b16 %v4561
  %v5196 = vunpack.c.l.b16 %v4562
  %v5197 = vunpack.c.l.b16 %v4563
  %v5198 = vunpack.c.l.b16 %v4564
  %v5199 = vunpack.c.l.b16 %v4565
  %v5200 = vunpack.c.l.b16 %v4566
  %v5201 = vunpack.c.l.b16 %v4567
  %v5202 = vunpack.c.l.b16 %v4568
  %v5203 = vunpack.c.l.b16 %v4569
  %v5204 = vunpack.c.l.b16 %v4570
  %v5205 = vunpack.c.l.b16 %v4571
  %v5206 = vunpack.c.l.b16 %v4572
  %v5207 = vunpack.c.l.b16 %v4573
  %v5208 = vunpack.c.l.b16 %v4574
  %v5209 = vunpack.c.l.b16 %v4575
  %v5210 = vunpack.c.l.b16 %v4576
  %v5211 = vunpack.c.l.b16 %v4577
  %v5212 = vunpack.c.l.b16 %v4578
  %v5213 = vunpack.c.l.b16 %v4579
  %v5214 = vunpack.c.l.b16 %v4580
  %v5215 = vunpack.c.l.b16 %v4581
  %v5216 = vunpack.c.l.b16 %v4582
  %v5217 = vunpack.c.l.b16 %v4583
  %v5218 = vunpack.c.l.b16 %v4584
  %v5219 = vunpack.c.l.b16 %v4585
  %v5220 = vunpack.c.l.b16 %v4586
  %v5221 = vunpack.c.l.b16 %v4587
  %v5222 = vunpack.c.l.b16 %v4588
  %v5223 = vunpack.c.l.b16 %v4589
  %v5224 = vunpack.c.l.b16 %v4590
  %v5225 = vunpack.c.l.b16 %v4591
  %v5226 = vunpack.c.l.b16 %v4592
  %v5227 = vunpack.c.l.b16 %v4593
  %v5228 = vunpack.c.l.b16 %v4594
  %v5229 = vunpack.c.l.b16 %v4595
  %v5230 = vunpack.c.l.b16 %v4596
  %v5231 = vunpack.c.l.b16 %v4597
  %v5232 = vunpack.c.l.b16 %v4598
  %v5233 = vunpack.c.l.b16 %v4599
  %v5234 = vunpack.c.l.b16 %v4600
  %v5235 = vunpack.c.l.b16 %v4601
  %v5236 = vunpack.c.l.b16 %v4602
  %v5237 = vunpack.c.l.b16 %v4603
  %v5238 = vunpack.c.l.b16 %v4604
  %v5239 = vunpack.c.l.b16 %v4605
  %v5240 = vunpack.c.l.b16 %v4606
  %v5241 = vunpack.c.l.b16 %v4607
  %v5242 = vunpack.c.l.b16 %v4608
  %v5243 = vunpack.c.l.b16 %v4609
  %v5244 = vunpack.c.l.b16 %v4610
  %v5245 = vunpack.c.l.b16 %v4611
  %v5246 = vunpack.c.l.b16 %v4612
  %v5247 = vunpack.c.l.b16 %v4613
  %v5248 = vunpack.c.l.b16 %v4614
  %v5249 = vunpack.c.l.b16 %v4615
  %v5250 = vunpack.c.l.b16 %v4616
  %v5251 = vunpack.c.l.b16 %v4617
  %v5252 = vunpack.c.l.b16 %v4618
  %v5253 = vunpack.c.l.b16 %v4619
  %v5254 = vunpack.c.l.b16 %v4620
  %v5255 = vunpack.c.l.b16 %v4621
  %v5256 = vpack.c.b16 %v5193, %v5192
  %v5257 = vpack.c.b16 %v5195, %v5194
  %v5258 = vpack.c.b16 %v5197, %v5196
  %v5259 = vpack.c.b16 %v5199, %v5198
  %v5260 = vpack.c.b16 %v5201, %v5200
  %v5261 = vpack.c.b16 %v5203, %v5202
  %v5262 = vpack.c.b16 %v5205, %v5204
  %v5263 = vpack.c.b16 %v5207, %v5206
  %v5264 = vpack.c.b16 %v5209, %v5208
  %v5265 = vpack.c.b16 %v5211, %v5210
  %v5266 = vpack.c.b16 %v5213, %v5212
  %v5267 = vpack.c.b16 %v5215, %v5214
  %v5268 = vpack.c.b16 %v5217, %v5216
  %v5269 = vpack.c.b16 %v5219, %v5218
  %v5270 = vpack.c.b16 %v5221, %v5220
  %v5271 = vpack.c.b16 %v5223, %v5222
  %v5272 = vpack.c.b16 %v5225, %v5224
  %v5273 = vpack.c.b16 %v5227, %v5226
  %v5274 = vpack.c.b16 %v5229, %v5228
  %v5275 = vpack.c.b16 %v5231, %v5230
  %v5276 = vpack.c.b16 %v5233, %v5232
  %v5277 = vpack.c.b16 %v5235, %v5234
  %v5278 = vpack.c.b16 %v5237, %v5236
  %v5279 = vpack.c.b16 %v5239, %v5238
  %v5280 = vpack.c.b16 %v5241, %v5240
  %v5281 = vpack.c.b16 %v5243, %v5242
  %v5282 = vpack.c.b16 %v5245, %v5244
  %v5283 = vpack.c.b16 %v5247, %v5246
  %v5284 = vpack.c.b16 %v5249, %v5248
  %v5285 = vpack.c.b16 %v5251, %v5250
  %v5286 = vpack.c.b16 %v5253, %v5252
  %v5287 = vpack.c.b16 %v5255, %v5254
  %5320 = vmatprep.subr.bf16.mxu0 0
  %5321 = vmatpush1.bf16.msra.mxu0 %v5263
  %5322 = vmatprep.subr.bf16.mxu0 0
  %5323 = vmatpush1.bf16.msra.mxu0 %v5262
  %5324 = vmatprep.subr.bf16.mxu0 0
  %5325 = vmatpush1.bf16.msra.mxu0 %v5261
  %5326 = vmatprep.subr.bf16.mxu0 0
  %5327 = vmatpush1.bf16.msra.mxu0 %v5260
  %5328 = vmatprep.subr.bf16.mxu0 0
  %5329 = vmatpush1.bf16.msra.mxu0 %v5259
  %5330 = vmatprep.subr.bf16.mxu0 0
  %5331 = vmatpush1.bf16.msra.mxu0 %v5258
  %5332 = vmatprep.subr.bf16.mxu0 0
  %5333 = vmatpush1.bf16.msra.mxu0 %v5257
  %5334 = vmatprep.subr.bf16.mxu0 0
  %5335 = vmatpush1.bf16.msra.mxu0 %v5256
  %5336 = vmatprep.subr.bf16.mxu0 0
  %5337 = vmatpush2.bf16.msra.mxu0 %v5271
  %5338 = vmatprep.subr.bf16.mxu0 0
  %5339 = vmatpush2.bf16.msra.mxu0 %v5270
  %5340 = vmatprep.subr.bf16.mxu0 0
  %5341 = vmatpush2.bf16.msra.mxu0 %v5269
  %5342 = vmatprep.subr.bf16.mxu0 0
  %5343 = vmatpush2.bf16.msra.mxu0 %v5268
  %5344 = vmatprep.subr.bf16.mxu0 0
  %5345 = vmatpush2.bf16.msra.mxu0 %v5267
  %5346 = vmatprep.subr.bf16.mxu0 0
  %5347 = vmatpush2.bf16.msra.mxu0 %v5266
  %5348 = vmatprep.subr.bf16.mxu0 0
  %5349 = vmatpush2.bf16.msra.mxu0 %v5265
  %5350 = vmatprep.subr.bf16.mxu0 0
  %5351 = vmatpush2.bf16.msra.mxu0 %v5264
  %5352 = vmatprep.mubr.bf16.mxu0 %v4554
  %5353 = vmatmul.mubr.bf16.gmra.mxu0 %v4553
  %v5354 = vpop.f32.mrf.mxu0
  %v5355 = vadd.f32 %v5122, %v5354
  %v5356 = vpop.f32.mrf.mxu0
  %v5357 = vpop.f32.mrf.mxu0
  %v5358 = vadd.f32 %v5125, %v5357
  %v5359 = vpop.f32.mrf.mxu0
  %5360 = vdwg.mxu0
  %5361 = vmatprep.subr.bf16.mxu0 0
  %5362 = vmatpush1.bf16.msra.mxu0 %v5279
  %5363 = vmatprep.subr.bf16.mxu0 0
  %5364 = vmatpush1.bf16.msra.mxu0 %v5278
  %5365 = vmatprep.subr.bf16.mxu0 0
  %5366 = vmatpush1.bf16.msra.mxu0 %v5277
  %5367 = vmatprep.subr.bf16.mxu0 0
  %5368 = vmatpush1.bf16.msra.mxu0 %v5276
  %5369 = vmatprep.subr.bf16.mxu0 0
  %5370 = vmatpush1.bf16.msra.mxu0 %v5275
  %5371 = vmatprep.subr.bf16.mxu0 0
  %5372 = vmatpush1.bf16.msra.mxu0 %v5274
  %5373 = vmatprep.subr.bf16.mxu0 0
  %5374 = vmatpush1.bf16.msra.mxu0 %v5273
  %5375 = vmatprep.subr.bf16.mxu0 0
  %5376 = vmatpush1.bf16.msra.mxu0 %v5272
  %5377 = vmatprep.subr.bf16.mxu0 0
  %5378 = vmatpush2.bf16.msra.mxu0 %v5287
  %5379 = vmatprep.subr.bf16.mxu0 0
  %5380 = vmatpush2.bf16.msra.mxu0 %v5286
  %5381 = vmatprep.subr.bf16.mxu0 0
  %5382 = vmatpush2.bf16.msra.mxu0 %v5285
  %5383 = vmatprep.subr.bf16.mxu0 0
  %5384 = vmatpush2.bf16.msra.mxu0 %v5284
  %5385 = vmatprep.subr.bf16.mxu0 0
  %5386 = vmatpush2.bf16.msra.mxu0 %v5283
  %5387 = vmatprep.subr.bf16.mxu0 0
  %5388 = vmatpush2.bf16.msra.mxu0 %v5282
  %5389 = vmatprep.subr.bf16.mxu0 0
  %5390 = vmatpush2.bf16.msra.mxu0 %v5281
  %5391 = vmatprep.subr.bf16.mxu0 0
  %5392 = vmatpush2.bf16.msra.mxu0 %v5280
  %5393 = vmatprep.mubr.bf16.mxu0 %v4556
  %5394 = vmatmul.mubr.bf16.gmra.mxu0 %v4555
  %v5395 = vpop.f32.mrf.mxu0
  %v5396 = vadd.f32 %v5355, %v5395
  %v5397 = vpop.f32.mrf.mxu0
  %v5398 = vpop.f32.mrf.mxu0
  %v5399 = vadd.f32 %v5358, %v5398
  %v5400 = vpop.f32.mrf.mxu0
  %5401 = vdwg.mxu0
  %v5402 = vld [vmem:[%s4384 + $0x20] sm:$0xff]
  %v5403 = vld [vmem:[%s4384 + $0x28] sm:$0xff]
  %v5404 = vld [vmem:[%s4384 + $0x60] sm:$0xff]
  %v5405 = vld [vmem:[%s4384 + $0x68] sm:$0xff]
  %v5406 = vld [vmem:[%s4384 + $0xa0] sm:$0xff]
  %v5407 = vld [vmem:[%s4384 + $0xa8] sm:$0xff]
  %v5408 = vld [vmem:[%s4384 + $0xe0] sm:$0xff]
  %v5409 = vld [vmem:[%s4384 + $0xe8] sm:$0xff]
  %v5410 = vld [vmem:[%s4393 + $0x8] sm:$0xf]
  %v5412 = vlaneseq
  %v5413 = vshrl.u32 %v5412, 7
  %v5414 = vsub.s32 0, %v5413
  %v5415 = vrot.slane %v5410, %v5414
  %v5416 = vlaneseq
  %v5417 = vshrl.u32 %v5416, 7
  %v5418 = vsub.s32 1, %v5417
  %v5419 = vrot.slane %v5410, %v5418
  %v5420 = vlaneseq
  %v5421 = vshrl.u32 %v5420, 7
  %v5422 = vsub.s32 2, %v5421
  %v5423 = vrot.slane %v5410, %v5422
  %v5424 = vlaneseq
  %v5425 = vshrl.u32 %v5424, 7
  %v5426 = vsub.s32 3, %v5425
  %v5427 = vrot.slane %v5410, %v5426
  %v5440 = vunpack.c.l.b16 %v5402
  %v5441 = vunpack.c.h.b16 %v5402
  %v5442 = vunpack.c.l.b16 %v5403
  %v5443 = vunpack.c.h.b16 %v5403
  %v5444 = vunpack.c.l.b16 %v5404
  %v5445 = vunpack.c.h.b16 %v5404
  %v5446 = vunpack.c.l.b16 %v5405
  %v5447 = vunpack.c.h.b16 %v5405
  %v5448 = vunpack.c.l.b16 %v5406
  %v5449 = vunpack.c.h.b16 %v5406
  %v5450 = vunpack.c.l.b16 %v5407
  %v5451 = vunpack.c.h.b16 %v5407
  %v5452 = vunpack.c.l.b16 %v5408
  %v5453 = vunpack.c.h.b16 %v5408
  %v5454 = vunpack.c.l.b16 %v5409
  %v5455 = vunpack.c.h.b16 %v5409
  %v5456 = vpack.c.b16 %v5444, %v5440
  %v5457 = vpack.c.b16 %v5445, %v5441
  %v5458 = vpack.c.b16 %v5446, %v5442
  %v5459 = vpack.c.b16 %v5447, %v5443
  %v5460 = vpack.c.b16 %v5452, %v5448
  %v5461 = vpack.c.b16 %v5453, %v5449
  %v5462 = vpack.c.b16 %v5454, %v5450
  %v5463 = vpack.c.b16 %v5455, %v5451
  %5472 = vmatprep.subr.bf16.mxu0 0
  %5473 = vmatpush1.bf16.msra.mxu0 0
  %5474 = vmatprep.subr.bf16.mxu0 0
  %5475 = vmatpush1.bf16.msra.mxu0 0
  %5476 = vmatprep.subr.bf16.mxu0 0
  %5477 = vmatpush1.bf16.msra.mxu0 0
  %5478 = vmatprep.subr.bf16.mxu0 0
  %5479 = vmatpush1.bf16.msra.mxu0 0
  %5480 = vmatprep.subr.bf16.mxu0 0
  %5481 = vmatpush1.bf16.msra.mxu0 0
  %5482 = vmatprep.subr.bf16.mxu0 0
  %5483 = vmatpush1.bf16.msra.mxu0 0
  %5484 = vmatprep.subr.bf16.mxu0 %v5461
  %5485 = vmatpush1.bf16.msra.mxu0 %v5460
  %5486 = vmatprep.subr.bf16.mxu0 %v5457
  %5487 = vmatpush1.bf16.msra.mxu0 %v5456
  %5488 = vmatprep.subr.bf16.mxu0 0
  %5489 = vmatpush2.bf16.msra.mxu0 0
  %5490 = vmatprep.subr.bf16.mxu0 0
  %5491 = vmatpush2.bf16.msra.mxu0 0
  %5492 = vmatprep.subr.bf16.mxu0 0
  %5493 = vmatpush2.bf16.msra.mxu0 0
  %5494 = vmatprep.subr.bf16.mxu0 0
  %5495 = vmatpush2.bf16.msra.mxu0 0
  %5496 = vmatprep.subr.bf16.mxu0 0
  %5497 = vmatpush2.bf16.msra.mxu0 0
  %5498 = vmatprep.subr.bf16.mxu0 0
  %5499 = vmatpush2.bf16.msra.mxu0 0
  %5500 = vmatprep.subr.bf16.mxu0 0
  %5501 = vmatpush2.bf16.msra.mxu0 0
  %5502 = vmatprep.subr.bf16.mxu0 0
  %5503 = vmatpush2.bf16.msra.mxu0 0
  %5504 = vmatprep.mubr.bf16.mxu0 0
  %5505 = vmatmul.mubr.bf16.gmra.mxu0 %v4457
  %v5506 = vpop.f32.mrf.mxu0
  %v5507 = vadd.f32 %v5415, %v5506
  %v5508 = vpop.f32.mrf.mxu0
  %v5509 = vadd.f32 %v5419, %v5508
  %v5510 = vpop.f32.mrf.mxu0
  %v5511 = vadd.f32 %v5415, %v5510
  %v5512 = vpop.f32.mrf.mxu0
  %v5513 = vadd.f32 %v5419, %v5512
  %5514 = vdwg.mxu0
  %5515 = vmatprep.subr.bf16.mxu0 0
  %5516 = vmatpush1.bf16.msra.mxu0 0
  %5517 = vmatprep.subr.bf16.mxu0 0
  %5518 = vmatpush1.bf16.msra.mxu0 0
  %5519 = vmatprep.subr.bf16.mxu0 0
  %5520 = vmatpush1.bf16.msra.mxu0 0
  %5521 = vmatprep.subr.bf16.mxu0 0
  %5522 = vmatpush1.bf16.msra.mxu0 0
  %5523 = vmatprep.subr.bf16.mxu0 0
  %5524 = vmatpush1.bf16.msra.mxu0 0
  %5525 = vmatprep.subr.bf16.mxu0 0
  %5526 = vmatpush1.bf16.msra.mxu0 0
  %5527 = vmatprep.subr.bf16.mxu0 %v5463
  %5528 = vmatpush1.bf16.msra.mxu0 %v5462
  %5529 = vmatprep.subr.bf16.mxu0 %v5459
  %5530 = vmatpush1.bf16.msra.mxu0 %v5458
  %5531 = vmatprep.subr.bf16.mxu0 0
  %5532 = vmatpush2.bf16.msra.mxu0 0
  %5533 = vmatprep.subr.bf16.mxu0 0
  %5534 = vmatpush2.bf16.msra.mxu0 0
  %5535 = vmatprep.subr.bf16.mxu0 0
  %5536 = vmatpush2.bf16.msra.mxu0 0
  %5537 = vmatprep.subr.bf16.mxu0 0
  %5538 = vmatpush2.bf16.msra.mxu0 0
  %5539 = vmatprep.subr.bf16.mxu0 0
  %5540 = vmatpush2.bf16.msra.mxu0 0
  %5541 = vmatprep.subr.bf16.mxu0 0
  %5542 = vmatpush2.bf16.msra.mxu0 0
  %5543 = vmatprep.subr.bf16.mxu0 0
  %5544 = vmatpush2.bf16.msra.mxu0 0
  %5545 = vmatprep.subr.bf16.mxu0 0
  %5546 = vmatpush2.bf16.msra.mxu0 0
  %5547 = vmatprep.mubr.bf16.mxu0 0
  %5548 = vmatmul.mubr.bf16.gmra.mxu0 %v4457
  %v5549 = vpop.f32.mrf.mxu0
  %v5550 = vadd.f32 %v5423, %v5549
  %v5551 = vpop.f32.mrf.mxu0
  %v5552 = vadd.f32 %v5427, %v5551
  %v5553 = vpop.f32.mrf.mxu0
  %v5554 = vadd.f32 %v5423, %v5553
  %v5555 = vpop.f32.mrf.mxu0
  %v5556 = vadd.f32 %v5427, %v5555
  %5557 = vdwg.mxu0
  %v5558 = vmax.f32 %v5507, 0.0
  %v5559 = vmax.f32 %v5509, 0.0
  %v5560 = vmax.f32 %v5550, 0.0
  %v5561 = vmax.f32 %v5552, 0.0
  %v5562 = vmax.f32 %v5511, 0.0
  %v5563 = vmax.f32 %v5513, 0.0
  %v5564 = vmax.f32 %v5554, 0.0
  %v5565 = vmax.f32 %v5556, 0.0
  %v5566 = vpack.c.bf16 %v5562, %v5558
  %v5567 = vpack.c.bf16 %v5563, %v5559
  %v5568 = vpack.c.bf16 %v5564, %v5560
  %v5569 = vpack.c.bf16 %v5565, %v5561
  %v5570 = vld [vmem:[%s4557 + $0x200] sm:$0xf]
  %v5571 = vld [vmem:[%s4557 + $0x204] sm:$0xf]
  %v5572 = vld [vmem:[%s4557 + $0x208] sm:$0xf]
  %v5573 = vld [vmem:[%s4557 + $0x20c] sm:$0xf]
  %v5574 = vld [vmem:[%s4557 + $0x210] sm:$0xf]
  %v5575 = vld [vmem:[%s4557 + $0x214] sm:$0xf]
  %v5576 = vld [vmem:[%s4557 + $0x218] sm:$0xf]
  %v5577 = vld [vmem:[%s4557 + $0x21c] sm:$0xf]
  %v5578 = vld [vmem:[%s4557 + $0x220] sm:$0xf]
  %v5579 = vld [vmem:[%s4557 + $0x224] sm:$0xf]
  %v5580 = vld [vmem:[%s4557 + $0x228] sm:$0xf]
  %v5581 = vld [vmem:[%s4557 + $0x22c] sm:$0xf]
  %v5582 = vld [vmem:[%s4557 + $0x230] sm:$0xf]
  %v5583 = vld [vmem:[%s4557 + $0x234] sm:$0xf]
  %v5584 = vld [vmem:[%s4557 + $0x238] sm:$0xf]
  %v5585 = vld [vmem:[%s4557 + $0x23c] sm:$0xf]
  %v5586 = vld [vmem:[%s4557 + $0x240] sm:$0xf]
  %v5587 = vld [vmem:[%s4557 + $0x244] sm:$0xf]
  %v5588 = vld [vmem:[%s4557 + $0x248] sm:$0xf]
  %v5589 = vld [vmem:[%s4557 + $0x24c] sm:$0xf]
  %v5590 = vld [vmem:[%s4557 + $0x250] sm:$0xf]
  %v5591 = vld [vmem:[%s4557 + $0x254] sm:$0xf]
  %v5592 = vld [vmem:[%s4557 + $0x258] sm:$0xf]
  %v5593 = vld [vmem:[%s4557 + $0x25c] sm:$0xf]
  %v5594 = vld [vmem:[%s4557 + $0x260] sm:$0xf]
  %v5595 = vld [vmem:[%s4557 + $0x264] sm:$0xf]
  %v5596 = vld [vmem:[%s4557 + $0x268] sm:$0xf]
  %v5597 = vld [vmem:[%s4557 + $0x26c] sm:$0xf]
  %v5598 = vld [vmem:[%s4557 + $0x270] sm:$0xf]
  %v5599 = vld [vmem:[%s4557 + $0x274] sm:$0xf]
  %v5600 = vld [vmem:[%s4557 + $0x278] sm:$0xf]
  %v5601 = vld [vmem:[%s4557 + $0x27c] sm:$0xf]
  %v5602 = vld [vmem:[%s4557 + $0x280] sm:$0xf]
  %v5603 = vld [vmem:[%s4557 + $0x284] sm:$0xf]
  %v5604 = vld [vmem:[%s4557 + $0x288] sm:$0xf]
  %v5605 = vld [vmem:[%s4557 + $0x28c] sm:$0xf]
  %v5606 = vld [vmem:[%s4557 + $0x290] sm:$0xf]
  %v5607 = vld [vmem:[%s4557 + $0x294] sm:$0xf]
  %v5608 = vld [vmem:[%s4557 + $0x298] sm:$0xf]
  %v5609 = vld [vmem:[%s4557 + $0x29c] sm:$0xf]
  %v5610 = vld [vmem:[%s4557 + $0x2a0] sm:$0xf]
  %v5611 = vld [vmem:[%s4557 + $0x2a4] sm:$0xf]
  %v5612 = vld [vmem:[%s4557 + $0x2a8] sm:$0xf]
  %v5613 = vld [vmem:[%s4557 + $0x2ac] sm:$0xf]
  %v5614 = vld [vmem:[%s4557 + $0x2b0] sm:$0xf]
  %v5615 = vld [vmem:[%s4557 + $0x2b4] sm:$0xf]
  %v5616 = vld [vmem:[%s4557 + $0x2b8] sm:$0xf]
  %v5617 = vld [vmem:[%s4557 + $0x2bc] sm:$0xf]
  %v5618 = vld [vmem:[%s4557 + $0x2c0] sm:$0xf]
  %v5619 = vld [vmem:[%s4557 + $0x2c4] sm:$0xf]
  %v5620 = vld [vmem:[%s4557 + $0x2c8] sm:$0xf]
  %v5621 = vld [vmem:[%s4557 + $0x2cc] sm:$0xf]
  %v5622 = vld [vmem:[%s4557 + $0x2d0] sm:$0xf]
  %v5623 = vld [vmem:[%s4557 + $0x2d4] sm:$0xf]
  %v5624 = vld [vmem:[%s4557 + $0x2d8] sm:$0xf]
  %v5625 = vld [vmem:[%s4557 + $0x2dc] sm:$0xf]
  %v5626 = vld [vmem:[%s4557 + $0x2e0] sm:$0xf]
  %v5627 = vld [vmem:[%s4557 + $0x2e4] sm:$0xf]
  %v5628 = vld [vmem:[%s4557 + $0x2e8] sm:$0xf]
  %v5629 = vld [vmem:[%s4557 + $0x2ec] sm:$0xf]
  %v5630 = vld [vmem:[%s4557 + $0x2f0] sm:$0xf]
  %v5631 = vld [vmem:[%s4557 + $0x2f4] sm:$0xf]
  %v5632 = vld [vmem:[%s4557 + $0x2f8] sm:$0xf]
  %v5633 = vld [vmem:[%s4557 + $0x2fc] sm:$0xf]
  %v5698 = vunpack.c.l.b16 %v5570
  %v5699 = vunpack.c.l.b16 %v5571
  %v5700 = vunpack.c.l.b16 %v5572
  %v5701 = vunpack.c.l.b16 %v5573
  %v5702 = vunpack.c.l.b16 %v5574
  %v5703 = vunpack.c.l.b16 %v5575
  %v5704 = vunpack.c.l.b16 %v5576
  %v5705 = vunpack.c.l.b16 %v5577
  %v5706 = vunpack.c.l.b16 %v5578
  %v5707 = vunpack.c.l.b16 %v5579
  %v5708 = vunpack.c.l.b16 %v5580
  %v5709 = vunpack.c.l.b16 %v5581
  %v5710 = vunpack.c.l.b16 %v5582
  %v5711 = vunpack.c.l.b16 %v5583
  %v5712 = vunpack.c.l.b16 %v5584
  %v5713 = vunpack.c.l.b16 %v5585
  %v5714 = vunpack.c.l.b16 %v5586
  %v5715 = vunpack.c.l.b16 %v5587
  %v5716 = vunpack.c.l.b16 %v5588
  %v5717 = vunpack.c.l.b16 %v5589
  %v5718 = vunpack.c.l.b16 %v5590
  %v5719 = vunpack.c.l.b16 %v5591
  %v5720 = vunpack.c.l.b16 %v5592
  %v5721 = vunpack.c.l.b16 %v5593
  %v5722 = vunpack.c.l.b16 %v5594
  %v5723 = vunpack.c.l.b16 %v5595
  %v5724 = vunpack.c.l.b16 %v5596
  %v5725 = vunpack.c.l.b16 %v5597
  %v5726 = vunpack.c.l.b16 %v5598
  %v5727 = vunpack.c.l.b16 %v5599
  %v5728 = vunpack.c.l.b16 %v5600
  %v5729 = vunpack.c.l.b16 %v5601
  %v5730 = vunpack.c.l.b16 %v5602
  %v5731 = vunpack.c.l.b16 %v5603
  %v5732 = vunpack.c.l.b16 %v5604
  %v5733 = vunpack.c.l.b16 %v5605
  %v5734 = vunpack.c.l.b16 %v5606
  %v5735 = vunpack.c.l.b16 %v5607
  %v5736 = vunpack.c.l.b16 %v5608
  %v5737 = vunpack.c.l.b16 %v5609
  %v5738 = vunpack.c.l.b16 %v5610
  %v5739 = vunpack.c.l.b16 %v5611
  %v5740 = vunpack.c.l.b16 %v5612
  %v5741 = vunpack.c.l.b16 %v5613
  %v5742 = vunpack.c.l.b16 %v5614
  %v5743 = vunpack.c.l.b16 %v5615
  %v5744 = vunpack.c.l.b16 %v5616
  %v5745 = vunpack.c.l.b16 %v5617
  %v5746 = vunpack.c.l.b16 %v5618
  %v5747 = vunpack.c.l.b16 %v5619
  %v5748 = vunpack.c.l.b16 %v5620
  %v5749 = vunpack.c.l.b16 %v5621
  %v5750 = vunpack.c.l.b16 %v5622
  %v5751 = vunpack.c.l.b16 %v5623
  %v5752 = vunpack.c.l.b16 %v5624
  %v5753 = vunpack.c.l.b16 %v5625
  %v5754 = vunpack.c.l.b16 %v5626
  %v5755 = vunpack.c.l.b16 %v5627
  %v5756 = vunpack.c.l.b16 %v5628
  %v5757 = vunpack.c.l.b16 %v5629
  %v5758 = vunpack.c.l.b16 %v5630
  %v5759 = vunpack.c.l.b16 %v5631
  %v5760 = vunpack.c.l.b16 %v5632
  %v5761 = vunpack.c.l.b16 %v5633
  %v5762 = vpack.c.b16 %v5699, %v5698
  %v5763 = vpack.c.b16 %v5701, %v5700
  %v5764 = vpack.c.b16 %v5703, %v5702
  %v5765 = vpack.c.b16 %v5705, %v5704
  %v5766 = vpack.c.b16 %v5707, %v5706
  %v5767 = vpack.c.b16 %v5709, %v5708
  %v5768 = vpack.c.b16 %v5711, %v5710
  %v5769 = vpack.c.b16 %v5713, %v5712
  %v5770 = vpack.c.b16 %v5715, %v5714
  %v5771 = vpack.c.b16 %v5717, %v5716
  %v5772 = vpack.c.b16 %v5719, %v5718
  %v5773 = vpack.c.b16 %v5721, %v5720
  %v5774 = vpack.c.b16 %v5723, %v5722
  %v5775 = vpack.c.b16 %v5725, %v5724
  %v5776 = vpack.c.b16 %v5727, %v5726
  %v5777 = vpack.c.b16 %v5729, %v5728
  %v5778 = vpack.c.b16 %v5731, %v5730
  %v5779 = vpack.c.b16 %v5733, %v5732
  %v5780 = vpack.c.b16 %v5735, %v5734
  %v5781 = vpack.c.b16 %v5737, %v5736
  %v5782 = vpack.c.b16 %v5739, %v5738
  %v5783 = vpack.c.b16 %v5741, %v5740
  %v5784 = vpack.c.b16 %v5743, %v5742
  %v5785 = vpack.c.b16 %v5745, %v5744
  %v5786 = vpack.c.b16 %v5747, %v5746
  %v5787 = vpack.c.b16 %v5749, %v5748
  %v5788 = vpack.c.b16 %v5751, %v5750
  %v5789 = vpack.c.b16 %v5753, %v5752
  %v5790 = vpack.c.b16 %v5755, %v5754
  %v5791 = vpack.c.b16 %v5757, %v5756
  %v5792 = vpack.c.b16 %v5759, %v5758
  %v5793 = vpack.c.b16 %v5761, %v5760
  %5826 = vmatprep.subr.bf16.mxu0 0
  %5827 = vmatpush1.bf16.msra.mxu0 %v5769
  %5828 = vmatprep.subr.bf16.mxu0 0
  %5829 = vmatpush1.bf16.msra.mxu0 %v5768
  %5830 = vmatprep.subr.bf16.mxu0 0
  %5831 = vmatpush1.bf16.msra.mxu0 %v5767
  %5832 = vmatprep.subr.bf16.mxu0 0
  %5833 = vmatpush1.bf16.msra.mxu0 %v5766
  %5834 = vmatprep.subr.bf16.mxu0 0
  %5835 = vmatpush1.bf16.msra.mxu0 %v5765
  %5836 = vmatprep.subr.bf16.mxu0 0
  %5837 = vmatpush1.bf16.msra.mxu0 %v5764
  %5838 = vmatprep.subr.bf16.mxu0 0
  %5839 = vmatpush1.bf16.msra.mxu0 %v5763
  %5840 = vmatprep.subr.bf16.mxu0 0
  %5841 = vmatpush1.bf16.msra.mxu0 %v5762
  %5842 = vmatprep.subr.bf16.mxu0 0
  %5843 = vmatpush2.bf16.msra.mxu0 %v5777
  %5844 = vmatprep.subr.bf16.mxu0 0
  %5845 = vmatpush2.bf16.msra.mxu0 %v5776
  %5846 = vmatprep.subr.bf16.mxu0 0
  %5847 = vmatpush2.bf16.msra.mxu0 %v5775
  %5848 = vmatprep.subr.bf16.mxu0 0
  %5849 = vmatpush2.bf16.msra.mxu0 %v5774
  %5850 = vmatprep.subr.bf16.mxu0 0
  %5851 = vmatpush2.bf16.msra.mxu0 %v5773
  %5852 = vmatprep.subr.bf16.mxu0 0
  %5853 = vmatpush2.bf16.msra.mxu0 %v5772
  %5854 = vmatprep.subr.bf16.mxu0 0
  %5855 = vmatpush2.bf16.msra.mxu0 %v5771
  %5856 = vmatprep.subr.bf16.mxu0 0
  %5857 = vmatpush2.bf16.msra.mxu0 %v5770
  %5858 = vmatprep.mubr.bf16.mxu0 %v5567
  %5859 = vmatmul.mubr.bf16.gmra.mxu0 %v5566
  %v5860 = vpop.f32.mrf.mxu0
  %v5861 = vadd.f32 0.0, %v5860
  %v5862 = vpop.f32.mrf.mxu0
  %v5863 = vpop.f32.mrf.mxu0
  %v5864 = vadd.f32 0.0, %v5863
  %v5865 = vpop.f32.mrf.mxu0
  %5866 = vdwg.mxu0
  %5867 = vmatprep.subr.bf16.mxu0 0
  %5868 = vmatpush1.bf16.msra.mxu0 %v5785
  %5869 = vmatprep.subr.bf16.mxu0 0
  %5870 = vmatpush1.bf16.msra.mxu0 %v5784
  %5871 = vmatprep.subr.bf16.mxu0 0
  %5872 = vmatpush1.bf16.msra.mxu0 %v5783
  %5873 = vmatprep.subr.bf16.mxu0 0
  %5874 = vmatpush1.bf16.msra.mxu0 %v5782
  %5875 = vmatprep.subr.bf16.mxu0 0
  %5876 = vmatpush1.bf16.msra.mxu0 %v5781
  %5877 = vmatprep.subr.bf16.mxu0 0
  %5878 = vmatpush1.bf16.msra.mxu0 %v5780
  %5879 = vmatprep.subr.bf16.mxu0 0
  %5880 = vmatpush1.bf16.msra.mxu0 %v5779
  %5881 = vmatprep.subr.bf16.mxu0 0
  %5882 = vmatpush1.bf16.msra.mxu0 %v5778
  %5883 = vmatprep.subr.bf16.mxu0 0
  %5884 = vmatpush2.bf16.msra.mxu0 %v5793
  %5885 = vmatprep.subr.bf16.mxu0 0
  %5886 = vmatpush2.bf16.msra.mxu0 %v5792
  %5887 = vmatprep.subr.bf16.mxu0 0
  %5888 = vmatpush2.bf16.msra.mxu0 %v5791
  %5889 = vmatprep.subr.bf16.mxu0 0
  %5890 = vmatpush2.bf16.msra.mxu0 %v5790
  %5891 = vmatprep.subr.bf16.mxu0 0
  %5892 = vmatpush2.bf16.msra.mxu0 %v5789
  %5893 = vmatprep.subr.bf16.mxu0 0
  %5894 = vmatpush2.bf16.msra.mxu0 %v5788
  %5895 = vmatprep.subr.bf16.mxu0 0
  %5896 = vmatpush2.bf16.msra.mxu0 %v5787
  %5897 = vmatprep.subr.bf16.mxu0 0
  %5898 = vmatpush2.bf16.msra.mxu0 %v5786
  %5899 = vmatprep.mubr.bf16.mxu0 %v5569
  %5900 = vmatmul.mubr.bf16.gmra.mxu0 %v5568
  %v5901 = vpop.f32.mrf.mxu0
  %v5902 = vadd.f32 %v5861, %v5901
  %v5903 = vpop.f32.mrf.mxu0
  %v5904 = vpop.f32.mrf.mxu0
  %v5905 = vadd.f32 %v5864, %v5904
  %v5906 = vpop.f32.mrf.mxu0
  %5907 = vdwg.mxu0
  %v5908 = vadd.f32 %v5396, %v5902
  %v5909 = vadd.f32 %v5399, %v5905
  %v5910 = vld [vmem:[%s4384 + $0x30] sm:$0xff]
  %v5911 = vld [vmem:[%s4384 + $0x38] sm:$0xff]
  %v5912 = vld [vmem:[%s4384 + $0x70] sm:$0xff]
  %v5913 = vld [vmem:[%s4384 + $0x78] sm:$0xff]
  %v5914 = vld [vmem:[%s4384 + $0xb0] sm:$0xff]
  %v5915 = vld [vmem:[%s4384 + $0xb8] sm:$0xff]
  %v5916 = vld [vmem:[%s4384 + $0xf0] sm:$0xff]
  %v5917 = vld [vmem:[%s4384 + $0xf8] sm:$0xff]
  %v5918 = vld [vmem:[%s4393 + $0xc] sm:$0xf]
  %v5920 = vlaneseq
  %v5921 = vshrl.u32 %v5920, 7
  %v5922 = vsub.s32 0, %v5921
  %v5923 = vrot.slane %v5918, %v5922
  %v5924 = vlaneseq
  %v5925 = vshrl.u32 %v5924, 7
  %v5926 = vsub.s32 1, %v5925
  %v5927 = vrot.slane %v5918, %v5926
  %v5928 = vlaneseq
  %v5929 = vshrl.u32 %v5928, 7
  %v5930 = vsub.s32 2, %v5929
  %v5931 = vrot.slane %v5918, %v5930
  %v5932 = vlaneseq
  %v5933 = vshrl.u32 %v5932, 7
  %v5934 = vsub.s32 3, %v5933
  %v5935 = vrot.slane %v5918, %v5934
  %v5948 = vunpack.c.l.b16 %v5910
  %v5949 = vunpack.c.h.b16 %v5910
  %v5950 = vunpack.c.l.b16 %v5911
  %v5951 = vunpack.c.h.b16 %v5911
  %v5952 = vunpack.c.l.b16 %v5912
  %v5953 = vunpack.c.h.b16 %v5912
  %v5954 = vunpack.c.l.b16 %v5913
  %v5955 = vunpack.c.h.b16 %v5913
  %v5956 = vunpack.c.l.b16 %v5914
  %v5957 = vunpack.c.h.b16 %v5914
  %v5958 = vunpack.c.l.b16 %v5915
  %v5959 = vunpack.c.h.b16 %v5915
  %v5960 = vunpack.c.l.b16 %v5916
  %v5961 = vunpack.c.h.b16 %v5916
  %v5962 = vunpack.c.l.b16 %v5917
  %v5963 = vunpack.c.h.b16 %v5917
  %v5964 = vpack.c.b16 %v5952, %v5948
  %v5965 = vpack.c.b16 %v5953, %v5949
  %v5966 = vpack.c.b16 %v5954, %v5950
  %v5967 = vpack.c.b16 %v5955, %v5951
  %v5968 = vpack.c.b16 %v5960, %v5956
  %v5969 = vpack.c.b16 %v5961, %v5957
  %v5970 = vpack.c.b16 %v5962, %v5958
  %v5971 = vpack.c.b16 %v5963, %v5959
  %5980 = vmatprep.subr.bf16.mxu0 0
  %5981 = vmatpush1.bf16.msra.mxu0 0
  %5982 = vmatprep.subr.bf16.mxu0 0
  %5983 = vmatpush1.bf16.msra.mxu0 0
  %5984 = vmatprep.subr.bf16.mxu0 0
  %5985 = vmatpush1.bf16.msra.mxu0 0
  %5986 = vmatprep.subr.bf16.mxu0 0
  %5987 = vmatpush1.bf16.msra.mxu0 0
  %5988 = vmatprep.subr.bf16.mxu0 0
  %5989 = vmatpush1.bf16.msra.mxu0 0
  %5990 = vmatprep.subr.bf16.mxu0 0
  %5991 = vmatpush1.bf16.msra.mxu0 0
  %5992 = vmatprep.subr.bf16.mxu0 %v5969
  %5993 = vmatpush1.bf16.msra.mxu0 %v5968
  %5994 = vmatprep.subr.bf16.mxu0 %v5965
  %5995 = vmatpush1.bf16.msra.mxu0 %v5964
  %5996 = vmatprep.subr.bf16.mxu0 0
  %5997 = vmatpush2.bf16.msra.mxu0 0
  %5998 = vmatprep.subr.bf16.mxu0 0
  %5999 = vmatpush2.bf16.msra.mxu0 0
  %6000 = vmatprep.subr.bf16.mxu0 0
  %6001 = vmatpush2.bf16.msra.mxu0 0
  %6002 = vmatprep.subr.bf16.mxu0 0
  %6003 = vmatpush2.bf16.msra.mxu0 0
  %6004 = vmatprep.subr.bf16.mxu0 0
  %6005 = vmatpush2.bf16.msra.mxu0 0
  %6006 = vmatprep.subr.bf16.mxu0 0
  %6007 = vmatpush2.bf16.msra.mxu0 0
  %6008 = vmatprep.subr.bf16.mxu0 0
  %6009 = vmatpush2.bf16.msra.mxu0 0
  %6010 = vmatprep.subr.bf16.mxu0 0
  %6011 = vmatpush2.bf16.msra.mxu0 0
  %6012 = vmatprep.mubr.bf16.mxu0 0
  %6013 = vmatmul.mubr.bf16.gmra.mxu0 %v4457
  %v6014 = vpop.f32.mrf.mxu0
  %v6015 = vadd.f32 %v5923, %v6014
  %v6016 = vpop.f32.mrf.mxu0
  %v6017 = vadd.f32 %v5927, %v6016
  %v6018 = vpop.f32.mrf.mxu0
  %v6019 = vadd.f32 %v5923, %v6018
  %v6020 = vpop.f32.mrf.mxu0
  %v6021 = vadd.f32 %v5927, %v6020
  %6022 = vdwg.mxu0
  %6023 = vmatprep.subr.bf16.mxu0 0
  %6024 = vmatpush1.bf16.msra.mxu0 0
  %6025 = vmatprep.subr.bf16.mxu0 0
  %6026 = vmatpush1.bf16.msra.mxu0 0
  %6027 = vmatprep.subr.bf16.mxu0 0
  %6028 = vmatpush1.bf16.msra.mxu0 0
  %6029 = vmatprep.subr.bf16.mxu0 0
  %6030 = vmatpush1.bf16.msra.mxu0 0
  %6031 = vmatprep.subr.bf16.mxu0 0
  %6032 = vmatpush1.bf16.msra.mxu0 0
  %6033 = vmatprep.subr.bf16.mxu0 0
  %6034 = vmatpush1.bf16.msra.mxu0 0
  %6035 = vmatprep.subr.bf16.mxu0 %v5971
  %6036 = vmatpush1.bf16.msra.mxu0 %v5970
  %6037 = vmatprep.subr.bf16.mxu0 %v5967
  %6038 = vmatpush1.bf16.msra.mxu0 %v5966
  %6039 = vmatprep.subr.bf16.mxu0 0
  %6040 = vmatpush2.bf16.msra.mxu0 0
  %6041 = vmatprep.subr.bf16.mxu0 0
  %6042 = vmatpush2.bf16.msra.mxu0 0
  %6043 = vmatprep.subr.bf16.mxu0 0
  %6044 = vmatpush2.bf16.msra.mxu0 0
  %6045 = vmatprep.subr.bf16.mxu0 0
  %6046 = vmatpush2.bf16.msra.mxu0 0
  %6047 = vmatprep.subr.bf16.mxu0 0
  %6048 = vmatpush2.bf16.msra.mxu0 0
  %6049 = vmatprep.subr.bf16.mxu0 0
  %6050 = vmatpush2.bf16.msra.mxu0 0
  %6051 = vmatprep.subr.bf16.mxu0 0
  %6052 = vmatpush2.bf16.msra.mxu0 0
  %6053 = vmatprep.subr.bf16.mxu0 0
  %6054 = vmatpush2.bf16.msra.mxu0 0
  %6055 = vmatprep.mubr.bf16.mxu0 0
  %6056 = vmatmul.mubr.bf16.gmra.mxu0 %v4457
  %v6057 = vpop.f32.mrf.mxu0
  %v6058 = vadd.f32 %v5931, %v6057
  %v6059 = vpop.f32.mrf.mxu0
  %v6060 = vadd.f32 %v5935, %v6059
  %v6061 = vpop.f32.mrf.mxu0
  %v6062 = vadd.f32 %v5931, %v6061
  %v6063 = vpop.f32.mrf.mxu0
  %v6064 = vadd.f32 %v5935, %v6063
  %6065 = vdwg.mxu0
  %v6066 = vmax.f32 %v6015, 0.0
  %v6067 = vmax.f32 %v6017, 0.0
  %v6068 = vmax.f32 %v6058, 0.0
  %v6069 = vmax.f32 %v6060, 0.0
  %v6070 = vmax.f32 %v6019, 0.0
  %v6071 = vmax.f32 %v6021, 0.0
  %v6072 = vmax.f32 %v6062, 0.0
  %v6073 = vmax.f32 %v6064, 0.0
  %v6074 = vpack.c.bf16 %v6070, %v6066
  %v6075 = vpack.c.bf16 %v6071, %v6067
  %v6076 = vpack.c.bf16 %v6072, %v6068
  %v6077 = vpack.c.bf16 %v6073, %v6069
  %v6078 = vld [vmem:[%s4557 + $0x300] sm:$0xf]
  %v6079 = vld [vmem:[%s4557 + $0x304] sm:$0xf]
  %v6080 = vld [vmem:[%s4557 + $0x308] sm:$0xf]
  %v6081 = vld [vmem:[%s4557 + $0x30c] sm:$0xf]
  %v6082 = vld [vmem:[%s4557 + $0x310] sm:$0xf]
  %v6083 = vld [vmem:[%s4557 + $0x314] sm:$0xf]
  %v6084 = vld [vmem:[%s4557 + $0x318] sm:$0xf]
  %v6085 = vld [vmem:[%s4557 + $0x31c] sm:$0xf]
  %v6086 = vld [vmem:[%s4557 + $0x320] sm:$0xf]
  %v6087 = vld [vmem:[%s4557 + $0x324] sm:$0xf]
  %v6088 = vld [vmem:[%s4557 + $0x328] sm:$0xf]
  %v6089 = vld [vmem:[%s4557 + $0x32c] sm:$0xf]
  %v6090 = vld [vmem:[%s4557 + $0x330] sm:$0xf]
  %v6091 = vld [vmem:[%s4557 + $0x334] sm:$0xf]
  %v6092 = vld [vmem:[%s4557 + $0x338] sm:$0xf]
  %v6093 = vld [vmem:[%s4557 + $0x33c] sm:$0xf]
  %v6094 = vld [vmem:[%s4557 + $0x340] sm:$0xf]
  %v6095 = vld [vmem:[%s4557 + $0x344] sm:$0xf]
  %v6096 = vld [vmem:[%s4557 + $0x348] sm:$0xf]
  %v6097 = vld [vmem:[%s4557 + $0x34c] sm:$0xf]
  %v6098 = vld [vmem:[%s4557 + $0x350] sm:$0xf]
  %v6099 = vld [vmem:[%s4557 + $0x354] sm:$0xf]
  %v6100 = vld [vmem:[%s4557 + $0x358] sm:$0xf]
  %v6101 = vld [vmem:[%s4557 + $0x35c] sm:$0xf]
  %v6102 = vld [vmem:[%s4557 + $0x360] sm:$0xf]
  %v6103 = vld [vmem:[%s4557 + $0x364] sm:$0xf]
  %v6104 = vld [vmem:[%s4557 + $0x368] sm:$0xf]
  %v6105 = vld [vmem:[%s4557 + $0x36c] sm:$0xf]
  %v6106 = vld [vmem:[%s4557 + $0x370] sm:$0xf]
  %v6107 = vld [vmem:[%s4557 + $0x374] sm:$0xf]
  %v6108 = vld [vmem:[%s4557 + $0x378] sm:$0xf]
  %v6109 = vld [vmem:[%s4557 + $0x37c] sm:$0xf]
  %v6110 = vld [vmem:[%s4557 + $0x380] sm:$0xf]
  %v6111 = vld [vmem:[%s4557 + $0x384] sm:$0xf]
  %v6112 = vld [vmem:[%s4557 + $0x388] sm:$0xf]
  %v6113 = vld [vmem:[%s4557 + $0x38c] sm:$0xf]
  %v6114 = vld [vmem:[%s4557 + $0x390] sm:$0xf]
  %v6115 = vld [vmem:[%s4557 + $0x394] sm:$0xf]
  %v6116 = vld [vmem:[%s4557 + $0x398] sm:$0xf]
  %v6117 = vld [vmem:[%s4557 + $0x39c] sm:$0xf]
  %v6118 = vld [vmem:[%s4557 + $0x3a0] sm:$0xf]
  %v6119 = vld [vmem:[%s4557 + $0x3a4] sm:$0xf]
  %v6120 = vld [vmem:[%s4557 + $0x3a8] sm:$0xf]
  %v6121 = vld [vmem:[%s4557 + $0x3ac] sm:$0xf]
  %v6122 = vld [vmem:[%s4557 + $0x3b0] sm:$0xf]
  %v6123 = vld [vmem:[%s4557 + $0x3b4] sm:$0xf]
  %v6124 = vld [vmem:[%s4557 + $0x3b8] sm:$0xf]
  %v6125 = vld [vmem:[%s4557 + $0x3bc] sm:$0xf]
  %v6126 = vld [vmem:[%s4557 + $0x3c0] sm:$0xf]
  %v6127 = vld [vmem:[%s4557 + $0x3c4] sm:$0xf]
  %v6128 = vld [vmem:[%s4557 + $0x3c8] sm:$0xf]
  %v6129 = vld [vmem:[%s4557 + $0x3cc] sm:$0xf]
  %v6130 = vld [vmem:[%s4557 + $0x3d0] sm:$0xf]
  %v6131 = vld [vmem:[%s4557 + $0x3d4] sm:$0xf]
  %v6132 = vld [vmem:[%s4557 + $0x3d8] sm:$0xf]
  %v6133 = vld [vmem:[%s4557 + $0x3dc] sm:$0xf]
  %v6134 = vld [vmem:[%s4557 + $0x3e0] sm:$0xf]
  %v6135 = vld [vmem:[%s4557 + $0x3e4] sm:$0xf]
  %v6136 = vld [vmem:[%s4557 + $0x3e8] sm:$0xf]
  %v6137 = vld [vmem:[%s4557 + $0x3ec] sm:$0xf]
  %v6138 = vld [vmem:[%s4557 + $0x3f0] sm:$0xf]
  %v6139 = vld [vmem:[%s4557 + $0x3f4] sm:$0xf]
  %v6140 = vld [vmem:[%s4557 + $0x3f8] sm:$0xf]
  %v6141 = vld [vmem:[%s4557 + $0x3fc] sm:$0xf]
  %v6206 = vunpack.c.l.b16 %v6078
  %v6207 = vunpack.c.l.b16 %v6079
  %v6208 = vunpack.c.l.b16 %v6080
  %v6209 = vunpack.c.l.b16 %v6081
  %v6210 = vunpack.c.l.b16 %v6082
  %v6211 = vunpack.c.l.b16 %v6083
  %v6212 = vunpack.c.l.b16 %v6084
  %v6213 = vunpack.c.l.b16 %v6085
  %v6214 = vunpack.c.l.b16 %v6086
  %v6215 = vunpack.c.l.b16 %v6087
  %v6216 = vunpack.c.l.b16 %v6088
  %v6217 = vunpack.c.l.b16 %v6089
  %v6218 = vunpack.c.l.b16 %v6090
  %v6219 = vunpack.c.l.b16 %v6091
  %v6220 = vunpack.c.l.b16 %v6092
  %v6221 = vunpack.c.l.b16 %v6093
  %v6222 = vunpack.c.l.b16 %v6094
  %v6223 = vunpack.c.l.b16 %v6095
  %v6224 = vunpack.c.l.b16 %v6096
  %v6225 = vunpack.c.l.b16 %v6097
  %v6226 = vunpack.c.l.b16 %v6098
  %v6227 = vunpack.c.l.b16 %v6099
  %v6228 = vunpack.c.l.b16 %v6100
  %v6229 = vunpack.c.l.b16 %v6101
  %v6230 = vunpack.c.l.b16 %v6102
  %v6231 = vunpack.c.l.b16 %v6103
  %v6232 = vunpack.c.l.b16 %v6104
  %v6233 = vunpack.c.l.b16 %v6105
  %v6234 = vunpack.c.l.b16 %v6106
  %v6235 = vunpack.c.l.b16 %v6107
  %v6236 = vunpack.c.l.b16 %v6108
  %v6237 = vunpack.c.l.b16 %v6109
  %v6238 = vunpack.c.l.b16 %v6110
  %v6239 = vunpack.c.l.b16 %v6111
  %v6240 = vunpack.c.l.b16 %v6112
  %v6241 = vunpack.c.l.b16 %v6113
  %v6242 = vunpack.c.l.b16 %v6114
  %v6243 = vunpack.c.l.b16 %v6115
  %v6244 = vunpack.c.l.b16 %v6116
  %v6245 = vunpack.c.l.b16 %v6117
  %v6246 = vunpack.c.l.b16 %v6118
  %v6247 = vunpack.c.l.b16 %v6119
  %v6248 = vunpack.c.l.b16 %v6120
  %v6249 = vunpack.c.l.b16 %v6121
  %v6250 = vunpack.c.l.b16 %v6122
  %v6251 = vunpack.c.l.b16 %v6123
  %v6252 = vunpack.c.l.b16 %v6124
  %v6253 = vunpack.c.l.b16 %v6125
  %v6254 = vunpack.c.l.b16 %v6126
  %v6255 = vunpack.c.l.b16 %v6127
  %v6256 = vunpack.c.l.b16 %v6128
  %v6257 = vunpack.c.l.b16 %v6129
  %v6258 = vunpack.c.l.b16 %v6130
  %v6259 = vunpack.c.l.b16 %v6131
  %v6260 = vunpack.c.l.b16 %v6132
  %v6261 = vunpack.c.l.b16 %v6133
  %v6262 = vunpack.c.l.b16 %v6134
  %v6263 = vunpack.c.l.b16 %v6135
  %v6264 = vunpack.c.l.b16 %v6136
  %v6265 = vunpack.c.l.b16 %v6137
  %v6266 = vunpack.c.l.b16 %v6138
  %v6267 = vunpack.c.l.b16 %v6139
  %v6268 = vunpack.c.l.b16 %v6140
  %v6269 = vunpack.c.l.b16 %v6141
  %v6270 = vpack.c.b16 %v6207, %v6206
  %v6271 = vpack.c.b16 %v6209, %v6208
  %v6272 = vpack.c.b16 %v6211, %v6210
  %v6273 = vpack.c.b16 %v6213, %v6212
  %v6274 = vpack.c.b16 %v6215, %v6214
  %v6275 = vpack.c.b16 %v6217, %v6216
  %v6276 = vpack.c.b16 %v6219, %v6218
  %v6277 = vpack.c.b16 %v6221, %v6220
  %v6278 = vpack.c.b16 %v6223, %v6222
  %v6279 = vpack.c.b16 %v6225, %v6224
  %v6280 = vpack.c.b16 %v6227, %v6226
  %v6281 = vpack.c.b16 %v6229, %v6228
  %v6282 = vpack.c.b16 %v6231, %v6230
  %v6283 = vpack.c.b16 %v6233, %v6232
  %v6284 = vpack.c.b16 %v6235, %v6234
  %v6285 = vpack.c.b16 %v6237, %v6236
  %v6286 = vpack.c.b16 %v6239, %v6238
  %v6287 = vpack.c.b16 %v6241, %v6240
  %v6288 = vpack.c.b16 %v6243, %v6242
  %v6289 = vpack.c.b16 %v6245, %v6244
  %v6290 = vpack.c.b16 %v6247, %v6246
  %v6291 = vpack.c.b16 %v6249, %v6248
  %v6292 = vpack.c.b16 %v6251, %v6250
  %v6293 = vpack.c.b16 %v6253, %v6252
  %v6294 = vpack.c.b16 %v6255, %v6254
  %v6295 = vpack.c.b16 %v6257, %v6256
  %v6296 = vpack.c.b16 %v6259, %v6258
  %v6297 = vpack.c.b16 %v6261, %v6260
  %v6298 = vpack.c.b16 %v6263, %v6262
  %v6299 = vpack.c.b16 %v6265, %v6264
  %v6300 = vpack.c.b16 %v6267, %v6266
  %v6301 = vpack.c.b16 %v6269, %v6268
  %6334 = vmatprep.subr.bf16.mxu0 0
  %6335 = vmatpush1.bf16.msra.mxu0 %v6277
  %6336 = vmatprep.subr.bf16.mxu0 0
  %6337 = vmatpush1.bf16.msra.mxu0 %v6276
  %6338 = vmatprep.subr.bf16.mxu0 0
  %6339 = vmatpush1.bf16.msra.mxu0 %v6275
  %6340 = vmatprep.subr.bf16.mxu0 0
  %6341 = vmatpush1.bf16.msra.mxu0 %v6274
  %6342 = vmatprep.subr.bf16.mxu0 0
  %6343 = vmatpush1.bf16.msra.mxu0 %v6273
  %6344 = vmatprep.subr.bf16.mxu0 0
  %6345 = vmatpush1.bf16.msra.mxu0 %v6272
  %6346 = vmatprep.subr.bf16.mxu0 0
  %6347 = vmatpush1.bf16.msra.mxu0 %v6271
  %6348 = vmatprep.subr.bf16.mxu0 0
  %6349 = vmatpush1.bf16.msra.mxu0 %v6270
  %6350 = vmatprep.subr.bf16.mxu0 0
  %6351 = vmatpush2.bf16.msra.mxu0 %v6285
  %6352 = vmatprep.subr.bf16.mxu0 0
  %6353 = vmatpush2.bf16.msra.mxu0 %v6284
  %6354 = vmatprep.subr.bf16.mxu0 0
  %6355 = vmatpush2.bf16.msra.mxu0 %v6283
  %6356 = vmatprep.subr.bf16.mxu0 0
  %6357 = vmatpush2.bf16.msra.mxu0 %v6282
  %6358 = vmatprep.subr.bf16.mxu0 0
  %6359 = vmatpush2.bf16.msra.mxu0 %v6281
  %6360 = vmatprep.subr.bf16.mxu0 0
  %6361 = vmatpush2.bf16.msra.mxu0 %v6280
  %6362 = vmatprep.subr.bf16.mxu0 0
  %6363 = vmatpush2.bf16.msra.mxu0 %v6279
  %6364 = vmatprep.subr.bf16.mxu0 0
  %6365 = vmatpush2.bf16.msra.mxu0 %v6278
  %6366 = vmatprep.mubr.bf16.mxu0 %v6075
  %6367 = vmatmul.mubr.bf16.gmra.mxu0 %v6074
  %v6368 = vpop.f32.mrf.mxu0
  %v6369 = vadd.f32 0.0, %v6368
  %v6370 = vpop.f32.mrf.mxu0
  %v6371 = vpop.f32.mrf.mxu0
  %v6372 = vadd.f32 0.0, %v6371
  %v6373 = vpop.f32.mrf.mxu0
  %6374 = vdwg.mxu0
  %6375 = vmatprep.subr.bf16.mxu0 0
  %6376 = vmatpush1.bf16.msra.mxu0 %v6293
  %6377 = vmatprep.subr.bf16.mxu0 0
  %6378 = vmatpush1.bf16.msra.mxu0 %v6292
  %6379 = vmatprep.subr.bf16.mxu0 0
  %6380 = vmatpush1.bf16.msra.mxu0 %v6291
  %6381 = vmatprep.subr.bf16.mxu0 0
  %6382 = vmatpush1.bf16.msra.mxu0 %v6290
  %6383 = vmatprep.subr.bf16.mxu0 0
  %6384 = vmatpush1.bf16.msra.mxu0 %v6289
  %6385 = vmatprep.subr.bf16.mxu0 0
  %6386 = vmatpush1.bf16.msra.mxu0 %v6288
  %6387 = vmatprep.subr.bf16.mxu0 0
  %6388 = vmatpush1.bf16.msra.mxu0 %v6287
  %6389 = vmatprep.subr.bf16.mxu0 0
  %6390 = vmatpush1.bf16.msra.mxu0 %v6286
  %6391 = vmatprep.subr.bf16.mxu0 0
  %6392 = vmatpush2.bf16.msra.mxu0 %v6301
  %6393 = vmatprep.subr.bf16.mxu0 0
  %6394 = vmatpush2.bf16.msra.mxu0 %v6300
  %6395 = vmatprep.subr.bf16.mxu0 0
  %6396 = vmatpush2.bf16.msra.mxu0 %v6299
  %6397 = vmatprep.subr.bf16.mxu0 0
  %6398 = vmatpush2.bf16.msra.mxu0 %v6298
  %6399 = vmatprep.subr.bf16.mxu0 0
  %6400 = vmatpush2.bf16.msra.mxu0 %v6297
  %6401 = vmatprep.subr.bf16.mxu0 0
  %6402 = vmatpush2.bf16.msra.mxu0 %v6296
  %6403 = vmatprep.subr.bf16.mxu0 0
  %6404 = vmatpush2.bf16.msra.mxu0 %v6295
  %6405 = vmatprep.subr.bf16.mxu0 0
  %6406 = vmatpush2.bf16.msra.mxu0 %v6294
  %6407 = vmatprep.mubr.bf16.mxu0 %v6077
  %6408 = vmatmul.mubr.bf16.gmra.mxu0 %v6076
  %v6409 = vpop.f32.mrf.mxu0
  %v6410 = vadd.f32 %v6369, %v6409
  %v6411 = vpop.f32.mrf.mxu0
  %v6412 = vpop.f32.mrf.mxu0
  %v6413 = vadd.f32 %v6372, %v6412
  %v6414 = vpop.f32.mrf.mxu0
  %6415 = vdwg.mxu0
  %v6416 = vadd.f32 %v5908, %v6410
  %v6417 = vadd.f32 %v5909, %v6413
  %v6418 = vadd.f32 %v4381, %v6416
  %v6419 = vadd.f32 %v4382, %v6417
  %s6420 = scalar_lea.vmem %s8, 1
  %v6421 = vld [vmem:[%s6420] sm:$0x1]
  %v6423 = vlaneseq
  %v6424 = vshrl.u32 %v6423, 7
  %v6425 = vsub.s32 0, %v6424
  %v6426 = vrot.slane %v6421, %v6425
  %v6428 = vadd.f32 %v6418, %v6426
  %v6429 = vadd.f32 %v6419, %v6426
  %s6430 = scalar_lea.vmem %s11, 1
  %v6431 = vld [vmem:[%s6430] sm:$0x1]
  %s6432 = scalar_lea.vmem %s12, 1
  %v6433 = vld [vmem:[%s6432] sm:$0x1]
  %v6434 = vsel %vm80, %v6428, 0.0
  %6435 = vadd.xlane.f32.xlu0 %v6434
  %v6436 = vpop.xlane.xlu0 %6435
  %v6437 = vsel %vm80, %v6429, 0.0
  %6438 = vadd.xlane.f32.xlu0 %v6437
  %v6439 = vpop.xlane.xlu0 %6438
  %v6440 = vmul.f32 %v6436, %v1139
  %v6441 = vmul.f32 %v6439, %v1139
  %v6442 = vsub.f32 %v6428, %v6440
  %v6443 = vsub.f32 %v6429, %v6441
  %v6444 = vmul.f32 %v6442, %v6442
  %v6445 = vmul.f32 %v6443, %v6443
  %v6446 = vsel %vm80, %v6444, 0.0
  %6447 = vadd.xlane.f32.xlu0 %v6446
  %v6448 = vpop.xlane.xlu0 %6447
  %v6449 = vsel %vm80, %v6445, 0.0
  %6450 = vadd.xlane.f32.xlu0 %v6449
  %v6451 = vpop.xlane.xlu0 %6450
  %v6452 = vmul.f32 %v6448, %v1139
  %v6453 = vmul.f32 %v6451, %v1139
  %v6454 = vadd.f32 %v6452, 1e-05
  %v6455 = vadd.f32 %v6453, 1e-05
  %v6456 = vrsqrt.pop %v6454
  %v6457 = vrsqrt.pop %v6455
  %v6458 = vmul.f32 %v6442, %v6456
  %v6459 = vmul.f32 %v6443, %v6457
  %v6461 = vlaneseq
  %v6462 = vshrl.u32 %v6461, 7
  %v6463 = vsub.s32 0, %v6462
  %v6464 = vrot.slane %v6431, %v6463
  %v6466 = vmul.f32 %v6458, %v6464
  %v6467 = vmul.f32 %v6459, %v6464
  %v6469 = vlaneseq
  %v6470 = vshrl.u32 %v6469, 7
  %v6471 = vsub.s32 0, %v6470
  %v6472 = vrot.slane %v6433, %v6471
  %v6474 = vadd.f32 %v6466, %v6472
  %v6475 = vadd.f32 %v6467, %v6472
  %v6476 = vpack.c.bf16 %v6475, %v6474
  %v6477 = vld [vmem:[%s13] sm:$0xff]
  %v6478 = vld [vmem:[%s13 + $0x8] sm:$0xff]
  %v6479 = vld [vmem:[%s13 + $0x10] sm:$0xff]
  %v6480 = vld [vmem:[%s13 + $0x18] sm:$0xff]
  %v6485 = vunpack.c.l.b16 %v6477
  %v6486 = vunpack.c.h.b16 %v6477
  %v6487 = vunpack.c.l.b16 %v6478
  %v6488 = vunpack.c.h.b16 %v6478
  %v6489 = vunpack.c.l.b16 %v6479
  %v6490 = vunpack.c.h.b16 %v6479
  %v6491 = vunpack.c.l.b16 %v6480
  %v6492 = vunpack.c.h.b16 %v6480
  %v6493 = vpack.c.b16 %v6487, %v6485
  %v6494 = vpack.c.b16 %v6488, %v6486
  %v6495 = vpack.c.b16 %v6491, %v6489
  %v6496 = vpack.c.b16 %v6492, %v6490
  %v6502 = vsel %vm80, %v6476, 0
  %6504 = vmatprep.subr.bf16.mxu0 0
  %6505 = vmatpush1.bf16.msra.mxu0 0
  %6506 = vmatprep.subr.bf16.mxu0 0
  %6507 = vmatpush1.bf16.msra.mxu0 0
  %6508 = vmatprep.subr.bf16.mxu0 0
  %6509 = vmatpush1.bf16.msra.mxu0 0
  %6510 = vmatprep.subr.bf16.mxu0 0
  %6511 = vmatpush1.bf16.msra.mxu0 0
  %6512 = vmatprep.subr.bf16.mxu0 0
  %6513 = vmatpush1.bf16.msra.mxu0 0
  %6514 = vmatprep.subr.bf16.mxu0 0
  %6515 = vmatpush1.bf16.msra.mxu0 0
  %6516 = vmatprep.subr.bf16.mxu0 %v6496
  %6517 = vmatpush1.bf16.msra.mxu0 %v6495
  %6518 = vmatprep.subr.bf16.mxu0 %v6494
  %6519 = vmatpush1.bf16.msra.mxu0 %v6493
  %6520 = vmatprep.subr.bf16.mxu0 0
  %6521 = vmatpush2.bf16.msra.mxu0 0
  %6522 = vmatprep.subr.bf16.mxu0 0
  %6523 = vmatpush2.bf16.msra.mxu0 0
  %6524 = vmatprep.subr.bf16.mxu0 0
  %6525 = vmatpush2.bf16.msra.mxu0 0
  %6526 = vmatprep.subr.bf16.mxu0 0
  %6527 = vmatpush2.bf16.msra.mxu0 0
  %6528 = vmatprep.subr.bf16.mxu0 0
  %6529 = vmatpush2.bf16.msra.mxu0 0
  %6530 = vmatprep.subr.bf16.mxu0 0
  %6531 = vmatpush2.bf16.msra.mxu0 0
  %6532 = vmatprep.subr.bf16.mxu0 0
  %6533 = vmatpush2.bf16.msra.mxu0 0
  %6534 = vmatprep.subr.bf16.mxu0 0
  %6535 = vmatpush2.bf16.msra.mxu0 0
  %6536 = vmatprep.mubr.bf16.mxu0 0
  %6537 = vmatmul.mubr.bf16.gmra.mxu0 %v6502
  %v6538 = vpop.f32.mrf.mxu0
  %v6539 = vadd.f32 0.0, %v6538
  %v6540 = vpop.f32.mrf.mxu0
  %v6541 = vadd.f32 0.0, %v6540
  %v6542 = vpop.f32.mrf.mxu0
  %v6543 = vadd.f32 0.0, %v6542
  %v6544 = vpop.f32.mrf.mxu0
  %v6545 = vadd.f32 0.0, %v6544
  %6546 = vdwg.mxu0
  %6547 = vst [vmem:[%s14] sm:$0xff] %v6539
  %6548 = vst [vmem:[%s14 + $0x8] sm:$0xff] %v6541
  %6549 = vst [vmem:[%s14 + $0x10] sm:$0xff] %v6543
  %6550 = vst [vmem:[%s14 + $0x18] sm:$0xff] %v6545
  // Predicated region
  $region58: #{forward.1} parent=0 // pred_check
    _
  $region59: #{forward.1} parent=0 // pred_check_branch
    %6552 = sbr.rel (0) target = $region61
  $region60: #{forward.1} parent=0 // pred_region
    _
  $region61: #{forward.1} parent=0 // pred_fallthru
    _
  // Predicated region
  $region62: #{forward.1} parent=0 // pred_check
    _
  $region63: #{forward.1} parent=0 // pred_check_branch
    %6554 = sbr.rel (0) target = $region65
  $region64: #{forward.1} parent=0 // pred_region
    _
  $region65: #{forward.1} parent=0 // pred_fallthru
    _

</llo_original>
